<compile_context>
chip_gen: v7x
topology: tpu7x:2x2x1
jax: 0.10.0
libtpu: 0.0.40
codegen_flags: <defaults>
</compile_context>

<pallas_src>
import math
import jax
import jax.numpy as jnp
from jax.experimental import pallas as pl
from jax.experimental.pallas import tpu as pltpu

NUM_HEADS = 4
D_MODEL = 32
HEAD_DIM = D_MODEL // NUM_HEADS
D_FF = 64
N_LAYERS = 2
LN_EPS = 1e-5
EXACT_SOFTMAX_DIV = False   # set True for an exact softmax divide if tolerance tightens


def _layernorm(x, g, b, eps=LN_EPS):
    # x: (rows, D), g/b: (1, D)
    mu = jnp.mean(x, axis=-1, keepdims=True)
    var = jnp.mean((x - mu) ** 2, axis=-1, keepdims=True)
    return (x - mu) * jax.lax.rsqrt(var + eps) * g + b


def fused_encoder_kernel(x_ref, mask_ref, wqkv_ref, bqkv_ref, wo_ref,
                         w1_ref, w2_ref, bmisc_ref, ln_ref, o_ref):
    B, _, S = mask_ref.shape
    xf = x_ref[...]                                   # (B*S, D) token-major activations

    # ---- mask hoisted out of all loops: one additive bias, broadcast once per batch ----
    mb = jnp.where(mask_ref[...] > 0.0, 0.0, -1e9).astype(jnp.float32)      # (B, 1, S)
    mask_bias = [jnp.broadcast_to(mb[b], (S, S)) for b in range(B)]          # hoisted

    for l in range(N_LAYERS):             # static unroll; all weights stay VMEM-resident
        # ---- sublayer 1: x + SelfAttn(LayerNorm(x))  (dropout = identity in eval) ----
        ln1 = ln_ref[2 * l]                                   # (2, D): row0 = gain, row1 = bias
        y = _layernorm(xf, ln1[0:1, :], ln1[1:2, :])          # (B*S, D)

        # Per-head projections: head indexed on a leading weight axis (free) -> no lane slices.
        # 1/sqrt(head_dim) is pre-folded into wq/bq host-side.
        q_h, k_h, v_h = [], [], []
        for h in range(NUM_HEADS):
            q_h.append(jnp.dot(y, wqkv_ref[l, 0, h], preferred_element_type=jnp.float32)
                       + bqkv_ref[l, 0, h])
            k_h.append(jnp.dot(y, wqkv_ref[l, 1, h], preferred_element_type=jnp.float32)
                       + bqkv_ref[l, 1, h])
            v_h.append(jnp.dot(y, wqkv_ref[l, 2, h], preferred_element_type=jnp.float32)
                       + bqkv_ref[l, 2, h])

        attn_rows = []
        for b in range(B):                # static unroll; sublane-tile-aligned row slices
            r = slice(b * S, (b + 1) * S)
            acc = None
            for h in range(NUM_HEADS):
                qb, kb, vb = q_h[h][r], k_h[h][r], v_h[h][r]                 # (S, HD)
                s = jnp.dot(qb, kb.T, preferred_element_type=jnp.float32)    # (S, S)
                s = s + mask_bias[b]
                s = s - jnp.max(s, axis=-1, keepdims=True)
                p = jnp.exp(s)
                den = jnp.sum(p, axis=-1, keepdims=True)
                p = p / den if EXACT_SOFTMAX_DIV else p * pl.reciprocal(den, approx=True)
                head = jnp.dot(p, vb, preferred_element_type=jnp.float32)    # (S, HD)
                # concat-then-(@ W_o)  ==  sum_h head_h @ W_o[h]
                contrib = jnp.dot(head, wo_ref[l, h], preferred_element_type=jnp.float32)
                acc = contrib if acc is None else acc + contrib
            attn_rows.append(acc)
        attn = attn_rows[0] if B == 1 else jnp.concatenate(attn_rows, axis=0)  # (B*S, D)

        bm = bmisc_ref[l]                                     # (1, D + D_FF + D) packed biases
        bo = bm[:, 0:D_MODEL]
        b1 = bm[:, D_MODEL:D_MODEL + D_FF]
        b2 = bm[:, D_MODEL + D_FF:]
        xf = xf + attn + bo

        # ---- sublayer 2: x + FFN(LayerNorm(x)) ----
        ln2 = ln_ref[2 * l + 1]
        y2 = _layernorm(xf, ln2[0:1, :], ln2[1:2, :])
        h1 = jnp.maximum(jnp.dot(y2, w1_ref[l], preferred_element_type=jnp.float32) + b1, 0.0)
        xf = xf + jnp.dot(h1, w2_ref[l], preferred_element_type=jnp.float32) + b2

    # ---- final LayerNorm (fused into the same kernel) ----
    lnf = ln_ref[2 * N_LAYERS]
    o_ref[...] = _layernorm(xf, lnf[0:1, :], lnf[1:2, :])


def transformer_encoder(x, mask, layer_params, norm_g, norm_b):
    """Fused: all encoder layers + final LayerNorm in one single-step pallas_call."""
    B, S, D = x.shape
    assert D == D_MODEL
    scale = 1.0 / math.sqrt(HEAD_DIM)

    # ---- host-side weight packing (one-time prep; 9 operands instead of 22) ----
    def heads_w(w):   # (D, D) -> (H, D, HD): split output columns per head
        return w.reshape(D_MODEL, NUM_HEADS, HEAD_DIM).transpose(1, 0, 2)

    def heads_b(b):   # (1, D) -> (H, 1, HD)
        return b.reshape(NUM_HEADS, 1, HEAD_DIM)

    w_qkv = jnp.stack([jnp.stack([heads_w(p["wq"]) * scale,      # score scale folded into Q
                                  heads_w(p["wk"]),
                                  heads_w(p["wv"])]) for p in layer_params])   # (L,3,H,D,HD)
    b_qkv = jnp.stack([jnp.stack([heads_b(p["bq"]) * scale,
                                  heads_b(p["bk"]),
                                  heads_b(p["bv"])]) for p in layer_params])   # (L,3,H,1,HD)
    w_o = jnp.stack([p["wo"].reshape(NUM_HEADS, HEAD_DIM, D_MODEL)
                     for p in layer_params])                                   # (L,H,HD,D)
    w_ff1 = jnp.stack([p["w1"] for p in layer_params])                         # (L,D,D_FF)
    w_ff2 = jnp.stack([p["w2"] for p in layer_params])                         # (L,D_FF,D)
    b_misc = jnp.stack([jnp.concatenate([p["bo"], p["fb1"], p["fb2"]], axis=-1)
                        for p in layer_params])                                # (L,1,128)
    ln_rows = []
    for p in layer_params:
        ln_rows.append(jnp.concatenate([p["ln1g"], p["ln1b"]], axis=0))        # (2,D)
        ln_rows.append(jnp.concatenate([p["ln2g"], p["ln2b"]], axis=0))
    ln_rows.append(jnp.concatenate([norm_g, norm_b], axis=0))
    ln = jnp.stack(ln_rows)                                                    # (2L+1,2,D)

    x_flat = x.reshape(B * S, D)          # pure metadata reshape outside the kernel
    args = (x_flat, mask, w_qkv, b_qkv, w_o, w_ff1, w_ff2, b_misc, ln)

    def full_spec(shape):
        n = len(shape)
        return pl.BlockSpec(shape, lambda i, _n=n: (0,) * _n)   # whole array, VMEM-resident

    out = pl.pallas_call(
        fused_encoder_kernel,
        out_shape=jax.ShapeDtypeStruct((B * S, D), jnp.float32),
        grid=(1,),                                             # single collapsed grid step
        in_specs=[full_spec(a.shape) for a in args],
        out_specs=full_spec((B * S, D)),
        compiler_params=pltpu.CompilerParams(dimension_semantics=("arbitrary",)),
    )(*args)
    return out.reshape(B, S, D)


# ------------------------ deterministic parameter init ------------------------
def init_layer_params(key):
    def lin(k, fi, fo):
        kw, kb = jax.random.split(k)
        w = jax.random.normal(kw, (fi, fo), jnp.float32) / math.sqrt(fi)
        b = jax.random.normal(kb, (1, fo), jnp.float32) * 0.02
        return w, b

    ks = jax.random.split(key, 6)
    wq, bq = lin(ks[0], D_MODEL, D_MODEL)
    wk, bk = lin(ks[1], D_MODEL, D_MODEL)
    wv, bv = lin(ks[2], D_MODEL, D_MODEL)
    wo, bo = lin(ks[3], D_MODEL, D_MODEL)
    w1, fb1 = lin(ks[4], D_MODEL, D_FF)
    w2, fb2 = lin(ks[5], D_FF, D_MODEL)
    ones = jnp.ones((1, D_MODEL), jnp.float32)
    zeros = jnp.zeros((1, D_MODEL), jnp.float32)
    return dict(ln1g=ones, ln1b=zeros, wq=wq, bq=bq, wk=wk, bk=bk, wv=wv, bv=bv,
                wo=wo, bo=bo, ln2g=ones, ln2b=zeros, w1=w1, fb1=fb1, w2=w2, fb2=fb2)


# ------------------------ pure-JAX reference (for checking) ------------------------
HP = jax.lax.Precision.HIGHEST


def _ref_ln(x, g, b, eps=LN_EPS):
    mu = jnp.mean(x, axis=-1, keepdims=True)
    var = jnp.mean((x - mu) ** 2, axis=-1, keepdims=True)
    return (x - mu) * jax.lax.rsqrt(var + eps) * g + b


def _ref_layer(x, mask, p):
    B, S, D = x.shape
    y = _ref_ln(x, p["ln1g"], p["ln1b"])
    q = jnp.matmul(y, p["wq"], precision=HP) + p["bq"]
    k = jnp.matmul(y, p["wk"], precision=HP) + p["bk"]
    v = jnp.matmul(y, p["wv"], precision=HP) + p["bv"]

    def split(t):
        return t.reshape(B, S, NUM_HEADS, HEAD_DIM).transpose(0, 2, 1, 3)

    qh, kh, vh = split(q), split(k), split(v)
    s = jnp.matmul(qh, kh.transpose(0, 1, 3, 2), precision=HP) / math.sqrt(HEAD_DIM)
    s = jnp.where(mask[:, :, None, :] > 0, s, jnp.float32(-1e9))
    pa = jax.nn.softmax(s, axis=-1)
    o = jnp.matmul(pa, vh, precision=HP).transpose(0, 2, 1, 3).reshape(B, S, D)
    x = x + jnp.matmul(o, p["wo"], precision=HP) + p["bo"]

    y2 = _ref_ln(x, p["ln2g"], p["ln2b"])
    h1 = jax.nn.relu(jnp.matmul(y2, p["w1"], precision=HP) + p["fb1"])
    return x + jnp.matmul(h1, p["w2"], precision=HP) + p["fb2"]


def ref_transformer_encoder(x, mask, layer_params, norm_g, norm_b):
    for p in layer_params:
        x = _ref_layer(x, mask, p)
    return _ref_ln(x, norm_g, norm_b)


if __name__ == "__main__":
    key = jax.random.PRNGKey(0)
    kx, kp = jax.random.split(key, 2)

    B, S = 2, 8
    x = jax.random.normal(kx, (B, S, D_MODEL), jnp.float32)
    mask = jnp.ones((B, 1, S), jnp.float32)
    mask = mask.at[1, 0, 6:].set(0.0)          # pad the last 2 key positions of batch 1

    layer_p = init_layer_params(kp)            # clones() deep-copies => all layers share init
    layer_params = [layer_p] * N_LAYERS
    norm_g = jnp.ones((1, D_MODEL), jnp.float32)
    norm_b = jnp.zeros((1, D_MODEL), jnp.float32)

    out = transformer_encoder(x, mask, layer_params, norm_g, norm_b)
    out = jax.block_until_ready(out)

    ref = ref_transformer_encoder(x, mask, layer_params, norm_g, norm_b)
    assert out.shape == (B, S, D_MODEL)
    max_err = float(jnp.max(jnp.abs(out - ref)))
    assert jnp.allclose(out, ref, atol=1e-2, rtol=1e-2), f"max abs err {max_err}"

    print("KERNEL_OK")
</pallas_src>

<mosaic_0001>
module attributes {stable_mosaic.version = 11 : i64} {
  func.func @fused_encoder_kernel(%arg0: i32, %arg1: memref<16x32xf32, #tpu.memory_space<vmem>>, %arg2: memref<2x1x8xf32, #tpu.memory_space<vmem>>, %arg3: memref<2x3x4x32x8xf32, #tpu.memory_space<vmem>>, %arg4: memref<2x3x4x1x8xf32, #tpu.memory_space<vmem>>, %arg5: memref<2x4x8x32xf32, #tpu.memory_space<vmem>>, %arg6: memref<2x32x64xf32, #tpu.memory_space<vmem>>, %arg7: memref<2x64x32xf32, #tpu.memory_space<vmem>>, %arg8: memref<2x1x128xf32, #tpu.memory_space<vmem>>, %arg9: memref<5x2x32xf32, #tpu.memory_space<vmem>>, %arg10: memref<16x32xf32, #tpu.memory_space<vmem>>) attributes {dimension_semantics = [#tpu.dimension_semantics<arbitrary>], iteration_bounds = array<i64: 1>, scalar_prefetch = 0 : i64, scratch_operands = 0 : i64, tpu.core_type = #tpu.core_type<tc>, window_params = [{pipeline_mode = #tpu.pipeline_mode<synchronous>, transform_indices = @transform_0, window_bounds = array<i64: 16, 32>}, {pipeline_mode = #tpu.pipeline_mode<synchronous>, transform_indices = @transform_1, window_bounds = array<i64: 2, 1, 8>}, {pipeline_mode = #tpu.pipeline_mode<synchronous>, transform_indices = @transform_2, window_bounds = array<i64: 2, 3, 4, 32, 8>}, {pipeline_mode = #tpu.pipeline_mode<synchronous>, transform_indices = @transform_3, window_bounds = array<i64: 2, 3, 4, 1, 8>}, {pipeline_mode = #tpu.pipeline_mode<synchronous>, transform_indices = @transform_4, window_bounds = array<i64: 2, 4, 8, 32>}, {pipeline_mode = #tpu.pipeline_mode<synchronous>, transform_indices = @transform_5, window_bounds = array<i64: 2, 32, 64>}, {pipeline_mode = #tpu.pipeline_mode<synchronous>, transform_indices = @transform_6, window_bounds = array<i64: 2, 64, 32>}, {pipeline_mode = #tpu.pipeline_mode<synchronous>, transform_indices = @transform_7, window_bounds = array<i64: 2, 1, 128>}, {pipeline_mode = #tpu.pipeline_mode<synchronous>, transform_indices = @transform_8, window_bounds = array<i64: 5, 2, 32>}, {pipeline_mode = #tpu.pipeline_mode<synchronous>, transform_indices = @transform_9, window_bounds = array<i64: 16, 32>}]} {
    %c0 = arith.constant 0 : index
    %c0_0 = arith.constant 0 : index
    %0 = vector.load %arg1[%c0, %c0_0] : memref<16x32xf32, #tpu.memory_space<vmem>>, vector<16x32xf32>
    %c0_1 = arith.constant 0 : index
    %c0_2 = arith.constant 0 : index
    %c0_3 = arith.constant 0 : index
    %1 = vector.load %arg2[%c0_1, %c0_2, %c0_3] : memref<2x1x8xf32, #tpu.memory_space<vmem>>, vector<2x1x8xf32>
    %cst = arith.constant 0.000000e+00 : f32
    %2 = vector.broadcast %cst : f32 to vector<2x1x8xf32>
    %3 = arith.cmpf ogt, %1, %2 : vector<2x1x8xf32>
    %cst_4 = arith.constant 0.000000e+00 : f32
    %cst_5 = arith.constant -1.000000e+09 : f32
    %4 = vector.broadcast %cst_4 : f32 to vector<2x1x8xf32>
    %5 = vector.broadcast %cst_5 : f32 to vector<2x1x8xf32>
    %6 = arith.select %3, %4, %5 : vector<2x1x8xi1>, vector<2x1x8xf32>
    %7 = vector.extract_strided_slice %6 {offsets = [0, 0, 0], sizes = [1, 1, 8], strides = [1, 1, 1]} : vector<2x1x8xf32> to vector<1x1x8xf32>
    %8 = vector.shape_cast %7 : vector<1x1x8xf32> to vector<1x8xf32>
    %9 = vector.shape_cast %8 : vector<1x8xf32> to vector<1x8xf32>
    %10 = vector.broadcast %9 : vector<1x8xf32> to vector<8x8xf32>
    %11 = vector.extract_strided_slice %6 {offsets = [1, 0, 0], sizes = [1, 1, 8], strides = [1, 1, 1]} : vector<2x1x8xf32> to vector<1x1x8xf32>
    %12 = vector.shape_cast %11 : vector<1x1x8xf32> to vector<1x8xf32>
    %13 = vector.shape_cast %12 : vector<1x8xf32> to vector<1x8xf32>
    %14 = vector.broadcast %13 : vector<1x8xf32> to vector<8x8xf32>
    %c0_6 = arith.constant 0 : index
    %c0_7 = arith.constant 0 : index
    %c0_8 = arith.constant 0 : index
    %15 = vector.load %arg9[%c0_6, %c0_7, %c0_8] : memref<5x2x32xf32, #tpu.memory_space<vmem>>, vector<1x2x32xf32>
    %16 = vector.shape_cast %15 : vector<1x2x32xf32> to vector<2x32xf32>
    %17 = vector.extract_strided_slice %16 {offsets = [0, 0], sizes = [1, 32], strides = [1, 1]} : vector<2x32xf32> to vector<1x32xf32>
    %18 = vector.extract_strided_slice %16 {offsets = [1, 0], sizes = [1, 32], strides = [1, 1]} : vector<2x32xf32> to vector<1x32xf32>
    %cst_9 = arith.constant dense<0.000000e+00> : vector<16xf32>
    %19 = vector.multi_reduction <add>, %0, %cst_9 [1] : vector<16x32xf32> to vector<16xf32>
    %20 = vector.shape_cast %19 : vector<16xf32> to vector<16x1xf32>
    %cst_10 = arith.constant 3.200000e+01 : f32
    %21 = vector.broadcast %cst_10 : f32 to vector<16x1xf32>
    %22 = arith.divf %20, %21 : vector<16x1xf32>
    %23 = vector.broadcast %22 : vector<16x1xf32> to vector<16x32xf32>
    %24 = arith.subf %0, %23 : vector<16x32xf32>
    %25 = arith.mulf %24, %24 : vector<16x32xf32>
    %cst_11 = arith.constant dense<0.000000e+00> : vector<16xf32>
    %26 = vector.multi_reduction <add>, %25, %cst_11 [1] : vector<16x32xf32> to vector<16xf32>
    %27 = vector.shape_cast %26 : vector<16xf32> to vector<16x1xf32>
    %cst_12 = arith.constant 3.200000e+01 : f32
    %28 = vector.broadcast %cst_12 : f32 to vector<16x1xf32>
    %29 = arith.divf %27, %28 : vector<16x1xf32>
    %30 = vector.broadcast %22 : vector<16x1xf32> to vector<16x32xf32>
    %31 = arith.subf %0, %30 : vector<16x32xf32>
    %cst_13 = arith.constant 9.99999974E-6 : f32
    %32 = vector.broadcast %cst_13 : f32 to vector<16x1xf32>
    %33 = arith.addf %29, %32 : vector<16x1xf32>
    %34 = math.rsqrt %33 : vector<16x1xf32>
    %35 = vector.broadcast %34 : vector<16x1xf32> to vector<16x32xf32>
    %36 = arith.mulf %31, %35 : vector<16x32xf32>
    %37 = vector.broadcast %17 : vector<1x32xf32> to vector<16x32xf32>
    %38 = arith.mulf %36, %37 : vector<16x32xf32>
    %39 = vector.broadcast %18 : vector<1x32xf32> to vector<16x32xf32>
    %40 = arith.addf %38, %39 : vector<16x32xf32>
    %c0_14 = arith.constant 0 : index
    %c0_15 = arith.constant 0 : index
    %c0_16 = arith.constant 0 : index
    %c0_17 = arith.constant 0 : index
    %c0_18 = arith.constant 0 : index
    %41 = vector.load %arg3[%c0_14, %c0_15, %c0_16, %c0_17, %c0_18] : memref<2x3x4x32x8xf32, #tpu.memory_space<vmem>>, vector<1x1x1x32x8xf32>
    %42 = vector.shape_cast %41 : vector<1x1x1x32x8xf32> to vector<32x8xf32>
    %cst_19 = arith.constant dense<0.000000e+00> : vector<16x8xf32>
    %43 = tpu.matmul %40, %42, %cst_19 {dimension_numbers = #tpu.dot_dimension_numbers<[1], [0], [0], [1], [0, 0, 1, 1], [], []>} : vector<16x32xf32>, vector<32x8xf32>, vector<16x8xf32> -> vector<16x8xf32>
    %c0_20 = arith.constant 0 : index
    %c0_21 = arith.constant 0 : index
    %c0_22 = arith.constant 0 : index
    %c0_23 = arith.constant 0 : index
    %c0_24 = arith.constant 0 : index
    %44 = vector.load %arg4[%c0_20, %c0_21, %c0_22, %c0_23, %c0_24] : memref<2x3x4x1x8xf32, #tpu.memory_space<vmem>>, vector<1x1x1x1x8xf32>
    %45 = vector.shape_cast %44 : vector<1x1x1x1x8xf32> to vector<1x8xf32>
    %46 = vector.broadcast %45 : vector<1x8xf32> to vector<16x8xf32>
    %47 = arith.addf %43, %46 : vector<16x8xf32>
    %c0_25 = arith.constant 0 : index
    %c1 = arith.constant 1 : index
    %c0_26 = arith.constant 0 : index
    %c0_27 = arith.constant 0 : index
    %c0_28 = arith.constant 0 : index
    %48 = vector.load %arg3[%c0_25, %c1, %c0_26, %c0_27, %c0_28] : memref<2x3x4x32x8xf32, #tpu.memory_space<vmem>>, vector<1x1x1x32x8xf32>
    %49 = vector.shape_cast %48 : vector<1x1x1x32x8xf32> to vector<32x8xf32>
    %cst_29 = arith.constant dense<0.000000e+00> : vector<16x8xf32>
    %50 = tpu.matmul %40, %49, %cst_29 {dimension_numbers = #tpu.dot_dimension_numbers<[1], [0], [0], [1], [0, 0, 1, 1], [], []>} : vector<16x32xf32>, vector<32x8xf32>, vector<16x8xf32> -> vector<16x8xf32>
    %c0_30 = arith.constant 0 : index
    %c1_31 = arith.constant 1 : index
    %c0_32 = arith.constant 0 : index
    %c0_33 = arith.constant 0 : index
    %c0_34 = arith.constant 0 : index
    %51 = vector.load %arg4[%c0_30, %c1_31, %c0_32, %c0_33, %c0_34] : memref<2x3x4x1x8xf32, #tpu.memory_space<vmem>>, vector<1x1x1x1x8xf32>
    %52 = vector.shape_cast %51 : vector<1x1x1x1x8xf32> to vector<1x8xf32>
    %53 = vector.broadcast %52 : vector<1x8xf32> to vector<16x8xf32>
    %54 = arith.addf %50, %53 : vector<16x8xf32>
    %c0_35 = arith.constant 0 : index
    %c2 = arith.constant 2 : index
    %c0_36 = arith.constant 0 : index
    %c0_37 = arith.constant 0 : index
    %c0_38 = arith.constant 0 : index
    %55 = vector.load %arg3[%c0_35, %c2, %c0_36, %c0_37, %c0_38] : memref<2x3x4x32x8xf32, #tpu.memory_space<vmem>>, vector<1x1x1x32x8xf32>
    %56 = vector.shape_cast %55 : vector<1x1x1x32x8xf32> to vector<32x8xf32>
    %cst_39 = arith.constant dense<0.000000e+00> : vector<16x8xf32>
    %57 = tpu.matmul %40, %56, %cst_39 {dimension_numbers = #tpu.dot_dimension_numbers<[1], [0], [0], [1], [0, 0, 1, 1], [], []>} : vector<16x32xf32>, vector<32x8xf32>, vector<16x8xf32> -> vector<16x8xf32>
    %c0_40 = arith.constant 0 : index
    %c2_41 = arith.constant 2 : index
    %c0_42 = arith.constant 0 : index
    %c0_43 = arith.constant 0 : index
    %c0_44 = arith.constant 0 : index
    %58 = vector.load %arg4[%c0_40, %c2_41, %c0_42, %c0_43, %c0_44] : memref<2x3x4x1x8xf32, #tpu.memory_space<vmem>>, vector<1x1x1x1x8xf32>
    %59 = vector.shape_cast %58 : vector<1x1x1x1x8xf32> to vector<1x8xf32>
    %60 = vector.broadcast %59 : vector<1x8xf32> to vector<16x8xf32>
    %61 = arith.addf %57, %60 : vector<16x8xf32>
    %c0_45 = arith.constant 0 : index
    %c0_46 = arith.constant 0 : index
    %c1_47 = arith.constant 1 : index
    %c0_48 = arith.constant 0 : index
    %c0_49 = arith.constant 0 : index
    %62 = vector.load %arg3[%c0_45, %c0_46, %c1_47, %c0_48, %c0_49] : memref<2x3x4x32x8xf32, #tpu.memory_space<vmem>>, vector<1x1x1x32x8xf32>
    %63 = vector.shape_cast %62 : vector<1x1x1x32x8xf32> to vector<32x8xf32>
    %cst_50 = arith.constant dense<0.000000e+00> : vector<16x8xf32>
    %64 = tpu.matmul %40, %63, %cst_50 {dimension_numbers = #tpu.dot_dimension_numbers<[1], [0], [0], [1], [0, 0, 1, 1], [], []>} : vector<16x32xf32>, vector<32x8xf32>, vector<16x8xf32> -> vector<16x8xf32>
    %c0_51 = arith.constant 0 : index
    %c0_52 = arith.constant 0 : index
    %c1_53 = arith.constant 1 : index
    %c0_54 = arith.constant 0 : index
    %c0_55 = arith.constant 0 : index
    %65 = vector.load %arg4[%c0_51, %c0_52, %c1_53, %c0_54, %c0_55] : memref<2x3x4x1x8xf32, #tpu.memory_space<vmem>>, vector<1x1x1x1x8xf32>
    %66 = vector.shape_cast %65 : vector<1x1x1x1x8xf32> to vector<1x8xf32>
    %67 = vector.broadcast %66 : vector<1x8xf32> to vector<16x8xf32>
    %68 = arith.addf %64, %67 : vector<16x8xf32>
    %c0_56 = arith.constant 0 : index
    %c1_57 = arith.constant 1 : index
    %c1_58 = arith.constant 1 : index
    %c0_59 = arith.constant 0 : index
    %c0_60 = arith.constant 0 : index
    %69 = vector.load %arg3[%c0_56, %c1_57, %c1_58, %c0_59, %c0_60] : memref<2x3x4x32x8xf32, #tpu.memory_space<vmem>>, vector<1x1x1x32x8xf32>
    %70 = vector.shape_cast %69 : vector<1x1x1x32x8xf32> to vector<32x8xf32>
    %cst_61 = arith.constant dense<0.000000e+00> : vector<16x8xf32>
    %71 = tpu.matmul %40, %70, %cst_61 {dimension_numbers = #tpu.dot_dimension_numbers<[1], [0], [0], [1], [0, 0, 1, 1], [], []>} : vector<16x32xf32>, vector<32x8xf32>, vector<16x8xf32> -> vector<16x8xf32>
    %c0_62 = arith.constant 0 : index
    %c1_63 = arith.constant 1 : index
    %c1_64 = arith.constant 1 : index
    %c0_65 = arith.constant 0 : index
    %c0_66 = arith.constant 0 : index
    %72 = vector.load %arg4[%c0_62, %c1_63, %c1_64, %c0_65, %c0_66] : memref<2x3x4x1x8xf32, #tpu.memory_space<vmem>>, vector<1x1x1x1x8xf32>
    %73 = vector.shape_cast %72 : vector<1x1x1x1x8xf32> to vector<1x8xf32>
    %74 = vector.broadcast %73 : vector<1x8xf32> to vector<16x8xf32>
    %75 = arith.addf %71, %74 : vector<16x8xf32>
    %c0_67 = arith.constant 0 : index
    %c2_68 = arith.constant 2 : index
    %c1_69 = arith.constant 1 : index
    %c0_70 = arith.constant 0 : index
    %c0_71 = arith.constant 0 : index
    %76 = vector.load %arg3[%c0_67, %c2_68, %c1_69, %c0_70, %c0_71] : memref<2x3x4x32x8xf32, #tpu.memory_space<vmem>>, vector<1x1x1x32x8xf32>
    %77 = vector.shape_cast %76 : vector<1x1x1x32x8xf32> to vector<32x8xf32>
    %cst_72 = arith.constant dense<0.000000e+00> : vector<16x8xf32>
    %78 = tpu.matmul %40, %77, %cst_72 {dimension_numbers = #tpu.dot_dimension_numbers<[1], [0], [0], [1], [0, 0, 1, 1], [], []>} : vector<16x32xf32>, vector<32x8xf32>, vector<16x8xf32> -> vector<16x8xf32>
    %c0_73 = arith.constant 0 : index
    %c2_74 = arith.constant 2 : index
    %c1_75 = arith.constant 1 : index
    %c0_76 = arith.constant 0 : index
    %c0_77 = arith.constant 0 : index
    %79 = vector.load %arg4[%c0_73, %c2_74, %c1_75, %c0_76, %c0_77] : memref<2x3x4x1x8xf32, #tpu.memory_space<vmem>>, vector<1x1x1x1x8xf32>
    %80 = vector.shape_cast %79 : vector<1x1x1x1x8xf32> to vector<1x8xf32>
    %81 = vector.broadcast %80 : vector<1x8xf32> to vector<16x8xf32>
    %82 = arith.addf %78, %81 : vector<16x8xf32>
    %c0_78 = arith.constant 0 : index
    %c0_79 = arith.constant 0 : index
    %c2_80 = arith.constant 2 : index
    %c0_81 = arith.constant 0 : index
    %c0_82 = arith.constant 0 : index
    %83 = vector.load %arg3[%c0_78, %c0_79, %c2_80, %c0_81, %c0_82] : memref<2x3x4x32x8xf32, #tpu.memory_space<vmem>>, vector<1x1x1x32x8xf32>
    %84 = vector.shape_cast %83 : vector<1x1x1x32x8xf32> to vector<32x8xf32>
    %cst_83 = arith.constant dense<0.000000e+00> : vector<16x8xf32>
    %85 = tpu.matmul %40, %84, %cst_83 {dimension_numbers = #tpu.dot_dimension_numbers<[1], [0], [0], [1], [0, 0, 1, 1], [], []>} : vector<16x32xf32>, vector<32x8xf32>, vector<16x8xf32> -> vector<16x8xf32>
    %c0_84 = arith.constant 0 : index
    %c0_85 = arith.constant 0 : index
    %c2_86 = arith.constant 2 : index
    %c0_87 = arith.constant 0 : index
    %c0_88 = arith.constant 0 : index
    %86 = vector.load %arg4[%c0_84, %c0_85, %c2_86, %c0_87, %c0_88] : memref<2x3x4x1x8xf32, #tpu.memory_space<vmem>>, vector<1x1x1x1x8xf32>
    %87 = vector.shape_cast %86 : vector<1x1x1x1x8xf32> to vector<1x8xf32>
    %88 = vector.broadcast %87 : vector<1x8xf32> to vector<16x8xf32>
    %89 = arith.addf %85, %88 : vector<16x8xf32>
    %c0_89 = arith.constant 0 : index
    %c1_90 = arith.constant 1 : index
    %c2_91 = arith.constant 2 : index
    %c0_92 = arith.constant 0 : index
    %c0_93 = arith.constant 0 : index
    %90 = vector.load %arg3[%c0_89, %c1_90, %c2_91, %c0_92, %c0_93] : memref<2x3x4x32x8xf32, #tpu.memory_space<vmem>>, vector<1x1x1x32x8xf32>
    %91 = vector.shape_cast %90 : vector<1x1x1x32x8xf32> to vector<32x8xf32>
    %cst_94 = arith.constant dense<0.000000e+00> : vector<16x8xf32>
    %92 = tpu.matmul %40, %91, %cst_94 {dimension_numbers = #tpu.dot_dimension_numbers<[1], [0], [0], [1], [0, 0, 1, 1], [], []>} : vector<16x32xf32>, vector<32x8xf32>, vector<16x8xf32> -> vector<16x8xf32>
    %c0_95 = arith.constant 0 : index
    %c1_96 = arith.constant 1 : index
    %c2_97 = arith.constant 2 : index
    %c0_98 = arith.constant 0 : index
    %c0_99 = arith.constant 0 : index
    %93 = vector.load %arg4[%c0_95, %c1_96, %c2_97, %c0_98, %c0_99] : memref<2x3x4x1x8xf32, #tpu.memory_space<vmem>>, vector<1x1x1x1x8xf32>
    %94 = vector.shape_cast %93 : vector<1x1x1x1x8xf32> to vector<1x8xf32>
    %95 = vector.broadcast %94 : vector<1x8xf32> to vector<16x8xf32>
    %96 = arith.addf %92, %95 : vector<16x8xf32>
    %c0_100 = arith.constant 0 : index
    %c2_101 = arith.constant 2 : index
    %c2_102 = arith.constant 2 : index
    %c0_103 = arith.constant 0 : index
    %c0_104 = arith.constant 0 : index
    %97 = vector.load %arg3[%c0_100, %c2_101, %c2_102, %c0_103, %c0_104] : memref<2x3x4x32x8xf32, #tpu.memory_space<vmem>>, vector<1x1x1x32x8xf32>
    %98 = vector.shape_cast %97 : vector<1x1x1x32x8xf32> to vector<32x8xf32>
    %cst_105 = arith.constant dense<0.000000e+00> : vector<16x8xf32>
    %99 = tpu.matmul %40, %98, %cst_105 {dimension_numbers = #tpu.dot_dimension_numbers<[1], [0], [0], [1], [0, 0, 1, 1], [], []>} : vector<16x32xf32>, vector<32x8xf32>, vector<16x8xf32> -> vector<16x8xf32>
    %c0_106 = arith.constant 0 : index
    %c2_107 = arith.constant 2 : index
    %c2_108 = arith.constant 2 : index
    %c0_109 = arith.constant 0 : index
    %c0_110 = arith.constant 0 : index
    %100 = vector.load %arg4[%c0_106, %c2_107, %c2_108, %c0_109, %c0_110] : memref<2x3x4x1x8xf32, #tpu.memory_space<vmem>>, vector<1x1x1x1x8xf32>
    %101 = vector.shape_cast %100 : vector<1x1x1x1x8xf32> to vector<1x8xf32>
    %102 = vector.broadcast %101 : vector<1x8xf32> to vector<16x8xf32>
    %103 = arith.addf %99, %102 : vector<16x8xf32>
    %c0_111 = arith.constant 0 : index
    %c0_112 = arith.constant 0 : index
    %c3 = arith.constant 3 : index
    %c0_113 = arith.constant 0 : index
    %c0_114 = arith.constant 0 : index
    %104 = vector.load %arg3[%c0_111, %c0_112, %c3, %c0_113, %c0_114] : memref<2x3x4x32x8xf32, #tpu.memory_space<vmem>>, vector<1x1x1x32x8xf32>
    %105 = vector.shape_cast %104 : vector<1x1x1x32x8xf32> to vector<32x8xf32>
    %cst_115 = arith.constant dense<0.000000e+00> : vector<16x8xf32>
    %106 = tpu.matmul %40, %105, %cst_115 {dimension_numbers = #tpu.dot_dimension_numbers<[1], [0], [0], [1], [0, 0, 1, 1], [], []>} : vector<16x32xf32>, vector<32x8xf32>, vector<16x8xf32> -> vector<16x8xf32>
    %c0_116 = arith.constant 0 : index
    %c0_117 = arith.constant 0 : index
    %c3_118 = arith.constant 3 : index
    %c0_119 = arith.constant 0 : index
    %c0_120 = arith.constant 0 : index
    %107 = vector.load %arg4[%c0_116, %c0_117, %c3_118, %c0_119, %c0_120] : memref<2x3x4x1x8xf32, #tpu.memory_space<vmem>>, vector<1x1x1x1x8xf32>
    %108 = vector.shape_cast %107 : vector<1x1x1x1x8xf32> to vector<1x8xf32>
    %109 = vector.broadcast %108 : vector<1x8xf32> to vector<16x8xf32>
    %110 = arith.addf %106, %109 : vector<16x8xf32>
    %c0_121 = arith.constant 0 : index
    %c1_122 = arith.constant 1 : index
    %c3_123 = arith.constant 3 : index
    %c0_124 = arith.constant 0 : index
    %c0_125 = arith.constant 0 : index
    %111 = vector.load %arg3[%c0_121, %c1_122, %c3_123, %c0_124, %c0_125] : memref<2x3x4x32x8xf32, #tpu.memory_space<vmem>>, vector<1x1x1x32x8xf32>
    %112 = vector.shape_cast %111 : vector<1x1x1x32x8xf32> to vector<32x8xf32>
    %cst_126 = arith.constant dense<0.000000e+00> : vector<16x8xf32>
    %113 = tpu.matmul %40, %112, %cst_126 {dimension_numbers = #tpu.dot_dimension_numbers<[1], [0], [0], [1], [0, 0, 1, 1], [], []>} : vector<16x32xf32>, vector<32x8xf32>, vector<16x8xf32> -> vector<16x8xf32>
    %c0_127 = arith.constant 0 : index
    %c1_128 = arith.constant 1 : index
    %c3_129 = arith.constant 3 : index
    %c0_130 = arith.constant 0 : index
    %c0_131 = arith.constant 0 : index
    %114 = vector.load %arg4[%c0_127, %c1_128, %c3_129, %c0_130, %c0_131] : memref<2x3x4x1x8xf32, #tpu.memory_space<vmem>>, vector<1x1x1x1x8xf32>
    %115 = vector.shape_cast %114 : vector<1x1x1x1x8xf32> to vector<1x8xf32>
    %116 = vector.broadcast %115 : vector<1x8xf32> to vector<16x8xf32>
    %117 = arith.addf %113, %116 : vector<16x8xf32>
    %c0_132 = arith.constant 0 : index
    %c2_133 = arith.constant 2 : index
    %c3_134 = arith.constant 3 : index
    %c0_135 = arith.constant 0 : index
    %c0_136 = arith.constant 0 : index
    %118 = vector.load %arg3[%c0_132, %c2_133, %c3_134, %c0_135, %c0_136] : memref<2x3x4x32x8xf32, #tpu.memory_space<vmem>>, vector<1x1x1x32x8xf32>
    %119 = vector.shape_cast %118 : vector<1x1x1x32x8xf32> to vector<32x8xf32>
    %cst_137 = arith.constant dense<0.000000e+00> : vector<16x8xf32>
    %120 = tpu.matmul %40, %119, %cst_137 {dimension_numbers = #tpu.dot_dimension_numbers<[1], [0], [0], [1], [0, 0, 1, 1], [], []>} : vector<16x32xf32>, vector<32x8xf32>, vector<16x8xf32> -> vector<16x8xf32>
    %c0_138 = arith.constant 0 : index
    %c2_139 = arith.constant 2 : index
    %c3_140 = arith.constant 3 : index
    %c0_141 = arith.constant 0 : index
    %c0_142 = arith.constant 0 : index
    %121 = vector.load %arg4[%c0_138, %c2_139, %c3_140, %c0_141, %c0_142] : memref<2x3x4x1x8xf32, #tpu.memory_space<vmem>>, vector<1x1x1x1x8xf32>
    %122 = vector.shape_cast %121 : vector<1x1x1x1x8xf32> to vector<1x8xf32>
    %123 = vector.broadcast %122 : vector<1x8xf32> to vector<16x8xf32>
    %124 = arith.addf %120, %123 : vector<16x8xf32>
    %125 = vector.extract_strided_slice %47 {offsets = [0, 0], sizes = [8, 8], strides = [1, 1]} : vector<16x8xf32> to vector<8x8xf32>
    %126 = vector.extract_strided_slice %54 {offsets = [0, 0], sizes = [8, 8], strides = [1, 1]} : vector<16x8xf32> to vector<8x8xf32>
    %127 = vector.extract_strided_slice %61 {offsets = [0, 0], sizes = [8, 8], strides = [1, 1]} : vector<16x8xf32> to vector<8x8xf32>
    %128 = tpu.transpose %126, [1, 0] : vector<8x8xf32> -> vector<8x8xf32>
    %cst_143 = arith.constant dense<0.000000e+00> : vector<8x8xf32>
    %129 = tpu.matmul %125, %128, %cst_143 {dimension_numbers = #tpu.dot_dimension_numbers<[1], [0], [0], [1], [0, 0, 1, 1], [], []>} : vector<8x8xf32>, vector<8x8xf32>, vector<8x8xf32> -> vector<8x8xf32>
    %130 = arith.addf %129, %10 : vector<8x8xf32>
    %cst_144 = arith.constant dense<0xFF800000> : vector<8xf32>
    %131 = vector.multi_reduction <maximumf>, %130, %cst_144 [1] : vector<8x8xf32> to vector<8xf32>
    %132 = vector.shape_cast %131 : vector<8xf32> to vector<8x1xf32>
    %133 = vector.broadcast %132 : vector<8x1xf32> to vector<8x8xf32>
    %134 = arith.subf %130, %133 : vector<8x8xf32>
    %135 = math.exp %134 : vector<8x8xf32>
    %cst_145 = arith.constant dense<0.000000e+00> : vector<8xf32>
    %136 = vector.multi_reduction <add>, %135, %cst_145 [1] : vector<8x8xf32> to vector<8xf32>
    %137 = vector.shape_cast %136 : vector<8xf32> to vector<8x1xf32>
    %138 = tpu.reciprocal %137 {approx = true} : vector<8x1xf32> -> vector<8x1xf32>
    %139 = vector.broadcast %138 : vector<8x1xf32> to vector<8x8xf32>
    %140 = arith.mulf %135, %139 : vector<8x8xf32>
    %cst_146 = arith.constant dense<0.000000e+00> : vector<8x8xf32>
    %141 = tpu.matmul %140, %127, %cst_146 {dimension_numbers = #tpu.dot_dimension_numbers<[1], [0], [0], [1], [0, 0, 1, 1], [], []>} : vector<8x8xf32>, vector<8x8xf32>, vector<8x8xf32> -> vector<8x8xf32>
    %c0_147 = arith.constant 0 : index
    %c0_148 = arith.constant 0 : index
    %c0_149 = arith.constant 0 : index
    %c0_150 = arith.constant 0 : index
    %142 = vector.load %arg5[%c0_147, %c0_148, %c0_149, %c0_150] : memref<2x4x8x32xf32, #tpu.memory_space<vmem>>, vector<1x1x8x32xf32>
    %143 = vector.shape_cast %142 : vector<1x1x8x32xf32> to vector<8x32xf32>
    %cst_151 = arith.constant dense<0.000000e+00> : vector<8x32xf32>
    %144 = tpu.matmul %141, %143, %cst_151 {dimension_numbers = #tpu.dot_dimension_numbers<[1], [0], [0], [1], [0, 0, 1, 1], [], []>} : vector<8x8xf32>, vector<8x32xf32>, vector<8x32xf32> -> vector<8x32xf32>
    %145 = vector.extract_strided_slice %68 {offsets = [0, 0], sizes = [8, 8], strides = [1, 1]} : vector<16x8xf32> to vector<8x8xf32>
    %146 = vector.extract_strided_slice %75 {offsets = [0, 0], sizes = [8, 8], strides = [1, 1]} : vector<16x8xf32> to vector<8x8xf32>
    %147 = vector.extract_strided_slice %82 {offsets = [0, 0], sizes = [8, 8], strides = [1, 1]} : vector<16x8xf32> to vector<8x8xf32>
    %148 = tpu.transpose %146, [1, 0] : vector<8x8xf32> -> vector<8x8xf32>
    %cst_152 = arith.constant dense<0.000000e+00> : vector<8x8xf32>
    %149 = tpu.matmul %145, %148, %cst_152 {dimension_numbers = #tpu.dot_dimension_numbers<[1], [0], [0], [1], [0, 0, 1, 1], [], []>} : vector<8x8xf32>, vector<8x8xf32>, vector<8x8xf32> -> vector<8x8xf32>
    %150 = arith.addf %149, %10 : vector<8x8xf32>
    %cst_153 = arith.constant dense<0xFF800000> : vector<8xf32>
    %151 = vector.multi_reduction <maximumf>, %150, %cst_153 [1] : vector<8x8xf32> to vector<8xf32>
    %152 = vector.shape_cast %151 : vector<8xf32> to vector<8x1xf32>
    %153 = vector.broadcast %152 : vector<8x1xf32> to vector<8x8xf32>
    %154 = arith.subf %150, %153 : vector<8x8xf32>
    %155 = math.exp %154 : vector<8x8xf32>
    %cst_154 = arith.constant dense<0.000000e+00> : vector<8xf32>
    %156 = vector.multi_reduction <add>, %155, %cst_154 [1] : vector<8x8xf32> to vector<8xf32>
    %157 = vector.shape_cast %156 : vector<8xf32> to vector<8x1xf32>
    %158 = tpu.reciprocal %157 {approx = true} : vector<8x1xf32> -> vector<8x1xf32>
    %159 = vector.broadcast %158 : vector<8x1xf32> to vector<8x8xf32>
    %160 = arith.mulf %155, %159 : vector<8x8xf32>
    %cst_155 = arith.constant dense<0.000000e+00> : vector<8x8xf32>
    %161 = tpu.matmul %160, %147, %cst_155 {dimension_numbers = #tpu.dot_dimension_numbers<[1], [0], [0], [1], [0, 0, 1, 1], [], []>} : vector<8x8xf32>, vector<8x8xf32>, vector<8x8xf32> -> vector<8x8xf32>
    %c0_156 = arith.constant 0 : index
    %c1_157 = arith.constant 1 : index
    %c0_158 = arith.constant 0 : index
    %c0_159 = arith.constant 0 : index
    %162 = vector.load %arg5[%c0_156, %c1_157, %c0_158, %c0_159] : memref<2x4x8x32xf32, #tpu.memory_space<vmem>>, vector<1x1x8x32xf32>
    %163 = vector.shape_cast %162 : vector<1x1x8x32xf32> to vector<8x32xf32>
    %cst_160 = arith.constant dense<0.000000e+00> : vector<8x32xf32>
    %164 = tpu.matmul %161, %163, %cst_160 {dimension_numbers = #tpu.dot_dimension_numbers<[1], [0], [0], [1], [0, 0, 1, 1], [], []>} : vector<8x8xf32>, vector<8x32xf32>, vector<8x32xf32> -> vector<8x32xf32>
    %165 = arith.addf %144, %164 : vector<8x32xf32>
    %166 = vector.extract_strided_slice %89 {offsets = [0, 0], sizes = [8, 8], strides = [1, 1]} : vector<16x8xf32> to vector<8x8xf32>
    %167 = vector.extract_strided_slice %96 {offsets = [0, 0], sizes = [8, 8], strides = [1, 1]} : vector<16x8xf32> to vector<8x8xf32>
    %168 = vector.extract_strided_slice %103 {offsets = [0, 0], sizes = [8, 8], strides = [1, 1]} : vector<16x8xf32> to vector<8x8xf32>
    %169 = tpu.transpose %167, [1, 0] : vector<8x8xf32> -> vector<8x8xf32>
    %cst_161 = arith.constant dense<0.000000e+00> : vector<8x8xf32>
    %170 = tpu.matmul %166, %169, %cst_161 {dimension_numbers = #tpu.dot_dimension_numbers<[1], [0], [0], [1], [0, 0, 1, 1], [], []>} : vector<8x8xf32>, vector<8x8xf32>, vector<8x8xf32> -> vector<8x8xf32>
    %171 = arith.addf %170, %10 : vector<8x8xf32>
    %cst_162 = arith.constant dense<0xFF800000> : vector<8xf32>
    %172 = vector.multi_reduction <maximumf>, %171, %cst_162 [1] : vector<8x8xf32> to vector<8xf32>
    %173 = vector.shape_cast %172 : vector<8xf32> to vector<8x1xf32>
    %174 = vector.broadcast %173 : vector<8x1xf32> to vector<8x8xf32>
    %175 = arith.subf %171, %174 : vector<8x8xf32>
    %176 = math.exp %175 : vector<8x8xf32>
    %cst_163 = arith.constant dense<0.000000e+00> : vector<8xf32>
    %177 = vector.multi_reduction <add>, %176, %cst_163 [1] : vector<8x8xf32> to vector<8xf32>
    %178 = vector.shape_cast %177 : vector<8xf32> to vector<8x1xf32>
    %179 = tpu.reciprocal %178 {approx = true} : vector<8x1xf32> -> vector<8x1xf32>
    %180 = vector.broadcast %179 : vector<8x1xf32> to vector<8x8xf32>
    %181 = arith.mulf %176, %180 : vector<8x8xf32>
    %cst_164 = arith.constant dense<0.000000e+00> : vector<8x8xf32>
    %182 = tpu.matmul %181, %168, %cst_164 {dimension_numbers = #tpu.dot_dimension_numbers<[1], [0], [0], [1], [0, 0, 1, 1], [], []>} : vector<8x8xf32>, vector<8x8xf32>, vector<8x8xf32> -> vector<8x8xf32>
    %c0_165 = arith.constant 0 : index
    %c2_166 = arith.constant 2 : index
    %c0_167 = arith.constant 0 : index
    %c0_168 = arith.constant 0 : index
    %183 = vector.load %arg5[%c0_165, %c2_166, %c0_167, %c0_168] : memref<2x4x8x32xf32, #tpu.memory_space<vmem>>, vector<1x1x8x32xf32>
    %184 = vector.shape_cast %183 : vector<1x1x8x32xf32> to vector<8x32xf32>
    %cst_169 = arith.constant dense<0.000000e+00> : vector<8x32xf32>
    %185 = tpu.matmul %182, %184, %cst_169 {dimension_numbers = #tpu.dot_dimension_numbers<[1], [0], [0], [1], [0, 0, 1, 1], [], []>} : vector<8x8xf32>, vector<8x32xf32>, vector<8x32xf32> -> vector<8x32xf32>
    %186 = arith.addf %165, %185 : vector<8x32xf32>
    %187 = vector.extract_strided_slice %110 {offsets = [0, 0], sizes = [8, 8], strides = [1, 1]} : vector<16x8xf32> to vector<8x8xf32>
    %188 = vector.extract_strided_slice %117 {offsets = [0, 0], sizes = [8, 8], strides = [1, 1]} : vector<16x8xf32> to vector<8x8xf32>
    %189 = vector.extract_strided_slice %124 {offsets = [0, 0], sizes = [8, 8], strides = [1, 1]} : vector<16x8xf32> to vector<8x8xf32>
    %190 = tpu.transpose %188, [1, 0] : vector<8x8xf32> -> vector<8x8xf32>
    %cst_170 = arith.constant dense<0.000000e+00> : vector<8x8xf32>
    %191 = tpu.matmul %187, %190, %cst_170 {dimension_numbers = #tpu.dot_dimension_numbers<[1], [0], [0], [1], [0, 0, 1, 1], [], []>} : vector<8x8xf32>, vector<8x8xf32>, vector<8x8xf32> -> vector<8x8xf32>
    %192 = arith.addf %191, %10 : vector<8x8xf32>
    %cst_171 = arith.constant dense<0xFF800000> : vector<8xf32>
    %193 = vector.multi_reduction <maximumf>, %192, %cst_171 [1] : vector<8x8xf32> to vector<8xf32>
    %194 = vector.shape_cast %193 : vector<8xf32> to vector<8x1xf32>
    %195 = vector.broadcast %194 : vector<8x1xf32> to vector<8x8xf32>
    %196 = arith.subf %192, %195 : vector<8x8xf32>
    %197 = math.exp %196 : vector<8x8xf32>
    %cst_172 = arith.constant dense<0.000000e+00> : vector<8xf32>
    %198 = vector.multi_reduction <add>, %197, %cst_172 [1] : vector<8x8xf32> to vector<8xf32>
    %199 = vector.shape_cast %198 : vector<8xf32> to vector<8x1xf32>
    %200 = tpu.reciprocal %199 {approx = true} : vector<8x1xf32> -> vector<8x1xf32>
    %201 = vector.broadcast %200 : vector<8x1xf32> to vector<8x8xf32>
    %202 = arith.mulf %197, %201 : vector<8x8xf32>
    %cst_173 = arith.constant dense<0.000000e+00> : vector<8x8xf32>
    %203 = tpu.matmul %202, %189, %cst_173 {dimension_numbers = #tpu.dot_dimension_numbers<[1], [0], [0], [1], [0, 0, 1, 1], [], []>} : vector<8x8xf32>, vector<8x8xf32>, vector<8x8xf32> -> vector<8x8xf32>
    %c0_174 = arith.constant 0 : index
    %c3_175 = arith.constant 3 : index
    %c0_176 = arith.constant 0 : index
    %c0_177 = arith.constant 0 : index
    %204 = vector.load %arg5[%c0_174, %c3_175, %c0_176, %c0_177] : memref<2x4x8x32xf32, #tpu.memory_space<vmem>>, vector<1x1x8x32xf32>
    %205 = vector.shape_cast %204 : vector<1x1x8x32xf32> to vector<8x32xf32>
    %cst_178 = arith.constant dense<0.000000e+00> : vector<8x32xf32>
    %206 = tpu.matmul %203, %205, %cst_178 {dimension_numbers = #tpu.dot_dimension_numbers<[1], [0], [0], [1], [0, 0, 1, 1], [], []>} : vector<8x8xf32>, vector<8x32xf32>, vector<8x32xf32> -> vector<8x32xf32>
    %207 = arith.addf %186, %206 : vector<8x32xf32>
    %208 = vector.extract_strided_slice %47 {offsets = [8, 0], sizes = [8, 8], strides = [1, 1]} : vector<16x8xf32> to vector<8x8xf32>
    %209 = vector.extract_strided_slice %54 {offsets = [8, 0], sizes = [8, 8], strides = [1, 1]} : vector<16x8xf32> to vector<8x8xf32>
    %210 = vector.extract_strided_slice %61 {offsets = [8, 0], sizes = [8, 8], strides = [1, 1]} : vector<16x8xf32> to vector<8x8xf32>
    %211 = tpu.transpose %209, [1, 0] : vector<8x8xf32> -> vector<8x8xf32>
    %cst_179 = arith.constant dense<0.000000e+00> : vector<8x8xf32>
    %212 = tpu.matmul %208, %211, %cst_179 {dimension_numbers = #tpu.dot_dimension_numbers<[1], [0], [0], [1], [0, 0, 1, 1], [], []>} : vector<8x8xf32>, vector<8x8xf32>, vector<8x8xf32> -> vector<8x8xf32>
    %213 = arith.addf %212, %14 : vector<8x8xf32>
    %cst_180 = arith.constant dense<0xFF800000> : vector<8xf32>
    %214 = vector.multi_reduction <maximumf>, %213, %cst_180 [1] : vector<8x8xf32> to vector<8xf32>
    %215 = vector.shape_cast %214 : vector<8xf32> to vector<8x1xf32>
    %216 = vector.broadcast %215 : vector<8x1xf32> to vector<8x8xf32>
    %217 = arith.subf %213, %216 : vector<8x8xf32>
    %218 = math.exp %217 : vector<8x8xf32>
    %cst_181 = arith.constant dense<0.000000e+00> : vector<8xf32>
    %219 = vector.multi_reduction <add>, %218, %cst_181 [1] : vector<8x8xf32> to vector<8xf32>
    %220 = vector.shape_cast %219 : vector<8xf32> to vector<8x1xf32>
    %221 = tpu.reciprocal %220 {approx = true} : vector<8x1xf32> -> vector<8x1xf32>
    %222 = vector.broadcast %221 : vector<8x1xf32> to vector<8x8xf32>
    %223 = arith.mulf %218, %222 : vector<8x8xf32>
    %cst_182 = arith.constant dense<0.000000e+00> : vector<8x8xf32>
    %224 = tpu.matmul %223, %210, %cst_182 {dimension_numbers = #tpu.dot_dimension_numbers<[1], [0], [0], [1], [0, 0, 1, 1], [], []>} : vector<8x8xf32>, vector<8x8xf32>, vector<8x8xf32> -> vector<8x8xf32>
    %c0_183 = arith.constant 0 : index
    %c0_184 = arith.constant 0 : index
    %c0_185 = arith.constant 0 : index
    %c0_186 = arith.constant 0 : index
    %225 = vector.load %arg5[%c0_183, %c0_184, %c0_185, %c0_186] : memref<2x4x8x32xf32, #tpu.memory_space<vmem>>, vector<1x1x8x32xf32>
    %226 = vector.shape_cast %225 : vector<1x1x8x32xf32> to vector<8x32xf32>
    %cst_187 = arith.constant dense<0.000000e+00> : vector<8x32xf32>
    %227 = tpu.matmul %224, %226, %cst_187 {dimension_numbers = #tpu.dot_dimension_numbers<[1], [0], [0], [1], [0, 0, 1, 1], [], []>} : vector<8x8xf32>, vector<8x32xf32>, vector<8x32xf32> -> vector<8x32xf32>
    %228 = vector.extract_strided_slice %68 {offsets = [8, 0], sizes = [8, 8], strides = [1, 1]} : vector<16x8xf32> to vector<8x8xf32>
    %229 = vector.extract_strided_slice %75 {offsets = [8, 0], sizes = [8, 8], strides = [1, 1]} : vector<16x8xf32> to vector<8x8xf32>
    %230 = vector.extract_strided_slice %82 {offsets = [8, 0], sizes = [8, 8], strides = [1, 1]} : vector<16x8xf32> to vector<8x8xf32>
    %231 = tpu.transpose %229, [1, 0] : vector<8x8xf32> -> vector<8x8xf32>
    %cst_188 = arith.constant dense<0.000000e+00> : vector<8x8xf32>
    %232 = tpu.matmul %228, %231, %cst_188 {dimension_numbers = #tpu.dot_dimension_numbers<[1], [0], [0], [1], [0, 0, 1, 1], [], []>} : vector<8x8xf32>, vector<8x8xf32>, vector<8x8xf32> -> vector<8x8xf32>
    %233 = arith.addf %232, %14 : vector<8x8xf32>
    %cst_189 = arith.constant dense<0xFF800000> : vector<8xf32>
    %234 = vector.multi_reduction <maximumf>, %233, %cst_189 [1] : vector<8x8xf32> to vector<8xf32>
    %235 = vector.shape_cast %234 : vector<8xf32> to vector<8x1xf32>
    %236 = vector.broadcast %235 : vector<8x1xf32> to vector<8x8xf32>
    %237 = arith.subf %233, %236 : vector<8x8xf32>
    %238 = math.exp %237 : vector<8x8xf32>
    %cst_190 = arith.constant dense<0.000000e+00> : vector<8xf32>
    %239 = vector.multi_reduction <add>, %238, %cst_190 [1] : vector<8x8xf32> to vector<8xf32>
    %240 = vector.shape_cast %239 : vector<8xf32> to vector<8x1xf32>
    %241 = tpu.reciprocal %240 {approx = true} : vector<8x1xf32> -> vector<8x1xf32>
    %242 = vector.broadcast %241 : vector<8x1xf32> to vector<8x8xf32>
    %243 = arith.mulf %238, %242 : vector<8x8xf32>
    %cst_191 = arith.constant dense<0.000000e+00> : vector<8x8xf32>
    %244 = tpu.matmul %243, %230, %cst_191 {dimension_numbers = #tpu.dot_dimension_numbers<[1], [0], [0], [1], [0, 0, 1, 1], [], []>} : vector<8x8xf32>, vector<8x8xf32>, vector<8x8xf32> -> vector<8x8xf32>
    %c0_192 = arith.constant 0 : index
    %c1_193 = arith.constant 1 : index
    %c0_194 = arith.constant 0 : index
    %c0_195 = arith.constant 0 : index
    %245 = vector.load %arg5[%c0_192, %c1_193, %c0_194, %c0_195] : memref<2x4x8x32xf32, #tpu.memory_space<vmem>>, vector<1x1x8x32xf32>
    %246 = vector.shape_cast %245 : vector<1x1x8x32xf32> to vector<8x32xf32>
    %cst_196 = arith.constant dense<0.000000e+00> : vector<8x32xf32>
    %247 = tpu.matmul %244, %246, %cst_196 {dimension_numbers = #tpu.dot_dimension_numbers<[1], [0], [0], [1], [0, 0, 1, 1], [], []>} : vector<8x8xf32>, vector<8x32xf32>, vector<8x32xf32> -> vector<8x32xf32>
    %248 = arith.addf %227, %247 : vector<8x32xf32>
    %249 = vector.extract_strided_slice %89 {offsets = [8, 0], sizes = [8, 8], strides = [1, 1]} : vector<16x8xf32> to vector<8x8xf32>
    %250 = vector.extract_strided_slice %96 {offsets = [8, 0], sizes = [8, 8], strides = [1, 1]} : vector<16x8xf32> to vector<8x8xf32>
    %251 = vector.extract_strided_slice %103 {offsets = [8, 0], sizes = [8, 8], strides = [1, 1]} : vector<16x8xf32> to vector<8x8xf32>
    %252 = tpu.transpose %250, [1, 0] : vector<8x8xf32> -> vector<8x8xf32>
    %cst_197 = arith.constant dense<0.000000e+00> : vector<8x8xf32>
    %253 = tpu.matmul %249, %252, %cst_197 {dimension_numbers = #tpu.dot_dimension_numbers<[1], [0], [0], [1], [0, 0, 1, 1], [], []>} : vector<8x8xf32>, vector<8x8xf32>, vector<8x8xf32> -> vector<8x8xf32>
    %254 = arith.addf %253, %14 : vector<8x8xf32>
    %cst_198 = arith.constant dense<0xFF800000> : vector<8xf32>
    %255 = vector.multi_reduction <maximumf>, %254, %cst_198 [1] : vector<8x8xf32> to vector<8xf32>
    %256 = vector.shape_cast %255 : vector<8xf32> to vector<8x1xf32>
    %257 = vector.broadcast %256 : vector<8x1xf32> to vector<8x8xf32>
    %258 = arith.subf %254, %257 : vector<8x8xf32>
    %259 = math.exp %258 : vector<8x8xf32>
    %cst_199 = arith.constant dense<0.000000e+00> : vector<8xf32>
    %260 = vector.multi_reduction <add>, %259, %cst_199 [1] : vector<8x8xf32> to vector<8xf32>
    %261 = vector.shape_cast %260 : vector<8xf32> to vector<8x1xf32>
    %262 = tpu.reciprocal %261 {approx = true} : vector<8x1xf32> -> vector<8x1xf32>
    %263 = vector.broadcast %262 : vector<8x1xf32> to vector<8x8xf32>
    %264 = arith.mulf %259, %263 : vector<8x8xf32>
    %cst_200 = arith.constant dense<0.000000e+00> : vector<8x8xf32>
    %265 = tpu.matmul %264, %251, %cst_200 {dimension_numbers = #tpu.dot_dimension_numbers<[1], [0], [0], [1], [0, 0, 1, 1], [], []>} : vector<8x8xf32>, vector<8x8xf32>, vector<8x8xf32> -> vector<8x8xf32>
    %c0_201 = arith.constant 0 : index
    %c2_202 = arith.constant 2 : index
    %c0_203 = arith.constant 0 : index
    %c0_204 = arith.constant 0 : index
    %266 = vector.load %arg5[%c0_201, %c2_202, %c0_203, %c0_204] : memref<2x4x8x32xf32, #tpu.memory_space<vmem>>, vector<1x1x8x32xf32>
    %267 = vector.shape_cast %266 : vector<1x1x8x32xf32> to vector<8x32xf32>
    %cst_205 = arith.constant dense<0.000000e+00> : vector<8x32xf32>
    %268 = tpu.matmul %265, %267, %cst_205 {dimension_numbers = #tpu.dot_dimension_numbers<[1], [0], [0], [1], [0, 0, 1, 1], [], []>} : vector<8x8xf32>, vector<8x32xf32>, vector<8x32xf32> -> vector<8x32xf32>
    %269 = arith.addf %248, %268 : vector<8x32xf32>
    %270 = vector.extract_strided_slice %110 {offsets = [8, 0], sizes = [8, 8], strides = [1, 1]} : vector<16x8xf32> to vector<8x8xf32>
    %271 = vector.extract_strided_slice %117 {offsets = [8, 0], sizes = [8, 8], strides = [1, 1]} : vector<16x8xf32> to vector<8x8xf32>
    %272 = vector.extract_strided_slice %124 {offsets = [8, 0], sizes = [8, 8], strides = [1, 1]} : vector<16x8xf32> to vector<8x8xf32>
    %273 = tpu.transpose %271, [1, 0] : vector<8x8xf32> -> vector<8x8xf32>
    %cst_206 = arith.constant dense<0.000000e+00> : vector<8x8xf32>
    %274 = tpu.matmul %270, %273, %cst_206 {dimension_numbers = #tpu.dot_dimension_numbers<[1], [0], [0], [1], [0, 0, 1, 1], [], []>} : vector<8x8xf32>, vector<8x8xf32>, vector<8x8xf32> -> vector<8x8xf32>
    %275 = arith.addf %274, %14 : vector<8x8xf32>
    %cst_207 = arith.constant dense<0xFF800000> : vector<8xf32>
    %276 = vector.multi_reduction <maximumf>, %275, %cst_207 [1] : vector<8x8xf32> to vector<8xf32>
    %277 = vector.shape_cast %276 : vector<8xf32> to vector<8x1xf32>
    %278 = vector.broadcast %277 : vector<8x1xf32> to vector<8x8xf32>
    %279 = arith.subf %275, %278 : vector<8x8xf32>
    %280 = math.exp %279 : vector<8x8xf32>
    %cst_208 = arith.constant dense<0.000000e+00> : vector<8xf32>
    %281 = vector.multi_reduction <add>, %280, %cst_208 [1] : vector<8x8xf32> to vector<8xf32>
    %282 = vector.shape_cast %281 : vector<8xf32> to vector<8x1xf32>
    %283 = tpu.reciprocal %282 {approx = true} : vector<8x1xf32> -> vector<8x1xf32>
    %284 = vector.broadcast %283 : vector<8x1xf32> to vector<8x8xf32>
    %285 = arith.mulf %280, %284 : vector<8x8xf32>
    %cst_209 = arith.constant dense<0.000000e+00> : vector<8x8xf32>
    %286 = tpu.matmul %285, %272, %cst_209 {dimension_numbers = #tpu.dot_dimension_numbers<[1], [0], [0], [1], [0, 0, 1, 1], [], []>} : vector<8x8xf32>, vector<8x8xf32>, vector<8x8xf32> -> vector<8x8xf32>
    %c0_210 = arith.constant 0 : index
    %c3_211 = arith.constant 3 : index
    %c0_212 = arith.constant 0 : index
    %c0_213 = arith.constant 0 : index
    %287 = vector.load %arg5[%c0_210, %c3_211, %c0_212, %c0_213] : memref<2x4x8x32xf32, #tpu.memory_space<vmem>>, vector<1x1x8x32xf32>
    %288 = vector.shape_cast %287 : vector<1x1x8x32xf32> to vector<8x32xf32>
    %cst_214 = arith.constant dense<0.000000e+00> : vector<8x32xf32>
    %289 = tpu.matmul %286, %288, %cst_214 {dimension_numbers = #tpu.dot_dimension_numbers<[1], [0], [0], [1], [0, 0, 1, 1], [], []>} : vector<8x8xf32>, vector<8x32xf32>, vector<8x32xf32> -> vector<8x32xf32>
    %290 = arith.addf %269, %289 : vector<8x32xf32>
    %291 = tpu.concatenate %207, %290 in 0 : vector<8x32xf32>, vector<8x32xf32> -> vector<16x32xf32>
    %c0_215 = arith.constant 0 : index
    %c0_216 = arith.constant 0 : index
    %c0_217 = arith.constant 0 : index
    %292 = vector.load %arg8[%c0_215, %c0_216, %c0_217] : memref<2x1x128xf32, #tpu.memory_space<vmem>>, vector<1x1x128xf32>
    %293 = vector.shape_cast %292 : vector<1x1x128xf32> to vector<1x128xf32>
    %294 = vector.extract_strided_slice %293 {offsets = [0, 0], sizes = [1, 32], strides = [1, 1]} : vector<1x128xf32> to vector<1x32xf32>
    %295 = vector.extract_strided_slice %293 {offsets = [0, 32], sizes = [1, 64], strides = [1, 1]} : vector<1x128xf32> to vector<1x64xf32>
    %296 = vector.extract_strided_slice %293 {offsets = [0, 96], sizes = [1, 32], strides = [1, 1]} : vector<1x128xf32> to vector<1x32xf32>
    %297 = arith.addf %0, %291 : vector<16x32xf32>
    %298 = vector.broadcast %294 : vector<1x32xf32> to vector<16x32xf32>
    %299 = arith.addf %297, %298 : vector<16x32xf32>
    %c1_218 = arith.constant 1 : index
    %c0_219 = arith.constant 0 : index
    %c0_220 = arith.constant 0 : index
    %300 = vector.load %arg9[%c1_218, %c0_219, %c0_220] : memref<5x2x32xf32, #tpu.memory_space<vmem>>, vector<1x2x32xf32>
    %301 = vector.shape_cast %300 : vector<1x2x32xf32> to vector<2x32xf32>
    %302 = vector.extract_strided_slice %301 {offsets = [0, 0], sizes = [1, 32], strides = [1, 1]} : vector<2x32xf32> to vector<1x32xf32>
    %303 = vector.extract_strided_slice %301 {offsets = [1, 0], sizes = [1, 32], strides = [1, 1]} : vector<2x32xf32> to vector<1x32xf32>
    %cst_221 = arith.constant dense<0.000000e+00> : vector<16xf32>
    %304 = vector.multi_reduction <add>, %299, %cst_221 [1] : vector<16x32xf32> to vector<16xf32>
    %305 = vector.shape_cast %304 : vector<16xf32> to vector<16x1xf32>
    %cst_222 = arith.constant 3.200000e+01 : f32
    %306 = vector.broadcast %cst_222 : f32 to vector<16x1xf32>
    %307 = arith.divf %305, %306 : vector<16x1xf32>
    %308 = vector.broadcast %307 : vector<16x1xf32> to vector<16x32xf32>
    %309 = arith.subf %299, %308 : vector<16x32xf32>
    %310 = arith.mulf %309, %309 : vector<16x32xf32>
    %cst_223 = arith.constant dense<0.000000e+00> : vector<16xf32>
    %311 = vector.multi_reduction <add>, %310, %cst_223 [1] : vector<16x32xf32> to vector<16xf32>
    %312 = vector.shape_cast %311 : vector<16xf32> to vector<16x1xf32>
    %cst_224 = arith.constant 3.200000e+01 : f32
    %313 = vector.broadcast %cst_224 : f32 to vector<16x1xf32>
    %314 = arith.divf %312, %313 : vector<16x1xf32>
    %315 = vector.broadcast %307 : vector<16x1xf32> to vector<16x32xf32>
    %316 = arith.subf %299, %315 : vector<16x32xf32>
    %cst_225 = arith.constant 9.99999974E-6 : f32
    %317 = vector.broadcast %cst_225 : f32 to vector<16x1xf32>
    %318 = arith.addf %314, %317 : vector<16x1xf32>
    %319 = math.rsqrt %318 : vector<16x1xf32>
    %320 = vector.broadcast %319 : vector<16x1xf32> to vector<16x32xf32>
    %321 = arith.mulf %316, %320 : vector<16x32xf32>
    %322 = vector.broadcast %302 : vector<1x32xf32> to vector<16x32xf32>
    %323 = arith.mulf %321, %322 : vector<16x32xf32>
    %324 = vector.broadcast %303 : vector<1x32xf32> to vector<16x32xf32>
    %325 = arith.addf %323, %324 : vector<16x32xf32>
    %c0_226 = arith.constant 0 : index
    %c0_227 = arith.constant 0 : index
    %c0_228 = arith.constant 0 : index
    %326 = vector.load %arg6[%c0_226, %c0_227, %c0_228] : memref<2x32x64xf32, #tpu.memory_space<vmem>>, vector<1x32x64xf32>
    %327 = vector.shape_cast %326 : vector<1x32x64xf32> to vector<32x64xf32>
    %cst_229 = arith.constant dense<0.000000e+00> : vector<16x64xf32>
    %328 = tpu.matmul %325, %327, %cst_229 {dimension_numbers = #tpu.dot_dimension_numbers<[1], [0], [0], [1], [0, 0, 1, 1], [], []>} : vector<16x32xf32>, vector<32x64xf32>, vector<16x64xf32> -> vector<16x64xf32>
    %329 = vector.broadcast %295 : vector<1x64xf32> to vector<16x64xf32>
    %330 = arith.addf %328, %329 : vector<16x64xf32>
    %cst_230 = arith.constant 0.000000e+00 : f32
    %331 = vector.broadcast %cst_230 : f32 to vector<16x64xf32>
    %332 = arith.maximumf %330, %331 : vector<16x64xf32>
    %c0_231 = arith.constant 0 : index
    %c0_232 = arith.constant 0 : index
    %c0_233 = arith.constant 0 : index
    %333 = vector.load %arg7[%c0_231, %c0_232, %c0_233] : memref<2x64x32xf32, #tpu.memory_space<vmem>>, vector<1x64x32xf32>
    %334 = vector.shape_cast %333 : vector<1x64x32xf32> to vector<64x32xf32>
    %cst_234 = arith.constant dense<0.000000e+00> : vector<16x32xf32>
    %335 = tpu.matmul %332, %334, %cst_234 {dimension_numbers = #tpu.dot_dimension_numbers<[1], [0], [0], [1], [0, 0, 1, 1], [], []>} : vector<16x64xf32>, vector<64x32xf32>, vector<16x32xf32> -> vector<16x32xf32>
    %336 = arith.addf %299, %335 : vector<16x32xf32>
    %337 = vector.broadcast %296 : vector<1x32xf32> to vector<16x32xf32>
    %338 = arith.addf %336, %337 : vector<16x32xf32>
    %c2_235 = arith.constant 2 : index
    %c0_236 = arith.constant 0 : index
    %c0_237 = arith.constant 0 : index
    %339 = vector.load %arg9[%c2_235, %c0_236, %c0_237] : memref<5x2x32xf32, #tpu.memory_space<vmem>>, vector<1x2x32xf32>
    %340 = vector.shape_cast %339 : vector<1x2x32xf32> to vector<2x32xf32>
    %341 = vector.extract_strided_slice %340 {offsets = [0, 0], sizes = [1, 32], strides = [1, 1]} : vector<2x32xf32> to vector<1x32xf32>
    %342 = vector.extract_strided_slice %340 {offsets = [1, 0], sizes = [1, 32], strides = [1, 1]} : vector<2x32xf32> to vector<1x32xf32>
    %cst_238 = arith.constant dense<0.000000e+00> : vector<16xf32>
    %343 = vector.multi_reduction <add>, %338, %cst_238 [1] : vector<16x32xf32> to vector<16xf32>
    %344 = vector.shape_cast %343 : vector<16xf32> to vector<16x1xf32>
    %cst_239 = arith.constant 3.200000e+01 : f32
    %345 = vector.broadcast %cst_239 : f32 to vector<16x1xf32>
    %346 = arith.divf %344, %345 : vector<16x1xf32>
    %347 = vector.broadcast %346 : vector<16x1xf32> to vector<16x32xf32>
    %348 = arith.subf %338, %347 : vector<16x32xf32>
    %349 = arith.mulf %348, %348 : vector<16x32xf32>
    %cst_240 = arith.constant dense<0.000000e+00> : vector<16xf32>
    %350 = vector.multi_reduction <add>, %349, %cst_240 [1] : vector<16x32xf32> to vector<16xf32>
    %351 = vector.shape_cast %350 : vector<16xf32> to vector<16x1xf32>
    %cst_241 = arith.constant 3.200000e+01 : f32
    %352 = vector.broadcast %cst_241 : f32 to vector<16x1xf32>
    %353 = arith.divf %351, %352 : vector<16x1xf32>
    %354 = vector.broadcast %346 : vector<16x1xf32> to vector<16x32xf32>
    %355 = arith.subf %338, %354 : vector<16x32xf32>
    %cst_242 = arith.constant 9.99999974E-6 : f32
    %356 = vector.broadcast %cst_242 : f32 to vector<16x1xf32>
    %357 = arith.addf %353, %356 : vector<16x1xf32>
    %358 = math.rsqrt %357 : vector<16x1xf32>
    %359 = vector.broadcast %358 : vector<16x1xf32> to vector<16x32xf32>
    %360 = arith.mulf %355, %359 : vector<16x32xf32>
    %361 = vector.broadcast %341 : vector<1x32xf32> to vector<16x32xf32>
    %362 = arith.mulf %360, %361 : vector<16x32xf32>
    %363 = vector.broadcast %342 : vector<1x32xf32> to vector<16x32xf32>
    %364 = arith.addf %362, %363 : vector<16x32xf32>
    %c1_243 = arith.constant 1 : index
    %c0_244 = arith.constant 0 : index
    %c0_245 = arith.constant 0 : index
    %c0_246 = arith.constant 0 : index
    %c0_247 = arith.constant 0 : index
    %365 = vector.load %arg3[%c1_243, %c0_244, %c0_245, %c0_246, %c0_247] : memref<2x3x4x32x8xf32, #tpu.memory_space<vmem>>, vector<1x1x1x32x8xf32>
    %366 = vector.shape_cast %365 : vector<1x1x1x32x8xf32> to vector<32x8xf32>
    %cst_248 = arith.constant dense<0.000000e+00> : vector<16x8xf32>
    %367 = tpu.matmul %364, %366, %cst_248 {dimension_numbers = #tpu.dot_dimension_numbers<[1], [0], [0], [1], [0, 0, 1, 1], [], []>} : vector<16x32xf32>, vector<32x8xf32>, vector<16x8xf32> -> vector<16x8xf32>
    %c1_249 = arith.constant 1 : index
    %c0_250 = arith.constant 0 : index
    %c0_251 = arith.constant 0 : index
    %c0_252 = arith.constant 0 : index
    %c0_253 = arith.constant 0 : index
    %368 = vector.load %arg4[%c1_249, %c0_250, %c0_251, %c0_252, %c0_253] : memref<2x3x4x1x8xf32, #tpu.memory_space<vmem>>, vector<1x1x1x1x8xf32>
    %369 = vector.shape_cast %368 : vector<1x1x1x1x8xf32> to vector<1x8xf32>
    %370 = vector.broadcast %369 : vector<1x8xf32> to vector<16x8xf32>
    %371 = arith.addf %367, %370 : vector<16x8xf32>
    %c1_254 = arith.constant 1 : index
    %c1_255 = arith.constant 1 : index
    %c0_256 = arith.constant 0 : index
    %c0_257 = arith.constant 0 : index
    %c0_258 = arith.constant 0 : index
    %372 = vector.load %arg3[%c1_254, %c1_255, %c0_256, %c0_257, %c0_258] : memref<2x3x4x32x8xf32, #tpu.memory_space<vmem>>, vector<1x1x1x32x8xf32>
    %373 = vector.shape_cast %372 : vector<1x1x1x32x8xf32> to vector<32x8xf32>
    %cst_259 = arith.constant dense<0.000000e+00> : vector<16x8xf32>
    %374 = tpu.matmul %364, %373, %cst_259 {dimension_numbers = #tpu.dot_dimension_numbers<[1], [0], [0], [1], [0, 0, 1, 1], [], []>} : vector<16x32xf32>, vector<32x8xf32>, vector<16x8xf32> -> vector<16x8xf32>
    %c1_260 = arith.constant 1 : index
    %c1_261 = arith.constant 1 : index
    %c0_262 = arith.constant 0 : index
    %c0_263 = arith.constant 0 : index
    %c0_264 = arith.constant 0 : index
    %375 = vector.load %arg4[%c1_260, %c1_261, %c0_262, %c0_263, %c0_264] : memref<2x3x4x1x8xf32, #tpu.memory_space<vmem>>, vector<1x1x1x1x8xf32>
    %376 = vector.shape_cast %375 : vector<1x1x1x1x8xf32> to vector<1x8xf32>
    %377 = vector.broadcast %376 : vector<1x8xf32> to vector<16x8xf32>
    %378 = arith.addf %374, %377 : vector<16x8xf32>
    %c1_265 = arith.constant 1 : index
    %c2_266 = arith.constant 2 : index
    %c0_267 = arith.constant 0 : index
    %c0_268 = arith.constant 0 : index
    %c0_269 = arith.constant 0 : index
    %379 = vector.load %arg3[%c1_265, %c2_266, %c0_267, %c0_268, %c0_269] : memref<2x3x4x32x8xf32, #tpu.memory_space<vmem>>, vector<1x1x1x32x8xf32>
    %380 = vector.shape_cast %379 : vector<1x1x1x32x8xf32> to vector<32x8xf32>
    %cst_270 = arith.constant dense<0.000000e+00> : vector<16x8xf32>
    %381 = tpu.matmul %364, %380, %cst_270 {dimension_numbers = #tpu.dot_dimension_numbers<[1], [0], [0], [1], [0, 0, 1, 1], [], []>} : vector<16x32xf32>, vector<32x8xf32>, vector<16x8xf32> -> vector<16x8xf32>
    %c1_271 = arith.constant 1 : index
    %c2_272 = arith.constant 2 : index
    %c0_273 = arith.constant 0 : index
    %c0_274 = arith.constant 0 : index
    %c0_275 = arith.constant 0 : index
    %382 = vector.load %arg4[%c1_271, %c2_272, %c0_273, %c0_274, %c0_275] : memref<2x3x4x1x8xf32, #tpu.memory_space<vmem>>, vector<1x1x1x1x8xf32>
    %383 = vector.shape_cast %382 : vector<1x1x1x1x8xf32> to vector<1x8xf32>
    %384 = vector.broadcast %383 : vector<1x8xf32> to vector<16x8xf32>
    %385 = arith.addf %381, %384 : vector<16x8xf32>
    %c1_276 = arith.constant 1 : index
    %c0_277 = arith.constant 0 : index
    %c1_278 = arith.constant 1 : index
    %c0_279 = arith.constant 0 : index
    %c0_280 = arith.constant 0 : index
    %386 = vector.load %arg3[%c1_276, %c0_277, %c1_278, %c0_279, %c0_280] : memref<2x3x4x32x8xf32, #tpu.memory_space<vmem>>, vector<1x1x1x32x8xf32>
    %387 = vector.shape_cast %386 : vector<1x1x1x32x8xf32> to vector<32x8xf32>
    %cst_281 = arith.constant dense<0.000000e+00> : vector<16x8xf32>
    %388 = tpu.matmul %364, %387, %cst_281 {dimension_numbers = #tpu.dot_dimension_numbers<[1], [0], [0], [1], [0, 0, 1, 1], [], []>} : vector<16x32xf32>, vector<32x8xf32>, vector<16x8xf32> -> vector<16x8xf32>
    %c1_282 = arith.constant 1 : index
    %c0_283 = arith.constant 0 : index
    %c1_284 = arith.constant 1 : index
    %c0_285 = arith.constant 0 : index
    %c0_286 = arith.constant 0 : index
    %389 = vector.load %arg4[%c1_282, %c0_283, %c1_284, %c0_285, %c0_286] : memref<2x3x4x1x8xf32, #tpu.memory_space<vmem>>, vector<1x1x1x1x8xf32>
    %390 = vector.shape_cast %389 : vector<1x1x1x1x8xf32> to vector<1x8xf32>
    %391 = vector.broadcast %390 : vector<1x8xf32> to vector<16x8xf32>
    %392 = arith.addf %388, %391 : vector<16x8xf32>
    %c1_287 = arith.constant 1 : index
    %c1_288 = arith.constant 1 : index
    %c1_289 = arith.constant 1 : index
    %c0_290 = arith.constant 0 : index
    %c0_291 = arith.constant 0 : index
    %393 = vector.load %arg3[%c1_287, %c1_288, %c1_289, %c0_290, %c0_291] : memref<2x3x4x32x8xf32, #tpu.memory_space<vmem>>, vector<1x1x1x32x8xf32>
    %394 = vector.shape_cast %393 : vector<1x1x1x32x8xf32> to vector<32x8xf32>
    %cst_292 = arith.constant dense<0.000000e+00> : vector<16x8xf32>
    %395 = tpu.matmul %364, %394, %cst_292 {dimension_numbers = #tpu.dot_dimension_numbers<[1], [0], [0], [1], [0, 0, 1, 1], [], []>} : vector<16x32xf32>, vector<32x8xf32>, vector<16x8xf32> -> vector<16x8xf32>
    %c1_293 = arith.constant 1 : index
    %c1_294 = arith.constant 1 : index
    %c1_295 = arith.constant 1 : index
    %c0_296 = arith.constant 0 : index
    %c0_297 = arith.constant 0 : index
    %396 = vector.load %arg4[%c1_293, %c1_294, %c1_295, %c0_296, %c0_297] : memref<2x3x4x1x8xf32, #tpu.memory_space<vmem>>, vector<1x1x1x1x8xf32>
    %397 = vector.shape_cast %396 : vector<1x1x1x1x8xf32> to vector<1x8xf32>
    %398 = vector.broadcast %397 : vector<1x8xf32> to vector<16x8xf32>
    %399 = arith.addf %395, %398 : vector<16x8xf32>
    %c1_298 = arith.constant 1 : index
    %c2_299 = arith.constant 2 : index
    %c1_300 = arith.constant 1 : index
    %c0_301 = arith.constant 0 : index
    %c0_302 = arith.constant 0 : index
    %400 = vector.load %arg3[%c1_298, %c2_299, %c1_300, %c0_301, %c0_302] : memref<2x3x4x32x8xf32, #tpu.memory_space<vmem>>, vector<1x1x1x32x8xf32>
    %401 = vector.shape_cast %400 : vector<1x1x1x32x8xf32> to vector<32x8xf32>
    %cst_303 = arith.constant dense<0.000000e+00> : vector<16x8xf32>
    %402 = tpu.matmul %364, %401, %cst_303 {dimension_numbers = #tpu.dot_dimension_numbers<[1], [0], [0], [1], [0, 0, 1, 1], [], []>} : vector<16x32xf32>, vector<32x8xf32>, vector<16x8xf32> -> vector<16x8xf32>
    %c1_304 = arith.constant 1 : index
    %c2_305 = arith.constant 2 : index
    %c1_306 = arith.constant 1 : index
    %c0_307 = arith.constant 0 : index
    %c0_308 = arith.constant 0 : index
    %403 = vector.load %arg4[%c1_304, %c2_305, %c1_306, %c0_307, %c0_308] : memref<2x3x4x1x8xf32, #tpu.memory_space<vmem>>, vector<1x1x1x1x8xf32>
    %404 = vector.shape_cast %403 : vector<1x1x1x1x8xf32> to vector<1x8xf32>
    %405 = vector.broadcast %404 : vector<1x8xf32> to vector<16x8xf32>
    %406 = arith.addf %402, %405 : vector<16x8xf32>
    %c1_309 = arith.constant 1 : index
    %c0_310 = arith.constant 0 : index
    %c2_311 = arith.constant 2 : index
    %c0_312 = arith.constant 0 : index
    %c0_313 = arith.constant 0 : index
    %407 = vector.load %arg3[%c1_309, %c0_310, %c2_311, %c0_312, %c0_313] : memref<2x3x4x32x8xf32, #tpu.memory_space<vmem>>, vector<1x1x1x32x8xf32>
    %408 = vector.shape_cast %407 : vector<1x1x1x32x8xf32> to vector<32x8xf32>
    %cst_314 = arith.constant dense<0.000000e+00> : vector<16x8xf32>
    %409 = tpu.matmul %364, %408, %cst_314 {dimension_numbers = #tpu.dot_dimension_numbers<[1], [0], [0], [1], [0, 0, 1, 1], [], []>} : vector<16x32xf32>, vector<32x8xf32>, vector<16x8xf32> -> vector<16x8xf32>
    %c1_315 = arith.constant 1 : index
    %c0_316 = arith.constant 0 : index
    %c2_317 = arith.constant 2 : index
    %c0_318 = arith.constant 0 : index
    %c0_319 = arith.constant 0 : index
    %410 = vector.load %arg4[%c1_315, %c0_316, %c2_317, %c0_318, %c0_319] : memref<2x3x4x1x8xf32, #tpu.memory_space<vmem>>, vector<1x1x1x1x8xf32>
    %411 = vector.shape_cast %410 : vector<1x1x1x1x8xf32> to vector<1x8xf32>
    %412 = vector.broadcast %411 : vector<1x8xf32> to vector<16x8xf32>
    %413 = arith.addf %409, %412 : vector<16x8xf32>
    %c1_320 = arith.constant 1 : index
    %c1_321 = arith.constant 1 : index
    %c2_322 = arith.constant 2 : index
    %c0_323 = arith.constant 0 : index
    %c0_324 = arith.constant 0 : index
    %414 = vector.load %arg3[%c1_320, %c1_321, %c2_322, %c0_323, %c0_324] : memref<2x3x4x32x8xf32, #tpu.memory_space<vmem>>, vector<1x1x1x32x8xf32>
    %415 = vector.shape_cast %414 : vector<1x1x1x32x8xf32> to vector<32x8xf32>
    %cst_325 = arith.constant dense<0.000000e+00> : vector<16x8xf32>
    %416 = tpu.matmul %364, %415, %cst_325 {dimension_numbers = #tpu.dot_dimension_numbers<[1], [0], [0], [1], [0, 0, 1, 1], [], []>} : vector<16x32xf32>, vector<32x8xf32>, vector<16x8xf32> -> vector<16x8xf32>
    %c1_326 = arith.constant 1 : index
    %c1_327 = arith.constant 1 : index
    %c2_328 = arith.constant 2 : index
    %c0_329 = arith.constant 0 : index
    %c0_330 = arith.constant 0 : index
    %417 = vector.load %arg4[%c1_326, %c1_327, %c2_328, %c0_329, %c0_330] : memref<2x3x4x1x8xf32, #tpu.memory_space<vmem>>, vector<1x1x1x1x8xf32>
    %418 = vector.shape_cast %417 : vector<1x1x1x1x8xf32> to vector<1x8xf32>
    %419 = vector.broadcast %418 : vector<1x8xf32> to vector<16x8xf32>
    %420 = arith.addf %416, %419 : vector<16x8xf32>
    %c1_331 = arith.constant 1 : index
    %c2_332 = arith.constant 2 : index
    %c2_333 = arith.constant 2 : index
    %c0_334 = arith.constant 0 : index
    %c0_335 = arith.constant 0 : index
    %421 = vector.load %arg3[%c1_331, %c2_332, %c2_333, %c0_334, %c0_335] : memref<2x3x4x32x8xf32, #tpu.memory_space<vmem>>, vector<1x1x1x32x8xf32>
    %422 = vector.shape_cast %421 : vector<1x1x1x32x8xf32> to vector<32x8xf32>
    %cst_336 = arith.constant dense<0.000000e+00> : vector<16x8xf32>
    %423 = tpu.matmul %364, %422, %cst_336 {dimension_numbers = #tpu.dot_dimension_numbers<[1], [0], [0], [1], [0, 0, 1, 1], [], []>} : vector<16x32xf32>, vector<32x8xf32>, vector<16x8xf32> -> vector<16x8xf32>
    %c1_337 = arith.constant 1 : index
    %c2_338 = arith.constant 2 : index
    %c2_339 = arith.constant 2 : index
    %c0_340 = arith.constant 0 : index
    %c0_341 = arith.constant 0 : index
    %424 = vector.load %arg4[%c1_337, %c2_338, %c2_339, %c0_340, %c0_341] : memref<2x3x4x1x8xf32, #tpu.memory_space<vmem>>, vector<1x1x1x1x8xf32>
    %425 = vector.shape_cast %424 : vector<1x1x1x1x8xf32> to vector<1x8xf32>
    %426 = vector.broadcast %425 : vector<1x8xf32> to vector<16x8xf32>
    %427 = arith.addf %423, %426 : vector<16x8xf32>
    %c1_342 = arith.constant 1 : index
    %c0_343 = arith.constant 0 : index
    %c3_344 = arith.constant 3 : index
    %c0_345 = arith.constant 0 : index
    %c0_346 = arith.constant 0 : index
    %428 = vector.load %arg3[%c1_342, %c0_343, %c3_344, %c0_345, %c0_346] : memref<2x3x4x32x8xf32, #tpu.memory_space<vmem>>, vector<1x1x1x32x8xf32>
    %429 = vector.shape_cast %428 : vector<1x1x1x32x8xf32> to vector<32x8xf32>
    %cst_347 = arith.constant dense<0.000000e+00> : vector<16x8xf32>
    %430 = tpu.matmul %364, %429, %cst_347 {dimension_numbers = #tpu.dot_dimension_numbers<[1], [0], [0], [1], [0, 0, 1, 1], [], []>} : vector<16x32xf32>, vector<32x8xf32>, vector<16x8xf32> -> vector<16x8xf32>
    %c1_348 = arith.constant 1 : index
    %c0_349 = arith.constant 0 : index
    %c3_350 = arith.constant 3 : index
    %c0_351 = arith.constant 0 : index
    %c0_352 = arith.constant 0 : index
    %431 = vector.load %arg4[%c1_348, %c0_349, %c3_350, %c0_351, %c0_352] : memref<2x3x4x1x8xf32, #tpu.memory_space<vmem>>, vector<1x1x1x1x8xf32>
    %432 = vector.shape_cast %431 : vector<1x1x1x1x8xf32> to vector<1x8xf32>
    %433 = vector.broadcast %432 : vector<1x8xf32> to vector<16x8xf32>
    %434 = arith.addf %430, %433 : vector<16x8xf32>
    %c1_353 = arith.constant 1 : index
    %c1_354 = arith.constant 1 : index
    %c3_355 = arith.constant 3 : index
    %c0_356 = arith.constant 0 : index
    %c0_357 = arith.constant 0 : index
    %435 = vector.load %arg3[%c1_353, %c1_354, %c3_355, %c0_356, %c0_357] : memref<2x3x4x32x8xf32, #tpu.memory_space<vmem>>, vector<1x1x1x32x8xf32>
    %436 = vector.shape_cast %435 : vector<1x1x1x32x8xf32> to vector<32x8xf32>
    %cst_358 = arith.constant dense<0.000000e+00> : vector<16x8xf32>
    %437 = tpu.matmul %364, %436, %cst_358 {dimension_numbers = #tpu.dot_dimension_numbers<[1], [0], [0], [1], [0, 0, 1, 1], [], []>} : vector<16x32xf32>, vector<32x8xf32>, vector<16x8xf32> -> vector<16x8xf32>
    %c1_359 = arith.constant 1 : index
    %c1_360 = arith.constant 1 : index
    %c3_361 = arith.constant 3 : index
    %c0_362 = arith.constant 0 : index
    %c0_363 = arith.constant 0 : index
    %438 = vector.load %arg4[%c1_359, %c1_360, %c3_361, %c0_362, %c0_363] : memref<2x3x4x1x8xf32, #tpu.memory_space<vmem>>, vector<1x1x1x1x8xf32>
    %439 = vector.shape_cast %438 : vector<1x1x1x1x8xf32> to vector<1x8xf32>
    %440 = vector.broadcast %439 : vector<1x8xf32> to vector<16x8xf32>
    %441 = arith.addf %437, %440 : vector<16x8xf32>
    %c1_364 = arith.constant 1 : index
    %c2_365 = arith.constant 2 : index
    %c3_366 = arith.constant 3 : index
    %c0_367 = arith.constant 0 : index
    %c0_368 = arith.constant 0 : index
    %442 = vector.load %arg3[%c1_364, %c2_365, %c3_366, %c0_367, %c0_368] : memref<2x3x4x32x8xf32, #tpu.memory_space<vmem>>, vector<1x1x1x32x8xf32>
    %443 = vector.shape_cast %442 : vector<1x1x1x32x8xf32> to vector<32x8xf32>
    %cst_369 = arith.constant dense<0.000000e+00> : vector<16x8xf32>
    %444 = tpu.matmul %364, %443, %cst_369 {dimension_numbers = #tpu.dot_dimension_numbers<[1], [0], [0], [1], [0, 0, 1, 1], [], []>} : vector<16x32xf32>, vector<32x8xf32>, vector<16x8xf32> -> vector<16x8xf32>
    %c1_370 = arith.constant 1 : index
    %c2_371 = arith.constant 2 : index
    %c3_372 = arith.constant 3 : index
    %c0_373 = arith.constant 0 : index
    %c0_374 = arith.constant 0 : index
    %445 = vector.load %arg4[%c1_370, %c2_371, %c3_372, %c0_373, %c0_374] : memref<2x3x4x1x8xf32, #tpu.memory_space<vmem>>, vector<1x1x1x1x8xf32>
    %446 = vector.shape_cast %445 : vector<1x1x1x1x8xf32> to vector<1x8xf32>
    %447 = vector.broadcast %446 : vector<1x8xf32> to vector<16x8xf32>
    %448 = arith.addf %444, %447 : vector<16x8xf32>
    %449 = vector.extract_strided_slice %371 {offsets = [0, 0], sizes = [8, 8], strides = [1, 1]} : vector<16x8xf32> to vector<8x8xf32>
    %450 = vector.extract_strided_slice %378 {offsets = [0, 0], sizes = [8, 8], strides = [1, 1]} : vector<16x8xf32> to vector<8x8xf32>
    %451 = vector.extract_strided_slice %385 {offsets = [0, 0], sizes = [8, 8], strides = [1, 1]} : vector<16x8xf32> to vector<8x8xf32>
    %452 = tpu.transpose %450, [1, 0] : vector<8x8xf32> -> vector<8x8xf32>
    %cst_375 = arith.constant dense<0.000000e+00> : vector<8x8xf32>
    %453 = tpu.matmul %449, %452, %cst_375 {dimension_numbers = #tpu.dot_dimension_numbers<[1], [0], [0], [1], [0, 0, 1, 1], [], []>} : vector<8x8xf32>, vector<8x8xf32>, vector<8x8xf32> -> vector<8x8xf32>
    %454 = arith.addf %453, %10 : vector<8x8xf32>
    %cst_376 = arith.constant dense<0xFF800000> : vector<8xf32>
    %455 = vector.multi_reduction <maximumf>, %454, %cst_376 [1] : vector<8x8xf32> to vector<8xf32>
    %456 = vector.shape_cast %455 : vector<8xf32> to vector<8x1xf32>
    %457 = vector.broadcast %456 : vector<8x1xf32> to vector<8x8xf32>
    %458 = arith.subf %454, %457 : vector<8x8xf32>
    %459 = math.exp %458 : vector<8x8xf32>
    %cst_377 = arith.constant dense<0.000000e+00> : vector<8xf32>
    %460 = vector.multi_reduction <add>, %459, %cst_377 [1] : vector<8x8xf32> to vector<8xf32>
    %461 = vector.shape_cast %460 : vector<8xf32> to vector<8x1xf32>
    %462 = tpu.reciprocal %461 {approx = true} : vector<8x1xf32> -> vector<8x1xf32>
    %463 = vector.broadcast %462 : vector<8x1xf32> to vector<8x8xf32>
    %464 = arith.mulf %459, %463 : vector<8x8xf32>
    %cst_378 = arith.constant dense<0.000000e+00> : vector<8x8xf32>
    %465 = tpu.matmul %464, %451, %cst_378 {dimension_numbers = #tpu.dot_dimension_numbers<[1], [0], [0], [1], [0, 0, 1, 1], [], []>} : vector<8x8xf32>, vector<8x8xf32>, vector<8x8xf32> -> vector<8x8xf32>
    %c1_379 = arith.constant 1 : index
    %c0_380 = arith.constant 0 : index
    %c0_381 = arith.constant 0 : index
    %c0_382 = arith.constant 0 : index
    %466 = vector.load %arg5[%c1_379, %c0_380, %c0_381, %c0_382] : memref<2x4x8x32xf32, #tpu.memory_space<vmem>>, vector<1x1x8x32xf32>
    %467 = vector.shape_cast %466 : vector<1x1x8x32xf32> to vector<8x32xf32>
    %cst_383 = arith.constant dense<0.000000e+00> : vector<8x32xf32>
    %468 = tpu.matmul %465, %467, %cst_383 {dimension_numbers = #tpu.dot_dimension_numbers<[1], [0], [0], [1], [0, 0, 1, 1], [], []>} : vector<8x8xf32>, vector<8x32xf32>, vector<8x32xf32> -> vector<8x32xf32>
    %469 = vector.extract_strided_slice %392 {offsets = [0, 0], sizes = [8, 8], strides = [1, 1]} : vector<16x8xf32> to vector<8x8xf32>
    %470 = vector.extract_strided_slice %399 {offsets = [0, 0], sizes = [8, 8], strides = [1, 1]} : vector<16x8xf32> to vector<8x8xf32>
    %471 = vector.extract_strided_slice %406 {offsets = [0, 0], sizes = [8, 8], strides = [1, 1]} : vector<16x8xf32> to vector<8x8xf32>
    %472 = tpu.transpose %470, [1, 0] : vector<8x8xf32> -> vector<8x8xf32>
    %cst_384 = arith.constant dense<0.000000e+00> : vector<8x8xf32>
    %473 = tpu.matmul %469, %472, %cst_384 {dimension_numbers = #tpu.dot_dimension_numbers<[1], [0], [0], [1], [0, 0, 1, 1], [], []>} : vector<8x8xf32>, vector<8x8xf32>, vector<8x8xf32> -> vector<8x8xf32>
    %474 = arith.addf %473, %10 : vector<8x8xf32>
    %cst_385 = arith.constant dense<0xFF800000> : vector<8xf32>
    %475 = vector.multi_reduction <maximumf>, %474, %cst_385 [1] : vector<8x8xf32> to vector<8xf32>
    %476 = vector.shape_cast %475 : vector<8xf32> to vector<8x1xf32>
    %477 = vector.broadcast %476 : vector<8x1xf32> to vector<8x8xf32>
    %478 = arith.subf %474, %477 : vector<8x8xf32>
    %479 = math.exp %478 : vector<8x8xf32>
    %cst_386 = arith.constant dense<0.000000e+00> : vector<8xf32>
    %480 = vector.multi_reduction <add>, %479, %cst_386 [1] : vector<8x8xf32> to vector<8xf32>
    %481 = vector.shape_cast %480 : vector<8xf32> to vector<8x1xf32>
    %482 = tpu.reciprocal %481 {approx = true} : vector<8x1xf32> -> vector<8x1xf32>
    %483 = vector.broadcast %482 : vector<8x1xf32> to vector<8x8xf32>
    %484 = arith.mulf %479, %483 : vector<8x8xf32>
    %cst_387 = arith.constant dense<0.000000e+00> : vector<8x8xf32>
    %485 = tpu.matmul %484, %471, %cst_387 {dimension_numbers = #tpu.dot_dimension_numbers<[1], [0], [0], [1], [0, 0, 1, 1], [], []>} : vector<8x8xf32>, vector<8x8xf32>, vector<8x8xf32> -> vector<8x8xf32>
    %c1_388 = arith.constant 1 : index
    %c1_389 = arith.constant 1 : index
    %c0_390 = arith.constant 0 : index
    %c0_391 = arith.constant 0 : index
    %486 = vector.load %arg5[%c1_388, %c1_389, %c0_390, %c0_391] : memref<2x4x8x32xf32, #tpu.memory_space<vmem>>, vector<1x1x8x32xf32>
    %487 = vector.shape_cast %486 : vector<1x1x8x32xf32> to vector<8x32xf32>
    %cst_392 = arith.constant dense<0.000000e+00> : vector<8x32xf32>
    %488 = tpu.matmul %485, %487, %cst_392 {dimension_numbers = #tpu.dot_dimension_numbers<[1], [0], [0], [1], [0, 0, 1, 1], [], []>} : vector<8x8xf32>, vector<8x32xf32>, vector<8x32xf32> -> vector<8x32xf32>
    %489 = arith.addf %468, %488 : vector<8x32xf32>
    %490 = vector.extract_strided_slice %413 {offsets = [0, 0], sizes = [8, 8], strides = [1, 1]} : vector<16x8xf32> to vector<8x8xf32>
    %491 = vector.extract_strided_slice %420 {offsets = [0, 0], sizes = [8, 8], strides = [1, 1]} : vector<16x8xf32> to vector<8x8xf32>
    %492 = vector.extract_strided_slice %427 {offsets = [0, 0], sizes = [8, 8], strides = [1, 1]} : vector<16x8xf32> to vector<8x8xf32>
    %493 = tpu.transpose %491, [1, 0] : vector<8x8xf32> -> vector<8x8xf32>
    %cst_393 = arith.constant dense<0.000000e+00> : vector<8x8xf32>
    %494 = tpu.matmul %490, %493, %cst_393 {dimension_numbers = #tpu.dot_dimension_numbers<[1], [0], [0], [1], [0, 0, 1, 1], [], []>} : vector<8x8xf32>, vector<8x8xf32>, vector<8x8xf32> -> vector<8x8xf32>
    %495 = arith.addf %494, %10 : vector<8x8xf32>
    %cst_394 = arith.constant dense<0xFF800000> : vector<8xf32>
    %496 = vector.multi_reduction <maximumf>, %495, %cst_394 [1] : vector<8x8xf32> to vector<8xf32>
    %497 = vector.shape_cast %496 : vector<8xf32> to vector<8x1xf32>
    %498 = vector.broadcast %497 : vector<8x1xf32> to vector<8x8xf32>
    %499 = arith.subf %495, %498 : vector<8x8xf32>
    %500 = math.exp %499 : vector<8x8xf32>
    %cst_395 = arith.constant dense<0.000000e+00> : vector<8xf32>
    %501 = vector.multi_reduction <add>, %500, %cst_395 [1] : vector<8x8xf32> to vector<8xf32>
    %502 = vector.shape_cast %501 : vector<8xf32> to vector<8x1xf32>
    %503 = tpu.reciprocal %502 {approx = true} : vector<8x1xf32> -> vector<8x1xf32>
    %504 = vector.broadcast %503 : vector<8x1xf32> to vector<8x8xf32>
    %505 = arith.mulf %500, %504 : vector<8x8xf32>
    %cst_396 = arith.constant dense<0.000000e+00> : vector<8x8xf32>
    %506 = tpu.matmul %505, %492, %cst_396 {dimension_numbers = #tpu.dot_dimension_numbers<[1], [0], [0], [1], [0, 0, 1, 1], [], []>} : vector<8x8xf32>, vector<8x8xf32>, vector<8x8xf32> -> vector<8x8xf32>
    %c1_397 = arith.constant 1 : index
    %c2_398 = arith.constant 2 : index
    %c0_399 = arith.constant 0 : index
    %c0_400 = arith.constant 0 : index
    %507 = vector.load %arg5[%c1_397, %c2_398, %c0_399, %c0_400] : memref<2x4x8x32xf32, #tpu.memory_space<vmem>>, vector<1x1x8x32xf32>
    %508 = vector.shape_cast %507 : vector<1x1x8x32xf32> to vector<8x32xf32>
    %cst_401 = arith.constant dense<0.000000e+00> : vector<8x32xf32>
    %509 = tpu.matmul %506, %508, %cst_401 {dimension_numbers = #tpu.dot_dimension_numbers<[1], [0], [0], [1], [0, 0, 1, 1], [], []>} : vector<8x8xf32>, vector<8x32xf32>, vector<8x32xf32> -> vector<8x32xf32>
    %510 = arith.addf %489, %509 : vector<8x32xf32>
    %511 = vector.extract_strided_slice %434 {offsets = [0, 0], sizes = [8, 8], strides = [1, 1]} : vector<16x8xf32> to vector<8x8xf32>
    %512 = vector.extract_strided_slice %441 {offsets = [0, 0], sizes = [8, 8], strides = [1, 1]} : vector<16x8xf32> to vector<8x8xf32>
    %513 = vector.extract_strided_slice %448 {offsets = [0, 0], sizes = [8, 8], strides = [1, 1]} : vector<16x8xf32> to vector<8x8xf32>
    %514 = tpu.transpose %512, [1, 0] : vector<8x8xf32> -> vector<8x8xf32>
    %cst_402 = arith.constant dense<0.000000e+00> : vector<8x8xf32>
    %515 = tpu.matmul %511, %514, %cst_402 {dimension_numbers = #tpu.dot_dimension_numbers<[1], [0], [0], [1], [0, 0, 1, 1], [], []>} : vector<8x8xf32>, vector<8x8xf32>, vector<8x8xf32> -> vector<8x8xf32>
    %516 = arith.addf %515, %10 : vector<8x8xf32>
    %cst_403 = arith.constant dense<0xFF800000> : vector<8xf32>
    %517 = vector.multi_reduction <maximumf>, %516, %cst_403 [1] : vector<8x8xf32> to vector<8xf32>
    %518 = vector.shape_cast %517 : vector<8xf32> to vector<8x1xf32>
    %519 = vector.broadcast %518 : vector<8x1xf32> to vector<8x8xf32>
    %520 = arith.subf %516, %519 : vector<8x8xf32>
    %521 = math.exp %520 : vector<8x8xf32>
    %cst_404 = arith.constant dense<0.000000e+00> : vector<8xf32>
    %522 = vector.multi_reduction <add>, %521, %cst_404 [1] : vector<8x8xf32> to vector<8xf32>
    %523 = vector.shape_cast %522 : vector<8xf32> to vector<8x1xf32>
    %524 = tpu.reciprocal %523 {approx = true} : vector<8x1xf32> -> vector<8x1xf32>
    %525 = vector.broadcast %524 : vector<8x1xf32> to vector<8x8xf32>
    %526 = arith.mulf %521, %525 : vector<8x8xf32>
    %cst_405 = arith.constant dense<0.000000e+00> : vector<8x8xf32>
    %527 = tpu.matmul %526, %513, %cst_405 {dimension_numbers = #tpu.dot_dimension_numbers<[1], [0], [0], [1], [0, 0, 1, 1], [], []>} : vector<8x8xf32>, vector<8x8xf32>, vector<8x8xf32> -> vector<8x8xf32>
    %c1_406 = arith.constant 1 : index
    %c3_407 = arith.constant 3 : index
    %c0_408 = arith.constant 0 : index
    %c0_409 = arith.constant 0 : index
    %528 = vector.load %arg5[%c1_406, %c3_407, %c0_408, %c0_409] : memref<2x4x8x32xf32, #tpu.memory_space<vmem>>, vector<1x1x8x32xf32>
    %529 = vector.shape_cast %528 : vector<1x1x8x32xf32> to vector<8x32xf32>
    %cst_410 = arith.constant dense<0.000000e+00> : vector<8x32xf32>
    %530 = tpu.matmul %527, %529, %cst_410 {dimension_numbers = #tpu.dot_dimension_numbers<[1], [0], [0], [1], [0, 0, 1, 1], [], []>} : vector<8x8xf32>, vector<8x32xf32>, vector<8x32xf32> -> vector<8x32xf32>
    %531 = arith.addf %510, %530 : vector<8x32xf32>
    %532 = vector.extract_strided_slice %371 {offsets = [8, 0], sizes = [8, 8], strides = [1, 1]} : vector<16x8xf32> to vector<8x8xf32>
    %533 = vector.extract_strided_slice %378 {offsets = [8, 0], sizes = [8, 8], strides = [1, 1]} : vector<16x8xf32> to vector<8x8xf32>
    %534 = vector.extract_strided_slice %385 {offsets = [8, 0], sizes = [8, 8], strides = [1, 1]} : vector<16x8xf32> to vector<8x8xf32>
    %535 = tpu.transpose %533, [1, 0] : vector<8x8xf32> -> vector<8x8xf32>
    %cst_411 = arith.constant dense<0.000000e+00> : vector<8x8xf32>
    %536 = tpu.matmul %532, %535, %cst_411 {dimension_numbers = #tpu.dot_dimension_numbers<[1], [0], [0], [1], [0, 0, 1, 1], [], []>} : vector<8x8xf32>, vector<8x8xf32>, vector<8x8xf32> -> vector<8x8xf32>
    %537 = arith.addf %536, %14 : vector<8x8xf32>
    %cst_412 = arith.constant dense<0xFF800000> : vector<8xf32>
    %538 = vector.multi_reduction <maximumf>, %537, %cst_412 [1] : vector<8x8xf32> to vector<8xf32>
    %539 = vector.shape_cast %538 : vector<8xf32> to vector<8x1xf32>
    %540 = vector.broadcast %539 : vector<8x1xf32> to vector<8x8xf32>
    %541 = arith.subf %537, %540 : vector<8x8xf32>
    %542 = math.exp %541 : vector<8x8xf32>
    %cst_413 = arith.constant dense<0.000000e+00> : vector<8xf32>
    %543 = vector.multi_reduction <add>, %542, %cst_413 [1] : vector<8x8xf32> to vector<8xf32>
    %544 = vector.shape_cast %543 : vector<8xf32> to vector<8x1xf32>
    %545 = tpu.reciprocal %544 {approx = true} : vector<8x1xf32> -> vector<8x1xf32>
    %546 = vector.broadcast %545 : vector<8x1xf32> to vector<8x8xf32>
    %547 = arith.mulf %542, %546 : vector<8x8xf32>
    %cst_414 = arith.constant dense<0.000000e+00> : vector<8x8xf32>
    %548 = tpu.matmul %547, %534, %cst_414 {dimension_numbers = #tpu.dot_dimension_numbers<[1], [0], [0], [1], [0, 0, 1, 1], [], []>} : vector<8x8xf32>, vector<8x8xf32>, vector<8x8xf32> -> vector<8x8xf32>
    %c1_415 = arith.constant 1 : index
    %c0_416 = arith.constant 0 : index
    %c0_417 = arith.constant 0 : index
    %c0_418 = arith.constant 0 : index
    %549 = vector.load %arg5[%c1_415, %c0_416, %c0_417, %c0_418] : memref<2x4x8x32xf32, #tpu.memory_space<vmem>>, vector<1x1x8x32xf32>
    %550 = vector.shape_cast %549 : vector<1x1x8x32xf32> to vector<8x32xf32>
    %cst_419 = arith.constant dense<0.000000e+00> : vector<8x32xf32>
    %551 = tpu.matmul %548, %550, %cst_419 {dimension_numbers = #tpu.dot_dimension_numbers<[1], [0], [0], [1], [0, 0, 1, 1], [], []>} : vector<8x8xf32>, vector<8x32xf32>, vector<8x32xf32> -> vector<8x32xf32>
    %552 = vector.extract_strided_slice %392 {offsets = [8, 0], sizes = [8, 8], strides = [1, 1]} : vector<16x8xf32> to vector<8x8xf32>
    %553 = vector.extract_strided_slice %399 {offsets = [8, 0], sizes = [8, 8], strides = [1, 1]} : vector<16x8xf32> to vector<8x8xf32>
    %554 = vector.extract_strided_slice %406 {offsets = [8, 0], sizes = [8, 8], strides = [1, 1]} : vector<16x8xf32> to vector<8x8xf32>
    %555 = tpu.transpose %553, [1, 0] : vector<8x8xf32> -> vector<8x8xf32>
    %cst_420 = arith.constant dense<0.000000e+00> : vector<8x8xf32>
    %556 = tpu.matmul %552, %555, %cst_420 {dimension_numbers = #tpu.dot_dimension_numbers<[1], [0], [0], [1], [0, 0, 1, 1], [], []>} : vector<8x8xf32>, vector<8x8xf32>, vector<8x8xf32> -> vector<8x8xf32>
    %557 = arith.addf %556, %14 : vector<8x8xf32>
    %cst_421 = arith.constant dense<0xFF800000> : vector<8xf32>
    %558 = vector.multi_reduction <maximumf>, %557, %cst_421 [1] : vector<8x8xf32> to vector<8xf32>
    %559 = vector.shape_cast %558 : vector<8xf32> to vector<8x1xf32>
    %560 = vector.broadcast %559 : vector<8x1xf32> to vector<8x8xf32>
    %561 = arith.subf %557, %560 : vector<8x8xf32>
    %562 = math.exp %561 : vector<8x8xf32>
    %cst_422 = arith.constant dense<0.000000e+00> : vector<8xf32>
    %563 = vector.multi_reduction <add>, %562, %cst_422 [1] : vector<8x8xf32> to vector<8xf32>
    %564 = vector.shape_cast %563 : vector<8xf32> to vector<8x1xf32>
    %565 = tpu.reciprocal %564 {approx = true} : vector<8x1xf32> -> vector<8x1xf32>
    %566 = vector.broadcast %565 : vector<8x1xf32> to vector<8x8xf32>
    %567 = arith.mulf %562, %566 : vector<8x8xf32>
    %cst_423 = arith.constant dense<0.000000e+00> : vector<8x8xf32>
    %568 = tpu.matmul %567, %554, %cst_423 {dimension_numbers = #tpu.dot_dimension_numbers<[1], [0], [0], [1], [0, 0, 1, 1], [], []>} : vector<8x8xf32>, vector<8x8xf32>, vector<8x8xf32> -> vector<8x8xf32>
    %c1_424 = arith.constant 1 : index
    %c1_425 = arith.constant 1 : index
    %c0_426 = arith.constant 0 : index
    %c0_427 = arith.constant 0 : index
    %569 = vector.load %arg5[%c1_424, %c1_425, %c0_426, %c0_427] : memref<2x4x8x32xf32, #tpu.memory_space<vmem>>, vector<1x1x8x32xf32>
    %570 = vector.shape_cast %569 : vector<1x1x8x32xf32> to vector<8x32xf32>
    %cst_428 = arith.constant dense<0.000000e+00> : vector<8x32xf32>
    %571 = tpu.matmul %568, %570, %cst_428 {dimension_numbers = #tpu.dot_dimension_numbers<[1], [0], [0], [1], [0, 0, 1, 1], [], []>} : vector<8x8xf32>, vector<8x32xf32>, vector<8x32xf32> -> vector<8x32xf32>
    %572 = arith.addf %551, %571 : vector<8x32xf32>
    %573 = vector.extract_strided_slice %413 {offsets = [8, 0], sizes = [8, 8], strides = [1, 1]} : vector<16x8xf32> to vector<8x8xf32>
    %574 = vector.extract_strided_slice %420 {offsets = [8, 0], sizes = [8, 8], strides = [1, 1]} : vector<16x8xf32> to vector<8x8xf32>
    %575 = vector.extract_strided_slice %427 {offsets = [8, 0], sizes = [8, 8], strides = [1, 1]} : vector<16x8xf32> to vector<8x8xf32>
    %576 = tpu.transpose %574, [1, 0] : vector<8x8xf32> -> vector<8x8xf32>
    %cst_429 = arith.constant dense<0.000000e+00> : vector<8x8xf32>
    %577 = tpu.matmul %573, %576, %cst_429 {dimension_numbers = #tpu.dot_dimension_numbers<[1], [0], [0], [1], [0, 0, 1, 1], [], []>} : vector<8x8xf32>, vector<8x8xf32>, vector<8x8xf32> -> vector<8x8xf32>
    %578 = arith.addf %577, %14 : vector<8x8xf32>
    %cst_430 = arith.constant dense<0xFF800000> : vector<8xf32>
    %579 = vector.multi_reduction <maximumf>, %578, %cst_430 [1] : vector<8x8xf32> to vector<8xf32>
    %580 = vector.shape_cast %579 : vector<8xf32> to vector<8x1xf32>
    %581 = vector.broadcast %580 : vector<8x1xf32> to vector<8x8xf32>
    %582 = arith.subf %578, %581 : vector<8x8xf32>
    %583 = math.exp %582 : vector<8x8xf32>
    %cst_431 = arith.constant dense<0.000000e+00> : vector<8xf32>
    %584 = vector.multi_reduction <add>, %583, %cst_431 [1] : vector<8x8xf32> to vector<8xf32>
    %585 = vector.shape_cast %584 : vector<8xf32> to vector<8x1xf32>
    %586 = tpu.reciprocal %585 {approx = true} : vector<8x1xf32> -> vector<8x1xf32>
    %587 = vector.broadcast %586 : vector<8x1xf32> to vector<8x8xf32>
    %588 = arith.mulf %583, %587 : vector<8x8xf32>
    %cst_432 = arith.constant dense<0.000000e+00> : vector<8x8xf32>
    %589 = tpu.matmul %588, %575, %cst_432 {dimension_numbers = #tpu.dot_dimension_numbers<[1], [0], [0], [1], [0, 0, 1, 1], [], []>} : vector<8x8xf32>, vector<8x8xf32>, vector<8x8xf32> -> vector<8x8xf32>
    %c1_433 = arith.constant 1 : index
    %c2_434 = arith.constant 2 : index
    %c0_435 = arith.constant 0 : index
    %c0_436 = arith.constant 0 : index
    %590 = vector.load %arg5[%c1_433, %c2_434, %c0_435, %c0_436] : memref<2x4x8x32xf32, #tpu.memory_space<vmem>>, vector<1x1x8x32xf32>
    %591 = vector.shape_cast %590 : vector<1x1x8x32xf32> to vector<8x32xf32>
    %cst_437 = arith.constant dense<0.000000e+00> : vector<8x32xf32>
    %592 = tpu.matmul %589, %591, %cst_437 {dimension_numbers = #tpu.dot_dimension_numbers<[1], [0], [0], [1], [0, 0, 1, 1], [], []>} : vector<8x8xf32>, vector<8x32xf32>, vector<8x32xf32> -> vector<8x32xf32>
    %593 = arith.addf %572, %592 : vector<8x32xf32>
    %594 = vector.extract_strided_slice %434 {offsets = [8, 0], sizes = [8, 8], strides = [1, 1]} : vector<16x8xf32> to vector<8x8xf32>
    %595 = vector.extract_strided_slice %441 {offsets = [8, 0], sizes = [8, 8], strides = [1, 1]} : vector<16x8xf32> to vector<8x8xf32>
    %596 = vector.extract_strided_slice %448 {offsets = [8, 0], sizes = [8, 8], strides = [1, 1]} : vector<16x8xf32> to vector<8x8xf32>
    %597 = tpu.transpose %595, [1, 0] : vector<8x8xf32> -> vector<8x8xf32>
    %cst_438 = arith.constant dense<0.000000e+00> : vector<8x8xf32>
    %598 = tpu.matmul %594, %597, %cst_438 {dimension_numbers = #tpu.dot_dimension_numbers<[1], [0], [0], [1], [0, 0, 1, 1], [], []>} : vector<8x8xf32>, vector<8x8xf32>, vector<8x8xf32> -> vector<8x8xf32>
    %599 = arith.addf %598, %14 : vector<8x8xf32>
    %cst_439 = arith.constant dense<0xFF800000> : vector<8xf32>
    %600 = vector.multi_reduction <maximumf>, %599, %cst_439 [1] : vector<8x8xf32> to vector<8xf32>
    %601 = vector.shape_cast %600 : vector<8xf32> to vector<8x1xf32>
    %602 = vector.broadcast %601 : vector<8x1xf32> to vector<8x8xf32>
    %603 = arith.subf %599, %602 : vector<8x8xf32>
    %604 = math.exp %603 : vector<8x8xf32>
    %cst_440 = arith.constant dense<0.000000e+00> : vector<8xf32>
    %605 = vector.multi_reduction <add>, %604, %cst_440 [1] : vector<8x8xf32> to vector<8xf32>
    %606 = vector.shape_cast %605 : vector<8xf32> to vector<8x1xf32>
    %607 = tpu.reciprocal %606 {approx = true} : vector<8x1xf32> -> vector<8x1xf32>
    %608 = vector.broadcast %607 : vector<8x1xf32> to vector<8x8xf32>
    %609 = arith.mulf %604, %608 : vector<8x8xf32>
    %cst_441 = arith.constant dense<0.000000e+00> : vector<8x8xf32>
    %610 = tpu.matmul %609, %596, %cst_441 {dimension_numbers = #tpu.dot_dimension_numbers<[1], [0], [0], [1], [0, 0, 1, 1], [], []>} : vector<8x8xf32>, vector<8x8xf32>, vector<8x8xf32> -> vector<8x8xf32>
    %c1_442 = arith.constant 1 : index
    %c3_443 = arith.constant 3 : index
    %c0_444 = arith.constant 0 : index
    %c0_445 = arith.constant 0 : index
    %611 = vector.load %arg5[%c1_442, %c3_443, %c0_444, %c0_445] : memref<2x4x8x32xf32, #tpu.memory_space<vmem>>, vector<1x1x8x32xf32>
    %612 = vector.shape_cast %611 : vector<1x1x8x32xf32> to vector<8x32xf32>
    %cst_446 = arith.constant dense<0.000000e+00> : vector<8x32xf32>
    %613 = tpu.matmul %610, %612, %cst_446 {dimension_numbers = #tpu.dot_dimension_numbers<[1], [0], [0], [1], [0, 0, 1, 1], [], []>} : vector<8x8xf32>, vector<8x32xf32>, vector<8x32xf32> -> vector<8x32xf32>
    %614 = arith.addf %593, %613 : vector<8x32xf32>
    %615 = tpu.concatenate %531, %614 in 0 : vector<8x32xf32>, vector<8x32xf32> -> vector<16x32xf32>
    %c1_447 = arith.constant 1 : index
    %c0_448 = arith.constant 0 : index
    %c0_449 = arith.constant 0 : index
    %616 = vector.load %arg8[%c1_447, %c0_448, %c0_449] : memref<2x1x128xf32, #tpu.memory_space<vmem>>, vector<1x1x128xf32>
    %617 = vector.shape_cast %616 : vector<1x1x128xf32> to vector<1x128xf32>
    %618 = vector.extract_strided_slice %617 {offsets = [0, 0], sizes = [1, 32], strides = [1, 1]} : vector<1x128xf32> to vector<1x32xf32>
    %619 = vector.extract_strided_slice %617 {offsets = [0, 32], sizes = [1, 64], strides = [1, 1]} : vector<1x128xf32> to vector<1x64xf32>
    %620 = vector.extract_strided_slice %617 {offsets = [0, 96], sizes = [1, 32], strides = [1, 1]} : vector<1x128xf32> to vector<1x32xf32>
    %621 = arith.addf %338, %615 : vector<16x32xf32>
    %622 = vector.broadcast %618 : vector<1x32xf32> to vector<16x32xf32>
    %623 = arith.addf %621, %622 : vector<16x32xf32>
    %c3_450 = arith.constant 3 : index
    %c0_451 = arith.constant 0 : index
    %c0_452 = arith.constant 0 : index
    %624 = vector.load %arg9[%c3_450, %c0_451, %c0_452] : memref<5x2x32xf32, #tpu.memory_space<vmem>>, vector<1x2x32xf32>
    %625 = vector.shape_cast %624 : vector<1x2x32xf32> to vector<2x32xf32>
    %626 = vector.extract_strided_slice %625 {offsets = [0, 0], sizes = [1, 32], strides = [1, 1]} : vector<2x32xf32> to vector<1x32xf32>
    %627 = vector.extract_strided_slice %625 {offsets = [1, 0], sizes = [1, 32], strides = [1, 1]} : vector<2x32xf32> to vector<1x32xf32>
    %cst_453 = arith.constant dense<0.000000e+00> : vector<16xf32>
    %628 = vector.multi_reduction <add>, %623, %cst_453 [1] : vector<16x32xf32> to vector<16xf32>
    %629 = vector.shape_cast %628 : vector<16xf32> to vector<16x1xf32>
    %cst_454 = arith.constant 3.200000e+01 : f32
    %630 = vector.broadcast %cst_454 : f32 to vector<16x1xf32>
    %631 = arith.divf %629, %630 : vector<16x1xf32>
    %632 = vector.broadcast %631 : vector<16x1xf32> to vector<16x32xf32>
    %633 = arith.subf %623, %632 : vector<16x32xf32>
    %634 = arith.mulf %633, %633 : vector<16x32xf32>
    %cst_455 = arith.constant dense<0.000000e+00> : vector<16xf32>
    %635 = vector.multi_reduction <add>, %634, %cst_455 [1] : vector<16x32xf32> to vector<16xf32>
    %636 = vector.shape_cast %635 : vector<16xf32> to vector<16x1xf32>
    %cst_456 = arith.constant 3.200000e+01 : f32
    %637 = vector.broadcast %cst_456 : f32 to vector<16x1xf32>
    %638 = arith.divf %636, %637 : vector<16x1xf32>
    %639 = vector.broadcast %631 : vector<16x1xf32> to vector<16x32xf32>
    %640 = arith.subf %623, %639 : vector<16x32xf32>
    %cst_457 = arith.constant 9.99999974E-6 : f32
    %641 = vector.broadcast %cst_457 : f32 to vector<16x1xf32>
    %642 = arith.addf %638, %641 : vector<16x1xf32>
    %643 = math.rsqrt %642 : vector<16x1xf32>
    %644 = vector.broadcast %643 : vector<16x1xf32> to vector<16x32xf32>
    %645 = arith.mulf %640, %644 : vector<16x32xf32>
    %646 = vector.broadcast %626 : vector<1x32xf32> to vector<16x32xf32>
    %647 = arith.mulf %645, %646 : vector<16x32xf32>
    %648 = vector.broadcast %627 : vector<1x32xf32> to vector<16x32xf32>
    %649 = arith.addf %647, %648 : vector<16x32xf32>
    %c1_458 = arith.constant 1 : index
    %c0_459 = arith.constant 0 : index
    %c0_460 = arith.constant 0 : index
    %650 = vector.load %arg6[%c1_458, %c0_459, %c0_460] : memref<2x32x64xf32, #tpu.memory_space<vmem>>, vector<1x32x64xf32>
    %651 = vector.shape_cast %650 : vector<1x32x64xf32> to vector<32x64xf32>
    %cst_461 = arith.constant dense<0.000000e+00> : vector<16x64xf32>
    %652 = tpu.matmul %649, %651, %cst_461 {dimension_numbers = #tpu.dot_dimension_numbers<[1], [0], [0], [1], [0, 0, 1, 1], [], []>} : vector<16x32xf32>, vector<32x64xf32>, vector<16x64xf32> -> vector<16x64xf32>
    %653 = vector.broadcast %619 : vector<1x64xf32> to vector<16x64xf32>
    %654 = arith.addf %652, %653 : vector<16x64xf32>
    %cst_462 = arith.constant 0.000000e+00 : f32
    %655 = vector.broadcast %cst_462 : f32 to vector<16x64xf32>
    %656 = arith.maximumf %654, %655 : vector<16x64xf32>
    %c1_463 = arith.constant 1 : index
    %c0_464 = arith.constant 0 : index
    %c0_465 = arith.constant 0 : index
    %657 = vector.load %arg7[%c1_463, %c0_464, %c0_465] : memref<2x64x32xf32, #tpu.memory_space<vmem>>, vector<1x64x32xf32>
    %658 = vector.shape_cast %657 : vector<1x64x32xf32> to vector<64x32xf32>
    %cst_466 = arith.constant dense<0.000000e+00> : vector<16x32xf32>
    %659 = tpu.matmul %656, %658, %cst_466 {dimension_numbers = #tpu.dot_dimension_numbers<[1], [0], [0], [1], [0, 0, 1, 1], [], []>} : vector<16x64xf32>, vector<64x32xf32>, vector<16x32xf32> -> vector<16x32xf32>
    %660 = arith.addf %623, %659 : vector<16x32xf32>
    %661 = vector.broadcast %620 : vector<1x32xf32> to vector<16x32xf32>
    %662 = arith.addf %660, %661 : vector<16x32xf32>
    %c4 = arith.constant 4 : index
    %c0_467 = arith.constant 0 : index
    %c0_468 = arith.constant 0 : index
    %663 = vector.load %arg9[%c4, %c0_467, %c0_468] : memref<5x2x32xf32, #tpu.memory_space<vmem>>, vector<1x2x32xf32>
    %664 = vector.shape_cast %663 : vector<1x2x32xf32> to vector<2x32xf32>
    %665 = vector.extract_strided_slice %664 {offsets = [0, 0], sizes = [1, 32], strides = [1, 1]} : vector<2x32xf32> to vector<1x32xf32>
    %666 = vector.extract_strided_slice %664 {offsets = [1, 0], sizes = [1, 32], strides = [1, 1]} : vector<2x32xf32> to vector<1x32xf32>
    %cst_469 = arith.constant dense<0.000000e+00> : vector<16xf32>
    %667 = vector.multi_reduction <add>, %662, %cst_469 [1] : vector<16x32xf32> to vector<16xf32>
    %668 = vector.shape_cast %667 : vector<16xf32> to vector<16x1xf32>
    %cst_470 = arith.constant 3.200000e+01 : f32
    %669 = vector.broadcast %cst_470 : f32 to vector<16x1xf32>
    %670 = arith.divf %668, %669 : vector<16x1xf32>
    %671 = vector.broadcast %670 : vector<16x1xf32> to vector<16x32xf32>
    %672 = arith.subf %662, %671 : vector<16x32xf32>
    %673 = arith.mulf %672, %672 : vector<16x32xf32>
    %cst_471 = arith.constant dense<0.000000e+00> : vector<16xf32>
    %674 = vector.multi_reduction <add>, %673, %cst_471 [1] : vector<16x32xf32> to vector<16xf32>
    %675 = vector.shape_cast %674 : vector<16xf32> to vector<16x1xf32>
    %cst_472 = arith.constant 3.200000e+01 : f32
    %676 = vector.broadcast %cst_472 : f32 to vector<16x1xf32>
    %677 = arith.divf %675, %676 : vector<16x1xf32>
    %678 = vector.broadcast %670 : vector<16x1xf32> to vector<16x32xf32>
    %679 = arith.subf %662, %678 : vector<16x32xf32>
    %cst_473 = arith.constant 9.99999974E-6 : f32
    %680 = vector.broadcast %cst_473 : f32 to vector<16x1xf32>
    %681 = arith.addf %677, %680 : vector<16x1xf32>
    %682 = math.rsqrt %681 : vector<16x1xf32>
    %683 = vector.broadcast %682 : vector<16x1xf32> to vector<16x32xf32>
    %684 = arith.mulf %679, %683 : vector<16x32xf32>
    %685 = vector.broadcast %665 : vector<1x32xf32> to vector<16x32xf32>
    %686 = arith.mulf %684, %685 : vector<16x32xf32>
    %687 = vector.broadcast %666 : vector<1x32xf32> to vector<16x32xf32>
    %688 = arith.addf %686, %687 : vector<16x32xf32>
    %c0_474 = arith.constant 0 : index
    %c0_475 = arith.constant 0 : index
    %689 = vector.load %arg10[%c0_474, %c0_475] : memref<16x32xf32, #tpu.memory_space<vmem>>, vector<16x32xf32>
    tpu.vector_store %arg10[%c0_474, %c0_475], %688 {strides = array<i32>} : memref<16x32xf32, #tpu.memory_space<vmem>>, vector<16x32xf32>,
    return
  }
  func.func @transform_0(%arg0: i32) -> (i32, i32) {
    %c0_i32 = arith.constant 0 : i32
    %c0_i32_0 = arith.constant 0 : i32
    %c0_i32_1 = arith.constant 0 : i32
    return %c0_i32, %c0_i32_0 : i32, i32
  }
  func.func @transform_1(%arg0: i32) -> (i32, i32, i32) {
    %c0_i32 = arith.constant 0 : i32
    %c0_i32_0 = arith.constant 0 : i32
    %c0_i32_1 = arith.constant 0 : i32
    %c0_i32_2 = arith.constant 0 : i32
    return %c0_i32, %c0_i32_0, %c0_i32_1 : i32, i32, i32
  }
  func.func @transform_2(%arg0: i32) -> (i32, i32, i32, i32, i32) {
    %c0_i32 = arith.constant 0 : i32
    %c0_i32_0 = arith.constant 0 : i32
    %c0_i32_1 = arith.constant 0 : i32
    %c0_i32_2 = arith.constant 0 : i32
    %c0_i32_3 = arith.constant 0 : i32
    %c0_i32_4 = arith.constant 0 : i32
    return %c0_i32, %c0_i32_0, %c0_i32_1, %c0_i32_2, %c0_i32_3 : i32, i32, i32, i32, i32
  }
  func.func @transform_3(%arg0: i32) -> (i32, i32, i32, i32, i32) {
    %c0_i32 = arith.constant 0 : i32
    %c0_i32_0 = arith.constant 0 : i32
    %c0_i32_1 = arith.constant 0 : i32
    %c0_i32_2 = arith.constant 0 : i32
    %c0_i32_3 = arith.constant 0 : i32
    %c0_i32_4 = arith.constant 0 : i32
    return %c0_i32, %c0_i32_0, %c0_i32_1, %c0_i32_2, %c0_i32_3 : i32, i32, i32, i32, i32
  }
  func.func @transform_4(%arg0: i32) -> (i32, i32, i32, i32) {
    %c0_i32 = arith.constant 0 : i32
    %c0_i32_0 = arith.constant 0 : i32
    %c0_i32_1 = arith.constant 0 : i32
    %c0_i32_2 = arith.constant 0 : i32
    %c0_i32_3 = arith.constant 0 : i32
    return %c0_i32, %c0_i32_0, %c0_i32_1, %c0_i32_2 : i32, i32, i32, i32
  }
  func.func @transform_5(%arg0: i32) -> (i32, i32, i32) {
    %c0_i32 = arith.constant 0 : i32
    %c0_i32_0 = arith.constant 0 : i32
    %c0_i32_1 = arith.constant 0 : i32
    %c0_i32_2 = arith.constant 0 : i32
    return %c0_i32, %c0_i32_0, %c0_i32_1 : i32, i32, i32
  }
  func.func @transform_6(%arg0: i32) -> (i32, i32, i32) {
    %c0_i32 = arith.constant 0 : i32
    %c0_i32_0 = arith.constant 0 : i32
    %c0_i32_1 = arith.constant 0 : i32
    %c0_i32_2 = arith.constant 0 : i32
    return %c0_i32, %c0_i32_0, %c0_i32_1 : i32, i32, i32
  }
  func.func @transform_7(%arg0: i32) -> (i32, i32, i32) {
    %c0_i32 = arith.constant 0 : i32
    %c0_i32_0 = arith.constant 0 : i32
    %c0_i32_1 = arith.constant 0 : i32
    %c0_i32_2 = arith.constant 0 : i32
    return %c0_i32, %c0_i32_0, %c0_i32_1 : i32, i32, i32
  }
  func.func @transform_8(%arg0: i32) -> (i32, i32, i32) {
    %c0_i32 = arith.constant 0 : i32
    %c0_i32_0 = arith.constant 0 : i32
    %c0_i32_1 = arith.constant 0 : i32
    %c0_i32_2 = arith.constant 0 : i32
    return %c0_i32, %c0_i32_0, %c0_i32_1 : i32, i32, i32
  }
  func.func @transform_9(%arg0: i32) -> (i32, i32) {
    %c0_i32 = arith.constant 0 : i32
    %c0_i32_0 = arith.constant 0 : i32
    %c0_i32_1 = arith.constant 0 : i32
    return %c0_i32, %c0_i32_0 : i32, i32
  }
}

</mosaic_0001>

<llo_original>
// kernel: tpu_custom_call.1
$region0: #{tpu_custom_call.1}
  #allocation0 [shape = 'u32[]', space=smem, size = 0x4, offset = 0x4, fixed_abs, tag = 'smem constant byte address 0x4 - core index']
  #allocation1 [shape = 'u32[144,128]{1,0:T(1,128)}', space=vmem, size = 0x12000, scoped, tag = 'internal scratch']
  %s0 = inlined_call_operand.vmem [shape: f32[16,32], index: 0, kind: input, shape index: {}]
  %s1 = inlined_call_operand.vmem [shape: f32[2,1,8], index: 1, kind: input, shape index: {}]
  %s2 = inlined_call_operand.vmem [shape: f32[2,3,4,32,8], index: 2, kind: input, shape index: {}]
  %s3 = inlined_call_operand.vmem [shape: f32[2,3,4,1,8], index: 3, kind: input, shape index: {}]
  %s4 = inlined_call_operand.vmem [shape: f32[2,4,8,32], index: 4, kind: input, shape index: {}]
  %s5 = inlined_call_operand.vmem [shape: f32[2,32,64], index: 5, kind: input, shape index: {}]
  %s6 = inlined_call_operand.vmem [shape: f32[2,64,32], index: 6, kind: input, shape index: {}]
  %s7 = inlined_call_operand.vmem [shape: f32[2,1,128], index: 7, kind: input, shape index: {}]
  %s8 = inlined_call_operand.vmem [shape: f32[5,2,32], index: 8, kind: input, shape index: {}]
  %s9 = inlined_call_operand.hbm [shape: f32[16,32], index: 9, kind: output, shape index: {}]
  %s10 = sld [smem:[#allocation0]]
  $region46: #{tpu_custom_call.1} parent=0
    _
  %s12 = ssub.s32 1, %s10
  %s13 = scalar_select 0, %s12, %s10
  $region1: #{tpu_custom_call.1} parent=0
    #allocation2 [shape = 'u8[8192]{0}', space=vmem, size = 0x2000, scoped, tag = 'output window, operand 0, single buffered']
    #allocation3 [shape = 's32[1]{0}', space=sflag, size = 0x4, scoped, tag = 'scoped memory for tpu_custom_call.1']
    %14 = vsyncpa [#allocation3], 0
    // Predicated region
    $region2: #{tpu_custom_call.1} parent=1 // pred_check
      _
    $region3: #{tpu_custom_call.1} parent=1 // pred_check_branch
      %16 = sbr.rel (0) target = $region5
    $region4: #{tpu_custom_call.1} parent=1 // pred_region
      _
    $region5: #{tpu_custom_call.1} parent=1 // pred_fallthru
      _
    // Predicated region
    $region6: #{tpu_custom_call.1} parent=1 // pred_check
      _
    $region7: #{tpu_custom_call.1} parent=1 // pred_check_branch
      %18 = sbr.rel (0) target = $region9
    $region8: #{tpu_custom_call.1} parent=1 // pred_region
      _
    $region9: #{tpu_custom_call.1} parent=1 // pred_fallthru
      _
    // Predicated region
    $region10: #{tpu_custom_call.1} parent=1 // pred_check
      _
    $region11: #{tpu_custom_call.1} parent=1 // pred_check_branch
      %20 = sbr.rel (0) target = $region13
    $region12: #{tpu_custom_call.1} parent=1 // pred_region
      _
    $region13: #{tpu_custom_call.1} parent=1 // pred_fallthru
      _
    // Predicated region
    $region14: #{tpu_custom_call.1} parent=1 // pred_check
      _
    $region15: #{tpu_custom_call.1} parent=1 // pred_check_branch
      %22 = sbr.rel (0) target = $region17
    $region16: #{tpu_custom_call.1} parent=1 // pred_region
      _
    $region17: #{tpu_custom_call.1} parent=1 // pred_fallthru
      _
    // Predicated region
    $region18: #{tpu_custom_call.1} parent=1 // pred_check
      _
    $region19: #{tpu_custom_call.1} parent=1 // pred_check_branch
      %24 = sbr.rel (0) target = $region21
    $region20: #{tpu_custom_call.1} parent=1 // pred_region
      _
    $region21: #{tpu_custom_call.1} parent=1 // pred_fallthru
      _
    // Predicated region
    $region22: #{tpu_custom_call.1} parent=1 // pred_check
      _
    $region23: #{tpu_custom_call.1} parent=1 // pred_check_branch
      %26 = sbr.rel (0) target = $region25
    $region24: #{tpu_custom_call.1} parent=1 // pred_region
      _
    $region25: #{tpu_custom_call.1} parent=1 // pred_fallthru
      _
    // Predicated region
    $region26: #{tpu_custom_call.1} parent=1 // pred_check
      _
    $region27: #{tpu_custom_call.1} parent=1 // pred_check_branch
      %28 = sbr.rel (0) target = $region29
    $region28: #{tpu_custom_call.1} parent=1 // pred_region
      _
    $region29: #{tpu_custom_call.1} parent=1 // pred_fallthru
      _
    // Predicated region
    $region30: #{tpu_custom_call.1} parent=1 // pred_check
      _
    $region31: #{tpu_custom_call.1} parent=1 // pred_check_branch
      %30 = sbr.rel (0) target = $region33
    $region32: #{tpu_custom_call.1} parent=1 // pred_region
      _
    $region33: #{tpu_custom_call.1} parent=1 // pred_fallthru
      _
    // Predicated region
    $region34: #{tpu_custom_call.1} parent=1 // pred_check
      _
    $region35: #{tpu_custom_call.1} parent=1 // pred_check_branch
      %32 = sbr.rel (0) target = $region37
    $region36: #{tpu_custom_call.1} parent=1 // pred_region
      _
    $region37: #{tpu_custom_call.1} parent=1 // pred_fallthru
      _
    %v33 = vld [vmem:[%s0] sm:$0xff]
    %v34 = vld [vmem:[%s0 + $0x8] sm:$0xff]
    %v35 = vld [vmem:[%s1] sm:$0x1]
    %v36 = vld [vmem:[%s1 + $0x1] sm:$0x1]
    %vm37 = vcmp.gt.f32.partialorder %v35, 0.0
    %vm38 = vcmp.gt.f32.partialorder %v36, 0.0
    %v39 = vsel %vm37, 0.0, -1e+09
    %v40 = vsel %vm38, 0.0, -1e+09
    %v42 = vlaneseq
    %v43 = vshrl.u32 %v42, 7
    %v44 = vsub.s32 0, %v43
    %v45 = vrot.slane %v39, %v44
    %v48 = vlaneseq
    %v49 = vshrl.u32 %v48, 7
    %v50 = vsub.s32 0, %v49
    %v51 = vrot.slane %v40, %v50
    %v53 = vld [vmem:[%s8] sm:$0x3]
    %vm54 = vcmask 261120
    %v55 = vsel %vm54, %v33, 0.0
    %56 = vadd.xlane.f32.xlu0 %v55
    %v57 = vpop.xlane.xlu0 %56
    %v58 = vsel %vm54, %v34, 0.0
    %59 = vadd.xlane.f32.xlu0 %v58
    %v60 = vpop.xlane.xlu0 %59
    %v61 = vrcp.pop 32.0
    %v62 = vmul.f32 %v57, %v61
    %v63 = vmul.f32 %v60, %v61
    %v64 = vsub.f32 %v33, %v62
    %v65 = vsub.f32 %v34, %v63
    %v66 = vmul.f32 %v64, %v64
    %v67 = vmul.f32 %v65, %v65
    %v68 = vsel %vm54, %v66, 0.0
    %69 = vadd.xlane.f32.xlu0 %v68
    %v70 = vpop.xlane.xlu0 %69
    %v71 = vsel %vm54, %v67, 0.0
    %72 = vadd.xlane.f32.xlu0 %v71
    %v73 = vpop.xlane.xlu0 %72
    %v74 = vmul.f32 %v70, %v61
    %v75 = vmul.f32 %v73, %v61
    %v76 = vadd.f32 %v74, 1e-05
    %v77 = vadd.f32 %v75, 1e-05
    %v78 = vrsqrt.pop %v76
    %v79 = vrsqrt.pop %v77
    %v80 = vmul.f32 %v64, %v78
    %v81 = vmul.f32 %v65, %v79
    %v82 = vlaneseq
    %v83 = vshrl.u32 %v82, 7
    %v84 = vsub.s32 0, %v83
    %v85 = vrot.slane %v53, %v84
    %v86 = vmul.f32 %v80, %v85
    %v87 = vmul.f32 %v81, %v85
    %v88 = vlaneseq
    %v89 = vshrl.u32 %v88, 7
    %v90 = vsub.s32 1, %v89
    %v91 = vrot.slane %v53, %v90
    %v92 = vadd.f32 %v86, %v91
    %v93 = vadd.f32 %v87, %v91
    %v94 = vld [vmem:[%s2] sm:$0xff]
    %v95 = vld [vmem:[%s2 + $0x8] sm:$0xff]
    %v96 = vld [vmem:[%s2 + $0x10] sm:$0xff]
    %v97 = vld [vmem:[%s2 + $0x18] sm:$0xff]
    %v98 = vld [vmem:[%s3] sm:$0x1]
    %v100 = vlaneseq
    %v101 = vshrl.u32 %v100, 7
    %v102 = vsub.s32 0, %v101
    %v103 = vrot.slane %v98, %v102
    %v106 = vsel %vm54, %v92, 0
    %v109 = vsel %vm54, %v93, 0
    %111 = vmatprep.subr.mxu0 0.0
    %112 = vmatpush1.msra.mxu0 %v94
    %113 = vmatprep.subr.mxu0 0.0
    %114 = vmatpush1.msra.mxu0 %v95
    %115 = vmatprep.subr.mxu0 0.0
    %116 = vmatpush1.msra.mxu0 %v96
    %117 = vmatprep.subr.mxu0 0.0
    %118 = vmatpush1.msra.mxu0 %v97
    %119 = vmatprep.subr.mxu0 0.0
    %120 = vmatpush1.msra.mxu0 0.0
    %121 = vmatprep.subr.mxu0 0.0
    %122 = vmatpush1.msra.mxu0 0.0
    %123 = vmatprep.subr.mxu0 0.0
    %124 = vmatpush1.msra.mxu0 0.0
    %125 = vmatprep.subr.mxu0 0.0
    %126 = vmatpush1.msra.mxu0 0.0
    %127 = vmatprep.subr.mxu0 0.0
    %128 = vmatpush1.msra.mxu0 0.0
    %129 = vmatprep.subr.mxu0 0.0
    %130 = vmatpush1.msra.mxu0 0.0
    %131 = vmatprep.subr.mxu0 0.0
    %132 = vmatpush1.msra.mxu0 0.0
    %133 = vmatprep.subr.mxu0 0.0
    %134 = vmatpush1.msra.mxu0 0.0
    %135 = vmatprep.subr.mxu0 0.0
    %136 = vmatpush1.msra.mxu0 0.0
    %137 = vmatprep.subr.mxu0 0.0
    %138 = vmatpush1.msra.mxu0 0.0
    %139 = vmatprep.subr.mxu0 0.0
    %140 = vmatpush1.msra.mxu0 0.0
    %141 = vmatprep.subr.mxu0 0.0
    %142 = vmatpush1.msra.mxu0 0.0
    %143 = vmatprep.subr.mxu0 0.0
    %144 = vmatpush1.msra.mxu0 0.0
    %145 = vmatprep.subr.mxu0 0.0
    %146 = vmatpush1.msra.mxu0 0.0
    %147 = vmatprep.subr.mxu0 0.0
    %148 = vmatpush1.msra.mxu0 0.0
    %149 = vmatprep.subr.mxu0 0.0
    %150 = vmatpush1.msra.mxu0 0.0
    %151 = vmatprep.subr.mxu0 0.0
    %152 = vmatpush1.msra.mxu0 0.0
    %153 = vmatprep.subr.mxu0 0.0
    %154 = vmatpush1.msra.mxu0 0.0
    %155 = vmatprep.subr.mxu0 0.0
    %156 = vmatpush1.msra.mxu0 0.0
    %157 = vmatprep.subr.mxu0 0.0
    %158 = vmatpush1.msra.mxu0 0.0
    %159 = vmatprep.subr.mxu0 0.0
    %160 = vmatpush1.msra.mxu0 0.0
    %161 = vmatprep.subr.mxu0 0.0
    %162 = vmatpush1.msra.mxu0 0.0
    %163 = vmatprep.subr.mxu0 0.0
    %164 = vmatpush1.msra.mxu0 0.0
    %165 = vmatprep.subr.mxu0 0.0
    %166 = vmatpush1.msra.mxu0 0.0
    %167 = vmatprep.subr.mxu0 0.0
    %168 = vmatpush1.msra.mxu0 0.0
    %169 = vmatprep.subr.mxu0 0.0
    %170 = vmatpush1.msra.mxu0 0.0
    %171 = vmatprep.subr.mxu0 0.0
    %172 = vmatpush1.msra.mxu0 0.0
    %173 = vmatprep.subr.mxu0 0.0
    %174 = vmatpush1.msra.mxu0 0.0
    %175 = vmatprep.mubr.f32.mxu0 0.0
    %176 = vmatmul.mubr.f32.gmra.mrb[0].mxu0 %v106
    %v177 = vpop.f32.mrb[0].mxu0
    %v178 = vadd.f32 %v103, %v177
    %v179 = vpop.f32.mrb[0].mxu0
    %180 = vmatprep.mubr.f32.mxu0 0.0
    %181 = vmatmul.mubr.f32.gmra.mrb[0].mxu0 %v109
    %v182 = vpop.f32.mrb[0].mxu0
    %v183 = vadd.f32 %v103, %v182
    %v184 = vpop.f32.mrb[0].mxu0
    %185 = vdwg.mxu0
    %s186 = scalar_lea.vmem %s2, 128
    %v187 = vld [vmem:[%s186] sm:$0xff]
    %v188 = vld [vmem:[%s186 + $0x8] sm:$0xff]
    %v189 = vld [vmem:[%s186 + $0x10] sm:$0xff]
    %v190 = vld [vmem:[%s186 + $0x18] sm:$0xff]
    %s191 = scalar_lea.vmem %s3, 4
    %v192 = vld [vmem:[%s191] sm:$0x1]
    %v194 = vlaneseq
    %v195 = vshrl.u32 %v194, 7
    %v196 = vsub.s32 0, %v195
    %v197 = vrot.slane %v192, %v196
    %199 = vmatprep.subr.mxu0 0.0
    %200 = vmatpush1.msra.mxu0 %v187
    %201 = vmatprep.subr.mxu0 0.0
    %202 = vmatpush1.msra.mxu0 %v188
    %203 = vmatprep.subr.mxu0 0.0
    %204 = vmatpush1.msra.mxu0 %v189
    %205 = vmatprep.subr.mxu0 0.0
    %206 = vmatpush1.msra.mxu0 %v190
    %207 = vmatprep.subr.mxu0 0.0
    %208 = vmatpush1.msra.mxu0 0.0
    %209 = vmatprep.subr.mxu0 0.0
    %210 = vmatpush1.msra.mxu0 0.0
    %211 = vmatprep.subr.mxu0 0.0
    %212 = vmatpush1.msra.mxu0 0.0
    %213 = vmatprep.subr.mxu0 0.0
    %214 = vmatpush1.msra.mxu0 0.0
    %215 = vmatprep.subr.mxu0 0.0
    %216 = vmatpush1.msra.mxu0 0.0
    %217 = vmatprep.subr.mxu0 0.0
    %218 = vmatpush1.msra.mxu0 0.0
    %219 = vmatprep.subr.mxu0 0.0
    %220 = vmatpush1.msra.mxu0 0.0
    %221 = vmatprep.subr.mxu0 0.0
    %222 = vmatpush1.msra.mxu0 0.0
    %223 = vmatprep.subr.mxu0 0.0
    %224 = vmatpush1.msra.mxu0 0.0
    %225 = vmatprep.subr.mxu0 0.0
    %226 = vmatpush1.msra.mxu0 0.0
    %227 = vmatprep.subr.mxu0 0.0
    %228 = vmatpush1.msra.mxu0 0.0
    %229 = vmatprep.subr.mxu0 0.0
    %230 = vmatpush1.msra.mxu0 0.0
    %231 = vmatprep.subr.mxu0 0.0
    %232 = vmatpush1.msra.mxu0 0.0
    %233 = vmatprep.subr.mxu0 0.0
    %234 = vmatpush1.msra.mxu0 0.0
    %235 = vmatprep.subr.mxu0 0.0
    %236 = vmatpush1.msra.mxu0 0.0
    %237 = vmatprep.subr.mxu0 0.0
    %238 = vmatpush1.msra.mxu0 0.0
    %239 = vmatprep.subr.mxu0 0.0
    %240 = vmatpush1.msra.mxu0 0.0
    %241 = vmatprep.subr.mxu0 0.0
    %242 = vmatpush1.msra.mxu0 0.0
    %243 = vmatprep.subr.mxu0 0.0
    %244 = vmatpush1.msra.mxu0 0.0
    %245 = vmatprep.subr.mxu0 0.0
    %246 = vmatpush1.msra.mxu0 0.0
    %247 = vmatprep.subr.mxu0 0.0
    %248 = vmatpush1.msra.mxu0 0.0
    %249 = vmatprep.subr.mxu0 0.0
    %250 = vmatpush1.msra.mxu0 0.0
    %251 = vmatprep.subr.mxu0 0.0
    %252 = vmatpush1.msra.mxu0 0.0
    %253 = vmatprep.subr.mxu0 0.0
    %254 = vmatpush1.msra.mxu0 0.0
    %255 = vmatprep.subr.mxu0 0.0
    %256 = vmatpush1.msra.mxu0 0.0
    %257 = vmatprep.subr.mxu0 0.0
    %258 = vmatpush1.msra.mxu0 0.0
    %259 = vmatprep.subr.mxu0 0.0
    %260 = vmatpush1.msra.mxu0 0.0
    %261 = vmatprep.subr.mxu0 0.0
    %262 = vmatpush1.msra.mxu0 0.0
    %263 = vmatprep.mubr.f32.mxu0 0.0
    %264 = vmatmul.mubr.f32.gmra.mrb[0].mxu0 %v106
    %v265 = vpop.f32.mrb[0].mxu0
    %v266 = vadd.f32 %v197, %v265
    %v267 = vpop.f32.mrb[0].mxu0
    %268 = vmatprep.mubr.f32.mxu0 0.0
    %269 = vmatmul.mubr.f32.gmra.mrb[0].mxu0 %v109
    %v270 = vpop.f32.mrb[0].mxu0
    %v271 = vadd.f32 %v197, %v270
    %v272 = vpop.f32.mrb[0].mxu0
    %273 = vdwg.mxu0
    %s274 = scalar_lea.vmem %s2, 256
    %v275 = vld [vmem:[%s274] sm:$0xff]
    %v276 = vld [vmem:[%s274 + $0x8] sm:$0xff]
    %v277 = vld [vmem:[%s274 + $0x10] sm:$0xff]
    %v278 = vld [vmem:[%s274 + $0x18] sm:$0xff]
    %s279 = scalar_lea.vmem %s3, 8
    %v280 = vld [vmem:[%s279] sm:$0x1]
    %v282 = vlaneseq
    %v283 = vshrl.u32 %v282, 7
    %v284 = vsub.s32 0, %v283
    %v285 = vrot.slane %v280, %v284
    %287 = vmatprep.subr.mxu0 0.0
    %288 = vmatpush1.msra.mxu0 %v275
    %289 = vmatprep.subr.mxu0 0.0
    %290 = vmatpush1.msra.mxu0 %v276
    %291 = vmatprep.subr.mxu0 0.0
    %292 = vmatpush1.msra.mxu0 %v277
    %293 = vmatprep.subr.mxu0 0.0
    %294 = vmatpush1.msra.mxu0 %v278
    %295 = vmatprep.subr.mxu0 0.0
    %296 = vmatpush1.msra.mxu0 0.0
    %297 = vmatprep.subr.mxu0 0.0
    %298 = vmatpush1.msra.mxu0 0.0
    %299 = vmatprep.subr.mxu0 0.0
    %300 = vmatpush1.msra.mxu0 0.0
    %301 = vmatprep.subr.mxu0 0.0
    %302 = vmatpush1.msra.mxu0 0.0
    %303 = vmatprep.subr.mxu0 0.0
    %304 = vmatpush1.msra.mxu0 0.0
    %305 = vmatprep.subr.mxu0 0.0
    %306 = vmatpush1.msra.mxu0 0.0
    %307 = vmatprep.subr.mxu0 0.0
    %308 = vmatpush1.msra.mxu0 0.0
    %309 = vmatprep.subr.mxu0 0.0
    %310 = vmatpush1.msra.mxu0 0.0
    %311 = vmatprep.subr.mxu0 0.0
    %312 = vmatpush1.msra.mxu0 0.0
    %313 = vmatprep.subr.mxu0 0.0
    %314 = vmatpush1.msra.mxu0 0.0
    %315 = vmatprep.subr.mxu0 0.0
    %316 = vmatpush1.msra.mxu0 0.0
    %317 = vmatprep.subr.mxu0 0.0
    %318 = vmatpush1.msra.mxu0 0.0
    %319 = vmatprep.subr.mxu0 0.0
    %320 = vmatpush1.msra.mxu0 0.0
    %321 = vmatprep.subr.mxu0 0.0
    %322 = vmatpush1.msra.mxu0 0.0
    %323 = vmatprep.subr.mxu0 0.0
    %324 = vmatpush1.msra.mxu0 0.0
    %325 = vmatprep.subr.mxu0 0.0
    %326 = vmatpush1.msra.mxu0 0.0
    %327 = vmatprep.subr.mxu0 0.0
    %328 = vmatpush1.msra.mxu0 0.0
    %329 = vmatprep.subr.mxu0 0.0
    %330 = vmatpush1.msra.mxu0 0.0
    %331 = vmatprep.subr.mxu0 0.0
    %332 = vmatpush1.msra.mxu0 0.0
    %333 = vmatprep.subr.mxu0 0.0
    %334 = vmatpush1.msra.mxu0 0.0
    %335 = vmatprep.subr.mxu0 0.0
    %336 = vmatpush1.msra.mxu0 0.0
    %337 = vmatprep.subr.mxu0 0.0
    %338 = vmatpush1.msra.mxu0 0.0
    %339 = vmatprep.subr.mxu0 0.0
    %340 = vmatpush1.msra.mxu0 0.0
    %341 = vmatprep.subr.mxu0 0.0
    %342 = vmatpush1.msra.mxu0 0.0
    %343 = vmatprep.subr.mxu0 0.0
    %344 = vmatpush1.msra.mxu0 0.0
    %345 = vmatprep.subr.mxu0 0.0
    %346 = vmatpush1.msra.mxu0 0.0
    %347 = vmatprep.subr.mxu0 0.0
    %348 = vmatpush1.msra.mxu0 0.0
    %349 = vmatprep.subr.mxu0 0.0
    %350 = vmatpush1.msra.mxu0 0.0
    %351 = vmatprep.mubr.f32.mxu0 0.0
    %352 = vmatmul.mubr.f32.gmra.mrb[0].mxu0 %v106
    %v353 = vpop.f32.mrb[0].mxu0
    %v354 = vadd.f32 %v285, %v353
    %v355 = vpop.f32.mrb[0].mxu0
    %356 = vmatprep.mubr.f32.mxu0 0.0
    %357 = vmatmul.mubr.f32.gmra.mrb[0].mxu0 %v109
    %v358 = vpop.f32.mrb[0].mxu0
    %v359 = vadd.f32 %v285, %v358
    %v360 = vpop.f32.mrb[0].mxu0
    %361 = vdwg.mxu0
    %s362 = scalar_lea.vmem %s2, 32
    %v363 = vld [vmem:[%s362] sm:$0xff]
    %v364 = vld [vmem:[%s362 + $0x8] sm:$0xff]
    %v365 = vld [vmem:[%s362 + $0x10] sm:$0xff]
    %v366 = vld [vmem:[%s362 + $0x18] sm:$0xff]
    %s367 = scalar_lea.vmem %s3, 1
    %v368 = vld [vmem:[%s367] sm:$0x1]
    %v370 = vlaneseq
    %v371 = vshrl.u32 %v370, 7
    %v372 = vsub.s32 0, %v371
    %v373 = vrot.slane %v368, %v372
    %375 = vmatprep.subr.mxu0 0.0
    %376 = vmatpush1.msra.mxu0 %v363
    %377 = vmatprep.subr.mxu0 0.0
    %378 = vmatpush1.msra.mxu0 %v364
    %379 = vmatprep.subr.mxu0 0.0
    %380 = vmatpush1.msra.mxu0 %v365
    %381 = vmatprep.subr.mxu0 0.0
    %382 = vmatpush1.msra.mxu0 %v366
    %383 = vmatprep.subr.mxu0 0.0
    %384 = vmatpush1.msra.mxu0 0.0
    %385 = vmatprep.subr.mxu0 0.0
    %386 = vmatpush1.msra.mxu0 0.0
    %387 = vmatprep.subr.mxu0 0.0
    %388 = vmatpush1.msra.mxu0 0.0
    %389 = vmatprep.subr.mxu0 0.0
    %390 = vmatpush1.msra.mxu0 0.0
    %391 = vmatprep.subr.mxu0 0.0
    %392 = vmatpush1.msra.mxu0 0.0
    %393 = vmatprep.subr.mxu0 0.0
    %394 = vmatpush1.msra.mxu0 0.0
    %395 = vmatprep.subr.mxu0 0.0
    %396 = vmatpush1.msra.mxu0 0.0
    %397 = vmatprep.subr.mxu0 0.0
    %398 = vmatpush1.msra.mxu0 0.0
    %399 = vmatprep.subr.mxu0 0.0
    %400 = vmatpush1.msra.mxu0 0.0
    %401 = vmatprep.subr.mxu0 0.0
    %402 = vmatpush1.msra.mxu0 0.0
    %403 = vmatprep.subr.mxu0 0.0
    %404 = vmatpush1.msra.mxu0 0.0
    %405 = vmatprep.subr.mxu0 0.0
    %406 = vmatpush1.msra.mxu0 0.0
    %407 = vmatprep.subr.mxu0 0.0
    %408 = vmatpush1.msra.mxu0 0.0
    %409 = vmatprep.subr.mxu0 0.0
    %410 = vmatpush1.msra.mxu0 0.0
    %411 = vmatprep.subr.mxu0 0.0
    %412 = vmatpush1.msra.mxu0 0.0
    %413 = vmatprep.subr.mxu0 0.0
    %414 = vmatpush1.msra.mxu0 0.0
    %415 = vmatprep.subr.mxu0 0.0
    %416 = vmatpush1.msra.mxu0 0.0
    %417 = vmatprep.subr.mxu0 0.0
    %418 = vmatpush1.msra.mxu0 0.0
    %419 = vmatprep.subr.mxu0 0.0
    %420 = vmatpush1.msra.mxu0 0.0
    %421 = vmatprep.subr.mxu0 0.0
    %422 = vmatpush1.msra.mxu0 0.0
    %423 = vmatprep.subr.mxu0 0.0
    %424 = vmatpush1.msra.mxu0 0.0
    %425 = vmatprep.subr.mxu0 0.0
    %426 = vmatpush1.msra.mxu0 0.0
    %427 = vmatprep.subr.mxu0 0.0
    %428 = vmatpush1.msra.mxu0 0.0
    %429 = vmatprep.subr.mxu0 0.0
    %430 = vmatpush1.msra.mxu0 0.0
    %431 = vmatprep.subr.mxu0 0.0
    %432 = vmatpush1.msra.mxu0 0.0
    %433 = vmatprep.subr.mxu0 0.0
    %434 = vmatpush1.msra.mxu0 0.0
    %435 = vmatprep.subr.mxu0 0.0
    %436 = vmatpush1.msra.mxu0 0.0
    %437 = vmatprep.subr.mxu0 0.0
    %438 = vmatpush1.msra.mxu0 0.0
    %439 = vmatprep.mubr.f32.mxu0 0.0
    %440 = vmatmul.mubr.f32.gmra.mrb[0].mxu0 %v106
    %v441 = vpop.f32.mrb[0].mxu0
    %v442 = vadd.f32 %v373, %v441
    %v443 = vpop.f32.mrb[0].mxu0
    %444 = vmatprep.mubr.f32.mxu0 0.0
    %445 = vmatmul.mubr.f32.gmra.mrb[0].mxu0 %v109
    %v446 = vpop.f32.mrb[0].mxu0
    %v447 = vadd.f32 %v373, %v446
    %v448 = vpop.f32.mrb[0].mxu0
    %449 = vdwg.mxu0
    %s450 = scalar_lea.vmem %s2, 160
    %v451 = vld [vmem:[%s450] sm:$0xff]
    %v452 = vld [vmem:[%s450 + $0x8] sm:$0xff]
    %v453 = vld [vmem:[%s450 + $0x10] sm:$0xff]
    %v454 = vld [vmem:[%s450 + $0x18] sm:$0xff]
    %s455 = scalar_lea.vmem %s3, 5
    %v456 = vld [vmem:[%s455] sm:$0x1]
    %v458 = vlaneseq
    %v459 = vshrl.u32 %v458, 7
    %v460 = vsub.s32 0, %v459
    %v461 = vrot.slane %v456, %v460
    %463 = vmatprep.subr.mxu0 0.0
    %464 = vmatpush1.msra.mxu0 %v451
    %465 = vmatprep.subr.mxu0 0.0
    %466 = vmatpush1.msra.mxu0 %v452
    %467 = vmatprep.subr.mxu0 0.0
    %468 = vmatpush1.msra.mxu0 %v453
    %469 = vmatprep.subr.mxu0 0.0
    %470 = vmatpush1.msra.mxu0 %v454
    %471 = vmatprep.subr.mxu0 0.0
    %472 = vmatpush1.msra.mxu0 0.0
    %473 = vmatprep.subr.mxu0 0.0
    %474 = vmatpush1.msra.mxu0 0.0
    %475 = vmatprep.subr.mxu0 0.0
    %476 = vmatpush1.msra.mxu0 0.0
    %477 = vmatprep.subr.mxu0 0.0
    %478 = vmatpush1.msra.mxu0 0.0
    %479 = vmatprep.subr.mxu0 0.0
    %480 = vmatpush1.msra.mxu0 0.0
    %481 = vmatprep.subr.mxu0 0.0
    %482 = vmatpush1.msra.mxu0 0.0
    %483 = vmatprep.subr.mxu0 0.0
    %484 = vmatpush1.msra.mxu0 0.0
    %485 = vmatprep.subr.mxu0 0.0
    %486 = vmatpush1.msra.mxu0 0.0
    %487 = vmatprep.subr.mxu0 0.0
    %488 = vmatpush1.msra.mxu0 0.0
    %489 = vmatprep.subr.mxu0 0.0
    %490 = vmatpush1.msra.mxu0 0.0
    %491 = vmatprep.subr.mxu0 0.0
    %492 = vmatpush1.msra.mxu0 0.0
    %493 = vmatprep.subr.mxu0 0.0
    %494 = vmatpush1.msra.mxu0 0.0
    %495 = vmatprep.subr.mxu0 0.0
    %496 = vmatpush1.msra.mxu0 0.0
    %497 = vmatprep.subr.mxu0 0.0
    %498 = vmatpush1.msra.mxu0 0.0
    %499 = vmatprep.subr.mxu0 0.0
    %500 = vmatpush1.msra.mxu0 0.0
    %501 = vmatprep.subr.mxu0 0.0
    %502 = vmatpush1.msra.mxu0 0.0
    %503 = vmatprep.subr.mxu0 0.0
    %504 = vmatpush1.msra.mxu0 0.0
    %505 = vmatprep.subr.mxu0 0.0
    %506 = vmatpush1.msra.mxu0 0.0
    %507 = vmatprep.subr.mxu0 0.0
    %508 = vmatpush1.msra.mxu0 0.0
    %509 = vmatprep.subr.mxu0 0.0
    %510 = vmatpush1.msra.mxu0 0.0
    %511 = vmatprep.subr.mxu0 0.0
    %512 = vmatpush1.msra.mxu0 0.0
    %513 = vmatprep.subr.mxu0 0.0
    %514 = vmatpush1.msra.mxu0 0.0
    %515 = vmatprep.subr.mxu0 0.0
    %516 = vmatpush1.msra.mxu0 0.0
    %517 = vmatprep.subr.mxu0 0.0
    %518 = vmatpush1.msra.mxu0 0.0
    %519 = vmatprep.subr.mxu0 0.0
    %520 = vmatpush1.msra.mxu0 0.0
    %521 = vmatprep.subr.mxu0 0.0
    %522 = vmatpush1.msra.mxu0 0.0
    %523 = vmatprep.subr.mxu0 0.0
    %524 = vmatpush1.msra.mxu0 0.0
    %525 = vmatprep.subr.mxu0 0.0
    %526 = vmatpush1.msra.mxu0 0.0
    %527 = vmatprep.mubr.f32.mxu0 0.0
    %528 = vmatmul.mubr.f32.gmra.mrb[0].mxu0 %v106
    %v529 = vpop.f32.mrb[0].mxu0
    %v530 = vadd.f32 %v461, %v529
    %v531 = vpop.f32.mrb[0].mxu0
    %532 = vmatprep.mubr.f32.mxu0 0.0
    %533 = vmatmul.mubr.f32.gmra.mrb[0].mxu0 %v109
    %v534 = vpop.f32.mrb[0].mxu0
    %v535 = vadd.f32 %v461, %v534
    %v536 = vpop.f32.mrb[0].mxu0
    %537 = vdwg.mxu0
    %s538 = scalar_lea.vmem %s2, 288
    %v539 = vld [vmem:[%s538] sm:$0xff]
    %v540 = vld [vmem:[%s538 + $0x8] sm:$0xff]
    %v541 = vld [vmem:[%s538 + $0x10] sm:$0xff]
    %v542 = vld [vmem:[%s538 + $0x18] sm:$0xff]
    %s543 = scalar_lea.vmem %s3, 9
    %v544 = vld [vmem:[%s543] sm:$0x1]
    %v546 = vlaneseq
    %v547 = vshrl.u32 %v546, 7
    %v548 = vsub.s32 0, %v547
    %v549 = vrot.slane %v544, %v548
    %551 = vmatprep.subr.mxu0 0.0
    %552 = vmatpush1.msra.mxu0 %v539
    %553 = vmatprep.subr.mxu0 0.0
    %554 = vmatpush1.msra.mxu0 %v540
    %555 = vmatprep.subr.mxu0 0.0
    %556 = vmatpush1.msra.mxu0 %v541
    %557 = vmatprep.subr.mxu0 0.0
    %558 = vmatpush1.msra.mxu0 %v542
    %559 = vmatprep.subr.mxu0 0.0
    %560 = vmatpush1.msra.mxu0 0.0
    %561 = vmatprep.subr.mxu0 0.0
    %562 = vmatpush1.msra.mxu0 0.0
    %563 = vmatprep.subr.mxu0 0.0
    %564 = vmatpush1.msra.mxu0 0.0
    %565 = vmatprep.subr.mxu0 0.0
    %566 = vmatpush1.msra.mxu0 0.0
    %567 = vmatprep.subr.mxu0 0.0
    %568 = vmatpush1.msra.mxu0 0.0
    %569 = vmatprep.subr.mxu0 0.0
    %570 = vmatpush1.msra.mxu0 0.0
    %571 = vmatprep.subr.mxu0 0.0
    %572 = vmatpush1.msra.mxu0 0.0
    %573 = vmatprep.subr.mxu0 0.0
    %574 = vmatpush1.msra.mxu0 0.0
    %575 = vmatprep.subr.mxu0 0.0
    %576 = vmatpush1.msra.mxu0 0.0
    %577 = vmatprep.subr.mxu0 0.0
    %578 = vmatpush1.msra.mxu0 0.0
    %579 = vmatprep.subr.mxu0 0.0
    %580 = vmatpush1.msra.mxu0 0.0
    %581 = vmatprep.subr.mxu0 0.0
    %582 = vmatpush1.msra.mxu0 0.0
    %583 = vmatprep.subr.mxu0 0.0
    %584 = vmatpush1.msra.mxu0 0.0
    %585 = vmatprep.subr.mxu0 0.0
    %586 = vmatpush1.msra.mxu0 0.0
    %587 = vmatprep.subr.mxu0 0.0
    %588 = vmatpush1.msra.mxu0 0.0
    %589 = vmatprep.subr.mxu0 0.0
    %590 = vmatpush1.msra.mxu0 0.0
    %591 = vmatprep.subr.mxu0 0.0
    %592 = vmatpush1.msra.mxu0 0.0
    %593 = vmatprep.subr.mxu0 0.0
    %594 = vmatpush1.msra.mxu0 0.0
    %595 = vmatprep.subr.mxu0 0.0
    %596 = vmatpush1.msra.mxu0 0.0
    %597 = vmatprep.subr.mxu0 0.0
    %598 = vmatpush1.msra.mxu0 0.0
    %599 = vmatprep.subr.mxu0 0.0
    %600 = vmatpush1.msra.mxu0 0.0
    %601 = vmatprep.subr.mxu0 0.0
    %602 = vmatpush1.msra.mxu0 0.0
    %603 = vmatprep.subr.mxu0 0.0
    %604 = vmatpush1.msra.mxu0 0.0
    %605 = vmatprep.subr.mxu0 0.0
    %606 = vmatpush1.msra.mxu0 0.0
    %607 = vmatprep.subr.mxu0 0.0
    %608 = vmatpush1.msra.mxu0 0.0
    %609 = vmatprep.subr.mxu0 0.0
    %610 = vmatpush1.msra.mxu0 0.0
    %611 = vmatprep.subr.mxu0 0.0
    %612 = vmatpush1.msra.mxu0 0.0
    %613 = vmatprep.subr.mxu0 0.0
    %614 = vmatpush1.msra.mxu0 0.0
    %615 = vmatprep.mubr.f32.mxu0 0.0
    %616 = vmatmul.mubr.f32.gmra.mrb[0].mxu0 %v106
    %v617 = vpop.f32.mrb[0].mxu0
    %v618 = vadd.f32 %v549, %v617
    %v619 = vpop.f32.mrb[0].mxu0
    %620 = vmatprep.mubr.f32.mxu0 0.0
    %621 = vmatmul.mubr.f32.gmra.mrb[0].mxu0 %v109
    %v622 = vpop.f32.mrb[0].mxu0
    %v623 = vadd.f32 %v549, %v622
    %v624 = vpop.f32.mrb[0].mxu0
    %625 = vdwg.mxu0
    %s626 = scalar_lea.vmem %s2, 64
    %v627 = vld [vmem:[%s626] sm:$0xff]
    %v628 = vld [vmem:[%s626 + $0x8] sm:$0xff]
    %v629 = vld [vmem:[%s626 + $0x10] sm:$0xff]
    %v630 = vld [vmem:[%s626 + $0x18] sm:$0xff]
    %s631 = scalar_lea.vmem %s3, 2
    %v632 = vld [vmem:[%s631] sm:$0x1]
    %v634 = vlaneseq
    %v635 = vshrl.u32 %v634, 7
    %v636 = vsub.s32 0, %v635
    %v637 = vrot.slane %v632, %v636
    %639 = vmatprep.subr.mxu0 0.0
    %640 = vmatpush1.msra.mxu0 %v627
    %641 = vmatprep.subr.mxu0 0.0
    %642 = vmatpush1.msra.mxu0 %v628
    %643 = vmatprep.subr.mxu0 0.0
    %644 = vmatpush1.msra.mxu0 %v629
    %645 = vmatprep.subr.mxu0 0.0
    %646 = vmatpush1.msra.mxu0 %v630
    %647 = vmatprep.subr.mxu0 0.0
    %648 = vmatpush1.msra.mxu0 0.0
    %649 = vmatprep.subr.mxu0 0.0
    %650 = vmatpush1.msra.mxu0 0.0
    %651 = vmatprep.subr.mxu0 0.0
    %652 = vmatpush1.msra.mxu0 0.0
    %653 = vmatprep.subr.mxu0 0.0
    %654 = vmatpush1.msra.mxu0 0.0
    %655 = vmatprep.subr.mxu0 0.0
    %656 = vmatpush1.msra.mxu0 0.0
    %657 = vmatprep.subr.mxu0 0.0
    %658 = vmatpush1.msra.mxu0 0.0
    %659 = vmatprep.subr.mxu0 0.0
    %660 = vmatpush1.msra.mxu0 0.0
    %661 = vmatprep.subr.mxu0 0.0
    %662 = vmatpush1.msra.mxu0 0.0
    %663 = vmatprep.subr.mxu0 0.0
    %664 = vmatpush1.msra.mxu0 0.0
    %665 = vmatprep.subr.mxu0 0.0
    %666 = vmatpush1.msra.mxu0 0.0
    %667 = vmatprep.subr.mxu0 0.0
    %668 = vmatpush1.msra.mxu0 0.0
    %669 = vmatprep.subr.mxu0 0.0
    %670 = vmatpush1.msra.mxu0 0.0
    %671 = vmatprep.subr.mxu0 0.0
    %672 = vmatpush1.msra.mxu0 0.0
    %673 = vmatprep.subr.mxu0 0.0
    %674 = vmatpush1.msra.mxu0 0.0
    %675 = vmatprep.subr.mxu0 0.0
    %676 = vmatpush1.msra.mxu0 0.0
    %677 = vmatprep.subr.mxu0 0.0
    %678 = vmatpush1.msra.mxu0 0.0
    %679 = vmatprep.subr.mxu0 0.0
    %680 = vmatpush1.msra.mxu0 0.0
    %681 = vmatprep.subr.mxu0 0.0
    %682 = vmatpush1.msra.mxu0 0.0
    %683 = vmatprep.subr.mxu0 0.0
    %684 = vmatpush1.msra.mxu0 0.0
    %685 = vmatprep.subr.mxu0 0.0
    %686 = vmatpush1.msra.mxu0 0.0
    %687 = vmatprep.subr.mxu0 0.0
    %688 = vmatpush1.msra.mxu0 0.0
    %689 = vmatprep.subr.mxu0 0.0
    %690 = vmatpush1.msra.mxu0 0.0
    %691 = vmatprep.subr.mxu0 0.0
    %692 = vmatpush1.msra.mxu0 0.0
    %693 = vmatprep.subr.mxu0 0.0
    %694 = vmatpush1.msra.mxu0 0.0
    %695 = vmatprep.subr.mxu0 0.0
    %696 = vmatpush1.msra.mxu0 0.0
    %697 = vmatprep.subr.mxu0 0.0
    %698 = vmatpush1.msra.mxu0 0.0
    %699 = vmatprep.subr.mxu0 0.0
    %700 = vmatpush1.msra.mxu0 0.0
    %701 = vmatprep.subr.mxu0 0.0
    %702 = vmatpush1.msra.mxu0 0.0
    %703 = vmatprep.mubr.f32.mxu0 0.0
    %704 = vmatmul.mubr.f32.gmra.mrb[0].mxu0 %v106
    %v705 = vpop.f32.mrb[0].mxu0
    %v706 = vadd.f32 %v637, %v705
    %v707 = vpop.f32.mrb[0].mxu0
    %708 = vmatprep.mubr.f32.mxu0 0.0
    %709 = vmatmul.mubr.f32.gmra.mrb[0].mxu0 %v109
    %v710 = vpop.f32.mrb[0].mxu0
    %v711 = vadd.f32 %v637, %v710
    %v712 = vpop.f32.mrb[0].mxu0
    %713 = vdwg.mxu0
    %s714 = scalar_lea.vmem %s2, 192
    %v715 = vld [vmem:[%s714] sm:$0xff]
    %v716 = vld [vmem:[%s714 + $0x8] sm:$0xff]
    %v717 = vld [vmem:[%s714 + $0x10] sm:$0xff]
    %v718 = vld [vmem:[%s714 + $0x18] sm:$0xff]
    %s719 = scalar_lea.vmem %s3, 6
    %v720 = vld [vmem:[%s719] sm:$0x1]
    %v722 = vlaneseq
    %v723 = vshrl.u32 %v722, 7
    %v724 = vsub.s32 0, %v723
    %v725 = vrot.slane %v720, %v724
    %727 = vmatprep.subr.mxu0 0.0
    %728 = vmatpush1.msra.mxu0 %v715
    %729 = vmatprep.subr.mxu0 0.0
    %730 = vmatpush1.msra.mxu0 %v716
    %731 = vmatprep.subr.mxu0 0.0
    %732 = vmatpush1.msra.mxu0 %v717
    %733 = vmatprep.subr.mxu0 0.0
    %734 = vmatpush1.msra.mxu0 %v718
    %735 = vmatprep.subr.mxu0 0.0
    %736 = vmatpush1.msra.mxu0 0.0
    %737 = vmatprep.subr.mxu0 0.0
    %738 = vmatpush1.msra.mxu0 0.0
    %739 = vmatprep.subr.mxu0 0.0
    %740 = vmatpush1.msra.mxu0 0.0
    %741 = vmatprep.subr.mxu0 0.0
    %742 = vmatpush1.msra.mxu0 0.0
    %743 = vmatprep.subr.mxu0 0.0
    %744 = vmatpush1.msra.mxu0 0.0
    %745 = vmatprep.subr.mxu0 0.0
    %746 = vmatpush1.msra.mxu0 0.0
    %747 = vmatprep.subr.mxu0 0.0
    %748 = vmatpush1.msra.mxu0 0.0
    %749 = vmatprep.subr.mxu0 0.0
    %750 = vmatpush1.msra.mxu0 0.0
    %751 = vmatprep.subr.mxu0 0.0
    %752 = vmatpush1.msra.mxu0 0.0
    %753 = vmatprep.subr.mxu0 0.0
    %754 = vmatpush1.msra.mxu0 0.0
    %755 = vmatprep.subr.mxu0 0.0
    %756 = vmatpush1.msra.mxu0 0.0
    %757 = vmatprep.subr.mxu0 0.0
    %758 = vmatpush1.msra.mxu0 0.0
    %759 = vmatprep.subr.mxu0 0.0
    %760 = vmatpush1.msra.mxu0 0.0
    %761 = vmatprep.subr.mxu0 0.0
    %762 = vmatpush1.msra.mxu0 0.0
    %763 = vmatprep.subr.mxu0 0.0
    %764 = vmatpush1.msra.mxu0 0.0
    %765 = vmatprep.subr.mxu0 0.0
    %766 = vmatpush1.msra.mxu0 0.0
    %767 = vmatprep.subr.mxu0 0.0
    %768 = vmatpush1.msra.mxu0 0.0
    %769 = vmatprep.subr.mxu0 0.0
    %770 = vmatpush1.msra.mxu0 0.0
    %771 = vmatprep.subr.mxu0 0.0
    %772 = vmatpush1.msra.mxu0 0.0
    %773 = vmatprep.subr.mxu0 0.0
    %774 = vmatpush1.msra.mxu0 0.0
    %775 = vmatprep.subr.mxu0 0.0
    %776 = vmatpush1.msra.mxu0 0.0
    %777 = vmatprep.subr.mxu0 0.0
    %778 = vmatpush1.msra.mxu0 0.0
    %779 = vmatprep.subr.mxu0 0.0
    %780 = vmatpush1.msra.mxu0 0.0
    %781 = vmatprep.subr.mxu0 0.0
    %782 = vmatpush1.msra.mxu0 0.0
    %783 = vmatprep.subr.mxu0 0.0
    %784 = vmatpush1.msra.mxu0 0.0
    %785 = vmatprep.subr.mxu0 0.0
    %786 = vmatpush1.msra.mxu0 0.0
    %787 = vmatprep.subr.mxu0 0.0
    %788 = vmatpush1.msra.mxu0 0.0
    %789 = vmatprep.subr.mxu0 0.0
    %790 = vmatpush1.msra.mxu0 0.0
    %791 = vmatprep.mubr.f32.mxu0 0.0
    %792 = vmatmul.mubr.f32.gmra.mrb[0].mxu0 %v106
    %v793 = vpop.f32.mrb[0].mxu0
    %v794 = vadd.f32 %v725, %v793
    %v795 = vpop.f32.mrb[0].mxu0
    %796 = vmatprep.mubr.f32.mxu0 0.0
    %797 = vmatmul.mubr.f32.gmra.mrb[0].mxu0 %v109
    %v798 = vpop.f32.mrb[0].mxu0
    %v799 = vadd.f32 %v725, %v798
    %v800 = vpop.f32.mrb[0].mxu0
    %801 = vdwg.mxu0
    %s802 = scalar_lea.vmem %s2, 320
    %v803 = vld [vmem:[%s802] sm:$0xff]
    %v804 = vld [vmem:[%s802 + $0x8] sm:$0xff]
    %v805 = vld [vmem:[%s802 + $0x10] sm:$0xff]
    %v806 = vld [vmem:[%s802 + $0x18] sm:$0xff]
    %s807 = scalar_lea.vmem %s3, 10
    %v808 = vld [vmem:[%s807] sm:$0x1]
    %v810 = vlaneseq
    %v811 = vshrl.u32 %v810, 7
    %v812 = vsub.s32 0, %v811
    %v813 = vrot.slane %v808, %v812
    %815 = vmatprep.subr.mxu0 0.0
    %816 = vmatpush1.msra.mxu0 %v803
    %817 = vmatprep.subr.mxu0 0.0
    %818 = vmatpush1.msra.mxu0 %v804
    %819 = vmatprep.subr.mxu0 0.0
    %820 = vmatpush1.msra.mxu0 %v805
    %821 = vmatprep.subr.mxu0 0.0
    %822 = vmatpush1.msra.mxu0 %v806
    %823 = vmatprep.subr.mxu0 0.0
    %824 = vmatpush1.msra.mxu0 0.0
    %825 = vmatprep.subr.mxu0 0.0
    %826 = vmatpush1.msra.mxu0 0.0
    %827 = vmatprep.subr.mxu0 0.0
    %828 = vmatpush1.msra.mxu0 0.0
    %829 = vmatprep.subr.mxu0 0.0
    %830 = vmatpush1.msra.mxu0 0.0
    %831 = vmatprep.subr.mxu0 0.0
    %832 = vmatpush1.msra.mxu0 0.0
    %833 = vmatprep.subr.mxu0 0.0
    %834 = vmatpush1.msra.mxu0 0.0
    %835 = vmatprep.subr.mxu0 0.0
    %836 = vmatpush1.msra.mxu0 0.0
    %837 = vmatprep.subr.mxu0 0.0
    %838 = vmatpush1.msra.mxu0 0.0
    %839 = vmatprep.subr.mxu0 0.0
    %840 = vmatpush1.msra.mxu0 0.0
    %841 = vmatprep.subr.mxu0 0.0
    %842 = vmatpush1.msra.mxu0 0.0
    %843 = vmatprep.subr.mxu0 0.0
    %844 = vmatpush1.msra.mxu0 0.0
    %845 = vmatprep.subr.mxu0 0.0
    %846 = vmatpush1.msra.mxu0 0.0
    %847 = vmatprep.subr.mxu0 0.0
    %848 = vmatpush1.msra.mxu0 0.0
    %849 = vmatprep.subr.mxu0 0.0
    %850 = vmatpush1.msra.mxu0 0.0
    %851 = vmatprep.subr.mxu0 0.0
    %852 = vmatpush1.msra.mxu0 0.0
    %853 = vmatprep.subr.mxu0 0.0
    %854 = vmatpush1.msra.mxu0 0.0
    %855 = vmatprep.subr.mxu0 0.0
    %856 = vmatpush1.msra.mxu0 0.0
    %857 = vmatprep.subr.mxu0 0.0
    %858 = vmatpush1.msra.mxu0 0.0
    %859 = vmatprep.subr.mxu0 0.0
    %860 = vmatpush1.msra.mxu0 0.0
    %861 = vmatprep.subr.mxu0 0.0
    %862 = vmatpush1.msra.mxu0 0.0
    %863 = vmatprep.subr.mxu0 0.0
    %864 = vmatpush1.msra.mxu0 0.0
    %865 = vmatprep.subr.mxu0 0.0
    %866 = vmatpush1.msra.mxu0 0.0
    %867 = vmatprep.subr.mxu0 0.0
    %868 = vmatpush1.msra.mxu0 0.0
    %869 = vmatprep.subr.mxu0 0.0
    %870 = vmatpush1.msra.mxu0 0.0
    %871 = vmatprep.subr.mxu0 0.0
    %872 = vmatpush1.msra.mxu0 0.0
    %873 = vmatprep.subr.mxu0 0.0
    %874 = vmatpush1.msra.mxu0 0.0
    %875 = vmatprep.subr.mxu0 0.0
    %876 = vmatpush1.msra.mxu0 0.0
    %877 = vmatprep.subr.mxu0 0.0
    %878 = vmatpush1.msra.mxu0 0.0
    %879 = vmatprep.mubr.f32.mxu0 0.0
    %880 = vmatmul.mubr.f32.gmra.mrb[0].mxu0 %v106
    %v881 = vpop.f32.mrb[0].mxu0
    %v882 = vadd.f32 %v813, %v881
    %v883 = vpop.f32.mrb[0].mxu0
    %884 = vmatprep.mubr.f32.mxu0 0.0
    %885 = vmatmul.mubr.f32.gmra.mrb[0].mxu0 %v109
    %v886 = vpop.f32.mrb[0].mxu0
    %v887 = vadd.f32 %v813, %v886
    %v888 = vpop.f32.mrb[0].mxu0
    %889 = vdwg.mxu0
    %s890 = scalar_lea.vmem %s2, 96
    %v891 = vld [vmem:[%s890] sm:$0xff]
    %v892 = vld [vmem:[%s890 + $0x8] sm:$0xff]
    %v893 = vld [vmem:[%s890 + $0x10] sm:$0xff]
    %v894 = vld [vmem:[%s890 + $0x18] sm:$0xff]
    %s895 = scalar_lea.vmem %s3, 3
    %v896 = vld [vmem:[%s895] sm:$0x1]
    %v898 = vlaneseq
    %v899 = vshrl.u32 %v898, 7
    %v900 = vsub.s32 0, %v899
    %v901 = vrot.slane %v896, %v900
    %903 = vmatprep.subr.mxu0 0.0
    %904 = vmatpush1.msra.mxu0 %v891
    %905 = vmatprep.subr.mxu0 0.0
    %906 = vmatpush1.msra.mxu0 %v892
    %907 = vmatprep.subr.mxu0 0.0
    %908 = vmatpush1.msra.mxu0 %v893
    %909 = vmatprep.subr.mxu0 0.0
    %910 = vmatpush1.msra.mxu0 %v894
    %911 = vmatprep.subr.mxu0 0.0
    %912 = vmatpush1.msra.mxu0 0.0
    %913 = vmatprep.subr.mxu0 0.0
    %914 = vmatpush1.msra.mxu0 0.0
    %915 = vmatprep.subr.mxu0 0.0
    %916 = vmatpush1.msra.mxu0 0.0
    %917 = vmatprep.subr.mxu0 0.0
    %918 = vmatpush1.msra.mxu0 0.0
    %919 = vmatprep.subr.mxu0 0.0
    %920 = vmatpush1.msra.mxu0 0.0
    %921 = vmatprep.subr.mxu0 0.0
    %922 = vmatpush1.msra.mxu0 0.0
    %923 = vmatprep.subr.mxu0 0.0
    %924 = vmatpush1.msra.mxu0 0.0
    %925 = vmatprep.subr.mxu0 0.0
    %926 = vmatpush1.msra.mxu0 0.0
    %927 = vmatprep.subr.mxu0 0.0
    %928 = vmatpush1.msra.mxu0 0.0
    %929 = vmatprep.subr.mxu0 0.0
    %930 = vmatpush1.msra.mxu0 0.0
    %931 = vmatprep.subr.mxu0 0.0
    %932 = vmatpush1.msra.mxu0 0.0
    %933 = vmatprep.subr.mxu0 0.0
    %934 = vmatpush1.msra.mxu0 0.0
    %935 = vmatprep.subr.mxu0 0.0
    %936 = vmatpush1.msra.mxu0 0.0
    %937 = vmatprep.subr.mxu0 0.0
    %938 = vmatpush1.msra.mxu0 0.0
    %939 = vmatprep.subr.mxu0 0.0
    %940 = vmatpush1.msra.mxu0 0.0
    %941 = vmatprep.subr.mxu0 0.0
    %942 = vmatpush1.msra.mxu0 0.0
    %943 = vmatprep.subr.mxu0 0.0
    %944 = vmatpush1.msra.mxu0 0.0
    %945 = vmatprep.subr.mxu0 0.0
    %946 = vmatpush1.msra.mxu0 0.0
    %947 = vmatprep.subr.mxu0 0.0
    %948 = vmatpush1.msra.mxu0 0.0
    %949 = vmatprep.subr.mxu0 0.0
    %950 = vmatpush1.msra.mxu0 0.0
    %951 = vmatprep.subr.mxu0 0.0
    %952 = vmatpush1.msra.mxu0 0.0
    %953 = vmatprep.subr.mxu0 0.0
    %954 = vmatpush1.msra.mxu0 0.0
    %955 = vmatprep.subr.mxu0 0.0
    %956 = vmatpush1.msra.mxu0 0.0
    %957 = vmatprep.subr.mxu0 0.0
    %958 = vmatpush1.msra.mxu0 0.0
    %959 = vmatprep.subr.mxu0 0.0
    %960 = vmatpush1.msra.mxu0 0.0
    %961 = vmatprep.subr.mxu0 0.0
    %962 = vmatpush1.msra.mxu0 0.0
    %963 = vmatprep.subr.mxu0 0.0
    %964 = vmatpush1.msra.mxu0 0.0
    %965 = vmatprep.subr.mxu0 0.0
    %966 = vmatpush1.msra.mxu0 0.0
    %967 = vmatprep.mubr.f32.mxu0 0.0
    %968 = vmatmul.mubr.f32.gmra.mrb[0].mxu0 %v106
    %v969 = vpop.f32.mrb[0].mxu0
    %v970 = vadd.f32 %v901, %v969
    %v971 = vpop.f32.mrb[0].mxu0
    %972 = vmatprep.mubr.f32.mxu0 0.0
    %973 = vmatmul.mubr.f32.gmra.mrb[0].mxu0 %v109
    %v974 = vpop.f32.mrb[0].mxu0
    %v975 = vadd.f32 %v901, %v974
    %v976 = vpop.f32.mrb[0].mxu0
    %977 = vdwg.mxu0
    %s978 = scalar_lea.vmem %s2, 224
    %v979 = vld [vmem:[%s978] sm:$0xff]
    %v980 = vld [vmem:[%s978 + $0x8] sm:$0xff]
    %v981 = vld [vmem:[%s978 + $0x10] sm:$0xff]
    %v982 = vld [vmem:[%s978 + $0x18] sm:$0xff]
    %s983 = scalar_lea.vmem %s3, 7
    %v984 = vld [vmem:[%s983] sm:$0x1]
    %v986 = vlaneseq
    %v987 = vshrl.u32 %v986, 7
    %v988 = vsub.s32 0, %v987
    %v989 = vrot.slane %v984, %v988
    %991 = vmatprep.subr.mxu0 0.0
    %992 = vmatpush1.msra.mxu0 %v979
    %993 = vmatprep.subr.mxu0 0.0
    %994 = vmatpush1.msra.mxu0 %v980
    %995 = vmatprep.subr.mxu0 0.0
    %996 = vmatpush1.msra.mxu0 %v981
    %997 = vmatprep.subr.mxu0 0.0
    %998 = vmatpush1.msra.mxu0 %v982
    %999 = vmatprep.subr.mxu0 0.0
    %1000 = vmatpush1.msra.mxu0 0.0
    %1001 = vmatprep.subr.mxu0 0.0
    %1002 = vmatpush1.msra.mxu0 0.0
    %1003 = vmatprep.subr.mxu0 0.0
    %1004 = vmatpush1.msra.mxu0 0.0
    %1005 = vmatprep.subr.mxu0 0.0
    %1006 = vmatpush1.msra.mxu0 0.0
    %1007 = vmatprep.subr.mxu0 0.0
    %1008 = vmatpush1.msra.mxu0 0.0
    %1009 = vmatprep.subr.mxu0 0.0
    %1010 = vmatpush1.msra.mxu0 0.0
    %1011 = vmatprep.subr.mxu0 0.0
    %1012 = vmatpush1.msra.mxu0 0.0
    %1013 = vmatprep.subr.mxu0 0.0
    %1014 = vmatpush1.msra.mxu0 0.0
    %1015 = vmatprep.subr.mxu0 0.0
    %1016 = vmatpush1.msra.mxu0 0.0
    %1017 = vmatprep.subr.mxu0 0.0
    %1018 = vmatpush1.msra.mxu0 0.0
    %1019 = vmatprep.subr.mxu0 0.0
    %1020 = vmatpush1.msra.mxu0 0.0
    %1021 = vmatprep.subr.mxu0 0.0
    %1022 = vmatpush1.msra.mxu0 0.0
    %1023 = vmatprep.subr.mxu0 0.0
    %1024 = vmatpush1.msra.mxu0 0.0
    %1025 = vmatprep.subr.mxu0 0.0
    %1026 = vmatpush1.msra.mxu0 0.0
    %1027 = vmatprep.subr.mxu0 0.0
    %1028 = vmatpush1.msra.mxu0 0.0
    %1029 = vmatprep.subr.mxu0 0.0
    %1030 = vmatpush1.msra.mxu0 0.0
    %1031 = vmatprep.subr.mxu0 0.0
    %1032 = vmatpush1.msra.mxu0 0.0
    %1033 = vmatprep.subr.mxu0 0.0
    %1034 = vmatpush1.msra.mxu0 0.0
    %1035 = vmatprep.subr.mxu0 0.0
    %1036 = vmatpush1.msra.mxu0 0.0
    %1037 = vmatprep.subr.mxu0 0.0
    %1038 = vmatpush1.msra.mxu0 0.0
    %1039 = vmatprep.subr.mxu0 0.0
    %1040 = vmatpush1.msra.mxu0 0.0
    %1041 = vmatprep.subr.mxu0 0.0
    %1042 = vmatpush1.msra.mxu0 0.0
    %1043 = vmatprep.subr.mxu0 0.0
    %1044 = vmatpush1.msra.mxu0 0.0
    %1045 = vmatprep.subr.mxu0 0.0
    %1046 = vmatpush1.msra.mxu0 0.0
    %1047 = vmatprep.subr.mxu0 0.0
    %1048 = vmatpush1.msra.mxu0 0.0
    %1049 = vmatprep.subr.mxu0 0.0
    %1050 = vmatpush1.msra.mxu0 0.0
    %1051 = vmatprep.subr.mxu0 0.0
    %1052 = vmatpush1.msra.mxu0 0.0
    %1053 = vmatprep.subr.mxu0 0.0
    %1054 = vmatpush1.msra.mxu0 0.0
    %1055 = vmatprep.mubr.f32.mxu0 0.0
    %1056 = vmatmul.mubr.f32.gmra.mrb[0].mxu0 %v106
    %v1057 = vpop.f32.mrb[0].mxu0
    %v1058 = vadd.f32 %v989, %v1057
    %v1059 = vpop.f32.mrb[0].mxu0
    %1060 = vmatprep.mubr.f32.mxu0 0.0
    %1061 = vmatmul.mubr.f32.gmra.mrb[0].mxu0 %v109
    %v1062 = vpop.f32.mrb[0].mxu0
    %v1063 = vadd.f32 %v989, %v1062
    %v1064 = vpop.f32.mrb[0].mxu0
    %1065 = vdwg.mxu0
    %s1066 = scalar_lea.vmem %s2, 352
    %v1067 = vld [vmem:[%s1066] sm:$0xff]
    %v1068 = vld [vmem:[%s1066 + $0x8] sm:$0xff]
    %v1069 = vld [vmem:[%s1066 + $0x10] sm:$0xff]
    %v1070 = vld [vmem:[%s1066 + $0x18] sm:$0xff]
    %s1071 = scalar_lea.vmem %s3, 11
    %v1072 = vld [vmem:[%s1071] sm:$0x1]
    %v1074 = vlaneseq
    %v1075 = vshrl.u32 %v1074, 7
    %v1076 = vsub.s32 0, %v1075
    %v1077 = vrot.slane %v1072, %v1076
    %1079 = vmatprep.subr.mxu0 0.0
    %1080 = vmatpush1.msra.mxu0 %v1067
    %1081 = vmatprep.subr.mxu0 0.0
    %1082 = vmatpush1.msra.mxu0 %v1068
    %1083 = vmatprep.subr.mxu0 0.0
    %1084 = vmatpush1.msra.mxu0 %v1069
    %1085 = vmatprep.subr.mxu0 0.0
    %1086 = vmatpush1.msra.mxu0 %v1070
    %1087 = vmatprep.subr.mxu0 0.0
    %1088 = vmatpush1.msra.mxu0 0.0
    %1089 = vmatprep.subr.mxu0 0.0
    %1090 = vmatpush1.msra.mxu0 0.0
    %1091 = vmatprep.subr.mxu0 0.0
    %1092 = vmatpush1.msra.mxu0 0.0
    %1093 = vmatprep.subr.mxu0 0.0
    %1094 = vmatpush1.msra.mxu0 0.0
    %1095 = vmatprep.subr.mxu0 0.0
    %1096 = vmatpush1.msra.mxu0 0.0
    %1097 = vmatprep.subr.mxu0 0.0
    %1098 = vmatpush1.msra.mxu0 0.0
    %1099 = vmatprep.subr.mxu0 0.0
    %1100 = vmatpush1.msra.mxu0 0.0
    %1101 = vmatprep.subr.mxu0 0.0
    %1102 = vmatpush1.msra.mxu0 0.0
    %1103 = vmatprep.subr.mxu0 0.0
    %1104 = vmatpush1.msra.mxu0 0.0
    %1105 = vmatprep.subr.mxu0 0.0
    %1106 = vmatpush1.msra.mxu0 0.0
    %1107 = vmatprep.subr.mxu0 0.0
    %1108 = vmatpush1.msra.mxu0 0.0
    %1109 = vmatprep.subr.mxu0 0.0
    %1110 = vmatpush1.msra.mxu0 0.0
    %1111 = vmatprep.subr.mxu0 0.0
    %1112 = vmatpush1.msra.mxu0 0.0
    %1113 = vmatprep.subr.mxu0 0.0
    %1114 = vmatpush1.msra.mxu0 0.0
    %1115 = vmatprep.subr.mxu0 0.0
    %1116 = vmatpush1.msra.mxu0 0.0
    %1117 = vmatprep.subr.mxu0 0.0
    %1118 = vmatpush1.msra.mxu0 0.0
    %1119 = vmatprep.subr.mxu0 0.0
    %1120 = vmatpush1.msra.mxu0 0.0
    %1121 = vmatprep.subr.mxu0 0.0
    %1122 = vmatpush1.msra.mxu0 0.0
    %1123 = vmatprep.subr.mxu0 0.0
    %1124 = vmatpush1.msra.mxu0 0.0
    %1125 = vmatprep.subr.mxu0 0.0
    %1126 = vmatpush1.msra.mxu0 0.0
    %1127 = vmatprep.subr.mxu0 0.0
    %1128 = vmatpush1.msra.mxu0 0.0
    %1129 = vmatprep.subr.mxu0 0.0
    %1130 = vmatpush1.msra.mxu0 0.0
    %1131 = vmatprep.subr.mxu0 0.0
    %1132 = vmatpush1.msra.mxu0 0.0
    %1133 = vmatprep.subr.mxu0 0.0
    %1134 = vmatpush1.msra.mxu0 0.0
    %1135 = vmatprep.subr.mxu0 0.0
    %1136 = vmatpush1.msra.mxu0 0.0
    %1137 = vmatprep.subr.mxu0 0.0
    %1138 = vmatpush1.msra.mxu0 0.0
    %1139 = vmatprep.subr.mxu0 0.0
    %1140 = vmatpush1.msra.mxu0 0.0
    %1141 = vmatprep.subr.mxu0 0.0
    %1142 = vmatpush1.msra.mxu0 0.0
    %1143 = vmatprep.mubr.f32.mxu0 0.0
    %1144 = vmatmul.mubr.f32.gmra.mrb[0].mxu0 %v106
    %v1145 = vpop.f32.mrb[0].mxu0
    %v1146 = vadd.f32 %v1077, %v1145
    %v1147 = vpop.f32.mrb[0].mxu0
    %1148 = vmatprep.mubr.f32.mxu0 0.0
    %1149 = vmatmul.mubr.f32.gmra.mrb[0].mxu0 %v109
    %v1150 = vpop.f32.mrb[0].mxu0
    %v1151 = vadd.f32 %v1077, %v1150
    %v1152 = vpop.f32.mrb[0].mxu0
    %1153 = vdwg.mxu0
    %vm1154 = vcmask 64512
    %v1156 = vsel %vm1154, %v178, 0
    %v1159 = vsel %vm1154, %v266, 0
    %1161 = vmatprep.subr.mxu0 0.0
    %1162 = vmatpush1.xpose.msra.mxu0 %v1159
    %1163 = vmatprep.subr.mxu0 0.0
    %1164 = vmatpush1.xpose.msra.mxu0 0.0
    %1165 = vmatprep.subr.mxu0 0.0
    %1166 = vmatpush1.xpose.msra.mxu0 0.0
    %1167 = vmatprep.subr.mxu0 0.0
    %1168 = vmatpush1.xpose.msra.mxu0 0.0
    %1169 = vmatprep.subr.mxu0 0.0
    %1170 = vmatpush1.xpose.msra.mxu0 0.0
    %1171 = vmatprep.subr.mxu0 0.0
    %1172 = vmatpush1.xpose.msra.mxu0 0.0
    %1173 = vmatprep.subr.mxu0 0.0
    %1174 = vmatpush1.xpose.msra.mxu0 0.0
    %1175 = vmatprep.subr.mxu0 0.0
    %1176 = vmatpush1.xpose.msra.mxu0 0.0
    %1177 = vmatprep.subr.mxu0 0.0
    %1178 = vmatpush1.xpose.msra.mxu0 0.0
    %1179 = vmatprep.subr.mxu0 0.0
    %1180 = vmatpush1.xpose.msra.mxu0 0.0
    %1181 = vmatprep.subr.mxu0 0.0
    %1182 = vmatpush1.xpose.msra.mxu0 0.0
    %1183 = vmatprep.subr.mxu0 0.0
    %1184 = vmatpush1.xpose.msra.mxu0 0.0
    %1185 = vmatprep.subr.mxu0 0.0
    %1186 = vmatpush1.xpose.msra.mxu0 0.0
    %1187 = vmatprep.subr.mxu0 0.0
    %1188 = vmatpush1.xpose.msra.mxu0 0.0
    %1189 = vmatprep.subr.mxu0 0.0
    %1190 = vmatpush1.xpose.msra.mxu0 0.0
    %1191 = vmatprep.subr.mxu0 0.0
    %1192 = vmatpush1.xpose.msra.mxu0 0.0
    %1193 = vmatprep.subr.mxu0 0.0
    %1194 = vmatpush1.xpose.msra.mxu0 0.0
    %1195 = vmatprep.subr.mxu0 0.0
    %1196 = vmatpush1.xpose.msra.mxu0 0.0
    %1197 = vmatprep.subr.mxu0 0.0
    %1198 = vmatpush1.xpose.msra.mxu0 0.0
    %1199 = vmatprep.subr.mxu0 0.0
    %1200 = vmatpush1.xpose.msra.mxu0 0.0
    %1201 = vmatprep.subr.mxu0 0.0
    %1202 = vmatpush1.xpose.msra.mxu0 0.0
    %1203 = vmatprep.subr.mxu0 0.0
    %1204 = vmatpush1.xpose.msra.mxu0 0.0
    %1205 = vmatprep.subr.mxu0 0.0
    %1206 = vmatpush1.xpose.msra.mxu0 0.0
    %1207 = vmatprep.subr.mxu0 0.0
    %1208 = vmatpush1.xpose.msra.mxu0 0.0
    %1209 = vmatprep.subr.mxu0 0.0
    %1210 = vmatpush1.xpose.msra.mxu0 0.0
    %1211 = vmatprep.subr.mxu0 0.0
    %1212 = vmatpush1.xpose.msra.mxu0 0.0
    %1213 = vmatprep.subr.mxu0 0.0
    %1214 = vmatpush1.xpose.msra.mxu0 0.0
    %1215 = vmatprep.subr.mxu0 0.0
    %1216 = vmatpush1.xpose.msra.mxu0 0.0
    %1217 = vmatprep.subr.mxu0 0.0
    %1218 = vmatpush1.xpose.msra.mxu0 0.0
    %1219 = vmatprep.subr.mxu0 0.0
    %1220 = vmatpush1.xpose.msra.mxu0 0.0
    %1221 = vmatprep.subr.mxu0 0.0
    %1222 = vmatpush1.xpose.msra.mxu0 0.0
    %1223 = vmatprep.subr.mxu0 0.0
    %1224 = vmatpush1.xpose.msra.mxu0 0.0
    %1225 = vmatprep.mubr.f32.mxu0 0.0
    %1226 = vmatmul.mubr.f32.gmra.mrb[0].mxu0 %v1156
    %v1227 = vpop.f32.mrb[0].mxu0
    %v1228 = vadd.f32 %v45, %v1227
    %v1229 = vpop.f32.mrb[0].mxu0
    %1230 = vdwg.mxu0
    %v1231 = vsel %vm1154, %v1228, -inf
    %1232 = vmax.xlane.f32.xlu0 %v1231
    %v1233 = vpop.xlane.xlu0 %1232
    %v1234 = vsub.f32 %v1228, %v1233
    %v1235 = vmul.f32 %v1234, 1.442695
    %v1236 = vpow.pop %v1235
    %v1237 = vsel %vm1154, %v1236, 0.0
    %1238 = vadd.xlane.f32.xlu0 %v1237
    %v1239 = vpop.xlane.xlu0 %1238
    %v1240 = vrcp.pop %v1239
    %v1241 = vmul.f32 %v1236, %v1240
    %v1243 = vsel %vm1154, %v1241, 0
    %1245 = vmatprep.subr.mxu0 0.0
    %1246 = vmatpush1.msra.mxu0 %v354
    %1247 = vmatprep.subr.mxu0 0.0
    %1248 = vmatpush1.msra.mxu0 0.0
    %1249 = vmatprep.subr.mxu0 0.0
    %1250 = vmatpush1.msra.mxu0 0.0
    %1251 = vmatprep.subr.mxu0 0.0
    %1252 = vmatpush1.msra.mxu0 0.0
    %1253 = vmatprep.subr.mxu0 0.0
    %1254 = vmatpush1.msra.mxu0 0.0
    %1255 = vmatprep.subr.mxu0 0.0
    %1256 = vmatpush1.msra.mxu0 0.0
    %1257 = vmatprep.subr.mxu0 0.0
    %1258 = vmatpush1.msra.mxu0 0.0
    %1259 = vmatprep.subr.mxu0 0.0
    %1260 = vmatpush1.msra.mxu0 0.0
    %1261 = vmatprep.subr.mxu0 0.0
    %1262 = vmatpush1.msra.mxu0 0.0
    %1263 = vmatprep.subr.mxu0 0.0
    %1264 = vmatpush1.msra.mxu0 0.0
    %1265 = vmatprep.subr.mxu0 0.0
    %1266 = vmatpush1.msra.mxu0 0.0
    %1267 = vmatprep.subr.mxu0 0.0
    %1268 = vmatpush1.msra.mxu0 0.0
    %1269 = vmatprep.subr.mxu0 0.0
    %1270 = vmatpush1.msra.mxu0 0.0
    %1271 = vmatprep.subr.mxu0 0.0
    %1272 = vmatpush1.msra.mxu0 0.0
    %1273 = vmatprep.subr.mxu0 0.0
    %1274 = vmatpush1.msra.mxu0 0.0
    %1275 = vmatprep.subr.mxu0 0.0
    %1276 = vmatpush1.msra.mxu0 0.0
    %1277 = vmatprep.subr.mxu0 0.0
    %1278 = vmatpush1.msra.mxu0 0.0
    %1279 = vmatprep.subr.mxu0 0.0
    %1280 = vmatpush1.msra.mxu0 0.0
    %1281 = vmatprep.subr.mxu0 0.0
    %1282 = vmatpush1.msra.mxu0 0.0
    %1283 = vmatprep.subr.mxu0 0.0
    %1284 = vmatpush1.msra.mxu0 0.0
    %1285 = vmatprep.subr.mxu0 0.0
    %1286 = vmatpush1.msra.mxu0 0.0
    %1287 = vmatprep.subr.mxu0 0.0
    %1288 = vmatpush1.msra.mxu0 0.0
    %1289 = vmatprep.subr.mxu0 0.0
    %1290 = vmatpush1.msra.mxu0 0.0
    %1291 = vmatprep.subr.mxu0 0.0
    %1292 = vmatpush1.msra.mxu0 0.0
    %1293 = vmatprep.subr.mxu0 0.0
    %1294 = vmatpush1.msra.mxu0 0.0
    %1295 = vmatprep.subr.mxu0 0.0
    %1296 = vmatpush1.msra.mxu0 0.0
    %1297 = vmatprep.subr.mxu0 0.0
    %1298 = vmatpush1.msra.mxu0 0.0
    %1299 = vmatprep.subr.mxu0 0.0
    %1300 = vmatpush1.msra.mxu0 0.0
    %1301 = vmatprep.subr.mxu0 0.0
    %1302 = vmatpush1.msra.mxu0 0.0
    %1303 = vmatprep.subr.mxu0 0.0
    %1304 = vmatpush1.msra.mxu0 0.0
    %1305 = vmatprep.subr.mxu0 0.0
    %1306 = vmatpush1.msra.mxu0 0.0
    %1307 = vmatprep.subr.mxu0 0.0
    %1308 = vmatpush1.msra.mxu0 0.0
    %1309 = vmatprep.mubr.f32.mxu0 0.0
    %1310 = vmatmul.mubr.f32.gmra.mrb[0].mxu0 %v1243
    %v1311 = vpop.f32.mrb[0].mxu0
    %v1312 = vadd.f32 0.0, %v1311
    %v1313 = vpop.f32.mrb[0].mxu0
    %1314 = vdwg.mxu0
    %v1315 = vld [vmem:[%s4] sm:$0xff]
    %v1317 = vsel %vm1154, %v442, 0
    %v1320 = vsel %vm1154, %v530, 0
    %1322 = vmatprep.subr.mxu0 0.0
    %1323 = vmatpush1.xpose.msra.mxu0 %v1320
    %1324 = vmatprep.subr.mxu0 0.0
    %1325 = vmatpush1.xpose.msra.mxu0 0.0
    %1326 = vmatprep.subr.mxu0 0.0
    %1327 = vmatpush1.xpose.msra.mxu0 0.0
    %1328 = vmatprep.subr.mxu0 0.0
    %1329 = vmatpush1.xpose.msra.mxu0 0.0
    %1330 = vmatprep.subr.mxu0 0.0
    %1331 = vmatpush1.xpose.msra.mxu0 0.0
    %1332 = vmatprep.subr.mxu0 0.0
    %1333 = vmatpush1.xpose.msra.mxu0 0.0
    %1334 = vmatprep.subr.mxu0 0.0
    %1335 = vmatpush1.xpose.msra.mxu0 0.0
    %1336 = vmatprep.subr.mxu0 0.0
    %1337 = vmatpush1.xpose.msra.mxu0 0.0
    %1338 = vmatprep.subr.mxu0 0.0
    %1339 = vmatpush1.xpose.msra.mxu0 0.0
    %1340 = vmatprep.subr.mxu0 0.0
    %1341 = vmatpush1.xpose.msra.mxu0 0.0
    %1342 = vmatprep.subr.mxu0 0.0
    %1343 = vmatpush1.xpose.msra.mxu0 0.0
    %1344 = vmatprep.subr.mxu0 0.0
    %1345 = vmatpush1.xpose.msra.mxu0 0.0
    %1346 = vmatprep.subr.mxu0 0.0
    %1347 = vmatpush1.xpose.msra.mxu0 0.0
    %1348 = vmatprep.subr.mxu0 0.0
    %1349 = vmatpush1.xpose.msra.mxu0 0.0
    %1350 = vmatprep.subr.mxu0 0.0
    %1351 = vmatpush1.xpose.msra.mxu0 0.0
    %1352 = vmatprep.subr.mxu0 0.0
    %1353 = vmatpush1.xpose.msra.mxu0 0.0
    %1354 = vmatprep.subr.mxu0 0.0
    %1355 = vmatpush1.xpose.msra.mxu0 0.0
    %1356 = vmatprep.subr.mxu0 0.0
    %1357 = vmatpush1.xpose.msra.mxu0 0.0
    %1358 = vmatprep.subr.mxu0 0.0
    %1359 = vmatpush1.xpose.msra.mxu0 0.0
    %1360 = vmatprep.subr.mxu0 0.0
    %1361 = vmatpush1.xpose.msra.mxu0 0.0
    %1362 = vmatprep.subr.mxu0 0.0
    %1363 = vmatpush1.xpose.msra.mxu0 0.0
    %1364 = vmatprep.subr.mxu0 0.0
    %1365 = vmatpush1.xpose.msra.mxu0 0.0
    %1366 = vmatprep.subr.mxu0 0.0
    %1367 = vmatpush1.xpose.msra.mxu0 0.0
    %1368 = vmatprep.subr.mxu0 0.0
    %1369 = vmatpush1.xpose.msra.mxu0 0.0
    %1370 = vmatprep.subr.mxu0 0.0
    %1371 = vmatpush1.xpose.msra.mxu0 0.0
    %1372 = vmatprep.subr.mxu0 0.0
    %1373 = vmatpush1.xpose.msra.mxu0 0.0
    %1374 = vmatprep.subr.mxu0 0.0
    %1375 = vmatpush1.xpose.msra.mxu0 0.0
    %1376 = vmatprep.subr.mxu0 0.0
    %1377 = vmatpush1.xpose.msra.mxu0 0.0
    %1378 = vmatprep.subr.mxu0 0.0
    %1379 = vmatpush1.xpose.msra.mxu0 0.0
    %1380 = vmatprep.subr.mxu0 0.0
    %1381 = vmatpush1.xpose.msra.mxu0 0.0
    %1382 = vmatprep.subr.mxu0 0.0
    %1383 = vmatpush1.xpose.msra.mxu0 0.0
    %1384 = vmatprep.subr.mxu0 0.0
    %1385 = vmatpush1.xpose.msra.mxu0 0.0
    %1386 = vmatprep.mubr.f32.mxu0 0.0
    %1387 = vmatmul.mubr.f32.gmra.mrb[0].mxu0 %v1317
    %v1388 = vpop.f32.mrb[0].mxu0
    %v1389 = vadd.f32 %v45, %v1388
    %v1390 = vpop.f32.mrb[0].mxu0
    %1391 = vdwg.mxu0
    %v1392 = vsel %vm1154, %v1389, -inf
    %1393 = vmax.xlane.f32.xlu0 %v1392
    %v1394 = vpop.xlane.xlu0 %1393
    %v1395 = vsub.f32 %v1389, %v1394
    %v1396 = vmul.f32 %v1395, 1.442695
    %v1397 = vpow.pop %v1396
    %v1398 = vsel %vm1154, %v1397, 0.0
    %1399 = vadd.xlane.f32.xlu0 %v1398
    %v1400 = vpop.xlane.xlu0 %1399
    %v1401 = vrcp.pop %v1400
    %v1402 = vmul.f32 %v1397, %v1401
    %v1404 = vsel %vm1154, %v1402, 0
    %1406 = vmatprep.subr.mxu0 0.0
    %1407 = vmatpush1.msra.mxu0 %v618
    %1408 = vmatprep.subr.mxu0 0.0
    %1409 = vmatpush1.msra.mxu0 0.0
    %1410 = vmatprep.subr.mxu0 0.0
    %1411 = vmatpush1.msra.mxu0 0.0
    %1412 = vmatprep.subr.mxu0 0.0
    %1413 = vmatpush1.msra.mxu0 0.0
    %1414 = vmatprep.subr.mxu0 0.0
    %1415 = vmatpush1.msra.mxu0 0.0
    %1416 = vmatprep.subr.mxu0 0.0
    %1417 = vmatpush1.msra.mxu0 0.0
    %1418 = vmatprep.subr.mxu0 0.0
    %1419 = vmatpush1.msra.mxu0 0.0
    %1420 = vmatprep.subr.mxu0 0.0
    %1421 = vmatpush1.msra.mxu0 0.0
    %1422 = vmatprep.subr.mxu0 0.0
    %1423 = vmatpush1.msra.mxu0 0.0
    %1424 = vmatprep.subr.mxu0 0.0
    %1425 = vmatpush1.msra.mxu0 0.0
    %1426 = vmatprep.subr.mxu0 0.0
    %1427 = vmatpush1.msra.mxu0 0.0
    %1428 = vmatprep.subr.mxu0 0.0
    %1429 = vmatpush1.msra.mxu0 0.0
    %1430 = vmatprep.subr.mxu0 0.0
    %1431 = vmatpush1.msra.mxu0 0.0
    %1432 = vmatprep.subr.mxu0 0.0
    %1433 = vmatpush1.msra.mxu0 0.0
    %1434 = vmatprep.subr.mxu0 0.0
    %1435 = vmatpush1.msra.mxu0 0.0
    %1436 = vmatprep.subr.mxu0 0.0
    %1437 = vmatpush1.msra.mxu0 0.0
    %1438 = vmatprep.subr.mxu0 0.0
    %1439 = vmatpush1.msra.mxu0 0.0
    %1440 = vmatprep.subr.mxu0 0.0
    %1441 = vmatpush1.msra.mxu0 0.0
    %1442 = vmatprep.subr.mxu0 0.0
    %1443 = vmatpush1.msra.mxu0 0.0
    %1444 = vmatprep.subr.mxu0 0.0
    %1445 = vmatpush1.msra.mxu0 0.0
    %1446 = vmatprep.subr.mxu0 0.0
    %1447 = vmatpush1.msra.mxu0 0.0
    %1448 = vmatprep.subr.mxu0 0.0
    %1449 = vmatpush1.msra.mxu0 0.0
    %1450 = vmatprep.subr.mxu0 0.0
    %1451 = vmatpush1.msra.mxu0 0.0
    %1452 = vmatprep.subr.mxu0 0.0
    %1453 = vmatpush1.msra.mxu0 0.0
    %1454 = vmatprep.subr.mxu0 0.0
    %1455 = vmatpush1.msra.mxu0 0.0
    %1456 = vmatprep.subr.mxu0 0.0
    %1457 = vmatpush1.msra.mxu0 0.0
    %1458 = vmatprep.subr.mxu0 0.0
    %1459 = vmatpush1.msra.mxu0 0.0
    %1460 = vmatprep.subr.mxu0 0.0
    %1461 = vmatpush1.msra.mxu0 0.0
    %1462 = vmatprep.subr.mxu0 0.0
    %1463 = vmatpush1.msra.mxu0 0.0
    %1464 = vmatprep.subr.mxu0 0.0
    %1465 = vmatpush1.msra.mxu0 0.0
    %1466 = vmatprep.subr.mxu0 0.0
    %1467 = vmatpush1.msra.mxu0 0.0
    %1468 = vmatprep.subr.mxu0 0.0
    %1469 = vmatpush1.msra.mxu0 0.0
    %1470 = vmatprep.mubr.f32.mxu0 0.0
    %1471 = vmatmul.mubr.f32.gmra.mrb[0].mxu0 %v1404
    %v1472 = vpop.f32.mrb[0].mxu0
    %v1473 = vadd.f32 0.0, %v1472
    %v1474 = vpop.f32.mrb[0].mxu0
    %1475 = vdwg.mxu0
    %s1476 = scalar_lea.vmem %s4, 8
    %v1477 = vld [vmem:[%s1476] sm:$0xff]
    %v1479 = vsel %vm1154, %v1473, 0
    %1481 = vmatprep.subr.mxu0 0.0
    %1482 = vmatpush1.msra.mxu0 %v1477
    %1483 = vmatprep.subr.mxu0 0.0
    %1484 = vmatpush1.msra.mxu0 0.0
    %1485 = vmatprep.subr.mxu0 0.0
    %1486 = vmatpush1.msra.mxu0 0.0
    %1487 = vmatprep.subr.mxu0 0.0
    %1488 = vmatpush1.msra.mxu0 0.0
    %1489 = vmatprep.subr.mxu0 0.0
    %1490 = vmatpush1.msra.mxu0 0.0
    %1491 = vmatprep.subr.mxu0 0.0
    %1492 = vmatpush1.msra.mxu0 0.0
    %1493 = vmatprep.subr.mxu0 0.0
    %1494 = vmatpush1.msra.mxu0 0.0
    %1495 = vmatprep.subr.mxu0 0.0
    %1496 = vmatpush1.msra.mxu0 0.0
    %1497 = vmatprep.subr.mxu0 0.0
    %1498 = vmatpush1.msra.mxu0 0.0
    %1499 = vmatprep.subr.mxu0 0.0
    %1500 = vmatpush1.msra.mxu0 0.0
    %1501 = vmatprep.subr.mxu0 0.0
    %1502 = vmatpush1.msra.mxu0 0.0
    %1503 = vmatprep.subr.mxu0 0.0
    %1504 = vmatpush1.msra.mxu0 0.0
    %1505 = vmatprep.subr.mxu0 0.0
    %1506 = vmatpush1.msra.mxu0 0.0
    %1507 = vmatprep.subr.mxu0 0.0
    %1508 = vmatpush1.msra.mxu0 0.0
    %1509 = vmatprep.subr.mxu0 0.0
    %1510 = vmatpush1.msra.mxu0 0.0
    %1511 = vmatprep.subr.mxu0 0.0
    %1512 = vmatpush1.msra.mxu0 0.0
    %1513 = vmatprep.subr.mxu0 0.0
    %1514 = vmatpush1.msra.mxu0 0.0
    %1515 = vmatprep.subr.mxu0 0.0
    %1516 = vmatpush1.msra.mxu0 0.0
    %1517 = vmatprep.subr.mxu0 0.0
    %1518 = vmatpush1.msra.mxu0 0.0
    %1519 = vmatprep.subr.mxu0 0.0
    %1520 = vmatpush1.msra.mxu0 0.0
    %1521 = vmatprep.subr.mxu0 0.0
    %1522 = vmatpush1.msra.mxu0 0.0
    %1523 = vmatprep.subr.mxu0 0.0
    %1524 = vmatpush1.msra.mxu0 0.0
    %1525 = vmatprep.subr.mxu0 0.0
    %1526 = vmatpush1.msra.mxu0 0.0
    %1527 = vmatprep.subr.mxu0 0.0
    %1528 = vmatpush1.msra.mxu0 0.0
    %1529 = vmatprep.subr.mxu0 0.0
    %1530 = vmatpush1.msra.mxu0 0.0
    %1531 = vmatprep.subr.mxu0 0.0
    %1532 = vmatpush1.msra.mxu0 0.0
    %1533 = vmatprep.subr.mxu0 0.0
    %1534 = vmatpush1.msra.mxu0 0.0
    %1535 = vmatprep.subr.mxu0 0.0
    %1536 = vmatpush1.msra.mxu0 0.0
    %1537 = vmatprep.subr.mxu0 0.0
    %1538 = vmatpush1.msra.mxu0 0.0
    %1539 = vmatprep.subr.mxu0 0.0
    %1540 = vmatpush1.msra.mxu0 0.0
    %1541 = vmatprep.subr.mxu0 0.0
    %1542 = vmatpush1.msra.mxu0 0.0
    %1543 = vmatprep.subr.mxu0 0.0
    %1544 = vmatpush1.msra.mxu0 0.0
    %1545 = vmatprep.mubr.f32.mxu0 0.0
    %1546 = vmatmul.mubr.f32.gmra.mrb[0].mxu0 %v1479
    %v1547 = vpop.f32.mrb[0].mxu0
    %v1548 = vadd.f32 0.0, %v1547
    %v1549 = vpop.f32.mrb[0].mxu0
    %1550 = vdwg.mxu0
    %v1552 = vsel %vm1154, %v1312, 0
    %1554 = vmatprep.subr.mxu0 0.0
    %1555 = vmatpush1.msra.mxu0 %v1315
    %1556 = vmatprep.subr.mxu0 0.0
    %1557 = vmatpush1.msra.mxu0 0.0
    %1558 = vmatprep.subr.mxu0 0.0
    %1559 = vmatpush1.msra.mxu0 0.0
    %1560 = vmatprep.subr.mxu0 0.0
    %1561 = vmatpush1.msra.mxu0 0.0
    %1562 = vmatprep.subr.mxu0 0.0
    %1563 = vmatpush1.msra.mxu0 0.0
    %1564 = vmatprep.subr.mxu0 0.0
    %1565 = vmatpush1.msra.mxu0 0.0
    %1566 = vmatprep.subr.mxu0 0.0
    %1567 = vmatpush1.msra.mxu0 0.0
    %1568 = vmatprep.subr.mxu0 0.0
    %1569 = vmatpush1.msra.mxu0 0.0
    %1570 = vmatprep.subr.mxu0 0.0
    %1571 = vmatpush1.msra.mxu0 0.0
    %1572 = vmatprep.subr.mxu0 0.0
    %1573 = vmatpush1.msra.mxu0 0.0
    %1574 = vmatprep.subr.mxu0 0.0
    %1575 = vmatpush1.msra.mxu0 0.0
    %1576 = vmatprep.subr.mxu0 0.0
    %1577 = vmatpush1.msra.mxu0 0.0
    %1578 = vmatprep.subr.mxu0 0.0
    %1579 = vmatpush1.msra.mxu0 0.0
    %1580 = vmatprep.subr.mxu0 0.0
    %1581 = vmatpush1.msra.mxu0 0.0
    %1582 = vmatprep.subr.mxu0 0.0
    %1583 = vmatpush1.msra.mxu0 0.0
    %1584 = vmatprep.subr.mxu0 0.0
    %1585 = vmatpush1.msra.mxu0 0.0
    %1586 = vmatprep.subr.mxu0 0.0
    %1587 = vmatpush1.msra.mxu0 0.0
    %1588 = vmatprep.subr.mxu0 0.0
    %1589 = vmatpush1.msra.mxu0 0.0
    %1590 = vmatprep.subr.mxu0 0.0
    %1591 = vmatpush1.msra.mxu0 0.0
    %1592 = vmatprep.subr.mxu0 0.0
    %1593 = vmatpush1.msra.mxu0 0.0
    %1594 = vmatprep.subr.mxu0 0.0
    %1595 = vmatpush1.msra.mxu0 0.0
    %1596 = vmatprep.subr.mxu0 0.0
    %1597 = vmatpush1.msra.mxu0 0.0
    %1598 = vmatprep.subr.mxu0 0.0
    %1599 = vmatpush1.msra.mxu0 0.0
    %1600 = vmatprep.subr.mxu0 0.0
    %1601 = vmatpush1.msra.mxu0 0.0
    %1602 = vmatprep.subr.mxu0 0.0
    %1603 = vmatpush1.msra.mxu0 0.0
    %1604 = vmatprep.subr.mxu0 0.0
    %1605 = vmatpush1.msra.mxu0 0.0
    %1606 = vmatprep.subr.mxu0 0.0
    %1607 = vmatpush1.msra.mxu0 0.0
    %1608 = vmatprep.subr.mxu0 0.0
    %1609 = vmatpush1.msra.mxu0 0.0
    %1610 = vmatprep.subr.mxu0 0.0
    %1611 = vmatpush1.msra.mxu0 0.0
    %1612 = vmatprep.subr.mxu0 0.0
    %1613 = vmatpush1.msra.mxu0 0.0
    %1614 = vmatprep.subr.mxu0 0.0
    %1615 = vmatpush1.msra.mxu0 0.0
    %1616 = vmatprep.subr.mxu0 0.0
    %1617 = vmatpush1.msra.mxu0 0.0
    %1618 = vmatprep.mubr.f32.mxu0 0.0
    %1619 = vmatmul.mubr.f32.gmra.mrb[0].mxu0 %v1552
    %v1620 = vpop.f32.mrb[0].mxu0
    %v1621 = vadd.f32 %v1548, %v1620
    %v1622 = vpop.f32.mrb[0].mxu0
    %1623 = vdwg.mxu0
    %v1625 = vsel %vm1154, %v706, 0
    %v1628 = vsel %vm1154, %v794, 0
    %1630 = vmatprep.subr.mxu0 0.0
    %1631 = vmatpush1.xpose.msra.mxu0 %v1628
    %1632 = vmatprep.subr.mxu0 0.0
    %1633 = vmatpush1.xpose.msra.mxu0 0.0
    %1634 = vmatprep.subr.mxu0 0.0
    %1635 = vmatpush1.xpose.msra.mxu0 0.0
    %1636 = vmatprep.subr.mxu0 0.0
    %1637 = vmatpush1.xpose.msra.mxu0 0.0
    %1638 = vmatprep.subr.mxu0 0.0
    %1639 = vmatpush1.xpose.msra.mxu0 0.0
    %1640 = vmatprep.subr.mxu0 0.0
    %1641 = vmatpush1.xpose.msra.mxu0 0.0
    %1642 = vmatprep.subr.mxu0 0.0
    %1643 = vmatpush1.xpose.msra.mxu0 0.0
    %1644 = vmatprep.subr.mxu0 0.0
    %1645 = vmatpush1.xpose.msra.mxu0 0.0
    %1646 = vmatprep.subr.mxu0 0.0
    %1647 = vmatpush1.xpose.msra.mxu0 0.0
    %1648 = vmatprep.subr.mxu0 0.0
    %1649 = vmatpush1.xpose.msra.mxu0 0.0
    %1650 = vmatprep.subr.mxu0 0.0
    %1651 = vmatpush1.xpose.msra.mxu0 0.0
    %1652 = vmatprep.subr.mxu0 0.0
    %1653 = vmatpush1.xpose.msra.mxu0 0.0
    %1654 = vmatprep.subr.mxu0 0.0
    %1655 = vmatpush1.xpose.msra.mxu0 0.0
    %1656 = vmatprep.subr.mxu0 0.0
    %1657 = vmatpush1.xpose.msra.mxu0 0.0
    %1658 = vmatprep.subr.mxu0 0.0
    %1659 = vmatpush1.xpose.msra.mxu0 0.0
    %1660 = vmatprep.subr.mxu0 0.0
    %1661 = vmatpush1.xpose.msra.mxu0 0.0
    %1662 = vmatprep.subr.mxu0 0.0
    %1663 = vmatpush1.xpose.msra.mxu0 0.0
    %1664 = vmatprep.subr.mxu0 0.0
    %1665 = vmatpush1.xpose.msra.mxu0 0.0
    %1666 = vmatprep.subr.mxu0 0.0
    %1667 = vmatpush1.xpose.msra.mxu0 0.0
    %1668 = vmatprep.subr.mxu0 0.0
    %1669 = vmatpush1.xpose.msra.mxu0 0.0
    %1670 = vmatprep.subr.mxu0 0.0
    %1671 = vmatpush1.xpose.msra.mxu0 0.0
    %1672 = vmatprep.subr.mxu0 0.0
    %1673 = vmatpush1.xpose.msra.mxu0 0.0
    %1674 = vmatprep.subr.mxu0 0.0
    %1675 = vmatpush1.xpose.msra.mxu0 0.0
    %1676 = vmatprep.subr.mxu0 0.0
    %1677 = vmatpush1.xpose.msra.mxu0 0.0
    %1678 = vmatprep.subr.mxu0 0.0
    %1679 = vmatpush1.xpose.msra.mxu0 0.0
    %1680 = vmatprep.subr.mxu0 0.0
    %1681 = vmatpush1.xpose.msra.mxu0 0.0
    %1682 = vmatprep.subr.mxu0 0.0
    %1683 = vmatpush1.xpose.msra.mxu0 0.0
    %1684 = vmatprep.subr.mxu0 0.0
    %1685 = vmatpush1.xpose.msra.mxu0 0.0
    %1686 = vmatprep.subr.mxu0 0.0
    %1687 = vmatpush1.xpose.msra.mxu0 0.0
    %1688 = vmatprep.subr.mxu0 0.0
    %1689 = vmatpush1.xpose.msra.mxu0 0.0
    %1690 = vmatprep.subr.mxu0 0.0
    %1691 = vmatpush1.xpose.msra.mxu0 0.0
    %1692 = vmatprep.subr.mxu0 0.0
    %1693 = vmatpush1.xpose.msra.mxu0 0.0
    %1694 = vmatprep.mubr.f32.mxu0 0.0
    %1695 = vmatmul.mubr.f32.gmra.mrb[0].mxu0 %v1625
    %v1696 = vpop.f32.mrb[0].mxu0
    %v1697 = vadd.f32 %v45, %v1696
    %v1698 = vpop.f32.mrb[0].mxu0
    %1699 = vdwg.mxu0
    %v1700 = vsel %vm1154, %v1697, -inf
    %1701 = vmax.xlane.f32.xlu0 %v1700
    %v1702 = vpop.xlane.xlu0 %1701
    %v1703 = vsub.f32 %v1697, %v1702
    %v1704 = vmul.f32 %v1703, 1.442695
    %v1705 = vpow.pop %v1704
    %v1706 = vsel %vm1154, %v1705, 0.0
    %1707 = vadd.xlane.f32.xlu0 %v1706
    %v1708 = vpop.xlane.xlu0 %1707
    %v1709 = vrcp.pop %v1708
    %v1710 = vmul.f32 %v1705, %v1709
    %v1712 = vsel %vm1154, %v1710, 0
    %1714 = vmatprep.subr.mxu0 0.0
    %1715 = vmatpush1.msra.mxu0 %v882
    %1716 = vmatprep.subr.mxu0 0.0
    %1717 = vmatpush1.msra.mxu0 0.0
    %1718 = vmatprep.subr.mxu0 0.0
    %1719 = vmatpush1.msra.mxu0 0.0
    %1720 = vmatprep.subr.mxu0 0.0
    %1721 = vmatpush1.msra.mxu0 0.0
    %1722 = vmatprep.subr.mxu0 0.0
    %1723 = vmatpush1.msra.mxu0 0.0
    %1724 = vmatprep.subr.mxu0 0.0
    %1725 = vmatpush1.msra.mxu0 0.0
    %1726 = vmatprep.subr.mxu0 0.0
    %1727 = vmatpush1.msra.mxu0 0.0
    %1728 = vmatprep.subr.mxu0 0.0
    %1729 = vmatpush1.msra.mxu0 0.0
    %1730 = vmatprep.subr.mxu0 0.0
    %1731 = vmatpush1.msra.mxu0 0.0
    %1732 = vmatprep.subr.mxu0 0.0
    %1733 = vmatpush1.msra.mxu0 0.0
    %1734 = vmatprep.subr.mxu0 0.0
    %1735 = vmatpush1.msra.mxu0 0.0
    %1736 = vmatprep.subr.mxu0 0.0
    %1737 = vmatpush1.msra.mxu0 0.0
    %1738 = vmatprep.subr.mxu0 0.0
    %1739 = vmatpush1.msra.mxu0 0.0
    %1740 = vmatprep.subr.mxu0 0.0
    %1741 = vmatpush1.msra.mxu0 0.0
    %1742 = vmatprep.subr.mxu0 0.0
    %1743 = vmatpush1.msra.mxu0 0.0
    %1744 = vmatprep.subr.mxu0 0.0
    %1745 = vmatpush1.msra.mxu0 0.0
    %1746 = vmatprep.subr.mxu0 0.0
    %1747 = vmatpush1.msra.mxu0 0.0
    %1748 = vmatprep.subr.mxu0 0.0
    %1749 = vmatpush1.msra.mxu0 0.0
    %1750 = vmatprep.subr.mxu0 0.0
    %1751 = vmatpush1.msra.mxu0 0.0
    %1752 = vmatprep.subr.mxu0 0.0
    %1753 = vmatpush1.msra.mxu0 0.0
    %1754 = vmatprep.subr.mxu0 0.0
    %1755 = vmatpush1.msra.mxu0 0.0
    %1756 = vmatprep.subr.mxu0 0.0
    %1757 = vmatpush1.msra.mxu0 0.0
    %1758 = vmatprep.subr.mxu0 0.0
    %1759 = vmatpush1.msra.mxu0 0.0
    %1760 = vmatprep.subr.mxu0 0.0
    %1761 = vmatpush1.msra.mxu0 0.0
    %1762 = vmatprep.subr.mxu0 0.0
    %1763 = vmatpush1.msra.mxu0 0.0
    %1764 = vmatprep.subr.mxu0 0.0
    %1765 = vmatpush1.msra.mxu0 0.0
    %1766 = vmatprep.subr.mxu0 0.0
    %1767 = vmatpush1.msra.mxu0 0.0
    %1768 = vmatprep.subr.mxu0 0.0
    %1769 = vmatpush1.msra.mxu0 0.0
    %1770 = vmatprep.subr.mxu0 0.0
    %1771 = vmatpush1.msra.mxu0 0.0
    %1772 = vmatprep.subr.mxu0 0.0
    %1773 = vmatpush1.msra.mxu0 0.0
    %1774 = vmatprep.subr.mxu0 0.0
    %1775 = vmatpush1.msra.mxu0 0.0
    %1776 = vmatprep.subr.mxu0 0.0
    %1777 = vmatpush1.msra.mxu0 0.0
    %1778 = vmatprep.mubr.f32.mxu0 0.0
    %1779 = vmatmul.mubr.f32.gmra.mrb[0].mxu0 %v1712
    %v1780 = vpop.f32.mrb[0].mxu0
    %v1781 = vadd.f32 0.0, %v1780
    %v1782 = vpop.f32.mrb[0].mxu0
    %1783 = vdwg.mxu0
    %s1784 = scalar_lea.vmem %s4, 16
    %v1785 = vld [vmem:[%s1784] sm:$0xff]
    %v1787 = vsel %vm1154, %v1781, 0
    %1789 = vmatprep.subr.mxu0 0.0
    %1790 = vmatpush1.msra.mxu0 %v1785
    %1791 = vmatprep.subr.mxu0 0.0
    %1792 = vmatpush1.msra.mxu0 0.0
    %1793 = vmatprep.subr.mxu0 0.0
    %1794 = vmatpush1.msra.mxu0 0.0
    %1795 = vmatprep.subr.mxu0 0.0
    %1796 = vmatpush1.msra.mxu0 0.0
    %1797 = vmatprep.subr.mxu0 0.0
    %1798 = vmatpush1.msra.mxu0 0.0
    %1799 = vmatprep.subr.mxu0 0.0
    %1800 = vmatpush1.msra.mxu0 0.0
    %1801 = vmatprep.subr.mxu0 0.0
    %1802 = vmatpush1.msra.mxu0 0.0
    %1803 = vmatprep.subr.mxu0 0.0
    %1804 = vmatpush1.msra.mxu0 0.0
    %1805 = vmatprep.subr.mxu0 0.0
    %1806 = vmatpush1.msra.mxu0 0.0
    %1807 = vmatprep.subr.mxu0 0.0
    %1808 = vmatpush1.msra.mxu0 0.0
    %1809 = vmatprep.subr.mxu0 0.0
    %1810 = vmatpush1.msra.mxu0 0.0
    %1811 = vmatprep.subr.mxu0 0.0
    %1812 = vmatpush1.msra.mxu0 0.0
    %1813 = vmatprep.subr.mxu0 0.0
    %1814 = vmatpush1.msra.mxu0 0.0
    %1815 = vmatprep.subr.mxu0 0.0
    %1816 = vmatpush1.msra.mxu0 0.0
    %1817 = vmatprep.subr.mxu0 0.0
    %1818 = vmatpush1.msra.mxu0 0.0
    %1819 = vmatprep.subr.mxu0 0.0
    %1820 = vmatpush1.msra.mxu0 0.0
    %1821 = vmatprep.subr.mxu0 0.0
    %1822 = vmatpush1.msra.mxu0 0.0
    %1823 = vmatprep.subr.mxu0 0.0
    %1824 = vmatpush1.msra.mxu0 0.0
    %1825 = vmatprep.subr.mxu0 0.0
    %1826 = vmatpush1.msra.mxu0 0.0
    %1827 = vmatprep.subr.mxu0 0.0
    %1828 = vmatpush1.msra.mxu0 0.0
    %1829 = vmatprep.subr.mxu0 0.0
    %1830 = vmatpush1.msra.mxu0 0.0
    %1831 = vmatprep.subr.mxu0 0.0
    %1832 = vmatpush1.msra.mxu0 0.0
    %1833 = vmatprep.subr.mxu0 0.0
    %1834 = vmatpush1.msra.mxu0 0.0
    %1835 = vmatprep.subr.mxu0 0.0
    %1836 = vmatpush1.msra.mxu0 0.0
    %1837 = vmatprep.subr.mxu0 0.0
    %1838 = vmatpush1.msra.mxu0 0.0
    %1839 = vmatprep.subr.mxu0 0.0
    %1840 = vmatpush1.msra.mxu0 0.0
    %1841 = vmatprep.subr.mxu0 0.0
    %1842 = vmatpush1.msra.mxu0 0.0
    %1843 = vmatprep.subr.mxu0 0.0
    %1844 = vmatpush1.msra.mxu0 0.0
    %1845 = vmatprep.subr.mxu0 0.0
    %1846 = vmatpush1.msra.mxu0 0.0
    %1847 = vmatprep.subr.mxu0 0.0
    %1848 = vmatpush1.msra.mxu0 0.0
    %1849 = vmatprep.subr.mxu0 0.0
    %1850 = vmatpush1.msra.mxu0 0.0
    %1851 = vmatprep.subr.mxu0 0.0
    %1852 = vmatpush1.msra.mxu0 0.0
    %1853 = vmatprep.mubr.f32.mxu0 0.0
    %1854 = vmatmul.mubr.f32.gmra.mrb[0].mxu0 %v1787
    %v1855 = vpop.f32.mrb[0].mxu0
    %v1856 = vadd.f32 0.0, %v1855
    %v1857 = vpop.f32.mrb[0].mxu0
    %1858 = vdwg.mxu0
    %v1859 = vadd.f32 %v1621, %v1856
    %v1861 = vsel %vm1154, %v970, 0
    %v1864 = vsel %vm1154, %v1058, 0
    %1866 = vmatprep.subr.mxu0 0.0
    %1867 = vmatpush1.xpose.msra.mxu0 %v1864
    %1868 = vmatprep.subr.mxu0 0.0
    %1869 = vmatpush1.xpose.msra.mxu0 0.0
    %1870 = vmatprep.subr.mxu0 0.0
    %1871 = vmatpush1.xpose.msra.mxu0 0.0
    %1872 = vmatprep.subr.mxu0 0.0
    %1873 = vmatpush1.xpose.msra.mxu0 0.0
    %1874 = vmatprep.subr.mxu0 0.0
    %1875 = vmatpush1.xpose.msra.mxu0 0.0
    %1876 = vmatprep.subr.mxu0 0.0
    %1877 = vmatpush1.xpose.msra.mxu0 0.0
    %1878 = vmatprep.subr.mxu0 0.0
    %1879 = vmatpush1.xpose.msra.mxu0 0.0
    %1880 = vmatprep.subr.mxu0 0.0
    %1881 = vmatpush1.xpose.msra.mxu0 0.0
    %1882 = vmatprep.subr.mxu0 0.0
    %1883 = vmatpush1.xpose.msra.mxu0 0.0
    %1884 = vmatprep.subr.mxu0 0.0
    %1885 = vmatpush1.xpose.msra.mxu0 0.0
    %1886 = vmatprep.subr.mxu0 0.0
    %1887 = vmatpush1.xpose.msra.mxu0 0.0
    %1888 = vmatprep.subr.mxu0 0.0
    %1889 = vmatpush1.xpose.msra.mxu0 0.0
    %1890 = vmatprep.subr.mxu0 0.0
    %1891 = vmatpush1.xpose.msra.mxu0 0.0
    %1892 = vmatprep.subr.mxu0 0.0
    %1893 = vmatpush1.xpose.msra.mxu0 0.0
    %1894 = vmatprep.subr.mxu0 0.0
    %1895 = vmatpush1.xpose.msra.mxu0 0.0
    %1896 = vmatprep.subr.mxu0 0.0
    %1897 = vmatpush1.xpose.msra.mxu0 0.0
    %1898 = vmatprep.subr.mxu0 0.0
    %1899 = vmatpush1.xpose.msra.mxu0 0.0
    %1900 = vmatprep.subr.mxu0 0.0
    %1901 = vmatpush1.xpose.msra.mxu0 0.0
    %1902 = vmatprep.subr.mxu0 0.0
    %1903 = vmatpush1.xpose.msra.mxu0 0.0
    %1904 = vmatprep.subr.mxu0 0.0
    %1905 = vmatpush1.xpose.msra.mxu0 0.0
    %1906 = vmatprep.subr.mxu0 0.0
    %1907 = vmatpush1.xpose.msra.mxu0 0.0
    %1908 = vmatprep.subr.mxu0 0.0
    %1909 = vmatpush1.xpose.msra.mxu0 0.0
    %1910 = vmatprep.subr.mxu0 0.0
    %1911 = vmatpush1.xpose.msra.mxu0 0.0
    %1912 = vmatprep.subr.mxu0 0.0
    %1913 = vmatpush1.xpose.msra.mxu0 0.0
    %1914 = vmatprep.subr.mxu0 0.0
    %1915 = vmatpush1.xpose.msra.mxu0 0.0
    %1916 = vmatprep.subr.mxu0 0.0
    %1917 = vmatpush1.xpose.msra.mxu0 0.0
    %1918 = vmatprep.subr.mxu0 0.0
    %1919 = vmatpush1.xpose.msra.mxu0 0.0
    %1920 = vmatprep.subr.mxu0 0.0
    %1921 = vmatpush1.xpose.msra.mxu0 0.0
    %1922 = vmatprep.subr.mxu0 0.0
    %1923 = vmatpush1.xpose.msra.mxu0 0.0
    %1924 = vmatprep.subr.mxu0 0.0
    %1925 = vmatpush1.xpose.msra.mxu0 0.0
    %1926 = vmatprep.subr.mxu0 0.0
    %1927 = vmatpush1.xpose.msra.mxu0 0.0
    %1928 = vmatprep.subr.mxu0 0.0
    %1929 = vmatpush1.xpose.msra.mxu0 0.0
    %1930 = vmatprep.mubr.f32.mxu0 0.0
    %1931 = vmatmul.mubr.f32.gmra.mrb[0].mxu0 %v1861
    %v1932 = vpop.f32.mrb[0].mxu0
    %v1933 = vadd.f32 %v45, %v1932
    %v1934 = vpop.f32.mrb[0].mxu0
    %1935 = vdwg.mxu0
    %v1936 = vsel %vm1154, %v1933, -inf
    %1937 = vmax.xlane.f32.xlu0 %v1936
    %v1938 = vpop.xlane.xlu0 %1937
    %v1939 = vsub.f32 %v1933, %v1938
    %v1940 = vmul.f32 %v1939, 1.442695
    %v1941 = vpow.pop %v1940
    %v1942 = vsel %vm1154, %v1941, 0.0
    %1943 = vadd.xlane.f32.xlu0 %v1942
    %v1944 = vpop.xlane.xlu0 %1943
    %v1945 = vrcp.pop %v1944
    %v1946 = vmul.f32 %v1941, %v1945
    %v1948 = vsel %vm1154, %v1946, 0
    %1950 = vmatprep.subr.mxu0 0.0
    %1951 = vmatpush1.msra.mxu0 %v1146
    %1952 = vmatprep.subr.mxu0 0.0
    %1953 = vmatpush1.msra.mxu0 0.0
    %1954 = vmatprep.subr.mxu0 0.0
    %1955 = vmatpush1.msra.mxu0 0.0
    %1956 = vmatprep.subr.mxu0 0.0
    %1957 = vmatpush1.msra.mxu0 0.0
    %1958 = vmatprep.subr.mxu0 0.0
    %1959 = vmatpush1.msra.mxu0 0.0
    %1960 = vmatprep.subr.mxu0 0.0
    %1961 = vmatpush1.msra.mxu0 0.0
    %1962 = vmatprep.subr.mxu0 0.0
    %1963 = vmatpush1.msra.mxu0 0.0
    %1964 = vmatprep.subr.mxu0 0.0
    %1965 = vmatpush1.msra.mxu0 0.0
    %1966 = vmatprep.subr.mxu0 0.0
    %1967 = vmatpush1.msra.mxu0 0.0
    %1968 = vmatprep.subr.mxu0 0.0
    %1969 = vmatpush1.msra.mxu0 0.0
    %1970 = vmatprep.subr.mxu0 0.0
    %1971 = vmatpush1.msra.mxu0 0.0
    %1972 = vmatprep.subr.mxu0 0.0
    %1973 = vmatpush1.msra.mxu0 0.0
    %1974 = vmatprep.subr.mxu0 0.0
    %1975 = vmatpush1.msra.mxu0 0.0
    %1976 = vmatprep.subr.mxu0 0.0
    %1977 = vmatpush1.msra.mxu0 0.0
    %1978 = vmatprep.subr.mxu0 0.0
    %1979 = vmatpush1.msra.mxu0 0.0
    %1980 = vmatprep.subr.mxu0 0.0
    %1981 = vmatpush1.msra.mxu0 0.0
    %1982 = vmatprep.subr.mxu0 0.0
    %1983 = vmatpush1.msra.mxu0 0.0
    %1984 = vmatprep.subr.mxu0 0.0
    %1985 = vmatpush1.msra.mxu0 0.0
    %1986 = vmatprep.subr.mxu0 0.0
    %1987 = vmatpush1.msra.mxu0 0.0
    %1988 = vmatprep.subr.mxu0 0.0
    %1989 = vmatpush1.msra.mxu0 0.0
    %1990 = vmatprep.subr.mxu0 0.0
    %1991 = vmatpush1.msra.mxu0 0.0
    %1992 = vmatprep.subr.mxu0 0.0
    %1993 = vmatpush1.msra.mxu0 0.0
    %1994 = vmatprep.subr.mxu0 0.0
    %1995 = vmatpush1.msra.mxu0 0.0
    %1996 = vmatprep.subr.mxu0 0.0
    %1997 = vmatpush1.msra.mxu0 0.0
    %1998 = vmatprep.subr.mxu0 0.0
    %1999 = vmatpush1.msra.mxu0 0.0
    %2000 = vmatprep.subr.mxu0 0.0
    %2001 = vmatpush1.msra.mxu0 0.0
    %2002 = vmatprep.subr.mxu0 0.0
    %2003 = vmatpush1.msra.mxu0 0.0
    %2004 = vmatprep.subr.mxu0 0.0
    %2005 = vmatpush1.msra.mxu0 0.0
    %2006 = vmatprep.subr.mxu0 0.0
    %2007 = vmatpush1.msra.mxu0 0.0
    %2008 = vmatprep.subr.mxu0 0.0
    %2009 = vmatpush1.msra.mxu0 0.0
    %2010 = vmatprep.subr.mxu0 0.0
    %2011 = vmatpush1.msra.mxu0 0.0
    %2012 = vmatprep.subr.mxu0 0.0
    %2013 = vmatpush1.msra.mxu0 0.0
    %2014 = vmatprep.mubr.f32.mxu0 0.0
    %2015 = vmatmul.mubr.f32.gmra.mrb[0].mxu0 %v1948
    %v2016 = vpop.f32.mrb[0].mxu0
    %v2017 = vadd.f32 0.0, %v2016
    %v2018 = vpop.f32.mrb[0].mxu0
    %2019 = vdwg.mxu0
    %s2020 = scalar_lea.vmem %s4, 24
    %v2021 = vld [vmem:[%s2020] sm:$0xff]
    %v2023 = vsel %vm1154, %v2017, 0
    %2025 = vmatprep.subr.mxu0 0.0
    %2026 = vmatpush1.msra.mxu0 %v2021
    %2027 = vmatprep.subr.mxu0 0.0
    %2028 = vmatpush1.msra.mxu0 0.0
    %2029 = vmatprep.subr.mxu0 0.0
    %2030 = vmatpush1.msra.mxu0 0.0
    %2031 = vmatprep.subr.mxu0 0.0
    %2032 = vmatpush1.msra.mxu0 0.0
    %2033 = vmatprep.subr.mxu0 0.0
    %2034 = vmatpush1.msra.mxu0 0.0
    %2035 = vmatprep.subr.mxu0 0.0
    %2036 = vmatpush1.msra.mxu0 0.0
    %2037 = vmatprep.subr.mxu0 0.0
    %2038 = vmatpush1.msra.mxu0 0.0
    %2039 = vmatprep.subr.mxu0 0.0
    %2040 = vmatpush1.msra.mxu0 0.0
    %2041 = vmatprep.subr.mxu0 0.0
    %2042 = vmatpush1.msra.mxu0 0.0
    %2043 = vmatprep.subr.mxu0 0.0
    %2044 = vmatpush1.msra.mxu0 0.0
    %2045 = vmatprep.subr.mxu0 0.0
    %2046 = vmatpush1.msra.mxu0 0.0
    %2047 = vmatprep.subr.mxu0 0.0
    %2048 = vmatpush1.msra.mxu0 0.0
    %2049 = vmatprep.subr.mxu0 0.0
    %2050 = vmatpush1.msra.mxu0 0.0
    %2051 = vmatprep.subr.mxu0 0.0
    %2052 = vmatpush1.msra.mxu0 0.0
    %2053 = vmatprep.subr.mxu0 0.0
    %2054 = vmatpush1.msra.mxu0 0.0
    %2055 = vmatprep.subr.mxu0 0.0
    %2056 = vmatpush1.msra.mxu0 0.0
    %2057 = vmatprep.subr.mxu0 0.0
    %2058 = vmatpush1.msra.mxu0 0.0
    %2059 = vmatprep.subr.mxu0 0.0
    %2060 = vmatpush1.msra.mxu0 0.0
    %2061 = vmatprep.subr.mxu0 0.0
    %2062 = vmatpush1.msra.mxu0 0.0
    %2063 = vmatprep.subr.mxu0 0.0
    %2064 = vmatpush1.msra.mxu0 0.0
    %2065 = vmatprep.subr.mxu0 0.0
    %2066 = vmatpush1.msra.mxu0 0.0
    %2067 = vmatprep.subr.mxu0 0.0
    %2068 = vmatpush1.msra.mxu0 0.0
    %2069 = vmatprep.subr.mxu0 0.0
    %2070 = vmatpush1.msra.mxu0 0.0
    %2071 = vmatprep.subr.mxu0 0.0
    %2072 = vmatpush1.msra.mxu0 0.0
    %2073 = vmatprep.subr.mxu0 0.0
    %2074 = vmatpush1.msra.mxu0 0.0
    %2075 = vmatprep.subr.mxu0 0.0
    %2076 = vmatpush1.msra.mxu0 0.0
    %2077 = vmatprep.subr.mxu0 0.0
    %2078 = vmatpush1.msra.mxu0 0.0
    %2079 = vmatprep.subr.mxu0 0.0
    %2080 = vmatpush1.msra.mxu0 0.0
    %2081 = vmatprep.subr.mxu0 0.0
    %2082 = vmatpush1.msra.mxu0 0.0
    %2083 = vmatprep.subr.mxu0 0.0
    %2084 = vmatpush1.msra.mxu0 0.0
    %2085 = vmatprep.subr.mxu0 0.0
    %2086 = vmatpush1.msra.mxu0 0.0
    %2087 = vmatprep.subr.mxu0 0.0
    %2088 = vmatpush1.msra.mxu0 0.0
    %2089 = vmatprep.mubr.f32.mxu0 0.0
    %2090 = vmatmul.mubr.f32.gmra.mrb[0].mxu0 %v2023
    %v2091 = vpop.f32.mrb[0].mxu0
    %v2092 = vadd.f32 0.0, %v2091
    %v2093 = vpop.f32.mrb[0].mxu0
    %2094 = vdwg.mxu0
    %v2095 = vadd.f32 %v1859, %v2092
    %v2097 = vsel %vm1154, %v183, 0
    %v2100 = vsel %vm1154, %v271, 0
    %2102 = vmatprep.subr.mxu0 0.0
    %2103 = vmatpush1.xpose.msra.mxu0 %v2100
    %2104 = vmatprep.subr.mxu0 0.0
    %2105 = vmatpush1.xpose.msra.mxu0 0.0
    %2106 = vmatprep.subr.mxu0 0.0
    %2107 = vmatpush1.xpose.msra.mxu0 0.0
    %2108 = vmatprep.subr.mxu0 0.0
    %2109 = vmatpush1.xpose.msra.mxu0 0.0
    %2110 = vmatprep.subr.mxu0 0.0
    %2111 = vmatpush1.xpose.msra.mxu0 0.0
    %2112 = vmatprep.subr.mxu0 0.0
    %2113 = vmatpush1.xpose.msra.mxu0 0.0
    %2114 = vmatprep.subr.mxu0 0.0
    %2115 = vmatpush1.xpose.msra.mxu0 0.0
    %2116 = vmatprep.subr.mxu0 0.0
    %2117 = vmatpush1.xpose.msra.mxu0 0.0
    %2118 = vmatprep.subr.mxu0 0.0
    %2119 = vmatpush1.xpose.msra.mxu0 0.0
    %2120 = vmatprep.subr.mxu0 0.0
    %2121 = vmatpush1.xpose.msra.mxu0 0.0
    %2122 = vmatprep.subr.mxu0 0.0
    %2123 = vmatpush1.xpose.msra.mxu0 0.0
    %2124 = vmatprep.subr.mxu0 0.0
    %2125 = vmatpush1.xpose.msra.mxu0 0.0
    %2126 = vmatprep.subr.mxu0 0.0
    %2127 = vmatpush1.xpose.msra.mxu0 0.0
    %2128 = vmatprep.subr.mxu0 0.0
    %2129 = vmatpush1.xpose.msra.mxu0 0.0
    %2130 = vmatprep.subr.mxu0 0.0
    %2131 = vmatpush1.xpose.msra.mxu0 0.0
    %2132 = vmatprep.subr.mxu0 0.0
    %2133 = vmatpush1.xpose.msra.mxu0 0.0
    %2134 = vmatprep.subr.mxu0 0.0
    %2135 = vmatpush1.xpose.msra.mxu0 0.0
    %2136 = vmatprep.subr.mxu0 0.0
    %2137 = vmatpush1.xpose.msra.mxu0 0.0
    %2138 = vmatprep.subr.mxu0 0.0
    %2139 = vmatpush1.xpose.msra.mxu0 0.0
    %2140 = vmatprep.subr.mxu0 0.0
    %2141 = vmatpush1.xpose.msra.mxu0 0.0
    %2142 = vmatprep.subr.mxu0 0.0
    %2143 = vmatpush1.xpose.msra.mxu0 0.0
    %2144 = vmatprep.subr.mxu0 0.0
    %2145 = vmatpush1.xpose.msra.mxu0 0.0
    %2146 = vmatprep.subr.mxu0 0.0
    %2147 = vmatpush1.xpose.msra.mxu0 0.0
    %2148 = vmatprep.subr.mxu0 0.0
    %2149 = vmatpush1.xpose.msra.mxu0 0.0
    %2150 = vmatprep.subr.mxu0 0.0
    %2151 = vmatpush1.xpose.msra.mxu0 0.0
    %2152 = vmatprep.subr.mxu0 0.0
    %2153 = vmatpush1.xpose.msra.mxu0 0.0
    %2154 = vmatprep.subr.mxu0 0.0
    %2155 = vmatpush1.xpose.msra.mxu0 0.0
    %2156 = vmatprep.subr.mxu0 0.0
    %2157 = vmatpush1.xpose.msra.mxu0 0.0
    %2158 = vmatprep.subr.mxu0 0.0
    %2159 = vmatpush1.xpose.msra.mxu0 0.0
    %2160 = vmatprep.subr.mxu0 0.0
    %2161 = vmatpush1.xpose.msra.mxu0 0.0
    %2162 = vmatprep.subr.mxu0 0.0
    %2163 = vmatpush1.xpose.msra.mxu0 0.0
    %2164 = vmatprep.subr.mxu0 0.0
    %2165 = vmatpush1.xpose.msra.mxu0 0.0
    %2166 = vmatprep.mubr.f32.mxu0 0.0
    %2167 = vmatmul.mubr.f32.gmra.mrb[0].mxu0 %v2097
    %v2168 = vpop.f32.mrb[0].mxu0
    %v2169 = vadd.f32 %v51, %v2168
    %v2170 = vpop.f32.mrb[0].mxu0
    %2171 = vdwg.mxu0
    %v2172 = vsel %vm1154, %v2169, -inf
    %2173 = vmax.xlane.f32.xlu0 %v2172
    %v2174 = vpop.xlane.xlu0 %2173
    %v2175 = vsub.f32 %v2169, %v2174
    %v2176 = vmul.f32 %v2175, 1.442695
    %v2177 = vpow.pop %v2176
    %v2178 = vsel %vm1154, %v2177, 0.0
    %2179 = vadd.xlane.f32.xlu0 %v2178
    %v2180 = vpop.xlane.xlu0 %2179
    %v2181 = vrcp.pop %v2180
    %v2182 = vmul.f32 %v2177, %v2181
    %v2184 = vsel %vm1154, %v2182, 0
    %2186 = vmatprep.subr.mxu0 0.0
    %2187 = vmatpush1.msra.mxu0 %v359
    %2188 = vmatprep.subr.mxu0 0.0
    %2189 = vmatpush1.msra.mxu0 0.0
    %2190 = vmatprep.subr.mxu0 0.0
    %2191 = vmatpush1.msra.mxu0 0.0
    %2192 = vmatprep.subr.mxu0 0.0
    %2193 = vmatpush1.msra.mxu0 0.0
    %2194 = vmatprep.subr.mxu0 0.0
    %2195 = vmatpush1.msra.mxu0 0.0
    %2196 = vmatprep.subr.mxu0 0.0
    %2197 = vmatpush1.msra.mxu0 0.0
    %2198 = vmatprep.subr.mxu0 0.0
    %2199 = vmatpush1.msra.mxu0 0.0
    %2200 = vmatprep.subr.mxu0 0.0
    %2201 = vmatpush1.msra.mxu0 0.0
    %2202 = vmatprep.subr.mxu0 0.0
    %2203 = vmatpush1.msra.mxu0 0.0
    %2204 = vmatprep.subr.mxu0 0.0
    %2205 = vmatpush1.msra.mxu0 0.0
    %2206 = vmatprep.subr.mxu0 0.0
    %2207 = vmatpush1.msra.mxu0 0.0
    %2208 = vmatprep.subr.mxu0 0.0
    %2209 = vmatpush1.msra.mxu0 0.0
    %2210 = vmatprep.subr.mxu0 0.0
    %2211 = vmatpush1.msra.mxu0 0.0
    %2212 = vmatprep.subr.mxu0 0.0
    %2213 = vmatpush1.msra.mxu0 0.0
    %2214 = vmatprep.subr.mxu0 0.0
    %2215 = vmatpush1.msra.mxu0 0.0
    %2216 = vmatprep.subr.mxu0 0.0
    %2217 = vmatpush1.msra.mxu0 0.0
    %2218 = vmatprep.subr.mxu0 0.0
    %2219 = vmatpush1.msra.mxu0 0.0
    %2220 = vmatprep.subr.mxu0 0.0
    %2221 = vmatpush1.msra.mxu0 0.0
    %2222 = vmatprep.subr.mxu0 0.0
    %2223 = vmatpush1.msra.mxu0 0.0
    %2224 = vmatprep.subr.mxu0 0.0
    %2225 = vmatpush1.msra.mxu0 0.0
    %2226 = vmatprep.subr.mxu0 0.0
    %2227 = vmatpush1.msra.mxu0 0.0
    %2228 = vmatprep.subr.mxu0 0.0
    %2229 = vmatpush1.msra.mxu0 0.0
    %2230 = vmatprep.subr.mxu0 0.0
    %2231 = vmatpush1.msra.mxu0 0.0
    %2232 = vmatprep.subr.mxu0 0.0
    %2233 = vmatpush1.msra.mxu0 0.0
    %2234 = vmatprep.subr.mxu0 0.0
    %2235 = vmatpush1.msra.mxu0 0.0
    %2236 = vmatprep.subr.mxu0 0.0
    %2237 = vmatpush1.msra.mxu0 0.0
    %2238 = vmatprep.subr.mxu0 0.0
    %2239 = vmatpush1.msra.mxu0 0.0
    %2240 = vmatprep.subr.mxu0 0.0
    %2241 = vmatpush1.msra.mxu0 0.0
    %2242 = vmatprep.subr.mxu0 0.0
    %2243 = vmatpush1.msra.mxu0 0.0
    %2244 = vmatprep.subr.mxu0 0.0
    %2245 = vmatpush1.msra.mxu0 0.0
    %2246 = vmatprep.subr.mxu0 0.0
    %2247 = vmatpush1.msra.mxu0 0.0
    %2248 = vmatprep.subr.mxu0 0.0
    %2249 = vmatpush1.msra.mxu0 0.0
    %2250 = vmatprep.mubr.f32.mxu0 0.0
    %2251 = vmatmul.mubr.f32.gmra.mrb[0].mxu0 %v2184
    %v2252 = vpop.f32.mrb[0].mxu0
    %v2253 = vadd.f32 0.0, %v2252
    %v2254 = vpop.f32.mrb[0].mxu0
    %2255 = vdwg.mxu0
    %v2257 = vsel %vm1154, %v447, 0
    %v2260 = vsel %vm1154, %v535, 0
    %2262 = vmatprep.subr.mxu0 0.0
    %2263 = vmatpush1.xpose.msra.mxu0 %v2260
    %2264 = vmatprep.subr.mxu0 0.0
    %2265 = vmatpush1.xpose.msra.mxu0 0.0
    %2266 = vmatprep.subr.mxu0 0.0
    %2267 = vmatpush1.xpose.msra.mxu0 0.0
    %2268 = vmatprep.subr.mxu0 0.0
    %2269 = vmatpush1.xpose.msra.mxu0 0.0
    %2270 = vmatprep.subr.mxu0 0.0
    %2271 = vmatpush1.xpose.msra.mxu0 0.0
    %2272 = vmatprep.subr.mxu0 0.0
    %2273 = vmatpush1.xpose.msra.mxu0 0.0
    %2274 = vmatprep.subr.mxu0 0.0
    %2275 = vmatpush1.xpose.msra.mxu0 0.0
    %2276 = vmatprep.subr.mxu0 0.0
    %2277 = vmatpush1.xpose.msra.mxu0 0.0
    %2278 = vmatprep.subr.mxu0 0.0
    %2279 = vmatpush1.xpose.msra.mxu0 0.0
    %2280 = vmatprep.subr.mxu0 0.0
    %2281 = vmatpush1.xpose.msra.mxu0 0.0
    %2282 = vmatprep.subr.mxu0 0.0
    %2283 = vmatpush1.xpose.msra.mxu0 0.0
    %2284 = vmatprep.subr.mxu0 0.0
    %2285 = vmatpush1.xpose.msra.mxu0 0.0
    %2286 = vmatprep.subr.mxu0 0.0
    %2287 = vmatpush1.xpose.msra.mxu0 0.0
    %2288 = vmatprep.subr.mxu0 0.0
    %2289 = vmatpush1.xpose.msra.mxu0 0.0
    %2290 = vmatprep.subr.mxu0 0.0
    %2291 = vmatpush1.xpose.msra.mxu0 0.0
    %2292 = vmatprep.subr.mxu0 0.0
    %2293 = vmatpush1.xpose.msra.mxu0 0.0
    %2294 = vmatprep.subr.mxu0 0.0
    %2295 = vmatpush1.xpose.msra.mxu0 0.0
    %2296 = vmatprep.subr.mxu0 0.0
    %2297 = vmatpush1.xpose.msra.mxu0 0.0
    %2298 = vmatprep.subr.mxu0 0.0
    %2299 = vmatpush1.xpose.msra.mxu0 0.0
    %2300 = vmatprep.subr.mxu0 0.0
    %2301 = vmatpush1.xpose.msra.mxu0 0.0
    %2302 = vmatprep.subr.mxu0 0.0
    %2303 = vmatpush1.xpose.msra.mxu0 0.0
    %2304 = vmatprep.subr.mxu0 0.0
    %2305 = vmatpush1.xpose.msra.mxu0 0.0
    %2306 = vmatprep.subr.mxu0 0.0
    %2307 = vmatpush1.xpose.msra.mxu0 0.0
    %2308 = vmatprep.subr.mxu0 0.0
    %2309 = vmatpush1.xpose.msra.mxu0 0.0
    %2310 = vmatprep.subr.mxu0 0.0
    %2311 = vmatpush1.xpose.msra.mxu0 0.0
    %2312 = vmatprep.subr.mxu0 0.0
    %2313 = vmatpush1.xpose.msra.mxu0 0.0
    %2314 = vmatprep.subr.mxu0 0.0
    %2315 = vmatpush1.xpose.msra.mxu0 0.0
    %2316 = vmatprep.subr.mxu0 0.0
    %2317 = vmatpush1.xpose.msra.mxu0 0.0
    %2318 = vmatprep.subr.mxu0 0.0
    %2319 = vmatpush1.xpose.msra.mxu0 0.0
    %2320 = vmatprep.subr.mxu0 0.0
    %2321 = vmatpush1.xpose.msra.mxu0 0.0
    %2322 = vmatprep.subr.mxu0 0.0
    %2323 = vmatpush1.xpose.msra.mxu0 0.0
    %2324 = vmatprep.subr.mxu0 0.0
    %2325 = vmatpush1.xpose.msra.mxu0 0.0
    %2326 = vmatprep.mubr.f32.mxu0 0.0
    %2327 = vmatmul.mubr.f32.gmra.mrb[0].mxu0 %v2257
    %v2328 = vpop.f32.mrb[0].mxu0
    %v2329 = vadd.f32 %v51, %v2328
    %v2330 = vpop.f32.mrb[0].mxu0
    %2331 = vdwg.mxu0
    %v2332 = vsel %vm1154, %v2329, -inf
    %2333 = vmax.xlane.f32.xlu0 %v2332
    %v2334 = vpop.xlane.xlu0 %2333
    %v2335 = vsub.f32 %v2329, %v2334
    %v2336 = vmul.f32 %v2335, 1.442695
    %v2337 = vpow.pop %v2336
    %v2338 = vsel %vm1154, %v2337, 0.0
    %2339 = vadd.xlane.f32.xlu0 %v2338
    %v2340 = vpop.xlane.xlu0 %2339
    %v2341 = vrcp.pop %v2340
    %v2342 = vmul.f32 %v2337, %v2341
    %v2344 = vsel %vm1154, %v2342, 0
    %2346 = vmatprep.subr.mxu0 0.0
    %2347 = vmatpush1.msra.mxu0 %v623
    %2348 = vmatprep.subr.mxu0 0.0
    %2349 = vmatpush1.msra.mxu0 0.0
    %2350 = vmatprep.subr.mxu0 0.0
    %2351 = vmatpush1.msra.mxu0 0.0
    %2352 = vmatprep.subr.mxu0 0.0
    %2353 = vmatpush1.msra.mxu0 0.0
    %2354 = vmatprep.subr.mxu0 0.0
    %2355 = vmatpush1.msra.mxu0 0.0
    %2356 = vmatprep.subr.mxu0 0.0
    %2357 = vmatpush1.msra.mxu0 0.0
    %2358 = vmatprep.subr.mxu0 0.0
    %2359 = vmatpush1.msra.mxu0 0.0
    %2360 = vmatprep.subr.mxu0 0.0
    %2361 = vmatpush1.msra.mxu0 0.0
    %2362 = vmatprep.subr.mxu0 0.0
    %2363 = vmatpush1.msra.mxu0 0.0
    %2364 = vmatprep.subr.mxu0 0.0
    %2365 = vmatpush1.msra.mxu0 0.0
    %2366 = vmatprep.subr.mxu0 0.0
    %2367 = vmatpush1.msra.mxu0 0.0
    %2368 = vmatprep.subr.mxu0 0.0
    %2369 = vmatpush1.msra.mxu0 0.0
    %2370 = vmatprep.subr.mxu0 0.0
    %2371 = vmatpush1.msra.mxu0 0.0
    %2372 = vmatprep.subr.mxu0 0.0
    %2373 = vmatpush1.msra.mxu0 0.0
    %2374 = vmatprep.subr.mxu0 0.0
    %2375 = vmatpush1.msra.mxu0 0.0
    %2376 = vmatprep.subr.mxu0 0.0
    %2377 = vmatpush1.msra.mxu0 0.0
    %2378 = vmatprep.subr.mxu0 0.0
    %2379 = vmatpush1.msra.mxu0 0.0
    %2380 = vmatprep.subr.mxu0 0.0
    %2381 = vmatpush1.msra.mxu0 0.0
    %2382 = vmatprep.subr.mxu0 0.0
    %2383 = vmatpush1.msra.mxu0 0.0
    %2384 = vmatprep.subr.mxu0 0.0
    %2385 = vmatpush1.msra.mxu0 0.0
    %2386 = vmatprep.subr.mxu0 0.0
    %2387 = vmatpush1.msra.mxu0 0.0
    %2388 = vmatprep.subr.mxu0 0.0
    %2389 = vmatpush1.msra.mxu0 0.0
    %2390 = vmatprep.subr.mxu0 0.0
    %2391 = vmatpush1.msra.mxu0 0.0
    %2392 = vmatprep.subr.mxu0 0.0
    %2393 = vmatpush1.msra.mxu0 0.0
    %2394 = vmatprep.subr.mxu0 0.0
    %2395 = vmatpush1.msra.mxu0 0.0
    %2396 = vmatprep.subr.mxu0 0.0
    %2397 = vmatpush1.msra.mxu0 0.0
    %2398 = vmatprep.subr.mxu0 0.0
    %2399 = vmatpush1.msra.mxu0 0.0
    %2400 = vmatprep.subr.mxu0 0.0
    %2401 = vmatpush1.msra.mxu0 0.0
    %2402 = vmatprep.subr.mxu0 0.0
    %2403 = vmatpush1.msra.mxu0 0.0
    %2404 = vmatprep.subr.mxu0 0.0
    %2405 = vmatpush1.msra.mxu0 0.0
    %2406 = vmatprep.subr.mxu0 0.0
    %2407 = vmatpush1.msra.mxu0 0.0
    %2408 = vmatprep.subr.mxu0 0.0
    %2409 = vmatpush1.msra.mxu0 0.0
    %2410 = vmatprep.mubr.f32.mxu0 0.0
    %2411 = vmatmul.mubr.f32.gmra.mrb[0].mxu0 %v2344
    %v2412 = vpop.f32.mrb[0].mxu0
    %v2413 = vadd.f32 0.0, %v2412
    %v2414 = vpop.f32.mrb[0].mxu0
    %2415 = vdwg.mxu0
    %v2417 = vsel %vm1154, %v2413, 0
    %2419 = vmatprep.subr.mxu0 0.0
    %2420 = vmatpush1.msra.mxu0 %v1477
    %2421 = vmatprep.subr.mxu0 0.0
    %2422 = vmatpush1.msra.mxu0 0.0
    %2423 = vmatprep.subr.mxu0 0.0
    %2424 = vmatpush1.msra.mxu0 0.0
    %2425 = vmatprep.subr.mxu0 0.0
    %2426 = vmatpush1.msra.mxu0 0.0
    %2427 = vmatprep.subr.mxu0 0.0
    %2428 = vmatpush1.msra.mxu0 0.0
    %2429 = vmatprep.subr.mxu0 0.0
    %2430 = vmatpush1.msra.mxu0 0.0
    %2431 = vmatprep.subr.mxu0 0.0
    %2432 = vmatpush1.msra.mxu0 0.0
    %2433 = vmatprep.subr.mxu0 0.0
    %2434 = vmatpush1.msra.mxu0 0.0
    %2435 = vmatprep.subr.mxu0 0.0
    %2436 = vmatpush1.msra.mxu0 0.0
    %2437 = vmatprep.subr.mxu0 0.0
    %2438 = vmatpush1.msra.mxu0 0.0
    %2439 = vmatprep.subr.mxu0 0.0
    %2440 = vmatpush1.msra.mxu0 0.0
    %2441 = vmatprep.subr.mxu0 0.0
    %2442 = vmatpush1.msra.mxu0 0.0
    %2443 = vmatprep.subr.mxu0 0.0
    %2444 = vmatpush1.msra.mxu0 0.0
    %2445 = vmatprep.subr.mxu0 0.0
    %2446 = vmatpush1.msra.mxu0 0.0
    %2447 = vmatprep.subr.mxu0 0.0
    %2448 = vmatpush1.msra.mxu0 0.0
    %2449 = vmatprep.subr.mxu0 0.0
    %2450 = vmatpush1.msra.mxu0 0.0
    %2451 = vmatprep.subr.mxu0 0.0
    %2452 = vmatpush1.msra.mxu0 0.0
    %2453 = vmatprep.subr.mxu0 0.0
    %2454 = vmatpush1.msra.mxu0 0.0
    %2455 = vmatprep.subr.mxu0 0.0
    %2456 = vmatpush1.msra.mxu0 0.0
    %2457 = vmatprep.subr.mxu0 0.0
    %2458 = vmatpush1.msra.mxu0 0.0
    %2459 = vmatprep.subr.mxu0 0.0
    %2460 = vmatpush1.msra.mxu0 0.0
    %2461 = vmatprep.subr.mxu0 0.0
    %2462 = vmatpush1.msra.mxu0 0.0
    %2463 = vmatprep.subr.mxu0 0.0
    %2464 = vmatpush1.msra.mxu0 0.0
    %2465 = vmatprep.subr.mxu0 0.0
    %2466 = vmatpush1.msra.mxu0 0.0
    %2467 = vmatprep.subr.mxu0 0.0
    %2468 = vmatpush1.msra.mxu0 0.0
    %2469 = vmatprep.subr.mxu0 0.0
    %2470 = vmatpush1.msra.mxu0 0.0
    %2471 = vmatprep.subr.mxu0 0.0
    %2472 = vmatpush1.msra.mxu0 0.0
    %2473 = vmatprep.subr.mxu0 0.0
    %2474 = vmatpush1.msra.mxu0 0.0
    %2475 = vmatprep.subr.mxu0 0.0
    %2476 = vmatpush1.msra.mxu0 0.0
    %2477 = vmatprep.subr.mxu0 0.0
    %2478 = vmatpush1.msra.mxu0 0.0
    %2479 = vmatprep.subr.mxu0 0.0
    %2480 = vmatpush1.msra.mxu0 0.0
    %2481 = vmatprep.subr.mxu0 0.0
    %2482 = vmatpush1.msra.mxu0 0.0
    %2483 = vmatprep.mubr.f32.mxu0 0.0
    %2484 = vmatmul.mubr.f32.gmra.mrb[0].mxu0 %v2417
    %v2485 = vpop.f32.mrb[0].mxu0
    %v2486 = vadd.f32 0.0, %v2485
    %v2487 = vpop.f32.mrb[0].mxu0
    %2488 = vdwg.mxu0
    %v2490 = vsel %vm1154, %v2253, 0
    %2492 = vmatprep.subr.mxu0 0.0
    %2493 = vmatpush1.msra.mxu0 %v1315
    %2494 = vmatprep.subr.mxu0 0.0
    %2495 = vmatpush1.msra.mxu0 0.0
    %2496 = vmatprep.subr.mxu0 0.0
    %2497 = vmatpush1.msra.mxu0 0.0
    %2498 = vmatprep.subr.mxu0 0.0
    %2499 = vmatpush1.msra.mxu0 0.0
    %2500 = vmatprep.subr.mxu0 0.0
    %2501 = vmatpush1.msra.mxu0 0.0
    %2502 = vmatprep.subr.mxu0 0.0
    %2503 = vmatpush1.msra.mxu0 0.0
    %2504 = vmatprep.subr.mxu0 0.0
    %2505 = vmatpush1.msra.mxu0 0.0
    %2506 = vmatprep.subr.mxu0 0.0
    %2507 = vmatpush1.msra.mxu0 0.0
    %2508 = vmatprep.subr.mxu0 0.0
    %2509 = vmatpush1.msra.mxu0 0.0
    %2510 = vmatprep.subr.mxu0 0.0
    %2511 = vmatpush1.msra.mxu0 0.0
    %2512 = vmatprep.subr.mxu0 0.0
    %2513 = vmatpush1.msra.mxu0 0.0
    %2514 = vmatprep.subr.mxu0 0.0
    %2515 = vmatpush1.msra.mxu0 0.0
    %2516 = vmatprep.subr.mxu0 0.0
    %2517 = vmatpush1.msra.mxu0 0.0
    %2518 = vmatprep.subr.mxu0 0.0
    %2519 = vmatpush1.msra.mxu0 0.0
    %2520 = vmatprep.subr.mxu0 0.0
    %2521 = vmatpush1.msra.mxu0 0.0
    %2522 = vmatprep.subr.mxu0 0.0
    %2523 = vmatpush1.msra.mxu0 0.0
    %2524 = vmatprep.subr.mxu0 0.0
    %2525 = vmatpush1.msra.mxu0 0.0
    %2526 = vmatprep.subr.mxu0 0.0
    %2527 = vmatpush1.msra.mxu0 0.0
    %2528 = vmatprep.subr.mxu0 0.0
    %2529 = vmatpush1.msra.mxu0 0.0
    %2530 = vmatprep.subr.mxu0 0.0
    %2531 = vmatpush1.msra.mxu0 0.0
    %2532 = vmatprep.subr.mxu0 0.0
    %2533 = vmatpush1.msra.mxu0 0.0
    %2534 = vmatprep.subr.mxu0 0.0
    %2535 = vmatpush1.msra.mxu0 0.0
    %2536 = vmatprep.subr.mxu0 0.0
    %2537 = vmatpush1.msra.mxu0 0.0
    %2538 = vmatprep.subr.mxu0 0.0
    %2539 = vmatpush1.msra.mxu0 0.0
    %2540 = vmatprep.subr.mxu0 0.0
    %2541 = vmatpush1.msra.mxu0 0.0
    %2542 = vmatprep.subr.mxu0 0.0
    %2543 = vmatpush1.msra.mxu0 0.0
    %2544 = vmatprep.subr.mxu0 0.0
    %2545 = vmatpush1.msra.mxu0 0.0
    %2546 = vmatprep.subr.mxu0 0.0
    %2547 = vmatpush1.msra.mxu0 0.0
    %2548 = vmatprep.subr.mxu0 0.0
    %2549 = vmatpush1.msra.mxu0 0.0
    %2550 = vmatprep.subr.mxu0 0.0
    %2551 = vmatpush1.msra.mxu0 0.0
    %2552 = vmatprep.subr.mxu0 0.0
    %2553 = vmatpush1.msra.mxu0 0.0
    %2554 = vmatprep.subr.mxu0 0.0
    %2555 = vmatpush1.msra.mxu0 0.0
    %2556 = vmatprep.mubr.f32.mxu0 0.0
    %2557 = vmatmul.mubr.f32.gmra.mrb[0].mxu0 %v2490
    %v2558 = vpop.f32.mrb[0].mxu0
    %v2559 = vadd.f32 %v2486, %v2558
    %v2560 = vpop.f32.mrb[0].mxu0
    %2561 = vdwg.mxu0
    %v2563 = vsel %vm1154, %v711, 0
    %v2566 = vsel %vm1154, %v799, 0
    %2568 = vmatprep.subr.mxu0 0.0
    %2569 = vmatpush1.xpose.msra.mxu0 %v2566
    %2570 = vmatprep.subr.mxu0 0.0
    %2571 = vmatpush1.xpose.msra.mxu0 0.0
    %2572 = vmatprep.subr.mxu0 0.0
    %2573 = vmatpush1.xpose.msra.mxu0 0.0
    %2574 = vmatprep.subr.mxu0 0.0
    %2575 = vmatpush1.xpose.msra.mxu0 0.0
    %2576 = vmatprep.subr.mxu0 0.0
    %2577 = vmatpush1.xpose.msra.mxu0 0.0
    %2578 = vmatprep.subr.mxu0 0.0
    %2579 = vmatpush1.xpose.msra.mxu0 0.0
    %2580 = vmatprep.subr.mxu0 0.0
    %2581 = vmatpush1.xpose.msra.mxu0 0.0
    %2582 = vmatprep.subr.mxu0 0.0
    %2583 = vmatpush1.xpose.msra.mxu0 0.0
    %2584 = vmatprep.subr.mxu0 0.0
    %2585 = vmatpush1.xpose.msra.mxu0 0.0
    %2586 = vmatprep.subr.mxu0 0.0
    %2587 = vmatpush1.xpose.msra.mxu0 0.0
    %2588 = vmatprep.subr.mxu0 0.0
    %2589 = vmatpush1.xpose.msra.mxu0 0.0
    %2590 = vmatprep.subr.mxu0 0.0
    %2591 = vmatpush1.xpose.msra.mxu0 0.0
    %2592 = vmatprep.subr.mxu0 0.0
    %2593 = vmatpush1.xpose.msra.mxu0 0.0
    %2594 = vmatprep.subr.mxu0 0.0
    %2595 = vmatpush1.xpose.msra.mxu0 0.0
    %2596 = vmatprep.subr.mxu0 0.0
    %2597 = vmatpush1.xpose.msra.mxu0 0.0
    %2598 = vmatprep.subr.mxu0 0.0
    %2599 = vmatpush1.xpose.msra.mxu0 0.0
    %2600 = vmatprep.subr.mxu0 0.0
    %2601 = vmatpush1.xpose.msra.mxu0 0.0
    %2602 = vmatprep.subr.mxu0 0.0
    %2603 = vmatpush1.xpose.msra.mxu0 0.0
    %2604 = vmatprep.subr.mxu0 0.0
    %2605 = vmatpush1.xpose.msra.mxu0 0.0
    %2606 = vmatprep.subr.mxu0 0.0
    %2607 = vmatpush1.xpose.msra.mxu0 0.0
    %2608 = vmatprep.subr.mxu0 0.0
    %2609 = vmatpush1.xpose.msra.mxu0 0.0
    %2610 = vmatprep.subr.mxu0 0.0
    %2611 = vmatpush1.xpose.msra.mxu0 0.0
    %2612 = vmatprep.subr.mxu0 0.0
    %2613 = vmatpush1.xpose.msra.mxu0 0.0
    %2614 = vmatprep.subr.mxu0 0.0
    %2615 = vmatpush1.xpose.msra.mxu0 0.0
    %2616 = vmatprep.subr.mxu0 0.0
    %2617 = vmatpush1.xpose.msra.mxu0 0.0
    %2618 = vmatprep.subr.mxu0 0.0
    %2619 = vmatpush1.xpose.msra.mxu0 0.0
    %2620 = vmatprep.subr.mxu0 0.0
    %2621 = vmatpush1.xpose.msra.mxu0 0.0
    %2622 = vmatprep.subr.mxu0 0.0
    %2623 = vmatpush1.xpose.msra.mxu0 0.0
    %2624 = vmatprep.subr.mxu0 0.0
    %2625 = vmatpush1.xpose.msra.mxu0 0.0
    %2626 = vmatprep.subr.mxu0 0.0
    %2627 = vmatpush1.xpose.msra.mxu0 0.0
    %2628 = vmatprep.subr.mxu0 0.0
    %2629 = vmatpush1.xpose.msra.mxu0 0.0
    %2630 = vmatprep.subr.mxu0 0.0
    %2631 = vmatpush1.xpose.msra.mxu0 0.0
    %2632 = vmatprep.mubr.f32.mxu0 0.0
    %2633 = vmatmul.mubr.f32.gmra.mrb[0].mxu0 %v2563
    %v2634 = vpop.f32.mrb[0].mxu0
    %v2635 = vadd.f32 %v51, %v2634
    %v2636 = vpop.f32.mrb[0].mxu0
    %2637 = vdwg.mxu0
    %v2638 = vsel %vm1154, %v2635, -inf
    %2639 = vmax.xlane.f32.xlu0 %v2638
    %v2640 = vpop.xlane.xlu0 %2639
    %v2641 = vsub.f32 %v2635, %v2640
    %v2642 = vmul.f32 %v2641, 1.442695
    %v2643 = vpow.pop %v2642
    %v2644 = vsel %vm1154, %v2643, 0.0
    %2645 = vadd.xlane.f32.xlu0 %v2644
    %v2646 = vpop.xlane.xlu0 %2645
    %v2647 = vrcp.pop %v2646
    %v2648 = vmul.f32 %v2643, %v2647
    %v2650 = vsel %vm1154, %v2648, 0
    %2652 = vmatprep.subr.mxu0 0.0
    %2653 = vmatpush1.msra.mxu0 %v887
    %2654 = vmatprep.subr.mxu0 0.0
    %2655 = vmatpush1.msra.mxu0 0.0
    %2656 = vmatprep.subr.mxu0 0.0
    %2657 = vmatpush1.msra.mxu0 0.0
    %2658 = vmatprep.subr.mxu0 0.0
    %2659 = vmatpush1.msra.mxu0 0.0
    %2660 = vmatprep.subr.mxu0 0.0
    %2661 = vmatpush1.msra.mxu0 0.0
    %2662 = vmatprep.subr.mxu0 0.0
    %2663 = vmatpush1.msra.mxu0 0.0
    %2664 = vmatprep.subr.mxu0 0.0
    %2665 = vmatpush1.msra.mxu0 0.0
    %2666 = vmatprep.subr.mxu0 0.0
    %2667 = vmatpush1.msra.mxu0 0.0
    %2668 = vmatprep.subr.mxu0 0.0
    %2669 = vmatpush1.msra.mxu0 0.0
    %2670 = vmatprep.subr.mxu0 0.0
    %2671 = vmatpush1.msra.mxu0 0.0
    %2672 = vmatprep.subr.mxu0 0.0
    %2673 = vmatpush1.msra.mxu0 0.0
    %2674 = vmatprep.subr.mxu0 0.0
    %2675 = vmatpush1.msra.mxu0 0.0
    %2676 = vmatprep.subr.mxu0 0.0
    %2677 = vmatpush1.msra.mxu0 0.0
    %2678 = vmatprep.subr.mxu0 0.0
    %2679 = vmatpush1.msra.mxu0 0.0
    %2680 = vmatprep.subr.mxu0 0.0
    %2681 = vmatpush1.msra.mxu0 0.0
    %2682 = vmatprep.subr.mxu0 0.0
    %2683 = vmatpush1.msra.mxu0 0.0
    %2684 = vmatprep.subr.mxu0 0.0
    %2685 = vmatpush1.msra.mxu0 0.0
    %2686 = vmatprep.subr.mxu0 0.0
    %2687 = vmatpush1.msra.mxu0 0.0
    %2688 = vmatprep.subr.mxu0 0.0
    %2689 = vmatpush1.msra.mxu0 0.0
    %2690 = vmatprep.subr.mxu0 0.0
    %2691 = vmatpush1.msra.mxu0 0.0
    %2692 = vmatprep.subr.mxu0 0.0
    %2693 = vmatpush1.msra.mxu0 0.0
    %2694 = vmatprep.subr.mxu0 0.0
    %2695 = vmatpush1.msra.mxu0 0.0
    %2696 = vmatprep.subr.mxu0 0.0
    %2697 = vmatpush1.msra.mxu0 0.0
    %2698 = vmatprep.subr.mxu0 0.0
    %2699 = vmatpush1.msra.mxu0 0.0
    %2700 = vmatprep.subr.mxu0 0.0
    %2701 = vmatpush1.msra.mxu0 0.0
    %2702 = vmatprep.subr.mxu0 0.0
    %2703 = vmatpush1.msra.mxu0 0.0
    %2704 = vmatprep.subr.mxu0 0.0
    %2705 = vmatpush1.msra.mxu0 0.0
    %2706 = vmatprep.subr.mxu0 0.0
    %2707 = vmatpush1.msra.mxu0 0.0
    %2708 = vmatprep.subr.mxu0 0.0
    %2709 = vmatpush1.msra.mxu0 0.0
    %2710 = vmatprep.subr.mxu0 0.0
    %2711 = vmatpush1.msra.mxu0 0.0
    %2712 = vmatprep.subr.mxu0 0.0
    %2713 = vmatpush1.msra.mxu0 0.0
    %2714 = vmatprep.subr.mxu0 0.0
    %2715 = vmatpush1.msra.mxu0 0.0
    %2716 = vmatprep.mubr.f32.mxu0 0.0
    %2717 = vmatmul.mubr.f32.gmra.mrb[0].mxu0 %v2650
    %v2718 = vpop.f32.mrb[0].mxu0
    %v2719 = vadd.f32 0.0, %v2718
    %v2720 = vpop.f32.mrb[0].mxu0
    %2721 = vdwg.mxu0
    %v2723 = vsel %vm1154, %v2719, 0
    %2725 = vmatprep.subr.mxu0 0.0
    %2726 = vmatpush1.msra.mxu0 %v1785
    %2727 = vmatprep.subr.mxu0 0.0
    %2728 = vmatpush1.msra.mxu0 0.0
    %2729 = vmatprep.subr.mxu0 0.0
    %2730 = vmatpush1.msra.mxu0 0.0
    %2731 = vmatprep.subr.mxu0 0.0
    %2732 = vmatpush1.msra.mxu0 0.0
    %2733 = vmatprep.subr.mxu0 0.0
    %2734 = vmatpush1.msra.mxu0 0.0
    %2735 = vmatprep.subr.mxu0 0.0
    %2736 = vmatpush1.msra.mxu0 0.0
    %2737 = vmatprep.subr.mxu0 0.0
    %2738 = vmatpush1.msra.mxu0 0.0
    %2739 = vmatprep.subr.mxu0 0.0
    %2740 = vmatpush1.msra.mxu0 0.0
    %2741 = vmatprep.subr.mxu0 0.0
    %2742 = vmatpush1.msra.mxu0 0.0
    %2743 = vmatprep.subr.mxu0 0.0
    %2744 = vmatpush1.msra.mxu0 0.0
    %2745 = vmatprep.subr.mxu0 0.0
    %2746 = vmatpush1.msra.mxu0 0.0
    %2747 = vmatprep.subr.mxu0 0.0
    %2748 = vmatpush1.msra.mxu0 0.0
    %2749 = vmatprep.subr.mxu0 0.0
    %2750 = vmatpush1.msra.mxu0 0.0
    %2751 = vmatprep.subr.mxu0 0.0
    %2752 = vmatpush1.msra.mxu0 0.0
    %2753 = vmatprep.subr.mxu0 0.0
    %2754 = vmatpush1.msra.mxu0 0.0
    %2755 = vmatprep.subr.mxu0 0.0
    %2756 = vmatpush1.msra.mxu0 0.0
    %2757 = vmatprep.subr.mxu0 0.0
    %2758 = vmatpush1.msra.mxu0 0.0
    %2759 = vmatprep.subr.mxu0 0.0
    %2760 = vmatpush1.msra.mxu0 0.0
    %2761 = vmatprep.subr.mxu0 0.0
    %2762 = vmatpush1.msra.mxu0 0.0
    %2763 = vmatprep.subr.mxu0 0.0
    %2764 = vmatpush1.msra.mxu0 0.0
    %2765 = vmatprep.subr.mxu0 0.0
    %2766 = vmatpush1.msra.mxu0 0.0
    %2767 = vmatprep.subr.mxu0 0.0
    %2768 = vmatpush1.msra.mxu0 0.0
    %2769 = vmatprep.subr.mxu0 0.0
    %2770 = vmatpush1.msra.mxu0 0.0
    %2771 = vmatprep.subr.mxu0 0.0
    %2772 = vmatpush1.msra.mxu0 0.0
    %2773 = vmatprep.subr.mxu0 0.0
    %2774 = vmatpush1.msra.mxu0 0.0
    %2775 = vmatprep.subr.mxu0 0.0
    %2776 = vmatpush1.msra.mxu0 0.0
    %2777 = vmatprep.subr.mxu0 0.0
    %2778 = vmatpush1.msra.mxu0 0.0
    %2779 = vmatprep.subr.mxu0 0.0
    %2780 = vmatpush1.msra.mxu0 0.0
    %2781 = vmatprep.subr.mxu0 0.0
    %2782 = vmatpush1.msra.mxu0 0.0
    %2783 = vmatprep.subr.mxu0 0.0
    %2784 = vmatpush1.msra.mxu0 0.0
    %2785 = vmatprep.subr.mxu0 0.0
    %2786 = vmatpush1.msra.mxu0 0.0
    %2787 = vmatprep.subr.mxu0 0.0
    %2788 = vmatpush1.msra.mxu0 0.0
    %2789 = vmatprep.mubr.f32.mxu0 0.0
    %2790 = vmatmul.mubr.f32.gmra.mrb[0].mxu0 %v2723
    %v2791 = vpop.f32.mrb[0].mxu0
    %v2792 = vadd.f32 0.0, %v2791
    %v2793 = vpop.f32.mrb[0].mxu0
    %2794 = vdwg.mxu0
    %v2795 = vadd.f32 %v2559, %v2792
    %v2797 = vsel %vm1154, %v975, 0
    %v2800 = vsel %vm1154, %v1063, 0
    %2802 = vmatprep.subr.mxu0 0.0
    %2803 = vmatpush1.xpose.msra.mxu0 %v2800
    %2804 = vmatprep.subr.mxu0 0.0
    %2805 = vmatpush1.xpose.msra.mxu0 0.0
    %2806 = vmatprep.subr.mxu0 0.0
    %2807 = vmatpush1.xpose.msra.mxu0 0.0
    %2808 = vmatprep.subr.mxu0 0.0
    %2809 = vmatpush1.xpose.msra.mxu0 0.0
    %2810 = vmatprep.subr.mxu0 0.0
    %2811 = vmatpush1.xpose.msra.mxu0 0.0
    %2812 = vmatprep.subr.mxu0 0.0
    %2813 = vmatpush1.xpose.msra.mxu0 0.0
    %2814 = vmatprep.subr.mxu0 0.0
    %2815 = vmatpush1.xpose.msra.mxu0 0.0
    %2816 = vmatprep.subr.mxu0 0.0
    %2817 = vmatpush1.xpose.msra.mxu0 0.0
    %2818 = vmatprep.subr.mxu0 0.0
    %2819 = vmatpush1.xpose.msra.mxu0 0.0
    %2820 = vmatprep.subr.mxu0 0.0
    %2821 = vmatpush1.xpose.msra.mxu0 0.0
    %2822 = vmatprep.subr.mxu0 0.0
    %2823 = vmatpush1.xpose.msra.mxu0 0.0
    %2824 = vmatprep.subr.mxu0 0.0
    %2825 = vmatpush1.xpose.msra.mxu0 0.0
    %2826 = vmatprep.subr.mxu0 0.0
    %2827 = vmatpush1.xpose.msra.mxu0 0.0
    %2828 = vmatprep.subr.mxu0 0.0
    %2829 = vmatpush1.xpose.msra.mxu0 0.0
    %2830 = vmatprep.subr.mxu0 0.0
    %2831 = vmatpush1.xpose.msra.mxu0 0.0
    %2832 = vmatprep.subr.mxu0 0.0
    %2833 = vmatpush1.xpose.msra.mxu0 0.0
    %2834 = vmatprep.subr.mxu0 0.0
    %2835 = vmatpush1.xpose.msra.mxu0 0.0
    %2836 = vmatprep.subr.mxu0 0.0
    %2837 = vmatpush1.xpose.msra.mxu0 0.0
    %2838 = vmatprep.subr.mxu0 0.0
    %2839 = vmatpush1.xpose.msra.mxu0 0.0
    %2840 = vmatprep.subr.mxu0 0.0
    %2841 = vmatpush1.xpose.msra.mxu0 0.0
    %2842 = vmatprep.subr.mxu0 0.0
    %2843 = vmatpush1.xpose.msra.mxu0 0.0
    %2844 = vmatprep.subr.mxu0 0.0
    %2845 = vmatpush1.xpose.msra.mxu0 0.0
    %2846 = vmatprep.subr.mxu0 0.0
    %2847 = vmatpush1.xpose.msra.mxu0 0.0
    %2848 = vmatprep.subr.mxu0 0.0
    %2849 = vmatpush1.xpose.msra.mxu0 0.0
    %2850 = vmatprep.subr.mxu0 0.0
    %2851 = vmatpush1.xpose.msra.mxu0 0.0
    %2852 = vmatprep.subr.mxu0 0.0
    %2853 = vmatpush1.xpose.msra.mxu0 0.0
    %2854 = vmatprep.subr.mxu0 0.0
    %2855 = vmatpush1.xpose.msra.mxu0 0.0
    %2856 = vmatprep.subr.mxu0 0.0
    %2857 = vmatpush1.xpose.msra.mxu0 0.0
    %2858 = vmatprep.subr.mxu0 0.0
    %2859 = vmatpush1.xpose.msra.mxu0 0.0
    %2860 = vmatprep.subr.mxu0 0.0
    %2861 = vmatpush1.xpose.msra.mxu0 0.0
    %2862 = vmatprep.subr.mxu0 0.0
    %2863 = vmatpush1.xpose.msra.mxu0 0.0
    %2864 = vmatprep.subr.mxu0 0.0
    %2865 = vmatpush1.xpose.msra.mxu0 0.0
    %2866 = vmatprep.mubr.f32.mxu0 0.0
    %2867 = vmatmul.mubr.f32.gmra.mrb[0].mxu0 %v2797
    %v2868 = vpop.f32.mrb[0].mxu0
    %v2869 = vadd.f32 %v51, %v2868
    %v2870 = vpop.f32.mrb[0].mxu0
    %2871 = vdwg.mxu0
    %v2872 = vsel %vm1154, %v2869, -inf
    %2873 = vmax.xlane.f32.xlu0 %v2872
    %v2874 = vpop.xlane.xlu0 %2873
    %v2875 = vsub.f32 %v2869, %v2874
    %v2876 = vmul.f32 %v2875, 1.442695
    %v2877 = vpow.pop %v2876
    %v2878 = vsel %vm1154, %v2877, 0.0
    %2879 = vadd.xlane.f32.xlu0 %v2878
    %v2880 = vpop.xlane.xlu0 %2879
    %v2881 = vrcp.pop %v2880
    %v2882 = vmul.f32 %v2877, %v2881
    %v2884 = vsel %vm1154, %v2882, 0
    %2886 = vmatprep.subr.mxu0 0.0
    %2887 = vmatpush1.msra.mxu0 %v1151
    %2888 = vmatprep.subr.mxu0 0.0
    %2889 = vmatpush1.msra.mxu0 0.0
    %2890 = vmatprep.subr.mxu0 0.0
    %2891 = vmatpush1.msra.mxu0 0.0
    %2892 = vmatprep.subr.mxu0 0.0
    %2893 = vmatpush1.msra.mxu0 0.0
    %2894 = vmatprep.subr.mxu0 0.0
    %2895 = vmatpush1.msra.mxu0 0.0
    %2896 = vmatprep.subr.mxu0 0.0
    %2897 = vmatpush1.msra.mxu0 0.0
    %2898 = vmatprep.subr.mxu0 0.0
    %2899 = vmatpush1.msra.mxu0 0.0
    %2900 = vmatprep.subr.mxu0 0.0
    %2901 = vmatpush1.msra.mxu0 0.0
    %2902 = vmatprep.subr.mxu0 0.0
    %2903 = vmatpush1.msra.mxu0 0.0
    %2904 = vmatprep.subr.mxu0 0.0
    %2905 = vmatpush1.msra.mxu0 0.0
    %2906 = vmatprep.subr.mxu0 0.0
    %2907 = vmatpush1.msra.mxu0 0.0
    %2908 = vmatprep.subr.mxu0 0.0
    %2909 = vmatpush1.msra.mxu0 0.0
    %2910 = vmatprep.subr.mxu0 0.0
    %2911 = vmatpush1.msra.mxu0 0.0
    %2912 = vmatprep.subr.mxu0 0.0
    %2913 = vmatpush1.msra.mxu0 0.0
    %2914 = vmatprep.subr.mxu0 0.0
    %2915 = vmatpush1.msra.mxu0 0.0
    %2916 = vmatprep.subr.mxu0 0.0
    %2917 = vmatpush1.msra.mxu0 0.0
    %2918 = vmatprep.subr.mxu0 0.0
    %2919 = vmatpush1.msra.mxu0 0.0
    %2920 = vmatprep.subr.mxu0 0.0
    %2921 = vmatpush1.msra.mxu0 0.0
    %2922 = vmatprep.subr.mxu0 0.0
    %2923 = vmatpush1.msra.mxu0 0.0
    %2924 = vmatprep.subr.mxu0 0.0
    %2925 = vmatpush1.msra.mxu0 0.0
    %2926 = vmatprep.subr.mxu0 0.0
    %2927 = vmatpush1.msra.mxu0 0.0
    %2928 = vmatprep.subr.mxu0 0.0
    %2929 = vmatpush1.msra.mxu0 0.0
    %2930 = vmatprep.subr.mxu0 0.0
    %2931 = vmatpush1.msra.mxu0 0.0
    %2932 = vmatprep.subr.mxu0 0.0
    %2933 = vmatpush1.msra.mxu0 0.0
    %2934 = vmatprep.subr.mxu0 0.0
    %2935 = vmatpush1.msra.mxu0 0.0
    %2936 = vmatprep.subr.mxu0 0.0
    %2937 = vmatpush1.msra.mxu0 0.0
    %2938 = vmatprep.subr.mxu0 0.0
    %2939 = vmatpush1.msra.mxu0 0.0
    %2940 = vmatprep.subr.mxu0 0.0
    %2941 = vmatpush1.msra.mxu0 0.0
    %2942 = vmatprep.subr.mxu0 0.0
    %2943 = vmatpush1.msra.mxu0 0.0
    %2944 = vmatprep.subr.mxu0 0.0
    %2945 = vmatpush1.msra.mxu0 0.0
    %2946 = vmatprep.subr.mxu0 0.0
    %2947 = vmatpush1.msra.mxu0 0.0
    %2948 = vmatprep.subr.mxu0 0.0
    %2949 = vmatpush1.msra.mxu0 0.0
    %2950 = vmatprep.mubr.f32.mxu0 0.0
    %2951 = vmatmul.mubr.f32.gmra.mrb[0].mxu0 %v2884
    %v2952 = vpop.f32.mrb[0].mxu0
    %v2953 = vadd.f32 0.0, %v2952
    %v2954 = vpop.f32.mrb[0].mxu0
    %2955 = vdwg.mxu0
    %v2957 = vsel %vm1154, %v2953, 0
    %2959 = vmatprep.subr.mxu0 0.0
    %2960 = vmatpush1.msra.mxu0 %v2021
    %2961 = vmatprep.subr.mxu0 0.0
    %2962 = vmatpush1.msra.mxu0 0.0
    %2963 = vmatprep.subr.mxu0 0.0
    %2964 = vmatpush1.msra.mxu0 0.0
    %2965 = vmatprep.subr.mxu0 0.0
    %2966 = vmatpush1.msra.mxu0 0.0
    %2967 = vmatprep.subr.mxu0 0.0
    %2968 = vmatpush1.msra.mxu0 0.0
    %2969 = vmatprep.subr.mxu0 0.0
    %2970 = vmatpush1.msra.mxu0 0.0
    %2971 = vmatprep.subr.mxu0 0.0
    %2972 = vmatpush1.msra.mxu0 0.0
    %2973 = vmatprep.subr.mxu0 0.0
    %2974 = vmatpush1.msra.mxu0 0.0
    %2975 = vmatprep.subr.mxu0 0.0
    %2976 = vmatpush1.msra.mxu0 0.0
    %2977 = vmatprep.subr.mxu0 0.0
    %2978 = vmatpush1.msra.mxu0 0.0
    %2979 = vmatprep.subr.mxu0 0.0
    %2980 = vmatpush1.msra.mxu0 0.0
    %2981 = vmatprep.subr.mxu0 0.0
    %2982 = vmatpush1.msra.mxu0 0.0
    %2983 = vmatprep.subr.mxu0 0.0
    %2984 = vmatpush1.msra.mxu0 0.0
    %2985 = vmatprep.subr.mxu0 0.0
    %2986 = vmatpush1.msra.mxu0 0.0
    %2987 = vmatprep.subr.mxu0 0.0
    %2988 = vmatpush1.msra.mxu0 0.0
    %2989 = vmatprep.subr.mxu0 0.0
    %2990 = vmatpush1.msra.mxu0 0.0
    %2991 = vmatprep.subr.mxu0 0.0
    %2992 = vmatpush1.msra.mxu0 0.0
    %2993 = vmatprep.subr.mxu0 0.0
    %2994 = vmatpush1.msra.mxu0 0.0
    %2995 = vmatprep.subr.mxu0 0.0
    %2996 = vmatpush1.msra.mxu0 0.0
    %2997 = vmatprep.subr.mxu0 0.0
    %2998 = vmatpush1.msra.mxu0 0.0
    %2999 = vmatprep.subr.mxu0 0.0
    %3000 = vmatpush1.msra.mxu0 0.0
    %3001 = vmatprep.subr.mxu0 0.0
    %3002 = vmatpush1.msra.mxu0 0.0
    %3003 = vmatprep.subr.mxu0 0.0
    %3004 = vmatpush1.msra.mxu0 0.0
    %3005 = vmatprep.subr.mxu0 0.0
    %3006 = vmatpush1.msra.mxu0 0.0
    %3007 = vmatprep.subr.mxu0 0.0
    %3008 = vmatpush1.msra.mxu0 0.0
    %3009 = vmatprep.subr.mxu0 0.0
    %3010 = vmatpush1.msra.mxu0 0.0
    %3011 = vmatprep.subr.mxu0 0.0
    %3012 = vmatpush1.msra.mxu0 0.0
    %3013 = vmatprep.subr.mxu0 0.0
    %3014 = vmatpush1.msra.mxu0 0.0
    %3015 = vmatprep.subr.mxu0 0.0
    %3016 = vmatpush1.msra.mxu0 0.0
    %3017 = vmatprep.subr.mxu0 0.0
    %3018 = vmatpush1.msra.mxu0 0.0
    %3019 = vmatprep.subr.mxu0 0.0
    %3020 = vmatpush1.msra.mxu0 0.0
    %3021 = vmatprep.subr.mxu0 0.0
    %3022 = vmatpush1.msra.mxu0 0.0
    %3023 = vmatprep.mubr.f32.mxu0 0.0
    %3024 = vmatmul.mubr.f32.gmra.mrb[0].mxu0 %v2957
    %v3025 = vpop.f32.mrb[0].mxu0
    %v3026 = vadd.f32 0.0, %v3025
    %v3027 = vpop.f32.mrb[0].mxu0
    %3028 = vdwg.mxu0
    %v3029 = vadd.f32 %v2795, %v3026
    %v3030 = vld [vmem:[%s7] sm:$0x1]
    %v3031 = vadd.f32 %v33, %v2095
    %v3032 = vadd.f32 %v34, %v3029
    %v3034 = vlaneseq
    %v3035 = vshrl.u32 %v3034, 7
    %v3036 = vsub.s32 0, %v3035
    %v3037 = vrot.slane %v3030, %v3036
    %v3039 = vadd.f32 %v3031, %v3037
    %v3040 = vadd.f32 %v3032, %v3037
    %s3041 = scalar_lea.vmem %s8, 2
    %v3042 = vld [vmem:[%s3041] sm:$0x3]
    %v3043 = vsel %vm54, %v3039, 0.0
    %3044 = vadd.xlane.f32.xlu0 %v3043
    %v3045 = vpop.xlane.xlu0 %3044
    %v3046 = vsel %vm54, %v3040, 0.0
    %3047 = vadd.xlane.f32.xlu0 %v3046
    %v3048 = vpop.xlane.xlu0 %3047
    %v3049 = vmul.f32 %v3045, %v61
    %v3050 = vmul.f32 %v3048, %v61
    %v3051 = vsub.f32 %v3039, %v3049
    %v3052 = vsub.f32 %v3040, %v3050
    %v3053 = vmul.f32 %v3051, %v3051
    %v3054 = vmul.f32 %v3052, %v3052
    %v3055 = vsel %vm54, %v3053, 0.0
    %3056 = vadd.xlane.f32.xlu0 %v3055
    %v3057 = vpop.xlane.xlu0 %3056
    %v3058 = vsel %vm54, %v3054, 0.0
    %3059 = vadd.xlane.f32.xlu0 %v3058
    %v3060 = vpop.xlane.xlu0 %3059
    %v3061 = vmul.f32 %v3057, %v61
    %v3062 = vmul.f32 %v3060, %v61
    %v3063 = vadd.f32 %v3061, 1e-05
    %v3064 = vadd.f32 %v3062, 1e-05
    %v3065 = vrsqrt.pop %v3063
    %v3066 = vrsqrt.pop %v3064
    %v3067 = vmul.f32 %v3051, %v3065
    %v3068 = vmul.f32 %v3052, %v3066
    %v3069 = vlaneseq
    %v3070 = vshrl.u32 %v3069, 7
    %v3071 = vsub.s32 0, %v3070
    %v3072 = vrot.slane %v3042, %v3071
    %v3073 = vmul.f32 %v3067, %v3072
    %v3074 = vmul.f32 %v3068, %v3072
    %v3075 = vlaneseq
    %v3076 = vshrl.u32 %v3075, 7
    %v3077 = vsub.s32 1, %v3076
    %v3078 = vrot.slane %v3042, %v3077
    %v3079 = vadd.f32 %v3073, %v3078
    %v3080 = vadd.f32 %v3074, %v3078
    %v3081 = vld [vmem:[%s5] sm:$0xff]
    %v3082 = vld [vmem:[%s5 + $0x8] sm:$0xff]
    %v3083 = vld [vmem:[%s5 + $0x10] sm:$0xff]
    %v3084 = vld [vmem:[%s5 + $0x18] sm:$0xff]
    %3085 = vrot.lane.b32.xlu0 %v3037, 96
    %v3086 = vpop.permute.xlu0 %3085
    %v3089 = vsel %vm54, %v3079, 0
    %v3092 = vsel %vm54, %v3080, 0
    %3094 = vmatprep.subr.mxu0 0.0
    %3095 = vmatpush1.msra.mxu0 %v3081
    %3096 = vmatprep.subr.mxu0 0.0
    %3097 = vmatpush1.msra.mxu0 %v3082
    %3098 = vmatprep.subr.mxu0 0.0
    %3099 = vmatpush1.msra.mxu0 %v3083
    %3100 = vmatprep.subr.mxu0 0.0
    %3101 = vmatpush1.msra.mxu0 %v3084
    %3102 = vmatprep.subr.mxu0 0.0
    %3103 = vmatpush1.msra.mxu0 0.0
    %3104 = vmatprep.subr.mxu0 0.0
    %3105 = vmatpush1.msra.mxu0 0.0
    %3106 = vmatprep.subr.mxu0 0.0
    %3107 = vmatpush1.msra.mxu0 0.0
    %3108 = vmatprep.subr.mxu0 0.0
    %3109 = vmatpush1.msra.mxu0 0.0
    %3110 = vmatprep.subr.mxu0 0.0
    %3111 = vmatpush1.msra.mxu0 0.0
    %3112 = vmatprep.subr.mxu0 0.0
    %3113 = vmatpush1.msra.mxu0 0.0
    %3114 = vmatprep.subr.mxu0 0.0
    %3115 = vmatpush1.msra.mxu0 0.0
    %3116 = vmatprep.subr.mxu0 0.0
    %3117 = vmatpush1.msra.mxu0 0.0
    %3118 = vmatprep.subr.mxu0 0.0
    %3119 = vmatpush1.msra.mxu0 0.0
    %3120 = vmatprep.subr.mxu0 0.0
    %3121 = vmatpush1.msra.mxu0 0.0
    %3122 = vmatprep.subr.mxu0 0.0
    %3123 = vmatpush1.msra.mxu0 0.0
    %3124 = vmatprep.subr.mxu0 0.0
    %3125 = vmatpush1.msra.mxu0 0.0
    %3126 = vmatprep.subr.mxu0 0.0
    %3127 = vmatpush1.msra.mxu0 0.0
    %3128 = vmatprep.subr.mxu0 0.0
    %3129 = vmatpush1.msra.mxu0 0.0
    %3130 = vmatprep.subr.mxu0 0.0
    %3131 = vmatpush1.msra.mxu0 0.0
    %3132 = vmatprep.subr.mxu0 0.0
    %3133 = vmatpush1.msra.mxu0 0.0
    %3134 = vmatprep.subr.mxu0 0.0
    %3135 = vmatpush1.msra.mxu0 0.0
    %3136 = vmatprep.subr.mxu0 0.0
    %3137 = vmatpush1.msra.mxu0 0.0
    %3138 = vmatprep.subr.mxu0 0.0
    %3139 = vmatpush1.msra.mxu0 0.0
    %3140 = vmatprep.subr.mxu0 0.0
    %3141 = vmatpush1.msra.mxu0 0.0
    %3142 = vmatprep.subr.mxu0 0.0
    %3143 = vmatpush1.msra.mxu0 0.0
    %3144 = vmatprep.subr.mxu0 0.0
    %3145 = vmatpush1.msra.mxu0 0.0
    %3146 = vmatprep.subr.mxu0 0.0
    %3147 = vmatpush1.msra.mxu0 0.0
    %3148 = vmatprep.subr.mxu0 0.0
    %3149 = vmatpush1.msra.mxu0 0.0
    %3150 = vmatprep.subr.mxu0 0.0
    %3151 = vmatpush1.msra.mxu0 0.0
    %3152 = vmatprep.subr.mxu0 0.0
    %3153 = vmatpush1.msra.mxu0 0.0
    %3154 = vmatprep.subr.mxu0 0.0
    %3155 = vmatpush1.msra.mxu0 0.0
    %3156 = vmatprep.subr.mxu0 0.0
    %3157 = vmatpush1.msra.mxu0 0.0
    %3158 = vmatprep.mubr.f32.mxu0 0.0
    %3159 = vmatmul.mubr.f32.gmra.mrb[0].mxu0 %v3089
    %v3160 = vpop.f32.mrb[0].mxu0
    %v3161 = vadd.f32 %v3086, %v3160
    %v3162 = vpop.f32.mrb[0].mxu0
    %3163 = vmatprep.mubr.f32.mxu0 0.0
    %3164 = vmatmul.mubr.f32.gmra.mrb[0].mxu0 %v3092
    %v3165 = vpop.f32.mrb[0].mxu0
    %v3166 = vadd.f32 %v3086, %v3165
    %v3167 = vpop.f32.mrb[0].mxu0
    %3168 = vdwg.mxu0
    %v3169 = vmax.f32 %v3161, 0.0
    %v3170 = vmax.f32 %v3166, 0.0
    %v3171 = vld [vmem:[%s6] sm:$0xff]
    %v3172 = vld [vmem:[%s6 + $0x8] sm:$0xff]
    %v3173 = vld [vmem:[%s6 + $0x10] sm:$0xff]
    %v3174 = vld [vmem:[%s6 + $0x18] sm:$0xff]
    %v3175 = vld [vmem:[%s6 + $0x20] sm:$0xff]
    %v3176 = vld [vmem:[%s6 + $0x28] sm:$0xff]
    %v3177 = vld [vmem:[%s6 + $0x30] sm:$0xff]
    %v3178 = vld [vmem:[%s6 + $0x38] sm:$0xff]
    %vm3179 = vcmask 523264
    %v3181 = vsel %vm3179, %v3169, 0
    %v3184 = vsel %vm3179, %v3170, 0
    %3186 = vmatprep.subr.mxu0 0.0
    %3187 = vmatpush1.msra.mxu0 %v3171
    %3188 = vmatprep.subr.mxu0 0.0
    %3189 = vmatpush1.msra.mxu0 %v3172
    %3190 = vmatprep.subr.mxu0 0.0
    %3191 = vmatpush1.msra.mxu0 %v3173
    %3192 = vmatprep.subr.mxu0 0.0
    %3193 = vmatpush1.msra.mxu0 %v3174
    %3194 = vmatprep.subr.mxu0 0.0
    %3195 = vmatpush1.msra.mxu0 %v3175
    %3196 = vmatprep.subr.mxu0 0.0
    %3197 = vmatpush1.msra.mxu0 %v3176
    %3198 = vmatprep.subr.mxu0 0.0
    %3199 = vmatpush1.msra.mxu0 %v3177
    %3200 = vmatprep.subr.mxu0 0.0
    %3201 = vmatpush1.msra.mxu0 %v3178
    %3202 = vmatprep.subr.mxu0 0.0
    %3203 = vmatpush1.msra.mxu0 0.0
    %3204 = vmatprep.subr.mxu0 0.0
    %3205 = vmatpush1.msra.mxu0 0.0
    %3206 = vmatprep.subr.mxu0 0.0
    %3207 = vmatpush1.msra.mxu0 0.0
    %3208 = vmatprep.subr.mxu0 0.0
    %3209 = vmatpush1.msra.mxu0 0.0
    %3210 = vmatprep.subr.mxu0 0.0
    %3211 = vmatpush1.msra.mxu0 0.0
    %3212 = vmatprep.subr.mxu0 0.0
    %3213 = vmatpush1.msra.mxu0 0.0
    %3214 = vmatprep.subr.mxu0 0.0
    %3215 = vmatpush1.msra.mxu0 0.0
    %3216 = vmatprep.subr.mxu0 0.0
    %3217 = vmatpush1.msra.mxu0 0.0
    %3218 = vmatprep.subr.mxu0 0.0
    %3219 = vmatpush1.msra.mxu0 0.0
    %3220 = vmatprep.subr.mxu0 0.0
    %3221 = vmatpush1.msra.mxu0 0.0
    %3222 = vmatprep.subr.mxu0 0.0
    %3223 = vmatpush1.msra.mxu0 0.0
    %3224 = vmatprep.subr.mxu0 0.0
    %3225 = vmatpush1.msra.mxu0 0.0
    %3226 = vmatprep.subr.mxu0 0.0
    %3227 = vmatpush1.msra.mxu0 0.0
    %3228 = vmatprep.subr.mxu0 0.0
    %3229 = vmatpush1.msra.mxu0 0.0
    %3230 = vmatprep.subr.mxu0 0.0
    %3231 = vmatpush1.msra.mxu0 0.0
    %3232 = vmatprep.subr.mxu0 0.0
    %3233 = vmatpush1.msra.mxu0 0.0
    %3234 = vmatprep.subr.mxu0 0.0
    %3235 = vmatpush1.msra.mxu0 0.0
    %3236 = vmatprep.subr.mxu0 0.0
    %3237 = vmatpush1.msra.mxu0 0.0
    %3238 = vmatprep.subr.mxu0 0.0
    %3239 = vmatpush1.msra.mxu0 0.0
    %3240 = vmatprep.subr.mxu0 0.0
    %3241 = vmatpush1.msra.mxu0 0.0
    %3242 = vmatprep.subr.mxu0 0.0
    %3243 = vmatpush1.msra.mxu0 0.0
    %3244 = vmatprep.subr.mxu0 0.0
    %3245 = vmatpush1.msra.mxu0 0.0
    %3246 = vmatprep.subr.mxu0 0.0
    %3247 = vmatpush1.msra.mxu0 0.0
    %3248 = vmatprep.subr.mxu0 0.0
    %3249 = vmatpush1.msra.mxu0 0.0
    %3250 = vmatprep.mubr.f32.mxu0 0.0
    %3251 = vmatmul.mubr.f32.gmra.mrb[0].mxu0 %v3181
    %v3252 = vpop.f32.mrb[0].mxu0
    %v3253 = vadd.f32 0.0, %v3252
    %v3254 = vpop.f32.mrb[0].mxu0
    %3255 = vmatprep.mubr.f32.mxu0 0.0
    %3256 = vmatmul.mubr.f32.gmra.mrb[0].mxu0 %v3184
    %v3257 = vpop.f32.mrb[0].mxu0
    %v3258 = vadd.f32 0.0, %v3257
    %v3259 = vpop.f32.mrb[0].mxu0
    %3260 = vdwg.mxu0
    %v3261 = vadd.f32 %v3039, %v3253
    %v3262 = vadd.f32 %v3040, %v3258
    %3263 = vrot.lane.b32.xlu0 %v3037, 32
    %v3264 = vpop.permute.xlu0 %3263
    %v3266 = vadd.f32 %v3261, %v3264
    %v3267 = vadd.f32 %v3262, %v3264
    %s3268 = scalar_lea.vmem %s8, 4
    %v3269 = vld [vmem:[%s3268] sm:$0x3]
    %v3270 = vsel %vm54, %v3266, 0.0
    %3271 = vadd.xlane.f32.xlu0 %v3270
    %v3272 = vpop.xlane.xlu0 %3271
    %v3273 = vsel %vm54, %v3267, 0.0
    %3274 = vadd.xlane.f32.xlu0 %v3273
    %v3275 = vpop.xlane.xlu0 %3274
    %v3276 = vmul.f32 %v3272, %v61
    %v3277 = vmul.f32 %v3275, %v61
    %v3278 = vsub.f32 %v3266, %v3276
    %v3279 = vsub.f32 %v3267, %v3277
    %v3280 = vmul.f32 %v3278, %v3278
    %v3281 = vmul.f32 %v3279, %v3279
    %v3282 = vsel %vm54, %v3280, 0.0
    %3283 = vadd.xlane.f32.xlu0 %v3282
    %v3284 = vpop.xlane.xlu0 %3283
    %v3285 = vsel %vm54, %v3281, 0.0
    %3286 = vadd.xlane.f32.xlu0 %v3285
    %v3287 = vpop.xlane.xlu0 %3286
    %v3288 = vmul.f32 %v3284, %v61
    %v3289 = vmul.f32 %v3287, %v61
    %v3290 = vadd.f32 %v3288, 1e-05
    %v3291 = vadd.f32 %v3289, 1e-05
    %v3292 = vrsqrt.pop %v3290
    %v3293 = vrsqrt.pop %v3291
    %v3294 = vmul.f32 %v3278, %v3292
    %v3295 = vmul.f32 %v3279, %v3293
    %v3296 = vlaneseq
    %v3297 = vshrl.u32 %v3296, 7
    %v3298 = vsub.s32 0, %v3297
    %v3299 = vrot.slane %v3269, %v3298
    %v3300 = vmul.f32 %v3294, %v3299
    %v3301 = vmul.f32 %v3295, %v3299
    %v3302 = vlaneseq
    %v3303 = vshrl.u32 %v3302, 7
    %v3304 = vsub.s32 1, %v3303
    %v3305 = vrot.slane %v3269, %v3304
    %v3306 = vadd.f32 %v3300, %v3305
    %v3307 = vadd.f32 %v3301, %v3305
    %s3308 = scalar_lea.vmem %s2, 384
    %v3309 = vld [vmem:[%s3308] sm:$0xff]
    %v3310 = vld [vmem:[%s3308 + $0x8] sm:$0xff]
    %v3311 = vld [vmem:[%s3308 + $0x10] sm:$0xff]
    %v3312 = vld [vmem:[%s3308 + $0x18] sm:$0xff]
    %s3313 = scalar_lea.vmem %s3, 12
    %v3314 = vld [vmem:[%s3313] sm:$0x1]
    %v3316 = vlaneseq
    %v3317 = vshrl.u32 %v3316, 7
    %v3318 = vsub.s32 0, %v3317
    %v3319 = vrot.slane %v3314, %v3318
    %v3322 = vsel %vm54, %v3306, 0
    %v3325 = vsel %vm54, %v3307, 0
    %3327 = vmatprep.subr.mxu0 0.0
    %3328 = vmatpush1.msra.mxu0 %v3309
    %3329 = vmatprep.subr.mxu0 0.0
    %3330 = vmatpush1.msra.mxu0 %v3310
    %3331 = vmatprep.subr.mxu0 0.0
    %3332 = vmatpush1.msra.mxu0 %v3311
    %3333 = vmatprep.subr.mxu0 0.0
    %3334 = vmatpush1.msra.mxu0 %v3312
    %3335 = vmatprep.subr.mxu0 0.0
    %3336 = vmatpush1.msra.mxu0 0.0
    %3337 = vmatprep.subr.mxu0 0.0
    %3338 = vmatpush1.msra.mxu0 0.0
    %3339 = vmatprep.subr.mxu0 0.0
    %3340 = vmatpush1.msra.mxu0 0.0
    %3341 = vmatprep.subr.mxu0 0.0
    %3342 = vmatpush1.msra.mxu0 0.0
    %3343 = vmatprep.subr.mxu0 0.0
    %3344 = vmatpush1.msra.mxu0 0.0
    %3345 = vmatprep.subr.mxu0 0.0
    %3346 = vmatpush1.msra.mxu0 0.0
    %3347 = vmatprep.subr.mxu0 0.0
    %3348 = vmatpush1.msra.mxu0 0.0
    %3349 = vmatprep.subr.mxu0 0.0
    %3350 = vmatpush1.msra.mxu0 0.0
    %3351 = vmatprep.subr.mxu0 0.0
    %3352 = vmatpush1.msra.mxu0 0.0
    %3353 = vmatprep.subr.mxu0 0.0
    %3354 = vmatpush1.msra.mxu0 0.0
    %3355 = vmatprep.subr.mxu0 0.0
    %3356 = vmatpush1.msra.mxu0 0.0
    %3357 = vmatprep.subr.mxu0 0.0
    %3358 = vmatpush1.msra.mxu0 0.0
    %3359 = vmatprep.subr.mxu0 0.0
    %3360 = vmatpush1.msra.mxu0 0.0
    %3361 = vmatprep.subr.mxu0 0.0
    %3362 = vmatpush1.msra.mxu0 0.0
    %3363 = vmatprep.subr.mxu0 0.0
    %3364 = vmatpush1.msra.mxu0 0.0
    %3365 = vmatprep.subr.mxu0 0.0
    %3366 = vmatpush1.msra.mxu0 0.0
    %3367 = vmatprep.subr.mxu0 0.0
    %3368 = vmatpush1.msra.mxu0 0.0
    %3369 = vmatprep.subr.mxu0 0.0
    %3370 = vmatpush1.msra.mxu0 0.0
    %3371 = vmatprep.subr.mxu0 0.0
    %3372 = vmatpush1.msra.mxu0 0.0
    %3373 = vmatprep.subr.mxu0 0.0
    %3374 = vmatpush1.msra.mxu0 0.0
    %3375 = vmatprep.subr.mxu0 0.0
    %3376 = vmatpush1.msra.mxu0 0.0
    %3377 = vmatprep.subr.mxu0 0.0
    %3378 = vmatpush1.msra.mxu0 0.0
    %3379 = vmatprep.subr.mxu0 0.0
    %3380 = vmatpush1.msra.mxu0 0.0
    %3381 = vmatprep.subr.mxu0 0.0
    %3382 = vmatpush1.msra.mxu0 0.0
    %3383 = vmatprep.subr.mxu0 0.0
    %3384 = vmatpush1.msra.mxu0 0.0
    %3385 = vmatprep.subr.mxu0 0.0
    %3386 = vmatpush1.msra.mxu0 0.0
    %3387 = vmatprep.subr.mxu0 0.0
    %3388 = vmatpush1.msra.mxu0 0.0
    %3389 = vmatprep.subr.mxu0 0.0
    %3390 = vmatpush1.msra.mxu0 0.0
    %3391 = vmatprep.mubr.f32.mxu0 0.0
    %3392 = vmatmul.mubr.f32.gmra.mrb[0].mxu0 %v3322
    %v3393 = vpop.f32.mrb[0].mxu0
    %v3394 = vadd.f32 %v3319, %v3393
    %v3395 = vpop.f32.mrb[0].mxu0
    %3396 = vmatprep.mubr.f32.mxu0 0.0
    %3397 = vmatmul.mubr.f32.gmra.mrb[0].mxu0 %v3325
    %v3398 = vpop.f32.mrb[0].mxu0
    %v3399 = vadd.f32 %v3319, %v3398
    %v3400 = vpop.f32.mrb[0].mxu0
    %3401 = vdwg.mxu0
    %s3402 = scalar_lea.vmem %s2, 512
    %v3403 = vld [vmem:[%s3402] sm:$0xff]
    %v3404 = vld [vmem:[%s3402 + $0x8] sm:$0xff]
    %v3405 = vld [vmem:[%s3402 + $0x10] sm:$0xff]
    %v3406 = vld [vmem:[%s3402 + $0x18] sm:$0xff]
    %s3407 = scalar_lea.vmem %s3, 16
    %v3408 = vld [vmem:[%s3407] sm:$0x1]
    %v3410 = vlaneseq
    %v3411 = vshrl.u32 %v3410, 7
    %v3412 = vsub.s32 0, %v3411
    %v3413 = vrot.slane %v3408, %v3412
    %3415 = vmatprep.subr.mxu0 0.0
    %3416 = vmatpush1.msra.mxu0 %v3403
    %3417 = vmatprep.subr.mxu0 0.0
    %3418 = vmatpush1.msra.mxu0 %v3404
    %3419 = vmatprep.subr.mxu0 0.0
    %3420 = vmatpush1.msra.mxu0 %v3405
    %3421 = vmatprep.subr.mxu0 0.0
    %3422 = vmatpush1.msra.mxu0 %v3406
    %3423 = vmatprep.subr.mxu0 0.0
    %3424 = vmatpush1.msra.mxu0 0.0
    %3425 = vmatprep.subr.mxu0 0.0
    %3426 = vmatpush1.msra.mxu0 0.0
    %3427 = vmatprep.subr.mxu0 0.0
    %3428 = vmatpush1.msra.mxu0 0.0
    %3429 = vmatprep.subr.mxu0 0.0
    %3430 = vmatpush1.msra.mxu0 0.0
    %3431 = vmatprep.subr.mxu0 0.0
    %3432 = vmatpush1.msra.mxu0 0.0
    %3433 = vmatprep.subr.mxu0 0.0
    %3434 = vmatpush1.msra.mxu0 0.0
    %3435 = vmatprep.subr.mxu0 0.0
    %3436 = vmatpush1.msra.mxu0 0.0
    %3437 = vmatprep.subr.mxu0 0.0
    %3438 = vmatpush1.msra.mxu0 0.0
    %3439 = vmatprep.subr.mxu0 0.0
    %3440 = vmatpush1.msra.mxu0 0.0
    %3441 = vmatprep.subr.mxu0 0.0
    %3442 = vmatpush1.msra.mxu0 0.0
    %3443 = vmatprep.subr.mxu0 0.0
    %3444 = vmatpush1.msra.mxu0 0.0
    %3445 = vmatprep.subr.mxu0 0.0
    %3446 = vmatpush1.msra.mxu0 0.0
    %3447 = vmatprep.subr.mxu0 0.0
    %3448 = vmatpush1.msra.mxu0 0.0
    %3449 = vmatprep.subr.mxu0 0.0
    %3450 = vmatpush1.msra.mxu0 0.0
    %3451 = vmatprep.subr.mxu0 0.0
    %3452 = vmatpush1.msra.mxu0 0.0
    %3453 = vmatprep.subr.mxu0 0.0
    %3454 = vmatpush1.msra.mxu0 0.0
    %3455 = vmatprep.subr.mxu0 0.0
    %3456 = vmatpush1.msra.mxu0 0.0
    %3457 = vmatprep.subr.mxu0 0.0
    %3458 = vmatpush1.msra.mxu0 0.0
    %3459 = vmatprep.subr.mxu0 0.0
    %3460 = vmatpush1.msra.mxu0 0.0
    %3461 = vmatprep.subr.mxu0 0.0
    %3462 = vmatpush1.msra.mxu0 0.0
    %3463 = vmatprep.subr.mxu0 0.0
    %3464 = vmatpush1.msra.mxu0 0.0
    %3465 = vmatprep.subr.mxu0 0.0
    %3466 = vmatpush1.msra.mxu0 0.0
    %3467 = vmatprep.subr.mxu0 0.0
    %3468 = vmatpush1.msra.mxu0 0.0
    %3469 = vmatprep.subr.mxu0 0.0
    %3470 = vmatpush1.msra.mxu0 0.0
    %3471 = vmatprep.subr.mxu0 0.0
    %3472 = vmatpush1.msra.mxu0 0.0
    %3473 = vmatprep.subr.mxu0 0.0
    %3474 = vmatpush1.msra.mxu0 0.0
    %3475 = vmatprep.subr.mxu0 0.0
    %3476 = vmatpush1.msra.mxu0 0.0
    %3477 = vmatprep.subr.mxu0 0.0
    %3478 = vmatpush1.msra.mxu0 0.0
    %3479 = vmatprep.mubr.f32.mxu0 0.0
    %3480 = vmatmul.mubr.f32.gmra.mrb[0].mxu0 %v3322
    %v3481 = vpop.f32.mrb[0].mxu0
    %v3482 = vadd.f32 %v3413, %v3481
    %v3483 = vpop.f32.mrb[0].mxu0
    %3484 = vmatprep.mubr.f32.mxu0 0.0
    %3485 = vmatmul.mubr.f32.gmra.mrb[0].mxu0 %v3325
    %v3486 = vpop.f32.mrb[0].mxu0
    %v3487 = vadd.f32 %v3413, %v3486
    %v3488 = vpop.f32.mrb[0].mxu0
    %3489 = vdwg.mxu0
    %s3490 = scalar_lea.vmem %s2, 640
    %v3491 = vld [vmem:[%s3490] sm:$0xff]
    %v3492 = vld [vmem:[%s3490 + $0x8] sm:$0xff]
    %v3493 = vld [vmem:[%s3490 + $0x10] sm:$0xff]
    %v3494 = vld [vmem:[%s3490 + $0x18] sm:$0xff]
    %s3495 = scalar_lea.vmem %s3, 20
    %v3496 = vld [vmem:[%s3495] sm:$0x1]
    %v3498 = vlaneseq
    %v3499 = vshrl.u32 %v3498, 7
    %v3500 = vsub.s32 0, %v3499
    %v3501 = vrot.slane %v3496, %v3500
    %3503 = vmatprep.subr.mxu0 0.0
    %3504 = vmatpush1.msra.mxu0 %v3491
    %3505 = vmatprep.subr.mxu0 0.0
    %3506 = vmatpush1.msra.mxu0 %v3492
    %3507 = vmatprep.subr.mxu0 0.0
    %3508 = vmatpush1.msra.mxu0 %v3493
    %3509 = vmatprep.subr.mxu0 0.0
    %3510 = vmatpush1.msra.mxu0 %v3494
    %3511 = vmatprep.subr.mxu0 0.0
    %3512 = vmatpush1.msra.mxu0 0.0
    %3513 = vmatprep.subr.mxu0 0.0
    %3514 = vmatpush1.msra.mxu0 0.0
    %3515 = vmatprep.subr.mxu0 0.0
    %3516 = vmatpush1.msra.mxu0 0.0
    %3517 = vmatprep.subr.mxu0 0.0
    %3518 = vmatpush1.msra.mxu0 0.0
    %3519 = vmatprep.subr.mxu0 0.0
    %3520 = vmatpush1.msra.mxu0 0.0
    %3521 = vmatprep.subr.mxu0 0.0
    %3522 = vmatpush1.msra.mxu0 0.0
    %3523 = vmatprep.subr.mxu0 0.0
    %3524 = vmatpush1.msra.mxu0 0.0
    %3525 = vmatprep.subr.mxu0 0.0
    %3526 = vmatpush1.msra.mxu0 0.0
    %3527 = vmatprep.subr.mxu0 0.0
    %3528 = vmatpush1.msra.mxu0 0.0
    %3529 = vmatprep.subr.mxu0 0.0
    %3530 = vmatpush1.msra.mxu0 0.0
    %3531 = vmatprep.subr.mxu0 0.0
    %3532 = vmatpush1.msra.mxu0 0.0
    %3533 = vmatprep.subr.mxu0 0.0
    %3534 = vmatpush1.msra.mxu0 0.0
    %3535 = vmatprep.subr.mxu0 0.0
    %3536 = vmatpush1.msra.mxu0 0.0
    %3537 = vmatprep.subr.mxu0 0.0
    %3538 = vmatpush1.msra.mxu0 0.0
    %3539 = vmatprep.subr.mxu0 0.0
    %3540 = vmatpush1.msra.mxu0 0.0
    %3541 = vmatprep.subr.mxu0 0.0
    %3542 = vmatpush1.msra.mxu0 0.0
    %3543 = vmatprep.subr.mxu0 0.0
    %3544 = vmatpush1.msra.mxu0 0.0
    %3545 = vmatprep.subr.mxu0 0.0
    %3546 = vmatpush1.msra.mxu0 0.0
    %3547 = vmatprep.subr.mxu0 0.0
    %3548 = vmatpush1.msra.mxu0 0.0
    %3549 = vmatprep.subr.mxu0 0.0
    %3550 = vmatpush1.msra.mxu0 0.0
    %3551 = vmatprep.subr.mxu0 0.0
    %3552 = vmatpush1.msra.mxu0 0.0
    %3553 = vmatprep.subr.mxu0 0.0
    %3554 = vmatpush1.msra.mxu0 0.0
    %3555 = vmatprep.subr.mxu0 0.0
    %3556 = vmatpush1.msra.mxu0 0.0
    %3557 = vmatprep.subr.mxu0 0.0
    %3558 = vmatpush1.msra.mxu0 0.0
    %3559 = vmatprep.subr.mxu0 0.0
    %3560 = vmatpush1.msra.mxu0 0.0
    %3561 = vmatprep.subr.mxu0 0.0
    %3562 = vmatpush1.msra.mxu0 0.0
    %3563 = vmatprep.subr.mxu0 0.0
    %3564 = vmatpush1.msra.mxu0 0.0
    %3565 = vmatprep.subr.mxu0 0.0
    %3566 = vmatpush1.msra.mxu0 0.0
    %3567 = vmatprep.mubr.f32.mxu0 0.0
    %3568 = vmatmul.mubr.f32.gmra.mrb[0].mxu0 %v3322
    %v3569 = vpop.f32.mrb[0].mxu0
    %v3570 = vadd.f32 %v3501, %v3569
    %v3571 = vpop.f32.mrb[0].mxu0
    %3572 = vmatprep.mubr.f32.mxu0 0.0
    %3573 = vmatmul.mubr.f32.gmra.mrb[0].mxu0 %v3325
    %v3574 = vpop.f32.mrb[0].mxu0
    %v3575 = vadd.f32 %v3501, %v3574
    %v3576 = vpop.f32.mrb[0].mxu0
    %3577 = vdwg.mxu0
    %s3578 = scalar_lea.vmem %s2, 416
    %v3579 = vld [vmem:[%s3578] sm:$0xff]
    %v3580 = vld [vmem:[%s3578 + $0x8] sm:$0xff]
    %v3581 = vld [vmem:[%s3578 + $0x10] sm:$0xff]
    %v3582 = vld [vmem:[%s3578 + $0x18] sm:$0xff]
    %s3583 = scalar_lea.vmem %s3, 13
    %v3584 = vld [vmem:[%s3583] sm:$0x1]
    %v3586 = vlaneseq
    %v3587 = vshrl.u32 %v3586, 7
    %v3588 = vsub.s32 0, %v3587
    %v3589 = vrot.slane %v3584, %v3588
    %3591 = vmatprep.subr.mxu0 0.0
    %3592 = vmatpush1.msra.mxu0 %v3579
    %3593 = vmatprep.subr.mxu0 0.0
    %3594 = vmatpush1.msra.mxu0 %v3580
    %3595 = vmatprep.subr.mxu0 0.0
    %3596 = vmatpush1.msra.mxu0 %v3581
    %3597 = vmatprep.subr.mxu0 0.0
    %3598 = vmatpush1.msra.mxu0 %v3582
    %3599 = vmatprep.subr.mxu0 0.0
    %3600 = vmatpush1.msra.mxu0 0.0
    %3601 = vmatprep.subr.mxu0 0.0
    %3602 = vmatpush1.msra.mxu0 0.0
    %3603 = vmatprep.subr.mxu0 0.0
    %3604 = vmatpush1.msra.mxu0 0.0
    %3605 = vmatprep.subr.mxu0 0.0
    %3606 = vmatpush1.msra.mxu0 0.0
    %3607 = vmatprep.subr.mxu0 0.0
    %3608 = vmatpush1.msra.mxu0 0.0
    %3609 = vmatprep.subr.mxu0 0.0
    %3610 = vmatpush1.msra.mxu0 0.0
    %3611 = vmatprep.subr.mxu0 0.0
    %3612 = vmatpush1.msra.mxu0 0.0
    %3613 = vmatprep.subr.mxu0 0.0
    %3614 = vmatpush1.msra.mxu0 0.0
    %3615 = vmatprep.subr.mxu0 0.0
    %3616 = vmatpush1.msra.mxu0 0.0
    %3617 = vmatprep.subr.mxu0 0.0
    %3618 = vmatpush1.msra.mxu0 0.0
    %3619 = vmatprep.subr.mxu0 0.0
    %3620 = vmatpush1.msra.mxu0 0.0
    %3621 = vmatprep.subr.mxu0 0.0
    %3622 = vmatpush1.msra.mxu0 0.0
    %3623 = vmatprep.subr.mxu0 0.0
    %3624 = vmatpush1.msra.mxu0 0.0
    %3625 = vmatprep.subr.mxu0 0.0
    %3626 = vmatpush1.msra.mxu0 0.0
    %3627 = vmatprep.subr.mxu0 0.0
    %3628 = vmatpush1.msra.mxu0 0.0
    %3629 = vmatprep.subr.mxu0 0.0
    %3630 = vmatpush1.msra.mxu0 0.0
    %3631 = vmatprep.subr.mxu0 0.0
    %3632 = vmatpush1.msra.mxu0 0.0
    %3633 = vmatprep.subr.mxu0 0.0
    %3634 = vmatpush1.msra.mxu0 0.0
    %3635 = vmatprep.subr.mxu0 0.0
    %3636 = vmatpush1.msra.mxu0 0.0
    %3637 = vmatprep.subr.mxu0 0.0
    %3638 = vmatpush1.msra.mxu0 0.0
    %3639 = vmatprep.subr.mxu0 0.0
    %3640 = vmatpush1.msra.mxu0 0.0
    %3641 = vmatprep.subr.mxu0 0.0
    %3642 = vmatpush1.msra.mxu0 0.0
    %3643 = vmatprep.subr.mxu0 0.0
    %3644 = vmatpush1.msra.mxu0 0.0
    %3645 = vmatprep.subr.mxu0 0.0
    %3646 = vmatpush1.msra.mxu0 0.0
    %3647 = vmatprep.subr.mxu0 0.0
    %3648 = vmatpush1.msra.mxu0 0.0
    %3649 = vmatprep.subr.mxu0 0.0
    %3650 = vmatpush1.msra.mxu0 0.0
    %3651 = vmatprep.subr.mxu0 0.0
    %3652 = vmatpush1.msra.mxu0 0.0
    %3653 = vmatprep.subr.mxu0 0.0
    %3654 = vmatpush1.msra.mxu0 0.0
    %3655 = vmatprep.mubr.f32.mxu0 0.0
    %3656 = vmatmul.mubr.f32.gmra.mrb[0].mxu0 %v3322
    %v3657 = vpop.f32.mrb[0].mxu0
    %v3658 = vadd.f32 %v3589, %v3657
    %v3659 = vpop.f32.mrb[0].mxu0
    %3660 = vmatprep.mubr.f32.mxu0 0.0
    %3661 = vmatmul.mubr.f32.gmra.mrb[0].mxu0 %v3325
    %v3662 = vpop.f32.mrb[0].mxu0
    %v3663 = vadd.f32 %v3589, %v3662
    %v3664 = vpop.f32.mrb[0].mxu0
    %3665 = vdwg.mxu0
    %s3666 = scalar_lea.vmem %s2, 544
    %v3667 = vld [vmem:[%s3666] sm:$0xff]
    %v3668 = vld [vmem:[%s3666 + $0x8] sm:$0xff]
    %v3669 = vld [vmem:[%s3666 + $0x10] sm:$0xff]
    %v3670 = vld [vmem:[%s3666 + $0x18] sm:$0xff]
    %s3671 = scalar_lea.vmem %s3, 17
    %v3672 = vld [vmem:[%s3671] sm:$0x1]
    %v3674 = vlaneseq
    %v3675 = vshrl.u32 %v3674, 7
    %v3676 = vsub.s32 0, %v3675
    %v3677 = vrot.slane %v3672, %v3676
    %3679 = vmatprep.subr.mxu0 0.0
    %3680 = vmatpush1.msra.mxu0 %v3667
    %3681 = vmatprep.subr.mxu0 0.0
    %3682 = vmatpush1.msra.mxu0 %v3668
    %3683 = vmatprep.subr.mxu0 0.0
    %3684 = vmatpush1.msra.mxu0 %v3669
    %3685 = vmatprep.subr.mxu0 0.0
    %3686 = vmatpush1.msra.mxu0 %v3670
    %3687 = vmatprep.subr.mxu0 0.0
    %3688 = vmatpush1.msra.mxu0 0.0
    %3689 = vmatprep.subr.mxu0 0.0
    %3690 = vmatpush1.msra.mxu0 0.0
    %3691 = vmatprep.subr.mxu0 0.0
    %3692 = vmatpush1.msra.mxu0 0.0
    %3693 = vmatprep.subr.mxu0 0.0
    %3694 = vmatpush1.msra.mxu0 0.0
    %3695 = vmatprep.subr.mxu0 0.0
    %3696 = vmatpush1.msra.mxu0 0.0
    %3697 = vmatprep.subr.mxu0 0.0
    %3698 = vmatpush1.msra.mxu0 0.0
    %3699 = vmatprep.subr.mxu0 0.0
    %3700 = vmatpush1.msra.mxu0 0.0
    %3701 = vmatprep.subr.mxu0 0.0
    %3702 = vmatpush1.msra.mxu0 0.0
    %3703 = vmatprep.subr.mxu0 0.0
    %3704 = vmatpush1.msra.mxu0 0.0
    %3705 = vmatprep.subr.mxu0 0.0
    %3706 = vmatpush1.msra.mxu0 0.0
    %3707 = vmatprep.subr.mxu0 0.0
    %3708 = vmatpush1.msra.mxu0 0.0
    %3709 = vmatprep.subr.mxu0 0.0
    %3710 = vmatpush1.msra.mxu0 0.0
    %3711 = vmatprep.subr.mxu0 0.0
    %3712 = vmatpush1.msra.mxu0 0.0
    %3713 = vmatprep.subr.mxu0 0.0
    %3714 = vmatpush1.msra.mxu0 0.0
    %3715 = vmatprep.subr.mxu0 0.0
    %3716 = vmatpush1.msra.mxu0 0.0
    %3717 = vmatprep.subr.mxu0 0.0
    %3718 = vmatpush1.msra.mxu0 0.0
    %3719 = vmatprep.subr.mxu0 0.0
    %3720 = vmatpush1.msra.mxu0 0.0
    %3721 = vmatprep.subr.mxu0 0.0
    %3722 = vmatpush1.msra.mxu0 0.0
    %3723 = vmatprep.subr.mxu0 0.0
    %3724 = vmatpush1.msra.mxu0 0.0
    %3725 = vmatprep.subr.mxu0 0.0
    %3726 = vmatpush1.msra.mxu0 0.0
    %3727 = vmatprep.subr.mxu0 0.0
    %3728 = vmatpush1.msra.mxu0 0.0
    %3729 = vmatprep.subr.mxu0 0.0
    %3730 = vmatpush1.msra.mxu0 0.0
    %3731 = vmatprep.subr.mxu0 0.0
    %3732 = vmatpush1.msra.mxu0 0.0
    %3733 = vmatprep.subr.mxu0 0.0
    %3734 = vmatpush1.msra.mxu0 0.0
    %3735 = vmatprep.subr.mxu0 0.0
    %3736 = vmatpush1.msra.mxu0 0.0
    %3737 = vmatprep.subr.mxu0 0.0
    %3738 = vmatpush1.msra.mxu0 0.0
    %3739 = vmatprep.subr.mxu0 0.0
    %3740 = vmatpush1.msra.mxu0 0.0
    %3741 = vmatprep.subr.mxu0 0.0
    %3742 = vmatpush1.msra.mxu0 0.0
    %3743 = vmatprep.mubr.f32.mxu0 0.0
    %3744 = vmatmul.mubr.f32.gmra.mrb[0].mxu0 %v3322
    %v3745 = vpop.f32.mrb[0].mxu0
    %v3746 = vadd.f32 %v3677, %v3745
    %v3747 = vpop.f32.mrb[0].mxu0
    %3748 = vmatprep.mubr.f32.mxu0 0.0
    %3749 = vmatmul.mubr.f32.gmra.mrb[0].mxu0 %v3325
    %v3750 = vpop.f32.mrb[0].mxu0
    %v3751 = vadd.f32 %v3677, %v3750
    %v3752 = vpop.f32.mrb[0].mxu0
    %3753 = vdwg.mxu0
    %s3754 = scalar_lea.vmem %s2, 672
    %v3755 = vld [vmem:[%s3754] sm:$0xff]
    %v3756 = vld [vmem:[%s3754 + $0x8] sm:$0xff]
    %v3757 = vld [vmem:[%s3754 + $0x10] sm:$0xff]
    %v3758 = vld [vmem:[%s3754 + $0x18] sm:$0xff]
    %s3759 = scalar_lea.vmem %s3, 21
    %v3760 = vld [vmem:[%s3759] sm:$0x1]
    %v3762 = vlaneseq
    %v3763 = vshrl.u32 %v3762, 7
    %v3764 = vsub.s32 0, %v3763
    %v3765 = vrot.slane %v3760, %v3764
    %3767 = vmatprep.subr.mxu0 0.0
    %3768 = vmatpush1.msra.mxu0 %v3755
    %3769 = vmatprep.subr.mxu0 0.0
    %3770 = vmatpush1.msra.mxu0 %v3756
    %3771 = vmatprep.subr.mxu0 0.0
    %3772 = vmatpush1.msra.mxu0 %v3757
    %3773 = vmatprep.subr.mxu0 0.0
    %3774 = vmatpush1.msra.mxu0 %v3758
    %3775 = vmatprep.subr.mxu0 0.0
    %3776 = vmatpush1.msra.mxu0 0.0
    %3777 = vmatprep.subr.mxu0 0.0
    %3778 = vmatpush1.msra.mxu0 0.0
    %3779 = vmatprep.subr.mxu0 0.0
    %3780 = vmatpush1.msra.mxu0 0.0
    %3781 = vmatprep.subr.mxu0 0.0
    %3782 = vmatpush1.msra.mxu0 0.0
    %3783 = vmatprep.subr.mxu0 0.0
    %3784 = vmatpush1.msra.mxu0 0.0
    %3785 = vmatprep.subr.mxu0 0.0
    %3786 = vmatpush1.msra.mxu0 0.0
    %3787 = vmatprep.subr.mxu0 0.0
    %3788 = vmatpush1.msra.mxu0 0.0
    %3789 = vmatprep.subr.mxu0 0.0
    %3790 = vmatpush1.msra.mxu0 0.0
    %3791 = vmatprep.subr.mxu0 0.0
    %3792 = vmatpush1.msra.mxu0 0.0
    %3793 = vmatprep.subr.mxu0 0.0
    %3794 = vmatpush1.msra.mxu0 0.0
    %3795 = vmatprep.subr.mxu0 0.0
    %3796 = vmatpush1.msra.mxu0 0.0
    %3797 = vmatprep.subr.mxu0 0.0
    %3798 = vmatpush1.msra.mxu0 0.0
    %3799 = vmatprep.subr.mxu0 0.0
    %3800 = vmatpush1.msra.mxu0 0.0
    %3801 = vmatprep.subr.mxu0 0.0
    %3802 = vmatpush1.msra.mxu0 0.0
    %3803 = vmatprep.subr.mxu0 0.0
    %3804 = vmatpush1.msra.mxu0 0.0
    %3805 = vmatprep.subr.mxu0 0.0
    %3806 = vmatpush1.msra.mxu0 0.0
    %3807 = vmatprep.subr.mxu0 0.0
    %3808 = vmatpush1.msra.mxu0 0.0
    %3809 = vmatprep.subr.mxu0 0.0
    %3810 = vmatpush1.msra.mxu0 0.0
    %3811 = vmatprep.subr.mxu0 0.0
    %3812 = vmatpush1.msra.mxu0 0.0
    %3813 = vmatprep.subr.mxu0 0.0
    %3814 = vmatpush1.msra.mxu0 0.0
    %3815 = vmatprep.subr.mxu0 0.0
    %3816 = vmatpush1.msra.mxu0 0.0
    %3817 = vmatprep.subr.mxu0 0.0
    %3818 = vmatpush1.msra.mxu0 0.0
    %3819 = vmatprep.subr.mxu0 0.0
    %3820 = vmatpush1.msra.mxu0 0.0
    %3821 = vmatprep.subr.mxu0 0.0
    %3822 = vmatpush1.msra.mxu0 0.0
    %3823 = vmatprep.subr.mxu0 0.0
    %3824 = vmatpush1.msra.mxu0 0.0
    %3825 = vmatprep.subr.mxu0 0.0
    %3826 = vmatpush1.msra.mxu0 0.0
    %3827 = vmatprep.subr.mxu0 0.0
    %3828 = vmatpush1.msra.mxu0 0.0
    %3829 = vmatprep.subr.mxu0 0.0
    %3830 = vmatpush1.msra.mxu0 0.0
    %3831 = vmatprep.mubr.f32.mxu0 0.0
    %3832 = vmatmul.mubr.f32.gmra.mrb[0].mxu0 %v3322
    %v3833 = vpop.f32.mrb[0].mxu0
    %v3834 = vadd.f32 %v3765, %v3833
    %v3835 = vpop.f32.mrb[0].mxu0
    %3836 = vmatprep.mubr.f32.mxu0 0.0
    %3837 = vmatmul.mubr.f32.gmra.mrb[0].mxu0 %v3325
    %v3838 = vpop.f32.mrb[0].mxu0
    %v3839 = vadd.f32 %v3765, %v3838
    %v3840 = vpop.f32.mrb[0].mxu0
    %3841 = vdwg.mxu0
    %s3842 = scalar_lea.vmem %s2, 448
    %v3843 = vld [vmem:[%s3842] sm:$0xff]
    %v3844 = vld [vmem:[%s3842 + $0x8] sm:$0xff]
    %v3845 = vld [vmem:[%s3842 + $0x10] sm:$0xff]
    %v3846 = vld [vmem:[%s3842 + $0x18] sm:$0xff]
    %s3847 = scalar_lea.vmem %s3, 14
    %v3848 = vld [vmem:[%s3847] sm:$0x1]
    %v3850 = vlaneseq
    %v3851 = vshrl.u32 %v3850, 7
    %v3852 = vsub.s32 0, %v3851
    %v3853 = vrot.slane %v3848, %v3852
    %3855 = vmatprep.subr.mxu0 0.0
    %3856 = vmatpush1.msra.mxu0 %v3843
    %3857 = vmatprep.subr.mxu0 0.0
    %3858 = vmatpush1.msra.mxu0 %v3844
    %3859 = vmatprep.subr.mxu0 0.0
    %3860 = vmatpush1.msra.mxu0 %v3845
    %3861 = vmatprep.subr.mxu0 0.0
    %3862 = vmatpush1.msra.mxu0 %v3846
    %3863 = vmatprep.subr.mxu0 0.0
    %3864 = vmatpush1.msra.mxu0 0.0
    %3865 = vmatprep.subr.mxu0 0.0
    %3866 = vmatpush1.msra.mxu0 0.0
    %3867 = vmatprep.subr.mxu0 0.0
    %3868 = vmatpush1.msra.mxu0 0.0
    %3869 = vmatprep.subr.mxu0 0.0
    %3870 = vmatpush1.msra.mxu0 0.0
    %3871 = vmatprep.subr.mxu0 0.0
    %3872 = vmatpush1.msra.mxu0 0.0
    %3873 = vmatprep.subr.mxu0 0.0
    %3874 = vmatpush1.msra.mxu0 0.0
    %3875 = vmatprep.subr.mxu0 0.0
    %3876 = vmatpush1.msra.mxu0 0.0
    %3877 = vmatprep.subr.mxu0 0.0
    %3878 = vmatpush1.msra.mxu0 0.0
    %3879 = vmatprep.subr.mxu0 0.0
    %3880 = vmatpush1.msra.mxu0 0.0
    %3881 = vmatprep.subr.mxu0 0.0
    %3882 = vmatpush1.msra.mxu0 0.0
    %3883 = vmatprep.subr.mxu0 0.0
    %3884 = vmatpush1.msra.mxu0 0.0
    %3885 = vmatprep.subr.mxu0 0.0
    %3886 = vmatpush1.msra.mxu0 0.0
    %3887 = vmatprep.subr.mxu0 0.0
    %3888 = vmatpush1.msra.mxu0 0.0
    %3889 = vmatprep.subr.mxu0 0.0
    %3890 = vmatpush1.msra.mxu0 0.0
    %3891 = vmatprep.subr.mxu0 0.0
    %3892 = vmatpush1.msra.mxu0 0.0
    %3893 = vmatprep.subr.mxu0 0.0
    %3894 = vmatpush1.msra.mxu0 0.0
    %3895 = vmatprep.subr.mxu0 0.0
    %3896 = vmatpush1.msra.mxu0 0.0
    %3897 = vmatprep.subr.mxu0 0.0
    %3898 = vmatpush1.msra.mxu0 0.0
    %3899 = vmatprep.subr.mxu0 0.0
    %3900 = vmatpush1.msra.mxu0 0.0
    %3901 = vmatprep.subr.mxu0 0.0
    %3902 = vmatpush1.msra.mxu0 0.0
    %3903 = vmatprep.subr.mxu0 0.0
    %3904 = vmatpush1.msra.mxu0 0.0
    %3905 = vmatprep.subr.mxu0 0.0
    %3906 = vmatpush1.msra.mxu0 0.0
    %3907 = vmatprep.subr.mxu0 0.0
    %3908 = vmatpush1.msra.mxu0 0.0
    %3909 = vmatprep.subr.mxu0 0.0
    %3910 = vmatpush1.msra.mxu0 0.0
    %3911 = vmatprep.subr.mxu0 0.0
    %3912 = vmatpush1.msra.mxu0 0.0
    %3913 = vmatprep.subr.mxu0 0.0
    %3914 = vmatpush1.msra.mxu0 0.0
    %3915 = vmatprep.subr.mxu0 0.0
    %3916 = vmatpush1.msra.mxu0 0.0
    %3917 = vmatprep.subr.mxu0 0.0
    %3918 = vmatpush1.msra.mxu0 0.0
    %3919 = vmatprep.mubr.f32.mxu0 0.0
    %3920 = vmatmul.mubr.f32.gmra.mrb[0].mxu0 %v3322
    %v3921 = vpop.f32.mrb[0].mxu0
    %v3922 = vadd.f32 %v3853, %v3921
    %v3923 = vpop.f32.mrb[0].mxu0
    %3924 = vmatprep.mubr.f32.mxu0 0.0
    %3925 = vmatmul.mubr.f32.gmra.mrb[0].mxu0 %v3325
    %v3926 = vpop.f32.mrb[0].mxu0
    %v3927 = vadd.f32 %v3853, %v3926
    %v3928 = vpop.f32.mrb[0].mxu0
    %3929 = vdwg.mxu0
    %s3930 = scalar_lea.vmem %s2, 576
    %v3931 = vld [vmem:[%s3930] sm:$0xff]
    %v3932 = vld [vmem:[%s3930 + $0x8] sm:$0xff]
    %v3933 = vld [vmem:[%s3930 + $0x10] sm:$0xff]
    %v3934 = vld [vmem:[%s3930 + $0x18] sm:$0xff]
    %s3935 = scalar_lea.vmem %s3, 18
    %v3936 = vld [vmem:[%s3935] sm:$0x1]
    %v3938 = vlaneseq
    %v3939 = vshrl.u32 %v3938, 7
    %v3940 = vsub.s32 0, %v3939
    %v3941 = vrot.slane %v3936, %v3940
    %3943 = vmatprep.subr.mxu0 0.0
    %3944 = vmatpush1.msra.mxu0 %v3931
    %3945 = vmatprep.subr.mxu0 0.0
    %3946 = vmatpush1.msra.mxu0 %v3932
    %3947 = vmatprep.subr.mxu0 0.0
    %3948 = vmatpush1.msra.mxu0 %v3933
    %3949 = vmatprep.subr.mxu0 0.0
    %3950 = vmatpush1.msra.mxu0 %v3934
    %3951 = vmatprep.subr.mxu0 0.0
    %3952 = vmatpush1.msra.mxu0 0.0
    %3953 = vmatprep.subr.mxu0 0.0
    %3954 = vmatpush1.msra.mxu0 0.0
    %3955 = vmatprep.subr.mxu0 0.0
    %3956 = vmatpush1.msra.mxu0 0.0
    %3957 = vmatprep.subr.mxu0 0.0
    %3958 = vmatpush1.msra.mxu0 0.0
    %3959 = vmatprep.subr.mxu0 0.0
    %3960 = vmatpush1.msra.mxu0 0.0
    %3961 = vmatprep.subr.mxu0 0.0
    %3962 = vmatpush1.msra.mxu0 0.0
    %3963 = vmatprep.subr.mxu0 0.0
    %3964 = vmatpush1.msra.mxu0 0.0
    %3965 = vmatprep.subr.mxu0 0.0
    %3966 = vmatpush1.msra.mxu0 0.0
    %3967 = vmatprep.subr.mxu0 0.0
    %3968 = vmatpush1.msra.mxu0 0.0
    %3969 = vmatprep.subr.mxu0 0.0
    %3970 = vmatpush1.msra.mxu0 0.0
    %3971 = vmatprep.subr.mxu0 0.0
    %3972 = vmatpush1.msra.mxu0 0.0
    %3973 = vmatprep.subr.mxu0 0.0
    %3974 = vmatpush1.msra.mxu0 0.0
    %3975 = vmatprep.subr.mxu0 0.0
    %3976 = vmatpush1.msra.mxu0 0.0
    %3977 = vmatprep.subr.mxu0 0.0
    %3978 = vmatpush1.msra.mxu0 0.0
    %3979 = vmatprep.subr.mxu0 0.0
    %3980 = vmatpush1.msra.mxu0 0.0
    %3981 = vmatprep.subr.mxu0 0.0
    %3982 = vmatpush1.msra.mxu0 0.0
    %3983 = vmatprep.subr.mxu0 0.0
    %3984 = vmatpush1.msra.mxu0 0.0
    %3985 = vmatprep.subr.mxu0 0.0
    %3986 = vmatpush1.msra.mxu0 0.0
    %3987 = vmatprep.subr.mxu0 0.0
    %3988 = vmatpush1.msra.mxu0 0.0
    %3989 = vmatprep.subr.mxu0 0.0
    %3990 = vmatpush1.msra.mxu0 0.0
    %3991 = vmatprep.subr.mxu0 0.0
    %3992 = vmatpush1.msra.mxu0 0.0
    %3993 = vmatprep.subr.mxu0 0.0
    %3994 = vmatpush1.msra.mxu0 0.0
    %3995 = vmatprep.subr.mxu0 0.0
    %3996 = vmatpush1.msra.mxu0 0.0
    %3997 = vmatprep.subr.mxu0 0.0
    %3998 = vmatpush1.msra.mxu0 0.0
    %3999 = vmatprep.subr.mxu0 0.0
    %4000 = vmatpush1.msra.mxu0 0.0
    %4001 = vmatprep.subr.mxu0 0.0
    %4002 = vmatpush1.msra.mxu0 0.0
    %4003 = vmatprep.subr.mxu0 0.0
    %4004 = vmatpush1.msra.mxu0 0.0
    %4005 = vmatprep.subr.mxu0 0.0
    %4006 = vmatpush1.msra.mxu0 0.0
    %4007 = vmatprep.mubr.f32.mxu0 0.0
    %4008 = vmatmul.mubr.f32.gmra.mrb[0].mxu0 %v3322
    %v4009 = vpop.f32.mrb[0].mxu0
    %v4010 = vadd.f32 %v3941, %v4009
    %v4011 = vpop.f32.mrb[0].mxu0
    %4012 = vmatprep.mubr.f32.mxu0 0.0
    %4013 = vmatmul.mubr.f32.gmra.mrb[0].mxu0 %v3325
    %v4014 = vpop.f32.mrb[0].mxu0
    %v4015 = vadd.f32 %v3941, %v4014
    %v4016 = vpop.f32.mrb[0].mxu0
    %4017 = vdwg.mxu0
    %s4018 = scalar_lea.vmem %s2, 704
    %v4019 = vld [vmem:[%s4018] sm:$0xff]
    %v4020 = vld [vmem:[%s4018 + $0x8] sm:$0xff]
    %v4021 = vld [vmem:[%s4018 + $0x10] sm:$0xff]
    %v4022 = vld [vmem:[%s4018 + $0x18] sm:$0xff]
    %s4023 = scalar_lea.vmem %s3, 22
    %v4024 = vld [vmem:[%s4023] sm:$0x1]
    %v4026 = vlaneseq
    %v4027 = vshrl.u32 %v4026, 7
    %v4028 = vsub.s32 0, %v4027
    %v4029 = vrot.slane %v4024, %v4028
    %4031 = vmatprep.subr.mxu0 0.0
    %4032 = vmatpush1.msra.mxu0 %v4019
    %4033 = vmatprep.subr.mxu0 0.0
    %4034 = vmatpush1.msra.mxu0 %v4020
    %4035 = vmatprep.subr.mxu0 0.0
    %4036 = vmatpush1.msra.mxu0 %v4021
    %4037 = vmatprep.subr.mxu0 0.0
    %4038 = vmatpush1.msra.mxu0 %v4022
    %4039 = vmatprep.subr.mxu0 0.0
    %4040 = vmatpush1.msra.mxu0 0.0
    %4041 = vmatprep.subr.mxu0 0.0
    %4042 = vmatpush1.msra.mxu0 0.0
    %4043 = vmatprep.subr.mxu0 0.0
    %4044 = vmatpush1.msra.mxu0 0.0
    %4045 = vmatprep.subr.mxu0 0.0
    %4046 = vmatpush1.msra.mxu0 0.0
    %4047 = vmatprep.subr.mxu0 0.0
    %4048 = vmatpush1.msra.mxu0 0.0
    %4049 = vmatprep.subr.mxu0 0.0
    %4050 = vmatpush1.msra.mxu0 0.0
    %4051 = vmatprep.subr.mxu0 0.0
    %4052 = vmatpush1.msra.mxu0 0.0
    %4053 = vmatprep.subr.mxu0 0.0
    %4054 = vmatpush1.msra.mxu0 0.0
    %4055 = vmatprep.subr.mxu0 0.0
    %4056 = vmatpush1.msra.mxu0 0.0
    %4057 = vmatprep.subr.mxu0 0.0
    %4058 = vmatpush1.msra.mxu0 0.0
    %4059 = vmatprep.subr.mxu0 0.0
    %4060 = vmatpush1.msra.mxu0 0.0
    %4061 = vmatprep.subr.mxu0 0.0
    %4062 = vmatpush1.msra.mxu0 0.0
    %4063 = vmatprep.subr.mxu0 0.0
    %4064 = vmatpush1.msra.mxu0 0.0
    %4065 = vmatprep.subr.mxu0 0.0
    %4066 = vmatpush1.msra.mxu0 0.0
    %4067 = vmatprep.subr.mxu0 0.0
    %4068 = vmatpush1.msra.mxu0 0.0
    %4069 = vmatprep.subr.mxu0 0.0
    %4070 = vmatpush1.msra.mxu0 0.0
    %4071 = vmatprep.subr.mxu0 0.0
    %4072 = vmatpush1.msra.mxu0 0.0
    %4073 = vmatprep.subr.mxu0 0.0
    %4074 = vmatpush1.msra.mxu0 0.0
    %4075 = vmatprep.subr.mxu0 0.0
    %4076 = vmatpush1.msra.mxu0 0.0
    %4077 = vmatprep.subr.mxu0 0.0
    %4078 = vmatpush1.msra.mxu0 0.0
    %4079 = vmatprep.subr.mxu0 0.0
    %4080 = vmatpush1.msra.mxu0 0.0
    %4081 = vmatprep.subr.mxu0 0.0
    %4082 = vmatpush1.msra.mxu0 0.0
    %4083 = vmatprep.subr.mxu0 0.0
    %4084 = vmatpush1.msra.mxu0 0.0
    %4085 = vmatprep.subr.mxu0 0.0
    %4086 = vmatpush1.msra.mxu0 0.0
    %4087 = vmatprep.subr.mxu0 0.0
    %4088 = vmatpush1.msra.mxu0 0.0
    %4089 = vmatprep.subr.mxu0 0.0
    %4090 = vmatpush1.msra.mxu0 0.0
    %4091 = vmatprep.subr.mxu0 0.0
    %4092 = vmatpush1.msra.mxu0 0.0
    %4093 = vmatprep.subr.mxu0 0.0
    %4094 = vmatpush1.msra.mxu0 0.0
    %4095 = vmatprep.mubr.f32.mxu0 0.0
    %4096 = vmatmul.mubr.f32.gmra.mrb[0].mxu0 %v3322
    %v4097 = vpop.f32.mrb[0].mxu0
    %v4098 = vadd.f32 %v4029, %v4097
    %v4099 = vpop.f32.mrb[0].mxu0
    %4100 = vmatprep.mubr.f32.mxu0 0.0
    %4101 = vmatmul.mubr.f32.gmra.mrb[0].mxu0 %v3325
    %v4102 = vpop.f32.mrb[0].mxu0
    %v4103 = vadd.f32 %v4029, %v4102
    %v4104 = vpop.f32.mrb[0].mxu0
    %4105 = vdwg.mxu0
    %s4106 = scalar_lea.vmem %s2, 480
    %v4107 = vld [vmem:[%s4106] sm:$0xff]
    %v4108 = vld [vmem:[%s4106 + $0x8] sm:$0xff]
    %v4109 = vld [vmem:[%s4106 + $0x10] sm:$0xff]
    %v4110 = vld [vmem:[%s4106 + $0x18] sm:$0xff]
    %s4111 = scalar_lea.vmem %s3, 15
    %v4112 = vld [vmem:[%s4111] sm:$0x1]
    %v4114 = vlaneseq
    %v4115 = vshrl.u32 %v4114, 7
    %v4116 = vsub.s32 0, %v4115
    %v4117 = vrot.slane %v4112, %v4116
    %4119 = vmatprep.subr.mxu0 0.0
    %4120 = vmatpush1.msra.mxu0 %v4107
    %4121 = vmatprep.subr.mxu0 0.0
    %4122 = vmatpush1.msra.mxu0 %v4108
    %4123 = vmatprep.subr.mxu0 0.0
    %4124 = vmatpush1.msra.mxu0 %v4109
    %4125 = vmatprep.subr.mxu0 0.0
    %4126 = vmatpush1.msra.mxu0 %v4110
    %4127 = vmatprep.subr.mxu0 0.0
    %4128 = vmatpush1.msra.mxu0 0.0
    %4129 = vmatprep.subr.mxu0 0.0
    %4130 = vmatpush1.msra.mxu0 0.0
    %4131 = vmatprep.subr.mxu0 0.0
    %4132 = vmatpush1.msra.mxu0 0.0
    %4133 = vmatprep.subr.mxu0 0.0
    %4134 = vmatpush1.msra.mxu0 0.0
    %4135 = vmatprep.subr.mxu0 0.0
    %4136 = vmatpush1.msra.mxu0 0.0
    %4137 = vmatprep.subr.mxu0 0.0
    %4138 = vmatpush1.msra.mxu0 0.0
    %4139 = vmatprep.subr.mxu0 0.0
    %4140 = vmatpush1.msra.mxu0 0.0
    %4141 = vmatprep.subr.mxu0 0.0
    %4142 = vmatpush1.msra.mxu0 0.0
    %4143 = vmatprep.subr.mxu0 0.0
    %4144 = vmatpush1.msra.mxu0 0.0
    %4145 = vmatprep.subr.mxu0 0.0
    %4146 = vmatpush1.msra.mxu0 0.0
    %4147 = vmatprep.subr.mxu0 0.0
    %4148 = vmatpush1.msra.mxu0 0.0
    %4149 = vmatprep.subr.mxu0 0.0
    %4150 = vmatpush1.msra.mxu0 0.0
    %4151 = vmatprep.subr.mxu0 0.0
    %4152 = vmatpush1.msra.mxu0 0.0
    %4153 = vmatprep.subr.mxu0 0.0
    %4154 = vmatpush1.msra.mxu0 0.0
    %4155 = vmatprep.subr.mxu0 0.0
    %4156 = vmatpush1.msra.mxu0 0.0
    %4157 = vmatprep.subr.mxu0 0.0
    %4158 = vmatpush1.msra.mxu0 0.0
    %4159 = vmatprep.subr.mxu0 0.0
    %4160 = vmatpush1.msra.mxu0 0.0
    %4161 = vmatprep.subr.mxu0 0.0
    %4162 = vmatpush1.msra.mxu0 0.0
    %4163 = vmatprep.subr.mxu0 0.0
    %4164 = vmatpush1.msra.mxu0 0.0
    %4165 = vmatprep.subr.mxu0 0.0
    %4166 = vmatpush1.msra.mxu0 0.0
    %4167 = vmatprep.subr.mxu0 0.0
    %4168 = vmatpush1.msra.mxu0 0.0
    %4169 = vmatprep.subr.mxu0 0.0
    %4170 = vmatpush1.msra.mxu0 0.0
    %4171 = vmatprep.subr.mxu0 0.0
    %4172 = vmatpush1.msra.mxu0 0.0
    %4173 = vmatprep.subr.mxu0 0.0
    %4174 = vmatpush1.msra.mxu0 0.0
    %4175 = vmatprep.subr.mxu0 0.0
    %4176 = vmatpush1.msra.mxu0 0.0
    %4177 = vmatprep.subr.mxu0 0.0
    %4178 = vmatpush1.msra.mxu0 0.0
    %4179 = vmatprep.subr.mxu0 0.0
    %4180 = vmatpush1.msra.mxu0 0.0
    %4181 = vmatprep.subr.mxu0 0.0
    %4182 = vmatpush1.msra.mxu0 0.0
    %4183 = vmatprep.mubr.f32.mxu0 0.0
    %4184 = vmatmul.mubr.f32.gmra.mrb[0].mxu0 %v3322
    %v4185 = vpop.f32.mrb[0].mxu0
    %v4186 = vadd.f32 %v4117, %v4185
    %v4187 = vpop.f32.mrb[0].mxu0
    %4188 = vmatprep.mubr.f32.mxu0 0.0
    %4189 = vmatmul.mubr.f32.gmra.mrb[0].mxu0 %v3325
    %v4190 = vpop.f32.mrb[0].mxu0
    %v4191 = vadd.f32 %v4117, %v4190
    %v4192 = vpop.f32.mrb[0].mxu0
    %4193 = vdwg.mxu0
    %s4194 = scalar_lea.vmem %s2, 608
    %v4195 = vld [vmem:[%s4194] sm:$0xff]
    %v4196 = vld [vmem:[%s4194 + $0x8] sm:$0xff]
    %v4197 = vld [vmem:[%s4194 + $0x10] sm:$0xff]
    %v4198 = vld [vmem:[%s4194 + $0x18] sm:$0xff]
    %s4199 = scalar_lea.vmem %s3, 19
    %v4200 = vld [vmem:[%s4199] sm:$0x1]
    %v4202 = vlaneseq
    %v4203 = vshrl.u32 %v4202, 7
    %v4204 = vsub.s32 0, %v4203
    %v4205 = vrot.slane %v4200, %v4204
    %4207 = vmatprep.subr.mxu0 0.0
    %4208 = vmatpush1.msra.mxu0 %v4195
    %4209 = vmatprep.subr.mxu0 0.0
    %4210 = vmatpush1.msra.mxu0 %v4196
    %4211 = vmatprep.subr.mxu0 0.0
    %4212 = vmatpush1.msra.mxu0 %v4197
    %4213 = vmatprep.subr.mxu0 0.0
    %4214 = vmatpush1.msra.mxu0 %v4198
    %4215 = vmatprep.subr.mxu0 0.0
    %4216 = vmatpush1.msra.mxu0 0.0
    %4217 = vmatprep.subr.mxu0 0.0
    %4218 = vmatpush1.msra.mxu0 0.0
    %4219 = vmatprep.subr.mxu0 0.0
    %4220 = vmatpush1.msra.mxu0 0.0
    %4221 = vmatprep.subr.mxu0 0.0
    %4222 = vmatpush1.msra.mxu0 0.0
    %4223 = vmatprep.subr.mxu0 0.0
    %4224 = vmatpush1.msra.mxu0 0.0
    %4225 = vmatprep.subr.mxu0 0.0
    %4226 = vmatpush1.msra.mxu0 0.0
    %4227 = vmatprep.subr.mxu0 0.0
    %4228 = vmatpush1.msra.mxu0 0.0
    %4229 = vmatprep.subr.mxu0 0.0
    %4230 = vmatpush1.msra.mxu0 0.0
    %4231 = vmatprep.subr.mxu0 0.0
    %4232 = vmatpush1.msra.mxu0 0.0
    %4233 = vmatprep.subr.mxu0 0.0
    %4234 = vmatpush1.msra.mxu0 0.0
    %4235 = vmatprep.subr.mxu0 0.0
    %4236 = vmatpush1.msra.mxu0 0.0
    %4237 = vmatprep.subr.mxu0 0.0
    %4238 = vmatpush1.msra.mxu0 0.0
    %4239 = vmatprep.subr.mxu0 0.0
    %4240 = vmatpush1.msra.mxu0 0.0
    %4241 = vmatprep.subr.mxu0 0.0
    %4242 = vmatpush1.msra.mxu0 0.0
    %4243 = vmatprep.subr.mxu0 0.0
    %4244 = vmatpush1.msra.mxu0 0.0
    %4245 = vmatprep.subr.mxu0 0.0
    %4246 = vmatpush1.msra.mxu0 0.0
    %4247 = vmatprep.subr.mxu0 0.0
    %4248 = vmatpush1.msra.mxu0 0.0
    %4249 = vmatprep.subr.mxu0 0.0
    %4250 = vmatpush1.msra.mxu0 0.0
    %4251 = vmatprep.subr.mxu0 0.0
    %4252 = vmatpush1.msra.mxu0 0.0
    %4253 = vmatprep.subr.mxu0 0.0
    %4254 = vmatpush1.msra.mxu0 0.0
    %4255 = vmatprep.subr.mxu0 0.0
    %4256 = vmatpush1.msra.mxu0 0.0
    %4257 = vmatprep.subr.mxu0 0.0
    %4258 = vmatpush1.msra.mxu0 0.0
    %4259 = vmatprep.subr.mxu0 0.0
    %4260 = vmatpush1.msra.mxu0 0.0
    %4261 = vmatprep.subr.mxu0 0.0
    %4262 = vmatpush1.msra.mxu0 0.0
    %4263 = vmatprep.subr.mxu0 0.0
    %4264 = vmatpush1.msra.mxu0 0.0
    %4265 = vmatprep.subr.mxu0 0.0
    %4266 = vmatpush1.msra.mxu0 0.0
    %4267 = vmatprep.subr.mxu0 0.0
    %4268 = vmatpush1.msra.mxu0 0.0
    %4269 = vmatprep.subr.mxu0 0.0
    %4270 = vmatpush1.msra.mxu0 0.0
    %4271 = vmatprep.mubr.f32.mxu0 0.0
    %4272 = vmatmul.mubr.f32.gmra.mrb[0].mxu0 %v3322
    %v4273 = vpop.f32.mrb[0].mxu0
    %v4274 = vadd.f32 %v4205, %v4273
    %v4275 = vpop.f32.mrb[0].mxu0
    %4276 = vmatprep.mubr.f32.mxu0 0.0
    %4277 = vmatmul.mubr.f32.gmra.mrb[0].mxu0 %v3325
    %v4278 = vpop.f32.mrb[0].mxu0
    %v4279 = vadd.f32 %v4205, %v4278
    %v4280 = vpop.f32.mrb[0].mxu0
    %4281 = vdwg.mxu0
    %s4282 = scalar_lea.vmem %s2, 736
    %v4283 = vld [vmem:[%s4282] sm:$0xff]
    %v4284 = vld [vmem:[%s4282 + $0x8] sm:$0xff]
    %v4285 = vld [vmem:[%s4282 + $0x10] sm:$0xff]
    %v4286 = vld [vmem:[%s4282 + $0x18] sm:$0xff]
    %s4287 = scalar_lea.vmem %s3, 23
    %v4288 = vld [vmem:[%s4287] sm:$0x1]
    %v4290 = vlaneseq
    %v4291 = vshrl.u32 %v4290, 7
    %v4292 = vsub.s32 0, %v4291
    %v4293 = vrot.slane %v4288, %v4292
    %4295 = vmatprep.subr.mxu0 0.0
    %4296 = vmatpush1.msra.mxu0 %v4283
    %4297 = vmatprep.subr.mxu0 0.0
    %4298 = vmatpush1.msra.mxu0 %v4284
    %4299 = vmatprep.subr.mxu0 0.0
    %4300 = vmatpush1.msra.mxu0 %v4285
    %4301 = vmatprep.subr.mxu0 0.0
    %4302 = vmatpush1.msra.mxu0 %v4286
    %4303 = vmatprep.subr.mxu0 0.0
    %4304 = vmatpush1.msra.mxu0 0.0
    %4305 = vmatprep.subr.mxu0 0.0
    %4306 = vmatpush1.msra.mxu0 0.0
    %4307 = vmatprep.subr.mxu0 0.0
    %4308 = vmatpush1.msra.mxu0 0.0
    %4309 = vmatprep.subr.mxu0 0.0
    %4310 = vmatpush1.msra.mxu0 0.0
    %4311 = vmatprep.subr.mxu0 0.0
    %4312 = vmatpush1.msra.mxu0 0.0
    %4313 = vmatprep.subr.mxu0 0.0
    %4314 = vmatpush1.msra.mxu0 0.0
    %4315 = vmatprep.subr.mxu0 0.0
    %4316 = vmatpush1.msra.mxu0 0.0
    %4317 = vmatprep.subr.mxu0 0.0
    %4318 = vmatpush1.msra.mxu0 0.0
    %4319 = vmatprep.subr.mxu0 0.0
    %4320 = vmatpush1.msra.mxu0 0.0
    %4321 = vmatprep.subr.mxu0 0.0
    %4322 = vmatpush1.msra.mxu0 0.0
    %4323 = vmatprep.subr.mxu0 0.0
    %4324 = vmatpush1.msra.mxu0 0.0
    %4325 = vmatprep.subr.mxu0 0.0
    %4326 = vmatpush1.msra.mxu0 0.0
    %4327 = vmatprep.subr.mxu0 0.0
    %4328 = vmatpush1.msra.mxu0 0.0
    %4329 = vmatprep.subr.mxu0 0.0
    %4330 = vmatpush1.msra.mxu0 0.0
    %4331 = vmatprep.subr.mxu0 0.0
    %4332 = vmatpush1.msra.mxu0 0.0
    %4333 = vmatprep.subr.mxu0 0.0
    %4334 = vmatpush1.msra.mxu0 0.0
    %4335 = vmatprep.subr.mxu0 0.0
    %4336 = vmatpush1.msra.mxu0 0.0
    %4337 = vmatprep.subr.mxu0 0.0
    %4338 = vmatpush1.msra.mxu0 0.0
    %4339 = vmatprep.subr.mxu0 0.0
    %4340 = vmatpush1.msra.mxu0 0.0
    %4341 = vmatprep.subr.mxu0 0.0
    %4342 = vmatpush1.msra.mxu0 0.0
    %4343 = vmatprep.subr.mxu0 0.0
    %4344 = vmatpush1.msra.mxu0 0.0
    %4345 = vmatprep.subr.mxu0 0.0
    %4346 = vmatpush1.msra.mxu0 0.0
    %4347 = vmatprep.subr.mxu0 0.0
    %4348 = vmatpush1.msra.mxu0 0.0
    %4349 = vmatprep.subr.mxu0 0.0
    %4350 = vmatpush1.msra.mxu0 0.0
    %4351 = vmatprep.subr.mxu0 0.0
    %4352 = vmatpush1.msra.mxu0 0.0
    %4353 = vmatprep.subr.mxu0 0.0
    %4354 = vmatpush1.msra.mxu0 0.0
    %4355 = vmatprep.subr.mxu0 0.0
    %4356 = vmatpush1.msra.mxu0 0.0
    %4357 = vmatprep.subr.mxu0 0.0
    %4358 = vmatpush1.msra.mxu0 0.0
    %4359 = vmatprep.mubr.f32.mxu0 0.0
    %4360 = vmatmul.mubr.f32.gmra.mrb[0].mxu0 %v3322
    %v4361 = vpop.f32.mrb[0].mxu0
    %v4362 = vadd.f32 %v4293, %v4361
    %v4363 = vpop.f32.mrb[0].mxu0
    %4364 = vmatprep.mubr.f32.mxu0 0.0
    %4365 = vmatmul.mubr.f32.gmra.mrb[0].mxu0 %v3325
    %v4366 = vpop.f32.mrb[0].mxu0
    %v4367 = vadd.f32 %v4293, %v4366
    %v4368 = vpop.f32.mrb[0].mxu0
    %4369 = vdwg.mxu0
    %v4371 = vsel %vm1154, %v3394, 0
    %v4374 = vsel %vm1154, %v3482, 0
    %4376 = vmatprep.subr.mxu0 0.0
    %4377 = vmatpush1.xpose.msra.mxu0 %v4374
    %4378 = vmatprep.subr.mxu0 0.0
    %4379 = vmatpush1.xpose.msra.mxu0 0.0
    %4380 = vmatprep.subr.mxu0 0.0
    %4381 = vmatpush1.xpose.msra.mxu0 0.0
    %4382 = vmatprep.subr.mxu0 0.0
    %4383 = vmatpush1.xpose.msra.mxu0 0.0
    %4384 = vmatprep.subr.mxu0 0.0
    %4385 = vmatpush1.xpose.msra.mxu0 0.0
    %4386 = vmatprep.subr.mxu0 0.0
    %4387 = vmatpush1.xpose.msra.mxu0 0.0
    %4388 = vmatprep.subr.mxu0 0.0
    %4389 = vmatpush1.xpose.msra.mxu0 0.0
    %4390 = vmatprep.subr.mxu0 0.0
    %4391 = vmatpush1.xpose.msra.mxu0 0.0
    %4392 = vmatprep.subr.mxu0 0.0
    %4393 = vmatpush1.xpose.msra.mxu0 0.0
    %4394 = vmatprep.subr.mxu0 0.0
    %4395 = vmatpush1.xpose.msra.mxu0 0.0
    %4396 = vmatprep.subr.mxu0 0.0
    %4397 = vmatpush1.xpose.msra.mxu0 0.0
    %4398 = vmatprep.subr.mxu0 0.0
    %4399 = vmatpush1.xpose.msra.mxu0 0.0
    %4400 = vmatprep.subr.mxu0 0.0
    %4401 = vmatpush1.xpose.msra.mxu0 0.0
    %4402 = vmatprep.subr.mxu0 0.0
    %4403 = vmatpush1.xpose.msra.mxu0 0.0
    %4404 = vmatprep.subr.mxu0 0.0
    %4405 = vmatpush1.xpose.msra.mxu0 0.0
    %4406 = vmatprep.subr.mxu0 0.0
    %4407 = vmatpush1.xpose.msra.mxu0 0.0
    %4408 = vmatprep.subr.mxu0 0.0
    %4409 = vmatpush1.xpose.msra.mxu0 0.0
    %4410 = vmatprep.subr.mxu0 0.0
    %4411 = vmatpush1.xpose.msra.mxu0 0.0
    %4412 = vmatprep.subr.mxu0 0.0
    %4413 = vmatpush1.xpose.msra.mxu0 0.0
    %4414 = vmatprep.subr.mxu0 0.0
    %4415 = vmatpush1.xpose.msra.mxu0 0.0
    %4416 = vmatprep.subr.mxu0 0.0
    %4417 = vmatpush1.xpose.msra.mxu0 0.0
    %4418 = vmatprep.subr.mxu0 0.0
    %4419 = vmatpush1.xpose.msra.mxu0 0.0
    %4420 = vmatprep.subr.mxu0 0.0
    %4421 = vmatpush1.xpose.msra.mxu0 0.0
    %4422 = vmatprep.subr.mxu0 0.0
    %4423 = vmatpush1.xpose.msra.mxu0 0.0
    %4424 = vmatprep.subr.mxu0 0.0
    %4425 = vmatpush1.xpose.msra.mxu0 0.0
    %4426 = vmatprep.subr.mxu0 0.0
    %4427 = vmatpush1.xpose.msra.mxu0 0.0
    %4428 = vmatprep.subr.mxu0 0.0
    %4429 = vmatpush1.xpose.msra.mxu0 0.0
    %4430 = vmatprep.subr.mxu0 0.0
    %4431 = vmatpush1.xpose.msra.mxu0 0.0
    %4432 = vmatprep.subr.mxu0 0.0
    %4433 = vmatpush1.xpose.msra.mxu0 0.0
    %4434 = vmatprep.subr.mxu0 0.0
    %4435 = vmatpush1.xpose.msra.mxu0 0.0
    %4436 = vmatprep.subr.mxu0 0.0
    %4437 = vmatpush1.xpose.msra.mxu0 0.0
    %4438 = vmatprep.subr.mxu0 0.0
    %4439 = vmatpush1.xpose.msra.mxu0 0.0
    %4440 = vmatprep.mubr.f32.mxu0 0.0
    %4441 = vmatmul.mubr.f32.gmra.mrb[0].mxu0 %v4371
    %v4442 = vpop.f32.mrb[0].mxu0
    %v4443 = vadd.f32 %v45, %v4442
    %v4444 = vpop.f32.mrb[0].mxu0
    %4445 = vdwg.mxu0
    %v4446 = vsel %vm1154, %v4443, -inf
    %4447 = vmax.xlane.f32.xlu0 %v4446
    %v4448 = vpop.xlane.xlu0 %4447
    %v4449 = vsub.f32 %v4443, %v4448
    %v4450 = vmul.f32 %v4449, 1.442695
    %v4451 = vpow.pop %v4450
    %v4452 = vsel %vm1154, %v4451, 0.0
    %4453 = vadd.xlane.f32.xlu0 %v4452
    %v4454 = vpop.xlane.xlu0 %4453
    %v4455 = vrcp.pop %v4454
    %v4456 = vmul.f32 %v4451, %v4455
    %v4458 = vsel %vm1154, %v4456, 0
    %4460 = vmatprep.subr.mxu0 0.0
    %4461 = vmatpush1.msra.mxu0 %v3570
    %4462 = vmatprep.subr.mxu0 0.0
    %4463 = vmatpush1.msra.mxu0 0.0
    %4464 = vmatprep.subr.mxu0 0.0
    %4465 = vmatpush1.msra.mxu0 0.0
    %4466 = vmatprep.subr.mxu0 0.0
    %4467 = vmatpush1.msra.mxu0 0.0
    %4468 = vmatprep.subr.mxu0 0.0
    %4469 = vmatpush1.msra.mxu0 0.0
    %4470 = vmatprep.subr.mxu0 0.0
    %4471 = vmatpush1.msra.mxu0 0.0
    %4472 = vmatprep.subr.mxu0 0.0
    %4473 = vmatpush1.msra.mxu0 0.0
    %4474 = vmatprep.subr.mxu0 0.0
    %4475 = vmatpush1.msra.mxu0 0.0
    %4476 = vmatprep.subr.mxu0 0.0
    %4477 = vmatpush1.msra.mxu0 0.0
    %4478 = vmatprep.subr.mxu0 0.0
    %4479 = vmatpush1.msra.mxu0 0.0
    %4480 = vmatprep.subr.mxu0 0.0
    %4481 = vmatpush1.msra.mxu0 0.0
    %4482 = vmatprep.subr.mxu0 0.0
    %4483 = vmatpush1.msra.mxu0 0.0
    %4484 = vmatprep.subr.mxu0 0.0
    %4485 = vmatpush1.msra.mxu0 0.0
    %4486 = vmatprep.subr.mxu0 0.0
    %4487 = vmatpush1.msra.mxu0 0.0
    %4488 = vmatprep.subr.mxu0 0.0
    %4489 = vmatpush1.msra.mxu0 0.0
    %4490 = vmatprep.subr.mxu0 0.0
    %4491 = vmatpush1.msra.mxu0 0.0
    %4492 = vmatprep.subr.mxu0 0.0
    %4493 = vmatpush1.msra.mxu0 0.0
    %4494 = vmatprep.subr.mxu0 0.0
    %4495 = vmatpush1.msra.mxu0 0.0
    %4496 = vmatprep.subr.mxu0 0.0
    %4497 = vmatpush1.msra.mxu0 0.0
    %4498 = vmatprep.subr.mxu0 0.0
    %4499 = vmatpush1.msra.mxu0 0.0
    %4500 = vmatprep.subr.mxu0 0.0
    %4501 = vmatpush1.msra.mxu0 0.0
    %4502 = vmatprep.subr.mxu0 0.0
    %4503 = vmatpush1.msra.mxu0 0.0
    %4504 = vmatprep.subr.mxu0 0.0
    %4505 = vmatpush1.msra.mxu0 0.0
    %4506 = vmatprep.subr.mxu0 0.0
    %4507 = vmatpush1.msra.mxu0 0.0
    %4508 = vmatprep.subr.mxu0 0.0
    %4509 = vmatpush1.msra.mxu0 0.0
    %4510 = vmatprep.subr.mxu0 0.0
    %4511 = vmatpush1.msra.mxu0 0.0
    %4512 = vmatprep.subr.mxu0 0.0
    %4513 = vmatpush1.msra.mxu0 0.0
    %4514 = vmatprep.subr.mxu0 0.0
    %4515 = vmatpush1.msra.mxu0 0.0
    %4516 = vmatprep.subr.mxu0 0.0
    %4517 = vmatpush1.msra.mxu0 0.0
    %4518 = vmatprep.subr.mxu0 0.0
    %4519 = vmatpush1.msra.mxu0 0.0
    %4520 = vmatprep.subr.mxu0 0.0
    %4521 = vmatpush1.msra.mxu0 0.0
    %4522 = vmatprep.subr.mxu0 0.0
    %4523 = vmatpush1.msra.mxu0 0.0
    %4524 = vmatprep.mubr.f32.mxu0 0.0
    %4525 = vmatmul.mubr.f32.gmra.mrb[0].mxu0 %v4458
    %v4526 = vpop.f32.mrb[0].mxu0
    %v4527 = vadd.f32 0.0, %v4526
    %v4528 = vpop.f32.mrb[0].mxu0
    %4529 = vdwg.mxu0
    %s4530 = scalar_lea.vmem %s4, 32
    %v4531 = vld [vmem:[%s4530] sm:$0xff]
    %v4533 = vsel %vm1154, %v3658, 0
    %v4536 = vsel %vm1154, %v3746, 0
    %4538 = vmatprep.subr.mxu0 0.0
    %4539 = vmatpush1.xpose.msra.mxu0 %v4536
    %4540 = vmatprep.subr.mxu0 0.0
    %4541 = vmatpush1.xpose.msra.mxu0 0.0
    %4542 = vmatprep.subr.mxu0 0.0
    %4543 = vmatpush1.xpose.msra.mxu0 0.0
    %4544 = vmatprep.subr.mxu0 0.0
    %4545 = vmatpush1.xpose.msra.mxu0 0.0
    %4546 = vmatprep.subr.mxu0 0.0
    %4547 = vmatpush1.xpose.msra.mxu0 0.0
    %4548 = vmatprep.subr.mxu0 0.0
    %4549 = vmatpush1.xpose.msra.mxu0 0.0
    %4550 = vmatprep.subr.mxu0 0.0
    %4551 = vmatpush1.xpose.msra.mxu0 0.0
    %4552 = vmatprep.subr.mxu0 0.0
    %4553 = vmatpush1.xpose.msra.mxu0 0.0
    %4554 = vmatprep.subr.mxu0 0.0
    %4555 = vmatpush1.xpose.msra.mxu0 0.0
    %4556 = vmatprep.subr.mxu0 0.0
    %4557 = vmatpush1.xpose.msra.mxu0 0.0
    %4558 = vmatprep.subr.mxu0 0.0
    %4559 = vmatpush1.xpose.msra.mxu0 0.0
    %4560 = vmatprep.subr.mxu0 0.0
    %4561 = vmatpush1.xpose.msra.mxu0 0.0
    %4562 = vmatprep.subr.mxu0 0.0
    %4563 = vmatpush1.xpose.msra.mxu0 0.0
    %4564 = vmatprep.subr.mxu0 0.0
    %4565 = vmatpush1.xpose.msra.mxu0 0.0
    %4566 = vmatprep.subr.mxu0 0.0
    %4567 = vmatpush1.xpose.msra.mxu0 0.0
    %4568 = vmatprep.subr.mxu0 0.0
    %4569 = vmatpush1.xpose.msra.mxu0 0.0
    %4570 = vmatprep.subr.mxu0 0.0
    %4571 = vmatpush1.xpose.msra.mxu0 0.0
    %4572 = vmatprep.subr.mxu0 0.0
    %4573 = vmatpush1.xpose.msra.mxu0 0.0
    %4574 = vmatprep.subr.mxu0 0.0
    %4575 = vmatpush1.xpose.msra.mxu0 0.0
    %4576 = vmatprep.subr.mxu0 0.0
    %4577 = vmatpush1.xpose.msra.mxu0 0.0
    %4578 = vmatprep.subr.mxu0 0.0
    %4579 = vmatpush1.xpose.msra.mxu0 0.0
    %4580 = vmatprep.subr.mxu0 0.0
    %4581 = vmatpush1.xpose.msra.mxu0 0.0
    %4582 = vmatprep.subr.mxu0 0.0
    %4583 = vmatpush1.xpose.msra.mxu0 0.0
    %4584 = vmatprep.subr.mxu0 0.0
    %4585 = vmatpush1.xpose.msra.mxu0 0.0
    %4586 = vmatprep.subr.mxu0 0.0
    %4587 = vmatpush1.xpose.msra.mxu0 0.0
    %4588 = vmatprep.subr.mxu0 0.0
    %4589 = vmatpush1.xpose.msra.mxu0 0.0
    %4590 = vmatprep.subr.mxu0 0.0
    %4591 = vmatpush1.xpose.msra.mxu0 0.0
    %4592 = vmatprep.subr.mxu0 0.0
    %4593 = vmatpush1.xpose.msra.mxu0 0.0
    %4594 = vmatprep.subr.mxu0 0.0
    %4595 = vmatpush1.xpose.msra.mxu0 0.0
    %4596 = vmatprep.subr.mxu0 0.0
    %4597 = vmatpush1.xpose.msra.mxu0 0.0
    %4598 = vmatprep.subr.mxu0 0.0
    %4599 = vmatpush1.xpose.msra.mxu0 0.0
    %4600 = vmatprep.subr.mxu0 0.0
    %4601 = vmatpush1.xpose.msra.mxu0 0.0
    %4602 = vmatprep.mubr.f32.mxu0 0.0
    %4603 = vmatmul.mubr.f32.gmra.mrb[0].mxu0 %v4533
    %v4604 = vpop.f32.mrb[0].mxu0
    %v4605 = vadd.f32 %v45, %v4604
    %v4606 = vpop.f32.mrb[0].mxu0
    %4607 = vdwg.mxu0
    %v4608 = vsel %vm1154, %v4605, -inf
    %4609 = vmax.xlane.f32.xlu0 %v4608
    %v4610 = vpop.xlane.xlu0 %4609
    %v4611 = vsub.f32 %v4605, %v4610
    %v4612 = vmul.f32 %v4611, 1.442695
    %v4613 = vpow.pop %v4612
    %v4614 = vsel %vm1154, %v4613, 0.0
    %4615 = vadd.xlane.f32.xlu0 %v4614
    %v4616 = vpop.xlane.xlu0 %4615
    %v4617 = vrcp.pop %v4616
    %v4618 = vmul.f32 %v4613, %v4617
    %v4620 = vsel %vm1154, %v4618, 0
    %4622 = vmatprep.subr.mxu0 0.0
    %4623 = vmatpush1.msra.mxu0 %v3834
    %4624 = vmatprep.subr.mxu0 0.0
    %4625 = vmatpush1.msra.mxu0 0.0
    %4626 = vmatprep.subr.mxu0 0.0
    %4627 = vmatpush1.msra.mxu0 0.0
    %4628 = vmatprep.subr.mxu0 0.0
    %4629 = vmatpush1.msra.mxu0 0.0
    %4630 = vmatprep.subr.mxu0 0.0
    %4631 = vmatpush1.msra.mxu0 0.0
    %4632 = vmatprep.subr.mxu0 0.0
    %4633 = vmatpush1.msra.mxu0 0.0
    %4634 = vmatprep.subr.mxu0 0.0
    %4635 = vmatpush1.msra.mxu0 0.0
    %4636 = vmatprep.subr.mxu0 0.0
    %4637 = vmatpush1.msra.mxu0 0.0
    %4638 = vmatprep.subr.mxu0 0.0
    %4639 = vmatpush1.msra.mxu0 0.0
    %4640 = vmatprep.subr.mxu0 0.0
    %4641 = vmatpush1.msra.mxu0 0.0
    %4642 = vmatprep.subr.mxu0 0.0
    %4643 = vmatpush1.msra.mxu0 0.0
    %4644 = vmatprep.subr.mxu0 0.0
    %4645 = vmatpush1.msra.mxu0 0.0
    %4646 = vmatprep.subr.mxu0 0.0
    %4647 = vmatpush1.msra.mxu0 0.0
    %4648 = vmatprep.subr.mxu0 0.0
    %4649 = vmatpush1.msra.mxu0 0.0
    %4650 = vmatprep.subr.mxu0 0.0
    %4651 = vmatpush1.msra.mxu0 0.0
    %4652 = vmatprep.subr.mxu0 0.0
    %4653 = vmatpush1.msra.mxu0 0.0
    %4654 = vmatprep.subr.mxu0 0.0
    %4655 = vmatpush1.msra.mxu0 0.0
    %4656 = vmatprep.subr.mxu0 0.0
    %4657 = vmatpush1.msra.mxu0 0.0
    %4658 = vmatprep.subr.mxu0 0.0
    %4659 = vmatpush1.msra.mxu0 0.0
    %4660 = vmatprep.subr.mxu0 0.0
    %4661 = vmatpush1.msra.mxu0 0.0
    %4662 = vmatprep.subr.mxu0 0.0
    %4663 = vmatpush1.msra.mxu0 0.0
    %4664 = vmatprep.subr.mxu0 0.0
    %4665 = vmatpush1.msra.mxu0 0.0
    %4666 = vmatprep.subr.mxu0 0.0
    %4667 = vmatpush1.msra.mxu0 0.0
    %4668 = vmatprep.subr.mxu0 0.0
    %4669 = vmatpush1.msra.mxu0 0.0
    %4670 = vmatprep.subr.mxu0 0.0
    %4671 = vmatpush1.msra.mxu0 0.0
    %4672 = vmatprep.subr.mxu0 0.0
    %4673 = vmatpush1.msra.mxu0 0.0
    %4674 = vmatprep.subr.mxu0 0.0
    %4675 = vmatpush1.msra.mxu0 0.0
    %4676 = vmatprep.subr.mxu0 0.0
    %4677 = vmatpush1.msra.mxu0 0.0
    %4678 = vmatprep.subr.mxu0 0.0
    %4679 = vmatpush1.msra.mxu0 0.0
    %4680 = vmatprep.subr.mxu0 0.0
    %4681 = vmatpush1.msra.mxu0 0.0
    %4682 = vmatprep.subr.mxu0 0.0
    %4683 = vmatpush1.msra.mxu0 0.0
    %4684 = vmatprep.subr.mxu0 0.0
    %4685 = vmatpush1.msra.mxu0 0.0
    %4686 = vmatprep.mubr.f32.mxu0 0.0
    %4687 = vmatmul.mubr.f32.gmra.mrb[0].mxu0 %v4620
    %v4688 = vpop.f32.mrb[0].mxu0
    %v4689 = vadd.f32 0.0, %v4688
    %v4690 = vpop.f32.mrb[0].mxu0
    %4691 = vdwg.mxu0
    %s4692 = scalar_lea.vmem %s4, 40
    %v4693 = vld [vmem:[%s4692] sm:$0xff]
    %v4695 = vsel %vm1154, %v4689, 0
    %4697 = vmatprep.subr.mxu0 0.0
    %4698 = vmatpush1.msra.mxu0 %v4693
    %4699 = vmatprep.subr.mxu0 0.0
    %4700 = vmatpush1.msra.mxu0 0.0
    %4701 = vmatprep.subr.mxu0 0.0
    %4702 = vmatpush1.msra.mxu0 0.0
    %4703 = vmatprep.subr.mxu0 0.0
    %4704 = vmatpush1.msra.mxu0 0.0
    %4705 = vmatprep.subr.mxu0 0.0
    %4706 = vmatpush1.msra.mxu0 0.0
    %4707 = vmatprep.subr.mxu0 0.0
    %4708 = vmatpush1.msra.mxu0 0.0
    %4709 = vmatprep.subr.mxu0 0.0
    %4710 = vmatpush1.msra.mxu0 0.0
    %4711 = vmatprep.subr.mxu0 0.0
    %4712 = vmatpush1.msra.mxu0 0.0
    %4713 = vmatprep.subr.mxu0 0.0
    %4714 = vmatpush1.msra.mxu0 0.0
    %4715 = vmatprep.subr.mxu0 0.0
    %4716 = vmatpush1.msra.mxu0 0.0
    %4717 = vmatprep.subr.mxu0 0.0
    %4718 = vmatpush1.msra.mxu0 0.0
    %4719 = vmatprep.subr.mxu0 0.0
    %4720 = vmatpush1.msra.mxu0 0.0
    %4721 = vmatprep.subr.mxu0 0.0
    %4722 = vmatpush1.msra.mxu0 0.0
    %4723 = vmatprep.subr.mxu0 0.0
    %4724 = vmatpush1.msra.mxu0 0.0
    %4725 = vmatprep.subr.mxu0 0.0
    %4726 = vmatpush1.msra.mxu0 0.0
    %4727 = vmatprep.subr.mxu0 0.0
    %4728 = vmatpush1.msra.mxu0 0.0
    %4729 = vmatprep.subr.mxu0 0.0
    %4730 = vmatpush1.msra.mxu0 0.0
    %4731 = vmatprep.subr.mxu0 0.0
    %4732 = vmatpush1.msra.mxu0 0.0
    %4733 = vmatprep.subr.mxu0 0.0
    %4734 = vmatpush1.msra.mxu0 0.0
    %4735 = vmatprep.subr.mxu0 0.0
    %4736 = vmatpush1.msra.mxu0 0.0
    %4737 = vmatprep.subr.mxu0 0.0
    %4738 = vmatpush1.msra.mxu0 0.0
    %4739 = vmatprep.subr.mxu0 0.0
    %4740 = vmatpush1.msra.mxu0 0.0
    %4741 = vmatprep.subr.mxu0 0.0
    %4742 = vmatpush1.msra.mxu0 0.0
    %4743 = vmatprep.subr.mxu0 0.0
    %4744 = vmatpush1.msra.mxu0 0.0
    %4745 = vmatprep.subr.mxu0 0.0
    %4746 = vmatpush1.msra.mxu0 0.0
    %4747 = vmatprep.subr.mxu0 0.0
    %4748 = vmatpush1.msra.mxu0 0.0
    %4749 = vmatprep.subr.mxu0 0.0
    %4750 = vmatpush1.msra.mxu0 0.0
    %4751 = vmatprep.subr.mxu0 0.0
    %4752 = vmatpush1.msra.mxu0 0.0
    %4753 = vmatprep.subr.mxu0 0.0
    %4754 = vmatpush1.msra.mxu0 0.0
    %4755 = vmatprep.subr.mxu0 0.0
    %4756 = vmatpush1.msra.mxu0 0.0
    %4757 = vmatprep.subr.mxu0 0.0
    %4758 = vmatpush1.msra.mxu0 0.0
    %4759 = vmatprep.subr.mxu0 0.0
    %4760 = vmatpush1.msra.mxu0 0.0
    %4761 = vmatprep.mubr.f32.mxu0 0.0
    %4762 = vmatmul.mubr.f32.gmra.mrb[0].mxu0 %v4695
    %v4763 = vpop.f32.mrb[0].mxu0
    %v4764 = vadd.f32 0.0, %v4763
    %v4765 = vpop.f32.mrb[0].mxu0
    %4766 = vdwg.mxu0
    %v4768 = vsel %vm1154, %v4527, 0
    %4770 = vmatprep.subr.mxu0 0.0
    %4771 = vmatpush1.msra.mxu0 %v4531
    %4772 = vmatprep.subr.mxu0 0.0
    %4773 = vmatpush1.msra.mxu0 0.0
    %4774 = vmatprep.subr.mxu0 0.0
    %4775 = vmatpush1.msra.mxu0 0.0
    %4776 = vmatprep.subr.mxu0 0.0
    %4777 = vmatpush1.msra.mxu0 0.0
    %4778 = vmatprep.subr.mxu0 0.0
    %4779 = vmatpush1.msra.mxu0 0.0
    %4780 = vmatprep.subr.mxu0 0.0
    %4781 = vmatpush1.msra.mxu0 0.0
    %4782 = vmatprep.subr.mxu0 0.0
    %4783 = vmatpush1.msra.mxu0 0.0
    %4784 = vmatprep.subr.mxu0 0.0
    %4785 = vmatpush1.msra.mxu0 0.0
    %4786 = vmatprep.subr.mxu0 0.0
    %4787 = vmatpush1.msra.mxu0 0.0
    %4788 = vmatprep.subr.mxu0 0.0
    %4789 = vmatpush1.msra.mxu0 0.0
    %4790 = vmatprep.subr.mxu0 0.0
    %4791 = vmatpush1.msra.mxu0 0.0
    %4792 = vmatprep.subr.mxu0 0.0
    %4793 = vmatpush1.msra.mxu0 0.0
    %4794 = vmatprep.subr.mxu0 0.0
    %4795 = vmatpush1.msra.mxu0 0.0
    %4796 = vmatprep.subr.mxu0 0.0
    %4797 = vmatpush1.msra.mxu0 0.0
    %4798 = vmatprep.subr.mxu0 0.0
    %4799 = vmatpush1.msra.mxu0 0.0
    %4800 = vmatprep.subr.mxu0 0.0
    %4801 = vmatpush1.msra.mxu0 0.0
    %4802 = vmatprep.subr.mxu0 0.0
    %4803 = vmatpush1.msra.mxu0 0.0
    %4804 = vmatprep.subr.mxu0 0.0
    %4805 = vmatpush1.msra.mxu0 0.0
    %4806 = vmatprep.subr.mxu0 0.0
    %4807 = vmatpush1.msra.mxu0 0.0
    %4808 = vmatprep.subr.mxu0 0.0
    %4809 = vmatpush1.msra.mxu0 0.0
    %4810 = vmatprep.subr.mxu0 0.0
    %4811 = vmatpush1.msra.mxu0 0.0
    %4812 = vmatprep.subr.mxu0 0.0
    %4813 = vmatpush1.msra.mxu0 0.0
    %4814 = vmatprep.subr.mxu0 0.0
    %4815 = vmatpush1.msra.mxu0 0.0
    %4816 = vmatprep.subr.mxu0 0.0
    %4817 = vmatpush1.msra.mxu0 0.0
    %4818 = vmatprep.subr.mxu0 0.0
    %4819 = vmatpush1.msra.mxu0 0.0
    %4820 = vmatprep.subr.mxu0 0.0
    %4821 = vmatpush1.msra.mxu0 0.0
    %4822 = vmatprep.subr.mxu0 0.0
    %4823 = vmatpush1.msra.mxu0 0.0
    %4824 = vmatprep.subr.mxu0 0.0
    %4825 = vmatpush1.msra.mxu0 0.0
    %4826 = vmatprep.subr.mxu0 0.0
    %4827 = vmatpush1.msra.mxu0 0.0
    %4828 = vmatprep.subr.mxu0 0.0
    %4829 = vmatpush1.msra.mxu0 0.0
    %4830 = vmatprep.subr.mxu0 0.0
    %4831 = vmatpush1.msra.mxu0 0.0
    %4832 = vmatprep.subr.mxu0 0.0
    %4833 = vmatpush1.msra.mxu0 0.0
    %4834 = vmatprep.mubr.f32.mxu0 0.0
    %4835 = vmatmul.mubr.f32.gmra.mrb[0].mxu0 %v4768
    %v4836 = vpop.f32.mrb[0].mxu0
    %v4837 = vadd.f32 %v4764, %v4836
    %v4838 = vpop.f32.mrb[0].mxu0
    %4839 = vdwg.mxu0
    %v4841 = vsel %vm1154, %v3922, 0
    %v4844 = vsel %vm1154, %v4010, 0
    %4846 = vmatprep.subr.mxu0 0.0
    %4847 = vmatpush1.xpose.msra.mxu0 %v4844
    %4848 = vmatprep.subr.mxu0 0.0
    %4849 = vmatpush1.xpose.msra.mxu0 0.0
    %4850 = vmatprep.subr.mxu0 0.0
    %4851 = vmatpush1.xpose.msra.mxu0 0.0
    %4852 = vmatprep.subr.mxu0 0.0
    %4853 = vmatpush1.xpose.msra.mxu0 0.0
    %4854 = vmatprep.subr.mxu0 0.0
    %4855 = vmatpush1.xpose.msra.mxu0 0.0
    %4856 = vmatprep.subr.mxu0 0.0
    %4857 = vmatpush1.xpose.msra.mxu0 0.0
    %4858 = vmatprep.subr.mxu0 0.0
    %4859 = vmatpush1.xpose.msra.mxu0 0.0
    %4860 = vmatprep.subr.mxu0 0.0
    %4861 = vmatpush1.xpose.msra.mxu0 0.0
    %4862 = vmatprep.subr.mxu0 0.0
    %4863 = vmatpush1.xpose.msra.mxu0 0.0
    %4864 = vmatprep.subr.mxu0 0.0
    %4865 = vmatpush1.xpose.msra.mxu0 0.0
    %4866 = vmatprep.subr.mxu0 0.0
    %4867 = vmatpush1.xpose.msra.mxu0 0.0
    %4868 = vmatprep.subr.mxu0 0.0
    %4869 = vmatpush1.xpose.msra.mxu0 0.0
    %4870 = vmatprep.subr.mxu0 0.0
    %4871 = vmatpush1.xpose.msra.mxu0 0.0
    %4872 = vmatprep.subr.mxu0 0.0
    %4873 = vmatpush1.xpose.msra.mxu0 0.0
    %4874 = vmatprep.subr.mxu0 0.0
    %4875 = vmatpush1.xpose.msra.mxu0 0.0
    %4876 = vmatprep.subr.mxu0 0.0
    %4877 = vmatpush1.xpose.msra.mxu0 0.0
    %4878 = vmatprep.subr.mxu0 0.0
    %4879 = vmatpush1.xpose.msra.mxu0 0.0
    %4880 = vmatprep.subr.mxu0 0.0
    %4881 = vmatpush1.xpose.msra.mxu0 0.0
    %4882 = vmatprep.subr.mxu0 0.0
    %4883 = vmatpush1.xpose.msra.mxu0 0.0
    %4884 = vmatprep.subr.mxu0 0.0
    %4885 = vmatpush1.xpose.msra.mxu0 0.0
    %4886 = vmatprep.subr.mxu0 0.0
    %4887 = vmatpush1.xpose.msra.mxu0 0.0
    %4888 = vmatprep.subr.mxu0 0.0
    %4889 = vmatpush1.xpose.msra.mxu0 0.0
    %4890 = vmatprep.subr.mxu0 0.0
    %4891 = vmatpush1.xpose.msra.mxu0 0.0
    %4892 = vmatprep.subr.mxu0 0.0
    %4893 = vmatpush1.xpose.msra.mxu0 0.0
    %4894 = vmatprep.subr.mxu0 0.0
    %4895 = vmatpush1.xpose.msra.mxu0 0.0
    %4896 = vmatprep.subr.mxu0 0.0
    %4897 = vmatpush1.xpose.msra.mxu0 0.0
    %4898 = vmatprep.subr.mxu0 0.0
    %4899 = vmatpush1.xpose.msra.mxu0 0.0
    %4900 = vmatprep.subr.mxu0 0.0
    %4901 = vmatpush1.xpose.msra.mxu0 0.0
    %4902 = vmatprep.subr.mxu0 0.0
    %4903 = vmatpush1.xpose.msra.mxu0 0.0
    %4904 = vmatprep.subr.mxu0 0.0
    %4905 = vmatpush1.xpose.msra.mxu0 0.0
    %4906 = vmatprep.subr.mxu0 0.0
    %4907 = vmatpush1.xpose.msra.mxu0 0.0
    %4908 = vmatprep.subr.mxu0 0.0
    %4909 = vmatpush1.xpose.msra.mxu0 0.0
    %4910 = vmatprep.mubr.f32.mxu0 0.0
    %4911 = vmatmul.mubr.f32.gmra.mrb[0].mxu0 %v4841
    %v4912 = vpop.f32.mrb[0].mxu0
    %v4913 = vadd.f32 %v45, %v4912
    %v4914 = vpop.f32.mrb[0].mxu0
    %4915 = vdwg.mxu0
    %v4916 = vsel %vm1154, %v4913, -inf
    %4917 = vmax.xlane.f32.xlu0 %v4916
    %v4918 = vpop.xlane.xlu0 %4917
    %v4919 = vsub.f32 %v4913, %v4918
    %v4920 = vmul.f32 %v4919, 1.442695
    %v4921 = vpow.pop %v4920
    %v4922 = vsel %vm1154, %v4921, 0.0
    %4923 = vadd.xlane.f32.xlu0 %v4922
    %v4924 = vpop.xlane.xlu0 %4923
    %v4925 = vrcp.pop %v4924
    %v4926 = vmul.f32 %v4921, %v4925
    %v4928 = vsel %vm1154, %v4926, 0
    %4930 = vmatprep.subr.mxu0 0.0
    %4931 = vmatpush1.msra.mxu0 %v4098
    %4932 = vmatprep.subr.mxu0 0.0
    %4933 = vmatpush1.msra.mxu0 0.0
    %4934 = vmatprep.subr.mxu0 0.0
    %4935 = vmatpush1.msra.mxu0 0.0
    %4936 = vmatprep.subr.mxu0 0.0
    %4937 = vmatpush1.msra.mxu0 0.0
    %4938 = vmatprep.subr.mxu0 0.0
    %4939 = vmatpush1.msra.mxu0 0.0
    %4940 = vmatprep.subr.mxu0 0.0
    %4941 = vmatpush1.msra.mxu0 0.0
    %4942 = vmatprep.subr.mxu0 0.0
    %4943 = vmatpush1.msra.mxu0 0.0
    %4944 = vmatprep.subr.mxu0 0.0
    %4945 = vmatpush1.msra.mxu0 0.0
    %4946 = vmatprep.subr.mxu0 0.0
    %4947 = vmatpush1.msra.mxu0 0.0
    %4948 = vmatprep.subr.mxu0 0.0
    %4949 = vmatpush1.msra.mxu0 0.0
    %4950 = vmatprep.subr.mxu0 0.0
    %4951 = vmatpush1.msra.mxu0 0.0
    %4952 = vmatprep.subr.mxu0 0.0
    %4953 = vmatpush1.msra.mxu0 0.0
    %4954 = vmatprep.subr.mxu0 0.0
    %4955 = vmatpush1.msra.mxu0 0.0
    %4956 = vmatprep.subr.mxu0 0.0
    %4957 = vmatpush1.msra.mxu0 0.0
    %4958 = vmatprep.subr.mxu0 0.0
    %4959 = vmatpush1.msra.mxu0 0.0
    %4960 = vmatprep.subr.mxu0 0.0
    %4961 = vmatpush1.msra.mxu0 0.0
    %4962 = vmatprep.subr.mxu0 0.0
    %4963 = vmatpush1.msra.mxu0 0.0
    %4964 = vmatprep.subr.mxu0 0.0
    %4965 = vmatpush1.msra.mxu0 0.0
    %4966 = vmatprep.subr.mxu0 0.0
    %4967 = vmatpush1.msra.mxu0 0.0
    %4968 = vmatprep.subr.mxu0 0.0
    %4969 = vmatpush1.msra.mxu0 0.0
    %4970 = vmatprep.subr.mxu0 0.0
    %4971 = vmatpush1.msra.mxu0 0.0
    %4972 = vmatprep.subr.mxu0 0.0
    %4973 = vmatpush1.msra.mxu0 0.0
    %4974 = vmatprep.subr.mxu0 0.0
    %4975 = vmatpush1.msra.mxu0 0.0
    %4976 = vmatprep.subr.mxu0 0.0
    %4977 = vmatpush1.msra.mxu0 0.0
    %4978 = vmatprep.subr.mxu0 0.0
    %4979 = vmatpush1.msra.mxu0 0.0
    %4980 = vmatprep.subr.mxu0 0.0
    %4981 = vmatpush1.msra.mxu0 0.0
    %4982 = vmatprep.subr.mxu0 0.0
    %4983 = vmatpush1.msra.mxu0 0.0
    %4984 = vmatprep.subr.mxu0 0.0
    %4985 = vmatpush1.msra.mxu0 0.0
    %4986 = vmatprep.subr.mxu0 0.0
    %4987 = vmatpush1.msra.mxu0 0.0
    %4988 = vmatprep.subr.mxu0 0.0
    %4989 = vmatpush1.msra.mxu0 0.0
    %4990 = vmatprep.subr.mxu0 0.0
    %4991 = vmatpush1.msra.mxu0 0.0
    %4992 = vmatprep.subr.mxu0 0.0
    %4993 = vmatpush1.msra.mxu0 0.0
    %4994 = vmatprep.mubr.f32.mxu0 0.0
    %4995 = vmatmul.mubr.f32.gmra.mrb[0].mxu0 %v4928
    %v4996 = vpop.f32.mrb[0].mxu0
    %v4997 = vadd.f32 0.0, %v4996
    %v4998 = vpop.f32.mrb[0].mxu0
    %4999 = vdwg.mxu0
    %s5000 = scalar_lea.vmem %s4, 48
    %v5001 = vld [vmem:[%s5000] sm:$0xff]
    %v5003 = vsel %vm1154, %v4997, 0
    %5005 = vmatprep.subr.mxu0 0.0
    %5006 = vmatpush1.msra.mxu0 %v5001
    %5007 = vmatprep.subr.mxu0 0.0
    %5008 = vmatpush1.msra.mxu0 0.0
    %5009 = vmatprep.subr.mxu0 0.0
    %5010 = vmatpush1.msra.mxu0 0.0
    %5011 = vmatprep.subr.mxu0 0.0
    %5012 = vmatpush1.msra.mxu0 0.0
    %5013 = vmatprep.subr.mxu0 0.0
    %5014 = vmatpush1.msra.mxu0 0.0
    %5015 = vmatprep.subr.mxu0 0.0
    %5016 = vmatpush1.msra.mxu0 0.0
    %5017 = vmatprep.subr.mxu0 0.0
    %5018 = vmatpush1.msra.mxu0 0.0
    %5019 = vmatprep.subr.mxu0 0.0
    %5020 = vmatpush1.msra.mxu0 0.0
    %5021 = vmatprep.subr.mxu0 0.0
    %5022 = vmatpush1.msra.mxu0 0.0
    %5023 = vmatprep.subr.mxu0 0.0
    %5024 = vmatpush1.msra.mxu0 0.0
    %5025 = vmatprep.subr.mxu0 0.0
    %5026 = vmatpush1.msra.mxu0 0.0
    %5027 = vmatprep.subr.mxu0 0.0
    %5028 = vmatpush1.msra.mxu0 0.0
    %5029 = vmatprep.subr.mxu0 0.0
    %5030 = vmatpush1.msra.mxu0 0.0
    %5031 = vmatprep.subr.mxu0 0.0
    %5032 = vmatpush1.msra.mxu0 0.0
    %5033 = vmatprep.subr.mxu0 0.0
    %5034 = vmatpush1.msra.mxu0 0.0
    %5035 = vmatprep.subr.mxu0 0.0
    %5036 = vmatpush1.msra.mxu0 0.0
    %5037 = vmatprep.subr.mxu0 0.0
    %5038 = vmatpush1.msra.mxu0 0.0
    %5039 = vmatprep.subr.mxu0 0.0
    %5040 = vmatpush1.msra.mxu0 0.0
    %5041 = vmatprep.subr.mxu0 0.0
    %5042 = vmatpush1.msra.mxu0 0.0
    %5043 = vmatprep.subr.mxu0 0.0
    %5044 = vmatpush1.msra.mxu0 0.0
    %5045 = vmatprep.subr.mxu0 0.0
    %5046 = vmatpush1.msra.mxu0 0.0
    %5047 = vmatprep.subr.mxu0 0.0
    %5048 = vmatpush1.msra.mxu0 0.0
    %5049 = vmatprep.subr.mxu0 0.0
    %5050 = vmatpush1.msra.mxu0 0.0
    %5051 = vmatprep.subr.mxu0 0.0
    %5052 = vmatpush1.msra.mxu0 0.0
    %5053 = vmatprep.subr.mxu0 0.0
    %5054 = vmatpush1.msra.mxu0 0.0
    %5055 = vmatprep.subr.mxu0 0.0
    %5056 = vmatpush1.msra.mxu0 0.0
    %5057 = vmatprep.subr.mxu0 0.0
    %5058 = vmatpush1.msra.mxu0 0.0
    %5059 = vmatprep.subr.mxu0 0.0
    %5060 = vmatpush1.msra.mxu0 0.0
    %5061 = vmatprep.subr.mxu0 0.0
    %5062 = vmatpush1.msra.mxu0 0.0
    %5063 = vmatprep.subr.mxu0 0.0
    %5064 = vmatpush1.msra.mxu0 0.0
    %5065 = vmatprep.subr.mxu0 0.0
    %5066 = vmatpush1.msra.mxu0 0.0
    %5067 = vmatprep.subr.mxu0 0.0
    %5068 = vmatpush1.msra.mxu0 0.0
    %5069 = vmatprep.mubr.f32.mxu0 0.0
    %5070 = vmatmul.mubr.f32.gmra.mrb[0].mxu0 %v5003
    %v5071 = vpop.f32.mrb[0].mxu0
    %v5072 = vadd.f32 0.0, %v5071
    %v5073 = vpop.f32.mrb[0].mxu0
    %5074 = vdwg.mxu0
    %v5075 = vadd.f32 %v4837, %v5072
    %v5077 = vsel %vm1154, %v4186, 0
    %v5080 = vsel %vm1154, %v4274, 0
    %5082 = vmatprep.subr.mxu0 0.0
    %5083 = vmatpush1.xpose.msra.mxu0 %v5080
    %5084 = vmatprep.subr.mxu0 0.0
    %5085 = vmatpush1.xpose.msra.mxu0 0.0
    %5086 = vmatprep.subr.mxu0 0.0
    %5087 = vmatpush1.xpose.msra.mxu0 0.0
    %5088 = vmatprep.subr.mxu0 0.0
    %5089 = vmatpush1.xpose.msra.mxu0 0.0
    %5090 = vmatprep.subr.mxu0 0.0
    %5091 = vmatpush1.xpose.msra.mxu0 0.0
    %5092 = vmatprep.subr.mxu0 0.0
    %5093 = vmatpush1.xpose.msra.mxu0 0.0
    %5094 = vmatprep.subr.mxu0 0.0
    %5095 = vmatpush1.xpose.msra.mxu0 0.0
    %5096 = vmatprep.subr.mxu0 0.0
    %5097 = vmatpush1.xpose.msra.mxu0 0.0
    %5098 = vmatprep.subr.mxu0 0.0
    %5099 = vmatpush1.xpose.msra.mxu0 0.0
    %5100 = vmatprep.subr.mxu0 0.0
    %5101 = vmatpush1.xpose.msra.mxu0 0.0
    %5102 = vmatprep.subr.mxu0 0.0
    %5103 = vmatpush1.xpose.msra.mxu0 0.0
    %5104 = vmatprep.subr.mxu0 0.0
    %5105 = vmatpush1.xpose.msra.mxu0 0.0
    %5106 = vmatprep.subr.mxu0 0.0
    %5107 = vmatpush1.xpose.msra.mxu0 0.0
    %5108 = vmatprep.subr.mxu0 0.0
    %5109 = vmatpush1.xpose.msra.mxu0 0.0
    %5110 = vmatprep.subr.mxu0 0.0
    %5111 = vmatpush1.xpose.msra.mxu0 0.0
    %5112 = vmatprep.subr.mxu0 0.0
    %5113 = vmatpush1.xpose.msra.mxu0 0.0
    %5114 = vmatprep.subr.mxu0 0.0
    %5115 = vmatpush1.xpose.msra.mxu0 0.0
    %5116 = vmatprep.subr.mxu0 0.0
    %5117 = vmatpush1.xpose.msra.mxu0 0.0
    %5118 = vmatprep.subr.mxu0 0.0
    %5119 = vmatpush1.xpose.msra.mxu0 0.0
    %5120 = vmatprep.subr.mxu0 0.0
    %5121 = vmatpush1.xpose.msra.mxu0 0.0
    %5122 = vmatprep.subr.mxu0 0.0
    %5123 = vmatpush1.xpose.msra.mxu0 0.0
    %5124 = vmatprep.subr.mxu0 0.0
    %5125 = vmatpush1.xpose.msra.mxu0 0.0
    %5126 = vmatprep.subr.mxu0 0.0
    %5127 = vmatpush1.xpose.msra.mxu0 0.0
    %5128 = vmatprep.subr.mxu0 0.0
    %5129 = vmatpush1.xpose.msra.mxu0 0.0
    %5130 = vmatprep.subr.mxu0 0.0
    %5131 = vmatpush1.xpose.msra.mxu0 0.0
    %5132 = vmatprep.subr.mxu0 0.0
    %5133 = vmatpush1.xpose.msra.mxu0 0.0
    %5134 = vmatprep.subr.mxu0 0.0
    %5135 = vmatpush1.xpose.msra.mxu0 0.0
    %5136 = vmatprep.subr.mxu0 0.0
    %5137 = vmatpush1.xpose.msra.mxu0 0.0
    %5138 = vmatprep.subr.mxu0 0.0
    %5139 = vmatpush1.xpose.msra.mxu0 0.0
    %5140 = vmatprep.subr.mxu0 0.0
    %5141 = vmatpush1.xpose.msra.mxu0 0.0
    %5142 = vmatprep.subr.mxu0 0.0
    %5143 = vmatpush1.xpose.msra.mxu0 0.0
    %5144 = vmatprep.subr.mxu0 0.0
    %5145 = vmatpush1.xpose.msra.mxu0 0.0
    %5146 = vmatprep.mubr.f32.mxu0 0.0
    %5147 = vmatmul.mubr.f32.gmra.mrb[0].mxu0 %v5077
    %v5148 = vpop.f32.mrb[0].mxu0
    %v5149 = vadd.f32 %v45, %v5148
    %v5150 = vpop.f32.mrb[0].mxu0
    %5151 = vdwg.mxu0
    %v5152 = vsel %vm1154, %v5149, -inf
    %5153 = vmax.xlane.f32.xlu0 %v5152
    %v5154 = vpop.xlane.xlu0 %5153
    %v5155 = vsub.f32 %v5149, %v5154
    %v5156 = vmul.f32 %v5155, 1.442695
    %v5157 = vpow.pop %v5156
    %v5158 = vsel %vm1154, %v5157, 0.0
    %5159 = vadd.xlane.f32.xlu0 %v5158
    %v5160 = vpop.xlane.xlu0 %5159
    %v5161 = vrcp.pop %v5160
    %v5162 = vmul.f32 %v5157, %v5161
    %v5164 = vsel %vm1154, %v5162, 0
    %5166 = vmatprep.subr.mxu0 0.0
    %5167 = vmatpush1.msra.mxu0 %v4362
    %5168 = vmatprep.subr.mxu0 0.0
    %5169 = vmatpush1.msra.mxu0 0.0
    %5170 = vmatprep.subr.mxu0 0.0
    %5171 = vmatpush1.msra.mxu0 0.0
    %5172 = vmatprep.subr.mxu0 0.0
    %5173 = vmatpush1.msra.mxu0 0.0
    %5174 = vmatprep.subr.mxu0 0.0
    %5175 = vmatpush1.msra.mxu0 0.0
    %5176 = vmatprep.subr.mxu0 0.0
    %5177 = vmatpush1.msra.mxu0 0.0
    %5178 = vmatprep.subr.mxu0 0.0
    %5179 = vmatpush1.msra.mxu0 0.0
    %5180 = vmatprep.subr.mxu0 0.0
    %5181 = vmatpush1.msra.mxu0 0.0
    %5182 = vmatprep.subr.mxu0 0.0
    %5183 = vmatpush1.msra.mxu0 0.0
    %5184 = vmatprep.subr.mxu0 0.0
    %5185 = vmatpush1.msra.mxu0 0.0
    %5186 = vmatprep.subr.mxu0 0.0
    %5187 = vmatpush1.msra.mxu0 0.0
    %5188 = vmatprep.subr.mxu0 0.0
    %5189 = vmatpush1.msra.mxu0 0.0
    %5190 = vmatprep.subr.mxu0 0.0
    %5191 = vmatpush1.msra.mxu0 0.0
    %5192 = vmatprep.subr.mxu0 0.0
    %5193 = vmatpush1.msra.mxu0 0.0
    %5194 = vmatprep.subr.mxu0 0.0
    %5195 = vmatpush1.msra.mxu0 0.0
    %5196 = vmatprep.subr.mxu0 0.0
    %5197 = vmatpush1.msra.mxu0 0.0
    %5198 = vmatprep.subr.mxu0 0.0
    %5199 = vmatpush1.msra.mxu0 0.0
    %5200 = vmatprep.subr.mxu0 0.0
    %5201 = vmatpush1.msra.mxu0 0.0
    %5202 = vmatprep.subr.mxu0 0.0
    %5203 = vmatpush1.msra.mxu0 0.0
    %5204 = vmatprep.subr.mxu0 0.0
    %5205 = vmatpush1.msra.mxu0 0.0
    %5206 = vmatprep.subr.mxu0 0.0
    %5207 = vmatpush1.msra.mxu0 0.0
    %5208 = vmatprep.subr.mxu0 0.0
    %5209 = vmatpush1.msra.mxu0 0.0
    %5210 = vmatprep.subr.mxu0 0.0
    %5211 = vmatpush1.msra.mxu0 0.0
    %5212 = vmatprep.subr.mxu0 0.0
    %5213 = vmatpush1.msra.mxu0 0.0
    %5214 = vmatprep.subr.mxu0 0.0
    %5215 = vmatpush1.msra.mxu0 0.0
    %5216 = vmatprep.subr.mxu0 0.0
    %5217 = vmatpush1.msra.mxu0 0.0
    %5218 = vmatprep.subr.mxu0 0.0
    %5219 = vmatpush1.msra.mxu0 0.0
    %5220 = vmatprep.subr.mxu0 0.0
    %5221 = vmatpush1.msra.mxu0 0.0
    %5222 = vmatprep.subr.mxu0 0.0
    %5223 = vmatpush1.msra.mxu0 0.0
    %5224 = vmatprep.subr.mxu0 0.0
    %5225 = vmatpush1.msra.mxu0 0.0
    %5226 = vmatprep.subr.mxu0 0.0
    %5227 = vmatpush1.msra.mxu0 0.0
    %5228 = vmatprep.subr.mxu0 0.0
    %5229 = vmatpush1.msra.mxu0 0.0
    %5230 = vmatprep.mubr.f32.mxu0 0.0
    %5231 = vmatmul.mubr.f32.gmra.mrb[0].mxu0 %v5164
    %v5232 = vpop.f32.mrb[0].mxu0
    %v5233 = vadd.f32 0.0, %v5232
    %v5234 = vpop.f32.mrb[0].mxu0
    %5235 = vdwg.mxu0
    %s5236 = scalar_lea.vmem %s4, 56
    %v5237 = vld [vmem:[%s5236] sm:$0xff]
    %v5239 = vsel %vm1154, %v5233, 0
    %5241 = vmatprep.subr.mxu0 0.0
    %5242 = vmatpush1.msra.mxu0 %v5237
    %5243 = vmatprep.subr.mxu0 0.0
    %5244 = vmatpush1.msra.mxu0 0.0
    %5245 = vmatprep.subr.mxu0 0.0
    %5246 = vmatpush1.msra.mxu0 0.0
    %5247 = vmatprep.subr.mxu0 0.0
    %5248 = vmatpush1.msra.mxu0 0.0
    %5249 = vmatprep.subr.mxu0 0.0
    %5250 = vmatpush1.msra.mxu0 0.0
    %5251 = vmatprep.subr.mxu0 0.0
    %5252 = vmatpush1.msra.mxu0 0.0
    %5253 = vmatprep.subr.mxu0 0.0
    %5254 = vmatpush1.msra.mxu0 0.0
    %5255 = vmatprep.subr.mxu0 0.0
    %5256 = vmatpush1.msra.mxu0 0.0
    %5257 = vmatprep.subr.mxu0 0.0
    %5258 = vmatpush1.msra.mxu0 0.0
    %5259 = vmatprep.subr.mxu0 0.0
    %5260 = vmatpush1.msra.mxu0 0.0
    %5261 = vmatprep.subr.mxu0 0.0
    %5262 = vmatpush1.msra.mxu0 0.0
    %5263 = vmatprep.subr.mxu0 0.0
    %5264 = vmatpush1.msra.mxu0 0.0
    %5265 = vmatprep.subr.mxu0 0.0
    %5266 = vmatpush1.msra.mxu0 0.0
    %5267 = vmatprep.subr.mxu0 0.0
    %5268 = vmatpush1.msra.mxu0 0.0
    %5269 = vmatprep.subr.mxu0 0.0
    %5270 = vmatpush1.msra.mxu0 0.0
    %5271 = vmatprep.subr.mxu0 0.0
    %5272 = vmatpush1.msra.mxu0 0.0
    %5273 = vmatprep.subr.mxu0 0.0
    %5274 = vmatpush1.msra.mxu0 0.0
    %5275 = vmatprep.subr.mxu0 0.0
    %5276 = vmatpush1.msra.mxu0 0.0
    %5277 = vmatprep.subr.mxu0 0.0
    %5278 = vmatpush1.msra.mxu0 0.0
    %5279 = vmatprep.subr.mxu0 0.0
    %5280 = vmatpush1.msra.mxu0 0.0
    %5281 = vmatprep.subr.mxu0 0.0
    %5282 = vmatpush1.msra.mxu0 0.0
    %5283 = vmatprep.subr.mxu0 0.0
    %5284 = vmatpush1.msra.mxu0 0.0
    %5285 = vmatprep.subr.mxu0 0.0
    %5286 = vmatpush1.msra.mxu0 0.0
    %5287 = vmatprep.subr.mxu0 0.0
    %5288 = vmatpush1.msra.mxu0 0.0
    %5289 = vmatprep.subr.mxu0 0.0
    %5290 = vmatpush1.msra.mxu0 0.0
    %5291 = vmatprep.subr.mxu0 0.0
    %5292 = vmatpush1.msra.mxu0 0.0
    %5293 = vmatprep.subr.mxu0 0.0
    %5294 = vmatpush1.msra.mxu0 0.0
    %5295 = vmatprep.subr.mxu0 0.0
    %5296 = vmatpush1.msra.mxu0 0.0
    %5297 = vmatprep.subr.mxu0 0.0
    %5298 = vmatpush1.msra.mxu0 0.0
    %5299 = vmatprep.subr.mxu0 0.0
    %5300 = vmatpush1.msra.mxu0 0.0
    %5301 = vmatprep.subr.mxu0 0.0
    %5302 = vmatpush1.msra.mxu0 0.0
    %5303 = vmatprep.subr.mxu0 0.0
    %5304 = vmatpush1.msra.mxu0 0.0
    %5305 = vmatprep.mubr.f32.mxu0 0.0
    %5306 = vmatmul.mubr.f32.gmra.mrb[0].mxu0 %v5239
    %v5307 = vpop.f32.mrb[0].mxu0
    %v5308 = vadd.f32 0.0, %v5307
    %v5309 = vpop.f32.mrb[0].mxu0
    %5310 = vdwg.mxu0
    %v5311 = vadd.f32 %v5075, %v5308
    %v5313 = vsel %vm1154, %v3399, 0
    %v5316 = vsel %vm1154, %v3487, 0
    %5318 = vmatprep.subr.mxu0 0.0
    %5319 = vmatpush1.xpose.msra.mxu0 %v5316
    %5320 = vmatprep.subr.mxu0 0.0
    %5321 = vmatpush1.xpose.msra.mxu0 0.0
    %5322 = vmatprep.subr.mxu0 0.0
    %5323 = vmatpush1.xpose.msra.mxu0 0.0
    %5324 = vmatprep.subr.mxu0 0.0
    %5325 = vmatpush1.xpose.msra.mxu0 0.0
    %5326 = vmatprep.subr.mxu0 0.0
    %5327 = vmatpush1.xpose.msra.mxu0 0.0
    %5328 = vmatprep.subr.mxu0 0.0
    %5329 = vmatpush1.xpose.msra.mxu0 0.0
    %5330 = vmatprep.subr.mxu0 0.0
    %5331 = vmatpush1.xpose.msra.mxu0 0.0
    %5332 = vmatprep.subr.mxu0 0.0
    %5333 = vmatpush1.xpose.msra.mxu0 0.0
    %5334 = vmatprep.subr.mxu0 0.0
    %5335 = vmatpush1.xpose.msra.mxu0 0.0
    %5336 = vmatprep.subr.mxu0 0.0
    %5337 = vmatpush1.xpose.msra.mxu0 0.0
    %5338 = vmatprep.subr.mxu0 0.0
    %5339 = vmatpush1.xpose.msra.mxu0 0.0
    %5340 = vmatprep.subr.mxu0 0.0
    %5341 = vmatpush1.xpose.msra.mxu0 0.0
    %5342 = vmatprep.subr.mxu0 0.0
    %5343 = vmatpush1.xpose.msra.mxu0 0.0
    %5344 = vmatprep.subr.mxu0 0.0
    %5345 = vmatpush1.xpose.msra.mxu0 0.0
    %5346 = vmatprep.subr.mxu0 0.0
    %5347 = vmatpush1.xpose.msra.mxu0 0.0
    %5348 = vmatprep.subr.mxu0 0.0
    %5349 = vmatpush1.xpose.msra.mxu0 0.0
    %5350 = vmatprep.subr.mxu0 0.0
    %5351 = vmatpush1.xpose.msra.mxu0 0.0
    %5352 = vmatprep.subr.mxu0 0.0
    %5353 = vmatpush1.xpose.msra.mxu0 0.0
    %5354 = vmatprep.subr.mxu0 0.0
    %5355 = vmatpush1.xpose.msra.mxu0 0.0
    %5356 = vmatprep.subr.mxu0 0.0
    %5357 = vmatpush1.xpose.msra.mxu0 0.0
    %5358 = vmatprep.subr.mxu0 0.0
    %5359 = vmatpush1.xpose.msra.mxu0 0.0
    %5360 = vmatprep.subr.mxu0 0.0
    %5361 = vmatpush1.xpose.msra.mxu0 0.0
    %5362 = vmatprep.subr.mxu0 0.0
    %5363 = vmatpush1.xpose.msra.mxu0 0.0
    %5364 = vmatprep.subr.mxu0 0.0
    %5365 = vmatpush1.xpose.msra.mxu0 0.0
    %5366 = vmatprep.subr.mxu0 0.0
    %5367 = vmatpush1.xpose.msra.mxu0 0.0
    %5368 = vmatprep.subr.mxu0 0.0
    %5369 = vmatpush1.xpose.msra.mxu0 0.0
    %5370 = vmatprep.subr.mxu0 0.0
    %5371 = vmatpush1.xpose.msra.mxu0 0.0
    %5372 = vmatprep.subr.mxu0 0.0
    %5373 = vmatpush1.xpose.msra.mxu0 0.0
    %5374 = vmatprep.subr.mxu0 0.0
    %5375 = vmatpush1.xpose.msra.mxu0 0.0
    %5376 = vmatprep.subr.mxu0 0.0
    %5377 = vmatpush1.xpose.msra.mxu0 0.0
    %5378 = vmatprep.subr.mxu0 0.0
    %5379 = vmatpush1.xpose.msra.mxu0 0.0
    %5380 = vmatprep.subr.mxu0 0.0
    %5381 = vmatpush1.xpose.msra.mxu0 0.0
    %5382 = vmatprep.mubr.f32.mxu0 0.0
    %5383 = vmatmul.mubr.f32.gmra.mrb[0].mxu0 %v5313
    %v5384 = vpop.f32.mrb[0].mxu0
    %v5385 = vadd.f32 %v51, %v5384
    %v5386 = vpop.f32.mrb[0].mxu0
    %5387 = vdwg.mxu0
    %v5388 = vsel %vm1154, %v5385, -inf
    %5389 = vmax.xlane.f32.xlu0 %v5388
    %v5390 = vpop.xlane.xlu0 %5389
    %v5391 = vsub.f32 %v5385, %v5390
    %v5392 = vmul.f32 %v5391, 1.442695
    %v5393 = vpow.pop %v5392
    %v5394 = vsel %vm1154, %v5393, 0.0
    %5395 = vadd.xlane.f32.xlu0 %v5394
    %v5396 = vpop.xlane.xlu0 %5395
    %v5397 = vrcp.pop %v5396
    %v5398 = vmul.f32 %v5393, %v5397
    %v5400 = vsel %vm1154, %v5398, 0
    %5402 = vmatprep.subr.mxu0 0.0
    %5403 = vmatpush1.msra.mxu0 %v3575
    %5404 = vmatprep.subr.mxu0 0.0
    %5405 = vmatpush1.msra.mxu0 0.0
    %5406 = vmatprep.subr.mxu0 0.0
    %5407 = vmatpush1.msra.mxu0 0.0
    %5408 = vmatprep.subr.mxu0 0.0
    %5409 = vmatpush1.msra.mxu0 0.0
    %5410 = vmatprep.subr.mxu0 0.0
    %5411 = vmatpush1.msra.mxu0 0.0
    %5412 = vmatprep.subr.mxu0 0.0
    %5413 = vmatpush1.msra.mxu0 0.0
    %5414 = vmatprep.subr.mxu0 0.0
    %5415 = vmatpush1.msra.mxu0 0.0
    %5416 = vmatprep.subr.mxu0 0.0
    %5417 = vmatpush1.msra.mxu0 0.0
    %5418 = vmatprep.subr.mxu0 0.0
    %5419 = vmatpush1.msra.mxu0 0.0
    %5420 = vmatprep.subr.mxu0 0.0
    %5421 = vmatpush1.msra.mxu0 0.0
    %5422 = vmatprep.subr.mxu0 0.0
    %5423 = vmatpush1.msra.mxu0 0.0
    %5424 = vmatprep.subr.mxu0 0.0
    %5425 = vmatpush1.msra.mxu0 0.0
    %5426 = vmatprep.subr.mxu0 0.0
    %5427 = vmatpush1.msra.mxu0 0.0
    %5428 = vmatprep.subr.mxu0 0.0
    %5429 = vmatpush1.msra.mxu0 0.0
    %5430 = vmatprep.subr.mxu0 0.0
    %5431 = vmatpush1.msra.mxu0 0.0
    %5432 = vmatprep.subr.mxu0 0.0
    %5433 = vmatpush1.msra.mxu0 0.0
    %5434 = vmatprep.subr.mxu0 0.0
    %5435 = vmatpush1.msra.mxu0 0.0
    %5436 = vmatprep.subr.mxu0 0.0
    %5437 = vmatpush1.msra.mxu0 0.0
    %5438 = vmatprep.subr.mxu0 0.0
    %5439 = vmatpush1.msra.mxu0 0.0
    %5440 = vmatprep.subr.mxu0 0.0
    %5441 = vmatpush1.msra.mxu0 0.0
    %5442 = vmatprep.subr.mxu0 0.0
    %5443 = vmatpush1.msra.mxu0 0.0
    %5444 = vmatprep.subr.mxu0 0.0
    %5445 = vmatpush1.msra.mxu0 0.0
    %5446 = vmatprep.subr.mxu0 0.0
    %5447 = vmatpush1.msra.mxu0 0.0
    %5448 = vmatprep.subr.mxu0 0.0
    %5449 = vmatpush1.msra.mxu0 0.0
    %5450 = vmatprep.subr.mxu0 0.0
    %5451 = vmatpush1.msra.mxu0 0.0
    %5452 = vmatprep.subr.mxu0 0.0
    %5453 = vmatpush1.msra.mxu0 0.0
    %5454 = vmatprep.subr.mxu0 0.0
    %5455 = vmatpush1.msra.mxu0 0.0
    %5456 = vmatprep.subr.mxu0 0.0
    %5457 = vmatpush1.msra.mxu0 0.0
    %5458 = vmatprep.subr.mxu0 0.0
    %5459 = vmatpush1.msra.mxu0 0.0
    %5460 = vmatprep.subr.mxu0 0.0
    %5461 = vmatpush1.msra.mxu0 0.0
    %5462 = vmatprep.subr.mxu0 0.0
    %5463 = vmatpush1.msra.mxu0 0.0
    %5464 = vmatprep.subr.mxu0 0.0
    %5465 = vmatpush1.msra.mxu0 0.0
    %5466 = vmatprep.mubr.f32.mxu0 0.0
    %5467 = vmatmul.mubr.f32.gmra.mrb[0].mxu0 %v5400
    %v5468 = vpop.f32.mrb[0].mxu0
    %v5469 = vadd.f32 0.0, %v5468
    %v5470 = vpop.f32.mrb[0].mxu0
    %5471 = vdwg.mxu0
    %v5473 = vsel %vm1154, %v3663, 0
    %v5476 = vsel %vm1154, %v3751, 0
    %5478 = vmatprep.subr.mxu0 0.0
    %5479 = vmatpush1.xpose.msra.mxu0 %v5476
    %5480 = vmatprep.subr.mxu0 0.0
    %5481 = vmatpush1.xpose.msra.mxu0 0.0
    %5482 = vmatprep.subr.mxu0 0.0
    %5483 = vmatpush1.xpose.msra.mxu0 0.0
    %5484 = vmatprep.subr.mxu0 0.0
    %5485 = vmatpush1.xpose.msra.mxu0 0.0
    %5486 = vmatprep.subr.mxu0 0.0
    %5487 = vmatpush1.xpose.msra.mxu0 0.0
    %5488 = vmatprep.subr.mxu0 0.0
    %5489 = vmatpush1.xpose.msra.mxu0 0.0
    %5490 = vmatprep.subr.mxu0 0.0
    %5491 = vmatpush1.xpose.msra.mxu0 0.0
    %5492 = vmatprep.subr.mxu0 0.0
    %5493 = vmatpush1.xpose.msra.mxu0 0.0
    %5494 = vmatprep.subr.mxu0 0.0
    %5495 = vmatpush1.xpose.msra.mxu0 0.0
    %5496 = vmatprep.subr.mxu0 0.0
    %5497 = vmatpush1.xpose.msra.mxu0 0.0
    %5498 = vmatprep.subr.mxu0 0.0
    %5499 = vmatpush1.xpose.msra.mxu0 0.0
    %5500 = vmatprep.subr.mxu0 0.0
    %5501 = vmatpush1.xpose.msra.mxu0 0.0
    %5502 = vmatprep.subr.mxu0 0.0
    %5503 = vmatpush1.xpose.msra.mxu0 0.0
    %5504 = vmatprep.subr.mxu0 0.0
    %5505 = vmatpush1.xpose.msra.mxu0 0.0
    %5506 = vmatprep.subr.mxu0 0.0
    %5507 = vmatpush1.xpose.msra.mxu0 0.0
    %5508 = vmatprep.subr.mxu0 0.0
    %5509 = vmatpush1.xpose.msra.mxu0 0.0
    %5510 = vmatprep.subr.mxu0 0.0
    %5511 = vmatpush1.xpose.msra.mxu0 0.0
    %5512 = vmatprep.subr.mxu0 0.0
    %5513 = vmatpush1.xpose.msra.mxu0 0.0
    %5514 = vmatprep.subr.mxu0 0.0
    %5515 = vmatpush1.xpose.msra.mxu0 0.0
    %5516 = vmatprep.subr.mxu0 0.0
    %5517 = vmatpush1.xpose.msra.mxu0 0.0
    %5518 = vmatprep.subr.mxu0 0.0
    %5519 = vmatpush1.xpose.msra.mxu0 0.0
    %5520 = vmatprep.subr.mxu0 0.0
    %5521 = vmatpush1.xpose.msra.mxu0 0.0
    %5522 = vmatprep.subr.mxu0 0.0
    %5523 = vmatpush1.xpose.msra.mxu0 0.0
    %5524 = vmatprep.subr.mxu0 0.0
    %5525 = vmatpush1.xpose.msra.mxu0 0.0
    %5526 = vmatprep.subr.mxu0 0.0
    %5527 = vmatpush1.xpose.msra.mxu0 0.0
    %5528 = vmatprep.subr.mxu0 0.0
    %5529 = vmatpush1.xpose.msra.mxu0 0.0
    %5530 = vmatprep.subr.mxu0 0.0
    %5531 = vmatpush1.xpose.msra.mxu0 0.0
    %5532 = vmatprep.subr.mxu0 0.0
    %5533 = vmatpush1.xpose.msra.mxu0 0.0
    %5534 = vmatprep.subr.mxu0 0.0
    %5535 = vmatpush1.xpose.msra.mxu0 0.0
    %5536 = vmatprep.subr.mxu0 0.0
    %5537 = vmatpush1.xpose.msra.mxu0 0.0
    %5538 = vmatprep.subr.mxu0 0.0
    %5539 = vmatpush1.xpose.msra.mxu0 0.0
    %5540 = vmatprep.subr.mxu0 0.0
    %5541 = vmatpush1.xpose.msra.mxu0 0.0
    %5542 = vmatprep.mubr.f32.mxu0 0.0
    %5543 = vmatmul.mubr.f32.gmra.mrb[0].mxu0 %v5473
    %v5544 = vpop.f32.mrb[0].mxu0
    %v5545 = vadd.f32 %v51, %v5544
    %v5546 = vpop.f32.mrb[0].mxu0
    %5547 = vdwg.mxu0
    %v5548 = vsel %vm1154, %v5545, -inf
    %5549 = vmax.xlane.f32.xlu0 %v5548
    %v5550 = vpop.xlane.xlu0 %5549
    %v5551 = vsub.f32 %v5545, %v5550
    %v5552 = vmul.f32 %v5551, 1.442695
    %v5553 = vpow.pop %v5552
    %v5554 = vsel %vm1154, %v5553, 0.0
    %5555 = vadd.xlane.f32.xlu0 %v5554
    %v5556 = vpop.xlane.xlu0 %5555
    %v5557 = vrcp.pop %v5556
    %v5558 = vmul.f32 %v5553, %v5557
    %v5560 = vsel %vm1154, %v5558, 0
    %5562 = vmatprep.subr.mxu0 0.0
    %5563 = vmatpush1.msra.mxu0 %v3839
    %5564 = vmatprep.subr.mxu0 0.0
    %5565 = vmatpush1.msra.mxu0 0.0
    %5566 = vmatprep.subr.mxu0 0.0
    %5567 = vmatpush1.msra.mxu0 0.0
    %5568 = vmatprep.subr.mxu0 0.0
    %5569 = vmatpush1.msra.mxu0 0.0
    %5570 = vmatprep.subr.mxu0 0.0
    %5571 = vmatpush1.msra.mxu0 0.0
    %5572 = vmatprep.subr.mxu0 0.0
    %5573 = vmatpush1.msra.mxu0 0.0
    %5574 = vmatprep.subr.mxu0 0.0
    %5575 = vmatpush1.msra.mxu0 0.0
    %5576 = vmatprep.subr.mxu0 0.0
    %5577 = vmatpush1.msra.mxu0 0.0
    %5578 = vmatprep.subr.mxu0 0.0
    %5579 = vmatpush1.msra.mxu0 0.0
    %5580 = vmatprep.subr.mxu0 0.0
    %5581 = vmatpush1.msra.mxu0 0.0
    %5582 = vmatprep.subr.mxu0 0.0
    %5583 = vmatpush1.msra.mxu0 0.0
    %5584 = vmatprep.subr.mxu0 0.0
    %5585 = vmatpush1.msra.mxu0 0.0
    %5586 = vmatprep.subr.mxu0 0.0
    %5587 = vmatpush1.msra.mxu0 0.0
    %5588 = vmatprep.subr.mxu0 0.0
    %5589 = vmatpush1.msra.mxu0 0.0
    %5590 = vmatprep.subr.mxu0 0.0
    %5591 = vmatpush1.msra.mxu0 0.0
    %5592 = vmatprep.subr.mxu0 0.0
    %5593 = vmatpush1.msra.mxu0 0.0
    %5594 = vmatprep.subr.mxu0 0.0
    %5595 = vmatpush1.msra.mxu0 0.0
    %5596 = vmatprep.subr.mxu0 0.0
    %5597 = vmatpush1.msra.mxu0 0.0
    %5598 = vmatprep.subr.mxu0 0.0
    %5599 = vmatpush1.msra.mxu0 0.0
    %5600 = vmatprep.subr.mxu0 0.0
    %5601 = vmatpush1.msra.mxu0 0.0
    %5602 = vmatprep.subr.mxu0 0.0
    %5603 = vmatpush1.msra.mxu0 0.0
    %5604 = vmatprep.subr.mxu0 0.0
    %5605 = vmatpush1.msra.mxu0 0.0
    %5606 = vmatprep.subr.mxu0 0.0
    %5607 = vmatpush1.msra.mxu0 0.0
    %5608 = vmatprep.subr.mxu0 0.0
    %5609 = vmatpush1.msra.mxu0 0.0
    %5610 = vmatprep.subr.mxu0 0.0
    %5611 = vmatpush1.msra.mxu0 0.0
    %5612 = vmatprep.subr.mxu0 0.0
    %5613 = vmatpush1.msra.mxu0 0.0
    %5614 = vmatprep.subr.mxu0 0.0
    %5615 = vmatpush1.msra.mxu0 0.0
    %5616 = vmatprep.subr.mxu0 0.0
    %5617 = vmatpush1.msra.mxu0 0.0
    %5618 = vmatprep.subr.mxu0 0.0
    %5619 = vmatpush1.msra.mxu0 0.0
    %5620 = vmatprep.subr.mxu0 0.0
    %5621 = vmatpush1.msra.mxu0 0.0
    %5622 = vmatprep.subr.mxu0 0.0
    %5623 = vmatpush1.msra.mxu0 0.0
    %5624 = vmatprep.subr.mxu0 0.0
    %5625 = vmatpush1.msra.mxu0 0.0
    %5626 = vmatprep.mubr.f32.mxu0 0.0
    %5627 = vmatmul.mubr.f32.gmra.mrb[0].mxu0 %v5560
    %v5628 = vpop.f32.mrb[0].mxu0
    %v5629 = vadd.f32 0.0, %v5628
    %v5630 = vpop.f32.mrb[0].mxu0
    %5631 = vdwg.mxu0
    %v5633 = vsel %vm1154, %v5629, 0
    %5635 = vmatprep.subr.mxu0 0.0
    %5636 = vmatpush1.msra.mxu0 %v4693
    %5637 = vmatprep.subr.mxu0 0.0
    %5638 = vmatpush1.msra.mxu0 0.0
    %5639 = vmatprep.subr.mxu0 0.0
    %5640 = vmatpush1.msra.mxu0 0.0
    %5641 = vmatprep.subr.mxu0 0.0
    %5642 = vmatpush1.msra.mxu0 0.0
    %5643 = vmatprep.subr.mxu0 0.0
    %5644 = vmatpush1.msra.mxu0 0.0
    %5645 = vmatprep.subr.mxu0 0.0
    %5646 = vmatpush1.msra.mxu0 0.0
    %5647 = vmatprep.subr.mxu0 0.0
    %5648 = vmatpush1.msra.mxu0 0.0
    %5649 = vmatprep.subr.mxu0 0.0
    %5650 = vmatpush1.msra.mxu0 0.0
    %5651 = vmatprep.subr.mxu0 0.0
    %5652 = vmatpush1.msra.mxu0 0.0
    %5653 = vmatprep.subr.mxu0 0.0
    %5654 = vmatpush1.msra.mxu0 0.0
    %5655 = vmatprep.subr.mxu0 0.0
    %5656 = vmatpush1.msra.mxu0 0.0
    %5657 = vmatprep.subr.mxu0 0.0
    %5658 = vmatpush1.msra.mxu0 0.0
    %5659 = vmatprep.subr.mxu0 0.0
    %5660 = vmatpush1.msra.mxu0 0.0
    %5661 = vmatprep.subr.mxu0 0.0
    %5662 = vmatpush1.msra.mxu0 0.0
    %5663 = vmatprep.subr.mxu0 0.0
    %5664 = vmatpush1.msra.mxu0 0.0
    %5665 = vmatprep.subr.mxu0 0.0
    %5666 = vmatpush1.msra.mxu0 0.0
    %5667 = vmatprep.subr.mxu0 0.0
    %5668 = vmatpush1.msra.mxu0 0.0
    %5669 = vmatprep.subr.mxu0 0.0
    %5670 = vmatpush1.msra.mxu0 0.0
    %5671 = vmatprep.subr.mxu0 0.0
    %5672 = vmatpush1.msra.mxu0 0.0
    %5673 = vmatprep.subr.mxu0 0.0
    %5674 = vmatpush1.msra.mxu0 0.0
    %5675 = vmatprep.subr.mxu0 0.0
    %5676 = vmatpush1.msra.mxu0 0.0
    %5677 = vmatprep.subr.mxu0 0.0
    %5678 = vmatpush1.msra.mxu0 0.0
    %5679 = vmatprep.subr.mxu0 0.0
    %5680 = vmatpush1.msra.mxu0 0.0
    %5681 = vmatprep.subr.mxu0 0.0
    %5682 = vmatpush1.msra.mxu0 0.0
    %5683 = vmatprep.subr.mxu0 0.0
    %5684 = vmatpush1.msra.mxu0 0.0
    %5685 = vmatprep.subr.mxu0 0.0
    %5686 = vmatpush1.msra.mxu0 0.0
    %5687 = vmatprep.subr.mxu0 0.0
    %5688 = vmatpush1.msra.mxu0 0.0
    %5689 = vmatprep.subr.mxu0 0.0
    %5690 = vmatpush1.msra.mxu0 0.0
    %5691 = vmatprep.subr.mxu0 0.0
    %5692 = vmatpush1.msra.mxu0 0.0
    %5693 = vmatprep.subr.mxu0 0.0
    %5694 = vmatpush1.msra.mxu0 0.0
    %5695 = vmatprep.subr.mxu0 0.0
    %5696 = vmatpush1.msra.mxu0 0.0
    %5697 = vmatprep.subr.mxu0 0.0
    %5698 = vmatpush1.msra.mxu0 0.0
    %5699 = vmatprep.mubr.f32.mxu0 0.0
    %5700 = vmatmul.mubr.f32.gmra.mrb[0].mxu0 %v5633
    %v5701 = vpop.f32.mrb[0].mxu0
    %v5702 = vadd.f32 0.0, %v5701
    %v5703 = vpop.f32.mrb[0].mxu0
    %5704 = vdwg.mxu0
    %v5706 = vsel %vm1154, %v5469, 0
    %5708 = vmatprep.subr.mxu0 0.0
    %5709 = vmatpush1.msra.mxu0 %v4531
    %5710 = vmatprep.subr.mxu0 0.0
    %5711 = vmatpush1.msra.mxu0 0.0
    %5712 = vmatprep.subr.mxu0 0.0
    %5713 = vmatpush1.msra.mxu0 0.0
    %5714 = vmatprep.subr.mxu0 0.0
    %5715 = vmatpush1.msra.mxu0 0.0
    %5716 = vmatprep.subr.mxu0 0.0
    %5717 = vmatpush1.msra.mxu0 0.0
    %5718 = vmatprep.subr.mxu0 0.0
    %5719 = vmatpush1.msra.mxu0 0.0
    %5720 = vmatprep.subr.mxu0 0.0
    %5721 = vmatpush1.msra.mxu0 0.0
    %5722 = vmatprep.subr.mxu0 0.0
    %5723 = vmatpush1.msra.mxu0 0.0
    %5724 = vmatprep.subr.mxu0 0.0
    %5725 = vmatpush1.msra.mxu0 0.0
    %5726 = vmatprep.subr.mxu0 0.0
    %5727 = vmatpush1.msra.mxu0 0.0
    %5728 = vmatprep.subr.mxu0 0.0
    %5729 = vmatpush1.msra.mxu0 0.0
    %5730 = vmatprep.subr.mxu0 0.0
    %5731 = vmatpush1.msra.mxu0 0.0
    %5732 = vmatprep.subr.mxu0 0.0
    %5733 = vmatpush1.msra.mxu0 0.0
    %5734 = vmatprep.subr.mxu0 0.0
    %5735 = vmatpush1.msra.mxu0 0.0
    %5736 = vmatprep.subr.mxu0 0.0
    %5737 = vmatpush1.msra.mxu0 0.0
    %5738 = vmatprep.subr.mxu0 0.0
    %5739 = vmatpush1.msra.mxu0 0.0
    %5740 = vmatprep.subr.mxu0 0.0
    %5741 = vmatpush1.msra.mxu0 0.0
    %5742 = vmatprep.subr.mxu0 0.0
    %5743 = vmatpush1.msra.mxu0 0.0
    %5744 = vmatprep.subr.mxu0 0.0
    %5745 = vmatpush1.msra.mxu0 0.0
    %5746 = vmatprep.subr.mxu0 0.0
    %5747 = vmatpush1.msra.mxu0 0.0
    %5748 = vmatprep.subr.mxu0 0.0
    %5749 = vmatpush1.msra.mxu0 0.0
    %5750 = vmatprep.subr.mxu0 0.0
    %5751 = vmatpush1.msra.mxu0 0.0
    %5752 = vmatprep.subr.mxu0 0.0
    %5753 = vmatpush1.msra.mxu0 0.0
    %5754 = vmatprep.subr.mxu0 0.0
    %5755 = vmatpush1.msra.mxu0 0.0
    %5756 = vmatprep.subr.mxu0 0.0
    %5757 = vmatpush1.msra.mxu0 0.0
    %5758 = vmatprep.subr.mxu0 0.0
    %5759 = vmatpush1.msra.mxu0 0.0
    %5760 = vmatprep.subr.mxu0 0.0
    %5761 = vmatpush1.msra.mxu0 0.0
    %5762 = vmatprep.subr.mxu0 0.0
    %5763 = vmatpush1.msra.mxu0 0.0
    %5764 = vmatprep.subr.mxu0 0.0
    %5765 = vmatpush1.msra.mxu0 0.0
    %5766 = vmatprep.subr.mxu0 0.0
    %5767 = vmatpush1.msra.mxu0 0.0
    %5768 = vmatprep.subr.mxu0 0.0
    %5769 = vmatpush1.msra.mxu0 0.0
    %5770 = vmatprep.subr.mxu0 0.0
    %5771 = vmatpush1.msra.mxu0 0.0
    %5772 = vmatprep.mubr.f32.mxu0 0.0
    %5773 = vmatmul.mubr.f32.gmra.mrb[0].mxu0 %v5706
    %v5774 = vpop.f32.mrb[0].mxu0
    %v5775 = vadd.f32 %v5702, %v5774
    %v5776 = vpop.f32.mrb[0].mxu0
    %5777 = vdwg.mxu0
    %v5779 = vsel %vm1154, %v3927, 0
    %v5782 = vsel %vm1154, %v4015, 0
    %5784 = vmatprep.subr.mxu0 0.0
    %5785 = vmatpush1.xpose.msra.mxu0 %v5782
    %5786 = vmatprep.subr.mxu0 0.0
    %5787 = vmatpush1.xpose.msra.mxu0 0.0
    %5788 = vmatprep.subr.mxu0 0.0
    %5789 = vmatpush1.xpose.msra.mxu0 0.0
    %5790 = vmatprep.subr.mxu0 0.0
    %5791 = vmatpush1.xpose.msra.mxu0 0.0
    %5792 = vmatprep.subr.mxu0 0.0
    %5793 = vmatpush1.xpose.msra.mxu0 0.0
    %5794 = vmatprep.subr.mxu0 0.0
    %5795 = vmatpush1.xpose.msra.mxu0 0.0
    %5796 = vmatprep.subr.mxu0 0.0
    %5797 = vmatpush1.xpose.msra.mxu0 0.0
    %5798 = vmatprep.subr.mxu0 0.0
    %5799 = vmatpush1.xpose.msra.mxu0 0.0
    %5800 = vmatprep.subr.mxu0 0.0
    %5801 = vmatpush1.xpose.msra.mxu0 0.0
    %5802 = vmatprep.subr.mxu0 0.0
    %5803 = vmatpush1.xpose.msra.mxu0 0.0
    %5804 = vmatprep.subr.mxu0 0.0
    %5805 = vmatpush1.xpose.msra.mxu0 0.0
    %5806 = vmatprep.subr.mxu0 0.0
    %5807 = vmatpush1.xpose.msra.mxu0 0.0
    %5808 = vmatprep.subr.mxu0 0.0
    %5809 = vmatpush1.xpose.msra.mxu0 0.0
    %5810 = vmatprep.subr.mxu0 0.0
    %5811 = vmatpush1.xpose.msra.mxu0 0.0
    %5812 = vmatprep.subr.mxu0 0.0
    %5813 = vmatpush1.xpose.msra.mxu0 0.0
    %5814 = vmatprep.subr.mxu0 0.0
    %5815 = vmatpush1.xpose.msra.mxu0 0.0
    %5816 = vmatprep.subr.mxu0 0.0
    %5817 = vmatpush1.xpose.msra.mxu0 0.0
    %5818 = vmatprep.subr.mxu0 0.0
    %5819 = vmatpush1.xpose.msra.mxu0 0.0
    %5820 = vmatprep.subr.mxu0 0.0
    %5821 = vmatpush1.xpose.msra.mxu0 0.0
    %5822 = vmatprep.subr.mxu0 0.0
    %5823 = vmatpush1.xpose.msra.mxu0 0.0
    %5824 = vmatprep.subr.mxu0 0.0
    %5825 = vmatpush1.xpose.msra.mxu0 0.0
    %5826 = vmatprep.subr.mxu0 0.0
    %5827 = vmatpush1.xpose.msra.mxu0 0.0
    %5828 = vmatprep.subr.mxu0 0.0
    %5829 = vmatpush1.xpose.msra.mxu0 0.0
    %5830 = vmatprep.subr.mxu0 0.0
    %5831 = vmatpush1.xpose.msra.mxu0 0.0
    %5832 = vmatprep.subr.mxu0 0.0
    %5833 = vmatpush1.xpose.msra.mxu0 0.0
    %5834 = vmatprep.subr.mxu0 0.0
    %5835 = vmatpush1.xpose.msra.mxu0 0.0
    %5836 = vmatprep.subr.mxu0 0.0
    %5837 = vmatpush1.xpose.msra.mxu0 0.0
    %5838 = vmatprep.subr.mxu0 0.0
    %5839 = vmatpush1.xpose.msra.mxu0 0.0
    %5840 = vmatprep.subr.mxu0 0.0
    %5841 = vmatpush1.xpose.msra.mxu0 0.0
    %5842 = vmatprep.subr.mxu0 0.0
    %5843 = vmatpush1.xpose.msra.mxu0 0.0
    %5844 = vmatprep.subr.mxu0 0.0
    %5845 = vmatpush1.xpose.msra.mxu0 0.0
    %5846 = vmatprep.subr.mxu0 0.0
    %5847 = vmatpush1.xpose.msra.mxu0 0.0
    %5848 = vmatprep.mubr.f32.mxu0 0.0
    %5849 = vmatmul.mubr.f32.gmra.mrb[0].mxu0 %v5779
    %v5850 = vpop.f32.mrb[0].mxu0
    %v5851 = vadd.f32 %v51, %v5850
    %v5852 = vpop.f32.mrb[0].mxu0
    %5853 = vdwg.mxu0
    %v5854 = vsel %vm1154, %v5851, -inf
    %5855 = vmax.xlane.f32.xlu0 %v5854
    %v5856 = vpop.xlane.xlu0 %5855
    %v5857 = vsub.f32 %v5851, %v5856
    %v5858 = vmul.f32 %v5857, 1.442695
    %v5859 = vpow.pop %v5858
    %v5860 = vsel %vm1154, %v5859, 0.0
    %5861 = vadd.xlane.f32.xlu0 %v5860
    %v5862 = vpop.xlane.xlu0 %5861
    %v5863 = vrcp.pop %v5862
    %v5864 = vmul.f32 %v5859, %v5863
    %v5866 = vsel %vm1154, %v5864, 0
    %5868 = vmatprep.subr.mxu0 0.0
    %5869 = vmatpush1.msra.mxu0 %v4103
    %5870 = vmatprep.subr.mxu0 0.0
    %5871 = vmatpush1.msra.mxu0 0.0
    %5872 = vmatprep.subr.mxu0 0.0
    %5873 = vmatpush1.msra.mxu0 0.0
    %5874 = vmatprep.subr.mxu0 0.0
    %5875 = vmatpush1.msra.mxu0 0.0
    %5876 = vmatprep.subr.mxu0 0.0
    %5877 = vmatpush1.msra.mxu0 0.0
    %5878 = vmatprep.subr.mxu0 0.0
    %5879 = vmatpush1.msra.mxu0 0.0
    %5880 = vmatprep.subr.mxu0 0.0
    %5881 = vmatpush1.msra.mxu0 0.0
    %5882 = vmatprep.subr.mxu0 0.0
    %5883 = vmatpush1.msra.mxu0 0.0
    %5884 = vmatprep.subr.mxu0 0.0
    %5885 = vmatpush1.msra.mxu0 0.0
    %5886 = vmatprep.subr.mxu0 0.0
    %5887 = vmatpush1.msra.mxu0 0.0
    %5888 = vmatprep.subr.mxu0 0.0
    %5889 = vmatpush1.msra.mxu0 0.0
    %5890 = vmatprep.subr.mxu0 0.0
    %5891 = vmatpush1.msra.mxu0 0.0
    %5892 = vmatprep.subr.mxu0 0.0
    %5893 = vmatpush1.msra.mxu0 0.0
    %5894 = vmatprep.subr.mxu0 0.0
    %5895 = vmatpush1.msra.mxu0 0.0
    %5896 = vmatprep.subr.mxu0 0.0
    %5897 = vmatpush1.msra.mxu0 0.0
    %5898 = vmatprep.subr.mxu0 0.0
    %5899 = vmatpush1.msra.mxu0 0.0
    %5900 = vmatprep.subr.mxu0 0.0
    %5901 = vmatpush1.msra.mxu0 0.0
    %5902 = vmatprep.subr.mxu0 0.0
    %5903 = vmatpush1.msra.mxu0 0.0
    %5904 = vmatprep.subr.mxu0 0.0
    %5905 = vmatpush1.msra.mxu0 0.0
    %5906 = vmatprep.subr.mxu0 0.0
    %5907 = vmatpush1.msra.mxu0 0.0
    %5908 = vmatprep.subr.mxu0 0.0
    %5909 = vmatpush1.msra.mxu0 0.0
    %5910 = vmatprep.subr.mxu0 0.0
    %5911 = vmatpush1.msra.mxu0 0.0
    %5912 = vmatprep.subr.mxu0 0.0
    %5913 = vmatpush1.msra.mxu0 0.0
    %5914 = vmatprep.subr.mxu0 0.0
    %5915 = vmatpush1.msra.mxu0 0.0
    %5916 = vmatprep.subr.mxu0 0.0
    %5917 = vmatpush1.msra.mxu0 0.0
    %5918 = vmatprep.subr.mxu0 0.0
    %5919 = vmatpush1.msra.mxu0 0.0
    %5920 = vmatprep.subr.mxu0 0.0
    %5921 = vmatpush1.msra.mxu0 0.0
    %5922 = vmatprep.subr.mxu0 0.0
    %5923 = vmatpush1.msra.mxu0 0.0
    %5924 = vmatprep.subr.mxu0 0.0
    %5925 = vmatpush1.msra.mxu0 0.0
    %5926 = vmatprep.subr.mxu0 0.0
    %5927 = vmatpush1.msra.mxu0 0.0
    %5928 = vmatprep.subr.mxu0 0.0
    %5929 = vmatpush1.msra.mxu0 0.0
    %5930 = vmatprep.subr.mxu0 0.0
    %5931 = vmatpush1.msra.mxu0 0.0
    %5932 = vmatprep.mubr.f32.mxu0 0.0
    %5933 = vmatmul.mubr.f32.gmra.mrb[0].mxu0 %v5866
    %v5934 = vpop.f32.mrb[0].mxu0
    %v5935 = vadd.f32 0.0, %v5934
    %v5936 = vpop.f32.mrb[0].mxu0
    %5937 = vdwg.mxu0
    %v5939 = vsel %vm1154, %v5935, 0
    %5941 = vmatprep.subr.mxu0 0.0
    %5942 = vmatpush1.msra.mxu0 %v5001
    %5943 = vmatprep.subr.mxu0 0.0
    %5944 = vmatpush1.msra.mxu0 0.0
    %5945 = vmatprep.subr.mxu0 0.0
    %5946 = vmatpush1.msra.mxu0 0.0
    %5947 = vmatprep.subr.mxu0 0.0
    %5948 = vmatpush1.msra.mxu0 0.0
    %5949 = vmatprep.subr.mxu0 0.0
    %5950 = vmatpush1.msra.mxu0 0.0
    %5951 = vmatprep.subr.mxu0 0.0
    %5952 = vmatpush1.msra.mxu0 0.0
    %5953 = vmatprep.subr.mxu0 0.0
    %5954 = vmatpush1.msra.mxu0 0.0
    %5955 = vmatprep.subr.mxu0 0.0
    %5956 = vmatpush1.msra.mxu0 0.0
    %5957 = vmatprep.subr.mxu0 0.0
    %5958 = vmatpush1.msra.mxu0 0.0
    %5959 = vmatprep.subr.mxu0 0.0
    %5960 = vmatpush1.msra.mxu0 0.0
    %5961 = vmatprep.subr.mxu0 0.0
    %5962 = vmatpush1.msra.mxu0 0.0
    %5963 = vmatprep.subr.mxu0 0.0
    %5964 = vmatpush1.msra.mxu0 0.0
    %5965 = vmatprep.subr.mxu0 0.0
    %5966 = vmatpush1.msra.mxu0 0.0
    %5967 = vmatprep.subr.mxu0 0.0
    %5968 = vmatpush1.msra.mxu0 0.0
    %5969 = vmatprep.subr.mxu0 0.0
    %5970 = vmatpush1.msra.mxu0 0.0
    %5971 = vmatprep.subr.mxu0 0.0
    %5972 = vmatpush1.msra.mxu0 0.0
    %5973 = vmatprep.subr.mxu0 0.0
    %5974 = vmatpush1.msra.mxu0 0.0
    %5975 = vmatprep.subr.mxu0 0.0
    %5976 = vmatpush1.msra.mxu0 0.0
    %5977 = vmatprep.subr.mxu0 0.0
    %5978 = vmatpush1.msra.mxu0 0.0
    %5979 = vmatprep.subr.mxu0 0.0
    %5980 = vmatpush1.msra.mxu0 0.0
    %5981 = vmatprep.subr.mxu0 0.0
    %5982 = vmatpush1.msra.mxu0 0.0
    %5983 = vmatprep.subr.mxu0 0.0
    %5984 = vmatpush1.msra.mxu0 0.0
    %5985 = vmatprep.subr.mxu0 0.0
    %5986 = vmatpush1.msra.mxu0 0.0
    %5987 = vmatprep.subr.mxu0 0.0
    %5988 = vmatpush1.msra.mxu0 0.0
    %5989 = vmatprep.subr.mxu0 0.0
    %5990 = vmatpush1.msra.mxu0 0.0
    %5991 = vmatprep.subr.mxu0 0.0
    %5992 = vmatpush1.msra.mxu0 0.0
    %5993 = vmatprep.subr.mxu0 0.0
    %5994 = vmatpush1.msra.mxu0 0.0
    %5995 = vmatprep.subr.mxu0 0.0
    %5996 = vmatpush1.msra.mxu0 0.0
    %5997 = vmatprep.subr.mxu0 0.0
    %5998 = vmatpush1.msra.mxu0 0.0
    %5999 = vmatprep.subr.mxu0 0.0
    %6000 = vmatpush1.msra.mxu0 0.0
    %6001 = vmatprep.subr.mxu0 0.0
    %6002 = vmatpush1.msra.mxu0 0.0
    %6003 = vmatprep.subr.mxu0 0.0
    %6004 = vmatpush1.msra.mxu0 0.0
    %6005 = vmatprep.mubr.f32.mxu0 0.0
    %6006 = vmatmul.mubr.f32.gmra.mrb[0].mxu0 %v5939
    %v6007 = vpop.f32.mrb[0].mxu0
    %v6008 = vadd.f32 0.0, %v6007
    %v6009 = vpop.f32.mrb[0].mxu0
    %6010 = vdwg.mxu0
    %v6011 = vadd.f32 %v5775, %v6008
    %v6013 = vsel %vm1154, %v4191, 0
    %v6016 = vsel %vm1154, %v4279, 0
    %6018 = vmatprep.subr.mxu0 0.0
    %6019 = vmatpush1.xpose.msra.mxu0 %v6016
    %6020 = vmatprep.subr.mxu0 0.0
    %6021 = vmatpush1.xpose.msra.mxu0 0.0
    %6022 = vmatprep.subr.mxu0 0.0
    %6023 = vmatpush1.xpose.msra.mxu0 0.0
    %6024 = vmatprep.subr.mxu0 0.0
    %6025 = vmatpush1.xpose.msra.mxu0 0.0
    %6026 = vmatprep.subr.mxu0 0.0
    %6027 = vmatpush1.xpose.msra.mxu0 0.0
    %6028 = vmatprep.subr.mxu0 0.0
    %6029 = vmatpush1.xpose.msra.mxu0 0.0
    %6030 = vmatprep.subr.mxu0 0.0
    %6031 = vmatpush1.xpose.msra.mxu0 0.0
    %6032 = vmatprep.subr.mxu0 0.0
    %6033 = vmatpush1.xpose.msra.mxu0 0.0
    %6034 = vmatprep.subr.mxu0 0.0
    %6035 = vmatpush1.xpose.msra.mxu0 0.0
    %6036 = vmatprep.subr.mxu0 0.0
    %6037 = vmatpush1.xpose.msra.mxu0 0.0
    %6038 = vmatprep.subr.mxu0 0.0
    %6039 = vmatpush1.xpose.msra.mxu0 0.0
    %6040 = vmatprep.subr.mxu0 0.0
    %6041 = vmatpush1.xpose.msra.mxu0 0.0
    %6042 = vmatprep.subr.mxu0 0.0
    %6043 = vmatpush1.xpose.msra.mxu0 0.0
    %6044 = vmatprep.subr.mxu0 0.0
    %6045 = vmatpush1.xpose.msra.mxu0 0.0
    %6046 = vmatprep.subr.mxu0 0.0
    %6047 = vmatpush1.xpose.msra.mxu0 0.0
    %6048 = vmatprep.subr.mxu0 0.0
    %6049 = vmatpush1.xpose.msra.mxu0 0.0
    %6050 = vmatprep.subr.mxu0 0.0
    %6051 = vmatpush1.xpose.msra.mxu0 0.0
    %6052 = vmatprep.subr.mxu0 0.0
    %6053 = vmatpush1.xpose.msra.mxu0 0.0
    %6054 = vmatprep.subr.mxu0 0.0
    %6055 = vmatpush1.xpose.msra.mxu0 0.0
    %6056 = vmatprep.subr.mxu0 0.0
    %6057 = vmatpush1.xpose.msra.mxu0 0.0
    %6058 = vmatprep.subr.mxu0 0.0
    %6059 = vmatpush1.xpose.msra.mxu0 0.0
    %6060 = vmatprep.subr.mxu0 0.0
    %6061 = vmatpush1.xpose.msra.mxu0 0.0
    %6062 = vmatprep.subr.mxu0 0.0
    %6063 = vmatpush1.xpose.msra.mxu0 0.0
    %6064 = vmatprep.subr.mxu0 0.0
    %6065 = vmatpush1.xpose.msra.mxu0 0.0
    %6066 = vmatprep.subr.mxu0 0.0
    %6067 = vmatpush1.xpose.msra.mxu0 0.0
    %6068 = vmatprep.subr.mxu0 0.0
    %6069 = vmatpush1.xpose.msra.mxu0 0.0
    %6070 = vmatprep.subr.mxu0 0.0
    %6071 = vmatpush1.xpose.msra.mxu0 0.0
    %6072 = vmatprep.subr.mxu0 0.0
    %6073 = vmatpush1.xpose.msra.mxu0 0.0
    %6074 = vmatprep.subr.mxu0 0.0
    %6075 = vmatpush1.xpose.msra.mxu0 0.0
    %6076 = vmatprep.subr.mxu0 0.0
    %6077 = vmatpush1.xpose.msra.mxu0 0.0
    %6078 = vmatprep.subr.mxu0 0.0
    %6079 = vmatpush1.xpose.msra.mxu0 0.0
    %6080 = vmatprep.subr.mxu0 0.0
    %6081 = vmatpush1.xpose.msra.mxu0 0.0
    %6082 = vmatprep.mubr.f32.mxu0 0.0
    %6083 = vmatmul.mubr.f32.gmra.mrb[0].mxu0 %v6013
    %v6084 = vpop.f32.mrb[0].mxu0
    %v6085 = vadd.f32 %v51, %v6084
    %v6086 = vpop.f32.mrb[0].mxu0
    %6087 = vdwg.mxu0
    %v6088 = vsel %vm1154, %v6085, -inf
    %6089 = vmax.xlane.f32.xlu0 %v6088
    %v6090 = vpop.xlane.xlu0 %6089
    %v6091 = vsub.f32 %v6085, %v6090
    %v6092 = vmul.f32 %v6091, 1.442695
    %v6093 = vpow.pop %v6092
    %v6094 = vsel %vm1154, %v6093, 0.0
    %6095 = vadd.xlane.f32.xlu0 %v6094
    %v6096 = vpop.xlane.xlu0 %6095
    %v6097 = vrcp.pop %v6096
    %v6098 = vmul.f32 %v6093, %v6097
    %v6100 = vsel %vm1154, %v6098, 0
    %6102 = vmatprep.subr.mxu0 0.0
    %6103 = vmatpush1.msra.mxu0 %v4367
    %6104 = vmatprep.subr.mxu0 0.0
    %6105 = vmatpush1.msra.mxu0 0.0
    %6106 = vmatprep.subr.mxu0 0.0
    %6107 = vmatpush1.msra.mxu0 0.0
    %6108 = vmatprep.subr.mxu0 0.0
    %6109 = vmatpush1.msra.mxu0 0.0
    %6110 = vmatprep.subr.mxu0 0.0
    %6111 = vmatpush1.msra.mxu0 0.0
    %6112 = vmatprep.subr.mxu0 0.0
    %6113 = vmatpush1.msra.mxu0 0.0
    %6114 = vmatprep.subr.mxu0 0.0
    %6115 = vmatpush1.msra.mxu0 0.0
    %6116 = vmatprep.subr.mxu0 0.0
    %6117 = vmatpush1.msra.mxu0 0.0
    %6118 = vmatprep.subr.mxu0 0.0
    %6119 = vmatpush1.msra.mxu0 0.0
    %6120 = vmatprep.subr.mxu0 0.0
    %6121 = vmatpush1.msra.mxu0 0.0
    %6122 = vmatprep.subr.mxu0 0.0
    %6123 = vmatpush1.msra.mxu0 0.0
    %6124 = vmatprep.subr.mxu0 0.0
    %6125 = vmatpush1.msra.mxu0 0.0
    %6126 = vmatprep.subr.mxu0 0.0
    %6127 = vmatpush1.msra.mxu0 0.0
    %6128 = vmatprep.subr.mxu0 0.0
    %6129 = vmatpush1.msra.mxu0 0.0
    %6130 = vmatprep.subr.mxu0 0.0
    %6131 = vmatpush1.msra.mxu0 0.0
    %6132 = vmatprep.subr.mxu0 0.0
    %6133 = vmatpush1.msra.mxu0 0.0
    %6134 = vmatprep.subr.mxu0 0.0
    %6135 = vmatpush1.msra.mxu0 0.0
    %6136 = vmatprep.subr.mxu0 0.0
    %6137 = vmatpush1.msra.mxu0 0.0
    %6138 = vmatprep.subr.mxu0 0.0
    %6139 = vmatpush1.msra.mxu0 0.0
    %6140 = vmatprep.subr.mxu0 0.0
    %6141 = vmatpush1.msra.mxu0 0.0
    %6142 = vmatprep.subr.mxu0 0.0
    %6143 = vmatpush1.msra.mxu0 0.0
    %6144 = vmatprep.subr.mxu0 0.0
    %6145 = vmatpush1.msra.mxu0 0.0
    %6146 = vmatprep.subr.mxu0 0.0
    %6147 = vmatpush1.msra.mxu0 0.0
    %6148 = vmatprep.subr.mxu0 0.0
    %6149 = vmatpush1.msra.mxu0 0.0
    %6150 = vmatprep.subr.mxu0 0.0
    %6151 = vmatpush1.msra.mxu0 0.0
    %6152 = vmatprep.subr.mxu0 0.0
    %6153 = vmatpush1.msra.mxu0 0.0
    %6154 = vmatprep.subr.mxu0 0.0
    %6155 = vmatpush1.msra.mxu0 0.0
    %6156 = vmatprep.subr.mxu0 0.0
    %6157 = vmatpush1.msra.mxu0 0.0
    %6158 = vmatprep.subr.mxu0 0.0
    %6159 = vmatpush1.msra.mxu0 0.0
    %6160 = vmatprep.subr.mxu0 0.0
    %6161 = vmatpush1.msra.mxu0 0.0
    %6162 = vmatprep.subr.mxu0 0.0
    %6163 = vmatpush1.msra.mxu0 0.0
    %6164 = vmatprep.subr.mxu0 0.0
    %6165 = vmatpush1.msra.mxu0 0.0
    %6166 = vmatprep.mubr.f32.mxu0 0.0
    %6167 = vmatmul.mubr.f32.gmra.mrb[0].mxu0 %v6100
    %v6168 = vpop.f32.mrb[0].mxu0
    %v6169 = vadd.f32 0.0, %v6168
    %v6170 = vpop.f32.mrb[0].mxu0
    %6171 = vdwg.mxu0
    %v6173 = vsel %vm1154, %v6169, 0
    %6175 = vmatprep.subr.mxu0 0.0
    %6176 = vmatpush1.msra.mxu0 %v5237
    %6177 = vmatprep.subr.mxu0 0.0
    %6178 = vmatpush1.msra.mxu0 0.0
    %6179 = vmatprep.subr.mxu0 0.0
    %6180 = vmatpush1.msra.mxu0 0.0
    %6181 = vmatprep.subr.mxu0 0.0
    %6182 = vmatpush1.msra.mxu0 0.0
    %6183 = vmatprep.subr.mxu0 0.0
    %6184 = vmatpush1.msra.mxu0 0.0
    %6185 = vmatprep.subr.mxu0 0.0
    %6186 = vmatpush1.msra.mxu0 0.0
    %6187 = vmatprep.subr.mxu0 0.0
    %6188 = vmatpush1.msra.mxu0 0.0
    %6189 = vmatprep.subr.mxu0 0.0
    %6190 = vmatpush1.msra.mxu0 0.0
    %6191 = vmatprep.subr.mxu0 0.0
    %6192 = vmatpush1.msra.mxu0 0.0
    %6193 = vmatprep.subr.mxu0 0.0
    %6194 = vmatpush1.msra.mxu0 0.0
    %6195 = vmatprep.subr.mxu0 0.0
    %6196 = vmatpush1.msra.mxu0 0.0
    %6197 = vmatprep.subr.mxu0 0.0
    %6198 = vmatpush1.msra.mxu0 0.0
    %6199 = vmatprep.subr.mxu0 0.0
    %6200 = vmatpush1.msra.mxu0 0.0
    %6201 = vmatprep.subr.mxu0 0.0
    %6202 = vmatpush1.msra.mxu0 0.0
    %6203 = vmatprep.subr.mxu0 0.0
    %6204 = vmatpush1.msra.mxu0 0.0
    %6205 = vmatprep.subr.mxu0 0.0
    %6206 = vmatpush1.msra.mxu0 0.0
    %6207 = vmatprep.subr.mxu0 0.0
    %6208 = vmatpush1.msra.mxu0 0.0
    %6209 = vmatprep.subr.mxu0 0.0
    %6210 = vmatpush1.msra.mxu0 0.0
    %6211 = vmatprep.subr.mxu0 0.0
    %6212 = vmatpush1.msra.mxu0 0.0
    %6213 = vmatprep.subr.mxu0 0.0
    %6214 = vmatpush1.msra.mxu0 0.0
    %6215 = vmatprep.subr.mxu0 0.0
    %6216 = vmatpush1.msra.mxu0 0.0
    %6217 = vmatprep.subr.mxu0 0.0
    %6218 = vmatpush1.msra.mxu0 0.0
    %6219 = vmatprep.subr.mxu0 0.0
    %6220 = vmatpush1.msra.mxu0 0.0
    %6221 = vmatprep.subr.mxu0 0.0
    %6222 = vmatpush1.msra.mxu0 0.0
    %6223 = vmatprep.subr.mxu0 0.0
    %6224 = vmatpush1.msra.mxu0 0.0
    %6225 = vmatprep.subr.mxu0 0.0
    %6226 = vmatpush1.msra.mxu0 0.0
    %6227 = vmatprep.subr.mxu0 0.0
    %6228 = vmatpush1.msra.mxu0 0.0
    %6229 = vmatprep.subr.mxu0 0.0
    %6230 = vmatpush1.msra.mxu0 0.0
    %6231 = vmatprep.subr.mxu0 0.0
    %6232 = vmatpush1.msra.mxu0 0.0
    %6233 = vmatprep.subr.mxu0 0.0
    %6234 = vmatpush1.msra.mxu0 0.0
    %6235 = vmatprep.subr.mxu0 0.0
    %6236 = vmatpush1.msra.mxu0 0.0
    %6237 = vmatprep.subr.mxu0 0.0
    %6238 = vmatpush1.msra.mxu0 0.0
    %6239 = vmatprep.mubr.f32.mxu0 0.0
    %6240 = vmatmul.mubr.f32.gmra.mrb[0].mxu0 %v6173
    %v6241 = vpop.f32.mrb[0].mxu0
    %v6242 = vadd.f32 0.0, %v6241
    %v6243 = vpop.f32.mrb[0].mxu0
    %6244 = vdwg.mxu0
    %v6245 = vadd.f32 %v6011, %v6242
    %s6246 = scalar_lea.vmem %s7, 1
    %v6247 = vld [vmem:[%s6246] sm:$0x1]
    %v6248 = vadd.f32 %v3266, %v5311
    %v6249 = vadd.f32 %v3267, %v6245
    %v6251 = vlaneseq
    %v6252 = vshrl.u32 %v6251, 7
    %v6253 = vsub.s32 0, %v6252
    %v6254 = vrot.slane %v6247, %v6253
    %v6256 = vadd.f32 %v6248, %v6254
    %v6257 = vadd.f32 %v6249, %v6254
    %s6258 = scalar_lea.vmem %s8, 6
    %v6259 = vld [vmem:[%s6258] sm:$0x3]
    %v6260 = vsel %vm54, %v6256, 0.0
    %6261 = vadd.xlane.f32.xlu0 %v6260
    %v6262 = vpop.xlane.xlu0 %6261
    %v6263 = vsel %vm54, %v6257, 0.0
    %6264 = vadd.xlane.f32.xlu0 %v6263
    %v6265 = vpop.xlane.xlu0 %6264
    %v6266 = vmul.f32 %v6262, %v61
    %v6267 = vmul.f32 %v6265, %v61
    %v6268 = vsub.f32 %v6256, %v6266
    %v6269 = vsub.f32 %v6257, %v6267
    %v6270 = vmul.f32 %v6268, %v6268
    %v6271 = vmul.f32 %v6269, %v6269
    %v6272 = vsel %vm54, %v6270, 0.0
    %6273 = vadd.xlane.f32.xlu0 %v6272
    %v6274 = vpop.xlane.xlu0 %6273
    %v6275 = vsel %vm54, %v6271, 0.0
    %6276 = vadd.xlane.f32.xlu0 %v6275
    %v6277 = vpop.xlane.xlu0 %6276
    %v6278 = vmul.f32 %v6274, %v61
    %v6279 = vmul.f32 %v6277, %v61
    %v6280 = vadd.f32 %v6278, 1e-05
    %v6281 = vadd.f32 %v6279, 1e-05
    %v6282 = vrsqrt.pop %v6280
    %v6283 = vrsqrt.pop %v6281
    %v6284 = vmul.f32 %v6268, %v6282
    %v6285 = vmul.f32 %v6269, %v6283
    %v6286 = vlaneseq
    %v6287 = vshrl.u32 %v6286, 7
    %v6288 = vsub.s32 0, %v6287
    %v6289 = vrot.slane %v6259, %v6288
    %v6290 = vmul.f32 %v6284, %v6289
    %v6291 = vmul.f32 %v6285, %v6289
    %v6292 = vlaneseq
    %v6293 = vshrl.u32 %v6292, 7
    %v6294 = vsub.s32 1, %v6293
    %v6295 = vrot.slane %v6259, %v6294
    %v6296 = vadd.f32 %v6290, %v6295
    %v6297 = vadd.f32 %v6291, %v6295
    %s6298 = scalar_lea.vmem %s5, 32
    %v6299 = vld [vmem:[%s6298] sm:$0xff]
    %v6300 = vld [vmem:[%s6298 + $0x8] sm:$0xff]
    %v6301 = vld [vmem:[%s6298 + $0x10] sm:$0xff]
    %v6302 = vld [vmem:[%s6298 + $0x18] sm:$0xff]
    %6303 = vrot.lane.b32.xlu0 %v6254, 96
    %v6304 = vpop.permute.xlu0 %6303
    %v6307 = vsel %vm54, %v6296, 0
    %v6310 = vsel %vm54, %v6297, 0
    %6312 = vmatprep.subr.mxu0 0.0
    %6313 = vmatpush1.msra.mxu0 %v6299
    %6314 = vmatprep.subr.mxu0 0.0
    %6315 = vmatpush1.msra.mxu0 %v6300
    %6316 = vmatprep.subr.mxu0 0.0
    %6317 = vmatpush1.msra.mxu0 %v6301
    %6318 = vmatprep.subr.mxu0 0.0
    %6319 = vmatpush1.msra.mxu0 %v6302
    %6320 = vmatprep.subr.mxu0 0.0
    %6321 = vmatpush1.msra.mxu0 0.0
    %6322 = vmatprep.subr.mxu0 0.0
    %6323 = vmatpush1.msra.mxu0 0.0
    %6324 = vmatprep.subr.mxu0 0.0
    %6325 = vmatpush1.msra.mxu0 0.0
    %6326 = vmatprep.subr.mxu0 0.0
    %6327 = vmatpush1.msra.mxu0 0.0
    %6328 = vmatprep.subr.mxu0 0.0
    %6329 = vmatpush1.msra.mxu0 0.0
    %6330 = vmatprep.subr.mxu0 0.0
    %6331 = vmatpush1.msra.mxu0 0.0
    %6332 = vmatprep.subr.mxu0 0.0
    %6333 = vmatpush1.msra.mxu0 0.0
    %6334 = vmatprep.subr.mxu0 0.0
    %6335 = vmatpush1.msra.mxu0 0.0
    %6336 = vmatprep.subr.mxu0 0.0
    %6337 = vmatpush1.msra.mxu0 0.0
    %6338 = vmatprep.subr.mxu0 0.0
    %6339 = vmatpush1.msra.mxu0 0.0
    %6340 = vmatprep.subr.mxu0 0.0
    %6341 = vmatpush1.msra.mxu0 0.0
    %6342 = vmatprep.subr.mxu0 0.0
    %6343 = vmatpush1.msra.mxu0 0.0
    %6344 = vmatprep.subr.mxu0 0.0
    %6345 = vmatpush1.msra.mxu0 0.0
    %6346 = vmatprep.subr.mxu0 0.0
    %6347 = vmatpush1.msra.mxu0 0.0
    %6348 = vmatprep.subr.mxu0 0.0
    %6349 = vmatpush1.msra.mxu0 0.0
    %6350 = vmatprep.subr.mxu0 0.0
    %6351 = vmatpush1.msra.mxu0 0.0
    %6352 = vmatprep.subr.mxu0 0.0
    %6353 = vmatpush1.msra.mxu0 0.0
    %6354 = vmatprep.subr.mxu0 0.0
    %6355 = vmatpush1.msra.mxu0 0.0
    %6356 = vmatprep.subr.mxu0 0.0
    %6357 = vmatpush1.msra.mxu0 0.0
    %6358 = vmatprep.subr.mxu0 0.0
    %6359 = vmatpush1.msra.mxu0 0.0
    %6360 = vmatprep.subr.mxu0 0.0
    %6361 = vmatpush1.msra.mxu0 0.0
    %6362 = vmatprep.subr.mxu0 0.0
    %6363 = vmatpush1.msra.mxu0 0.0
    %6364 = vmatprep.subr.mxu0 0.0
    %6365 = vmatpush1.msra.mxu0 0.0
    %6366 = vmatprep.subr.mxu0 0.0
    %6367 = vmatpush1.msra.mxu0 0.0
    %6368 = vmatprep.subr.mxu0 0.0
    %6369 = vmatpush1.msra.mxu0 0.0
    %6370 = vmatprep.subr.mxu0 0.0
    %6371 = vmatpush1.msra.mxu0 0.0
    %6372 = vmatprep.subr.mxu0 0.0
    %6373 = vmatpush1.msra.mxu0 0.0
    %6374 = vmatprep.subr.mxu0 0.0
    %6375 = vmatpush1.msra.mxu0 0.0
    %6376 = vmatprep.mubr.f32.mxu0 0.0
    %6377 = vmatmul.mubr.f32.gmra.mrb[0].mxu0 %v6307
    %v6378 = vpop.f32.mrb[0].mxu0
    %v6379 = vadd.f32 %v6304, %v6378
    %v6380 = vpop.f32.mrb[0].mxu0
    %6381 = vmatprep.mubr.f32.mxu0 0.0
    %6382 = vmatmul.mubr.f32.gmra.mrb[0].mxu0 %v6310
    %v6383 = vpop.f32.mrb[0].mxu0
    %v6384 = vadd.f32 %v6304, %v6383
    %v6385 = vpop.f32.mrb[0].mxu0
    %6386 = vdwg.mxu0
    %v6387 = vmax.f32 %v6379, 0.0
    %v6388 = vmax.f32 %v6384, 0.0
    %s6389 = scalar_lea.vmem %s6, 64
    %v6390 = vld [vmem:[%s6389] sm:$0xff]
    %v6391 = vld [vmem:[%s6389 + $0x8] sm:$0xff]
    %v6392 = vld [vmem:[%s6389 + $0x10] sm:$0xff]
    %v6393 = vld [vmem:[%s6389 + $0x18] sm:$0xff]
    %v6394 = vld [vmem:[%s6389 + $0x20] sm:$0xff]
    %v6395 = vld [vmem:[%s6389 + $0x28] sm:$0xff]
    %v6396 = vld [vmem:[%s6389 + $0x30] sm:$0xff]
    %v6397 = vld [vmem:[%s6389 + $0x38] sm:$0xff]
    %v6399 = vsel %vm3179, %v6387, 0
    %v6402 = vsel %vm3179, %v6388, 0
    %6404 = vmatprep.subr.mxu0 0.0
    %6405 = vmatpush1.msra.mxu0 %v6390
    %6406 = vmatprep.subr.mxu0 0.0
    %6407 = vmatpush1.msra.mxu0 %v6391
    %6408 = vmatprep.subr.mxu0 0.0
    %6409 = vmatpush1.msra.mxu0 %v6392
    %6410 = vmatprep.subr.mxu0 0.0
    %6411 = vmatpush1.msra.mxu0 %v6393
    %6412 = vmatprep.subr.mxu0 0.0
    %6413 = vmatpush1.msra.mxu0 %v6394
    %6414 = vmatprep.subr.mxu0 0.0
    %6415 = vmatpush1.msra.mxu0 %v6395
    %6416 = vmatprep.subr.mxu0 0.0
    %6417 = vmatpush1.msra.mxu0 %v6396
    %6418 = vmatprep.subr.mxu0 0.0
    %6419 = vmatpush1.msra.mxu0 %v6397
    %6420 = vmatprep.subr.mxu0 0.0
    %6421 = vmatpush1.msra.mxu0 0.0
    %6422 = vmatprep.subr.mxu0 0.0
    %6423 = vmatpush1.msra.mxu0 0.0
    %6424 = vmatprep.subr.mxu0 0.0
    %6425 = vmatpush1.msra.mxu0 0.0
    %6426 = vmatprep.subr.mxu0 0.0
    %6427 = vmatpush1.msra.mxu0 0.0
    %6428 = vmatprep.subr.mxu0 0.0
    %6429 = vmatpush1.msra.mxu0 0.0
    %6430 = vmatprep.subr.mxu0 0.0
    %6431 = vmatpush1.msra.mxu0 0.0
    %6432 = vmatprep.subr.mxu0 0.0
    %6433 = vmatpush1.msra.mxu0 0.0
    %6434 = vmatprep.subr.mxu0 0.0
    %6435 = vmatpush1.msra.mxu0 0.0
    %6436 = vmatprep.subr.mxu0 0.0
    %6437 = vmatpush1.msra.mxu0 0.0
    %6438 = vmatprep.subr.mxu0 0.0
    %6439 = vmatpush1.msra.mxu0 0.0
    %6440 = vmatprep.subr.mxu0 0.0
    %6441 = vmatpush1.msra.mxu0 0.0
    %6442 = vmatprep.subr.mxu0 0.0
    %6443 = vmatpush1.msra.mxu0 0.0
    %6444 = vmatprep.subr.mxu0 0.0
    %6445 = vmatpush1.msra.mxu0 0.0
    %6446 = vmatprep.subr.mxu0 0.0
    %6447 = vmatpush1.msra.mxu0 0.0
    %6448 = vmatprep.subr.mxu0 0.0
    %6449 = vmatpush1.msra.mxu0 0.0
    %6450 = vmatprep.subr.mxu0 0.0
    %6451 = vmatpush1.msra.mxu0 0.0
    %6452 = vmatprep.subr.mxu0 0.0
    %6453 = vmatpush1.msra.mxu0 0.0
    %6454 = vmatprep.subr.mxu0 0.0
    %6455 = vmatpush1.msra.mxu0 0.0
    %6456 = vmatprep.subr.mxu0 0.0
    %6457 = vmatpush1.msra.mxu0 0.0
    %6458 = vmatprep.subr.mxu0 0.0
    %6459 = vmatpush1.msra.mxu0 0.0
    %6460 = vmatprep.subr.mxu0 0.0
    %6461 = vmatpush1.msra.mxu0 0.0
    %6462 = vmatprep.subr.mxu0 0.0
    %6463 = vmatpush1.msra.mxu0 0.0
    %6464 = vmatprep.subr.mxu0 0.0
    %6465 = vmatpush1.msra.mxu0 0.0
    %6466 = vmatprep.subr.mxu0 0.0
    %6467 = vmatpush1.msra.mxu0 0.0
    %6468 = vmatprep.mubr.f32.mxu0 0.0
    %6469 = vmatmul.mubr.f32.gmra.mrb[0].mxu0 %v6399
    %v6470 = vpop.f32.mrb[0].mxu0
    %v6471 = vadd.f32 0.0, %v6470
    %v6472 = vpop.f32.mrb[0].mxu0
    %6473 = vmatprep.mubr.f32.mxu0 0.0
    %6474 = vmatmul.mubr.f32.gmra.mrb[0].mxu0 %v6402
    %v6475 = vpop.f32.mrb[0].mxu0
    %v6476 = vadd.f32 0.0, %v6475
    %v6477 = vpop.f32.mrb[0].mxu0
    %6478 = vdwg.mxu0
    %v6479 = vadd.f32 %v6256, %v6471
    %v6480 = vadd.f32 %v6257, %v6476
    %6481 = vrot.lane.b32.xlu0 %v6254, 32
    %v6482 = vpop.permute.xlu0 %6481
    %v6484 = vadd.f32 %v6479, %v6482
    %v6485 = vadd.f32 %v6480, %v6482
    %s6486 = scalar_lea.vmem %s8, 8
    %v6487 = vld [vmem:[%s6486] sm:$0x3]
    %v6488 = vsel %vm54, %v6484, 0.0
    %6489 = vadd.xlane.f32.xlu0 %v6488
    %v6490 = vpop.xlane.xlu0 %6489
    %v6491 = vsel %vm54, %v6485, 0.0
    %6492 = vadd.xlane.f32.xlu0 %v6491
    %v6493 = vpop.xlane.xlu0 %6492
    %v6494 = vmul.f32 %v6490, %v61
    %v6495 = vmul.f32 %v6493, %v61
    %v6496 = vsub.f32 %v6484, %v6494
    %v6497 = vsub.f32 %v6485, %v6495
    %v6498 = vmul.f32 %v6496, %v6496
    %v6499 = vmul.f32 %v6497, %v6497
    %v6500 = vsel %vm54, %v6498, 0.0
    %6501 = vadd.xlane.f32.xlu0 %v6500
    %v6502 = vpop.xlane.xlu0 %6501
    %v6503 = vsel %vm54, %v6499, 0.0
    %6504 = vadd.xlane.f32.xlu0 %v6503
    %v6505 = vpop.xlane.xlu0 %6504
    %v6506 = vmul.f32 %v6502, %v61
    %v6507 = vmul.f32 %v6505, %v61
    %v6508 = vadd.f32 %v6506, 1e-05
    %v6509 = vadd.f32 %v6507, 1e-05
    %v6510 = vrsqrt.pop %v6508
    %v6511 = vrsqrt.pop %v6509
    %v6512 = vmul.f32 %v6496, %v6510
    %v6513 = vmul.f32 %v6497, %v6511
    %v6514 = vlaneseq
    %v6515 = vshrl.u32 %v6514, 7
    %v6516 = vsub.s32 0, %v6515
    %v6517 = vrot.slane %v6487, %v6516
    %v6518 = vmul.f32 %v6512, %v6517
    %v6519 = vmul.f32 %v6513, %v6517
    %v6520 = vlaneseq
    %v6521 = vshrl.u32 %v6520, 7
    %v6522 = vsub.s32 1, %v6521
    %v6523 = vrot.slane %v6487, %v6522
    %v6524 = vadd.f32 %v6518, %v6523
    %v6525 = vadd.f32 %v6519, %v6523
    %6526 = vst.msk [vmem:[#allocation2] sm:$0xff] %vm54, %v6524
    %6527 = vst.msk [vmem:[#allocation2 + $0x8] sm:$0xff] %vm54, %v6525
    // Predicated region
    $region38: #{tpu_custom_call.1} parent=1 // pred_check
      _
    $region39: #{tpu_custom_call.1} parent=1 // pred_check_branch
      %6529 = sbr.rel (0) target = $region41
    $region40: #{tpu_custom_call.1} parent=1 // pred_region
      %s6531 = ssub.s32 256, 256
      %6532 = vsyncadd [#allocation3], %s6531
      %s6533 = sshll.u32 [#allocation2], 4
      %s6534 = int_to_ptr.vmem [resolvable:$true] %s6533
      %6539 = dma.vmem_to_hbm [thread:$0]  %s6534, 256, %s9, [#allocation3], 128, 128, 8
    $region41: #{tpu_custom_call.1} parent=1 // pred_fallthru
      _
    // Predicated region
    $region42: #{tpu_custom_call.1} parent=1 // pred_check
      _
    $region43: #{tpu_custom_call.1} parent=1 // pred_check_branch
      %6541 = sbr.rel (0) target = $region45
    $region44: #{tpu_custom_call.1} parent=1 // pred_region
      %6542 = dma.done [#allocation3], 256
    $region45: #{tpu_custom_call.1} parent=1 // pred_fallthru
      _
    %6543 = vsyncpa [#allocation3], 1

</llo_original>
